<compile_context>
chip_gen: v7x
topology: tpu7x:2x2x1
jax: 0.10.0
libtpu: 0.0.40
codegen_flags: <defaults>
</compile_context>

<pallas_src>
import jax
import jax.numpy as jnp
from jax.experimental import pallas as pl
from jax.experimental.pallas import tpu as pltpu


def _instruction_kernel(
    q_ref,          # [Bt, S, W]        bf16  question block (batch-major)
    mask_ref,       # [Bt, S]           f32   1 = valid token
    w_ih_ref,       # [4, W, H]         bf16  per-gate input weights (i, f, g, o)
    w_hh_ref,       # [4, H, H]         bf16  per-gate recurrent weights
    b_g_ref,        # [4, 1, H]         f32   per-gate bias (b_ih + b_hh)
    w_q_ref,        # [num_step, H, H]  bf16  question_linear_i weights (transposed)
    b_q_ref,        # [num_step, 1, H]  f32
    w_inst_ref,     # [H, H]            bf16  inst_ques_linear, instruction half
    w_qi_ref,       # [H, H]            bf16  inst_ques_linear, question_i half
    b_iq_ref,       # [1, H]            f32
    w_att_ref,      # [1, H]            f32   attention_linear weight
    b_att_ref,      # [1]               f32   attention_linear bias (SMEM scalar)
    inst_out_ref,   # [num_step, Bt, H] f32
    hidden_out_ref, # [Bt, H]           f32
    att_out_ref,    # [num_step, Bt, S] f32   lane-dense (S on lanes)
    gxi_ref,        # scratch [Bt, S, H] f32  precomputed input projection (gate i)
    gxf_ref,        # scratch [Bt, S, H] f32  (gate f)
    gxg_ref,        # scratch [Bt, S, H] f32  (gate g)
    gxo_ref,        # scratch [Bt, S, H] f32  (gate o)
    qtok_ref,       # scratch [Bt, S, H] f32  LSTM outputs (question_token)
):
    f32 = jnp.float32
    bf16 = jnp.bfloat16
    Bt, S, W = q_ref.shape
    H = w_hh_ref.shape[-1]
    num_step = w_q_ref.shape[0]
    gx_refs = (gxi_ref, gxf_ref, gxg_ref, gxo_ref)

    # ---- 1) Hoisted LSTM input projection: one big MXU matmul per gate ----
    q2d = q_ref[...].reshape(Bt * S, W)                               # bf16
    for g in range(4):
        proj = jnp.dot(q2d, w_ih_ref[g], preferred_element_type=f32)  # [Bt*S, H]
        gx_refs[g][...] = (proj + b_g_ref[g]).reshape(Bt, S, H)       # bias folded in

    # Hoist recurrent weights / mask loads out of the unrolled time loop.
    w_hh = [w_hh_ref[g] for g in range(4)]                            # bf16 [H, H]
    mask = mask_ref[...]                                              # [Bt, S] f32
    valid_all = mask > 0.0

    # ---- 2) masked LSTM recurrence (== pack/pad_packed_sequence semantics) ----
    # Statically unrolled over the small static S: gives the scheduler visibility
    # to hide EUP sigmoid/tanh latency under the recurrent matmul.
    # TODO(synk): for long S switch to lax.fori_loop over a time-major gx layout.
    h = jnp.zeros((Bt, H), f32)
    c = jnp.zeros((Bt, H), f32)
    for t in range(S):
        hb = h.astype(bf16)
        pre = [
            gx_refs[g][:, t:t + 1, :].reshape(Bt, H)
            + jnp.dot(hb, w_hh[g], preferred_element_type=f32)
            for g in range(4)
        ]
        i_t = jax.nn.sigmoid(pre[0])
        f_t = jax.nn.sigmoid(pre[1])
        g_t = jnp.tanh(pre[2])
        o_t = jax.nn.sigmoid(pre[3])
        c_new = f_t * c + i_t * g_t
        h_new = o_t * jnp.tanh(c_new)
        valid = valid_all[:, t:t + 1]                                 # [Bt, 1] bool
        qtok_ref[:, t:t + 1, :] = jnp.where(valid, h_new, 0.0)[:, None, :]
        c = jnp.where(valid, c_new, c)                                # freeze past seq end
        h = jnp.where(valid, h_new, h)

    hidden_out_ref[...] = h                                           # hidden at last valid step

    # ---- 3) num_step rounds of attention-based instruction decoding ----
    qtok = qtok_ref[...]          # [Bt, S, H] f32 — single hoisted, batch-tile-bounded load
    w_att = w_att_ref[...]        # [1, H]
    b_att = b_att_ref[0]          # scalar from SMEM
    hb = h.astype(bf16)
    neg_big = jnp.float32(-1e20)

    instruction = jnp.zeros((Bt, H), f32)
    for i in range(num_step):
        q_i = jnp.dot(hb, w_q_ref[i], preferred_element_type=f32) + b_q_ref[i]        # [Bt, H]
        iq = (
            jnp.dot(instruction.astype(bf16), w_inst_ref[...], preferred_element_type=f32)
            + jnp.dot(q_i.astype(bf16), w_qi_ref[...], preferred_element_type=f32)
            + b_iq_ref[...]
        )                                                                              # [Bt, H]
        v = iq * w_att                                                # fold attention_linear weight
        # Batched mat-vec contractions (over H, then S): kept on VPU/XLU — an MXU
        # form needs k=1 passes + relayouts; all temporaries are bounded by Bt*S*H.
        scores = jnp.sum(qtok * v[:, None, :], axis=-1) + b_att       # [Bt, S]
        masked = jnp.where(valid_all, scores, neg_big)
        masked = masked - jnp.max(masked, axis=-1, keepdims=True)
        e = jnp.exp(masked)
        att = e * pl.reciprocal(jnp.sum(e, axis=-1, keepdims=True), approx=True)       # softmax over S
        instruction = jnp.sum(att[:, :, None] * qtok, axis=1)         # [Bt, H]
        inst_out_ref[i] = instruction
        att_out_ref[i] = att                                          # lane-dense [Bt, S]


def instruction_forward(question, question_mask, params, *, num_step, hidden_dim,
                        batch_tile=8):
    """question: [B, S, W] f32, question_mask: [B, S] f32 (1 = valid token)."""
    B, S, W = question.shape
    H = hidden_dim
    Bt = batch_tile if (batch_tile <= B and B % batch_tile == 0) else B
    grid = (B // Bt,)

    q_bf = question.astype(jnp.bfloat16)                    # bf16 activations for the MXU
    mask = question_mask.astype(jnp.float32)

    # Per-gate LSTM weights in PyTorch gate order (i, f, g, o), transposed for x @ W.
    w_ih_g = params["w_ih"].reshape(4, H, W).transpose(0, 2, 1).astype(jnp.bfloat16)   # [4, W, H]
    w_hh_g = params["w_hh"].reshape(4, H, H).transpose(0, 2, 1).astype(jnp.bfloat16)   # [4, H, H]
    b_g = (params["b_ih"] + params["b_hh"]).reshape(4, 1, H).astype(jnp.float32)       # [4, 1, H]

    w_q = jnp.transpose(params["w_q"], (0, 2, 1)).astype(jnp.bfloat16)                 # [num_step, H, H]
    b_q = params["b_q"][:, None, :].astype(jnp.float32)                                # [num_step, 1, H]
    w_iq_t = params["w_iq"].T                                                          # [2H, H]
    w_inst = w_iq_t[:H].astype(jnp.bfloat16)                                           # [H, H]
    w_qi = w_iq_t[H:].astype(jnp.bfloat16)                                             # [H, H]
    b_iq = params["b_iq"][None, :].astype(jnp.float32)                                 # [1, H]
    w_att = params["w_att"].astype(jnp.float32)                                        # [1, H]
    b_att = params["b_att"].astype(jnp.float32)                                        # [1]

    smem = pltpu.MemorySpace.SMEM
    in_specs = [
        pl.BlockSpec((Bt, S, W), lambda b: (b, 0, 0)),                 # question (batch-major)
        pl.BlockSpec((Bt, S), lambda b: (b, 0)),                       # mask
        pl.BlockSpec((4, W, H), lambda b: (0, 0, 0)),                  # w_ih per gate
        pl.BlockSpec((4, H, H), lambda b: (0, 0, 0)),                  # w_hh per gate
        pl.BlockSpec((4, 1, H), lambda b: (0, 0, 0)),                  # lstm bias per gate
        pl.BlockSpec((num_step, H, H), lambda b: (0, 0, 0)),           # w_q
        pl.BlockSpec((num_step, 1, H), lambda b: (0, 0, 0)),           # b_q
        pl.BlockSpec((H, H), lambda b: (0, 0)),                        # w_inst
        pl.BlockSpec((H, H), lambda b: (0, 0)),                        # w_qi
        pl.BlockSpec((1, H), lambda b: (0, 0)),                        # b_iq
        pl.BlockSpec((1, H), lambda b: (0, 0)),                        # w_att
        pl.BlockSpec(memory_space=smem),                               # b_att (scalar in SMEM)
    ]
    out_specs = (
        pl.BlockSpec((num_step, Bt, H), lambda b: (0, b, 0)),
        pl.BlockSpec((Bt, H), lambda b: (b, 0)),
        pl.BlockSpec((num_step, Bt, S), lambda b: (0, b, 0)),          # lane-dense attention
    )
    out_shape = (
        jax.ShapeDtypeStruct((num_step, B, H), jnp.float32),
        jax.ShapeDtypeStruct((B, H), jnp.float32),
        jax.ShapeDtypeStruct((num_step, B, S), jnp.float32),
    )
    # Scratch is per-core and sized by the batch tile (re-derive Bt for v7x's 64 MiB VMEM).
    scratch_shapes = [pltpu.VMEM((Bt, S, H), jnp.float32) for _ in range(5)]

    inst, hidden, att = pl.pallas_call(
        _instruction_kernel,
        out_shape=out_shape,
        grid=grid,
        in_specs=in_specs,
        out_specs=out_specs,
        scratch_shapes=scratch_shapes,
        compiler_params=pltpu.CompilerParams(
            dimension_semantics=("parallel",),
            vmem_limit_bytes=32 * 1024 * 1024,
        ),
    )(q_bf, mask, w_ih_g, w_hh_g, b_g, w_q, b_q, w_inst, w_qi, b_iq, w_att, b_att)

    instructions = [inst[i] for i in range(num_step)]                  # each [B, H]
    attentions = [att[i] for i in range(num_step)]                     # each [B, S] (no transpose)
    return instructions, hidden[:, None, :], attentions                # hidden [B, 1, H]


def reference_forward(question, question_mask, params, *, num_step, hidden_dim):
    """Pure-JAX f32 reference mirroring the PyTorch forward (eval mode)."""
    B, S, W = question.shape
    H = hidden_dim
    w_ih_t = params["w_ih"].T
    w_hh_t = params["w_hh"].T
    b_lstm = params["b_ih"] + params["b_hh"]
    h = jnp.zeros((B, H), jnp.float32)
    c = jnp.zeros((B, H), jnp.float32)
    qtok = jnp.zeros((B, S, H), jnp.float32)
    for t in range(S):
        x_t = question[:, t]
        m = question_mask[:, t][:, None]
        gates = x_t @ w_ih_t + h @ w_hh_t + b_lstm
        i_g = jax.nn.sigmoid(gates[:, :H])
        f_g = jax.nn.sigmoid(gates[:, H:2 * H])
        g_g = jnp.tanh(gates[:, 2 * H:3 * H])
        o_g = jax.nn.sigmoid(gates[:, 3 * H:])
        c_new = f_g * c + i_g * g_g
        h_new = o_g * jnp.tanh(c_new)
        qtok = qtok.at[:, t].set(m * h_new)
        c = m * c_new + (1.0 - m) * c
        h = m * h_new + (1.0 - m) * h
    hidden = h
    w_q_t = jnp.transpose(params["w_q"], (0, 2, 1))
    w_iq_t = params["w_iq"].T
    instruction = jnp.zeros((B, H), jnp.float32)
    instructions, attentions = [], []
    for i in range(num_step):
        q_i = hidden @ w_q_t[i] + params["b_q"][i]
        iq = jnp.concatenate([instruction, q_i], axis=-1) @ w_iq_t + params["b_iq"]
        scores = jnp.sum((iq[:, None, :] * qtok) * params["w_att"][None], axis=-1) + params["b_att"][0]
        masked = question_mask * scores + (1.0 - question_mask) * (-1e20)
        att = jax.nn.softmax(masked, axis=1)
        instruction = jnp.sum(att[:, :, None] * qtok, axis=1)
        instructions.append(instruction)
        attentions.append(att)
    return instructions, hidden[:, None, :], attentions


def init_params(key, word_dim, hidden_dim, num_step):
    """Deterministic synthetic parameters (PyTorch-default-like uniform init)."""
    W, H = word_dim, hidden_dim
    ks = jax.random.split(key, 10)

    def u(k, shape, fan_in):
        bound = 1.0 / (fan_in ** 0.5)
        return jax.random.uniform(k, shape, jnp.float32, -bound, bound)

    return dict(
        w_ih=u(ks[0], (4 * H, W), H),
        w_hh=u(ks[1], (4 * H, H), H),
        b_ih=u(ks[2], (4 * H,), H),
        b_hh=u(ks[3], (4 * H,), H),
        w_q=u(ks[4], (num_step, H, H), H),        # question_linear_i weights [H, H]
        b_q=u(ks[5], (num_step, H), H),
        w_iq=u(ks[6], (H, 2 * H), 2 * H),         # inst_ques_linear weight
        b_iq=u(ks[7], (H,), 2 * H),
        w_att=u(ks[8], (1, H), H),                # attention_linear weight
        b_att=u(ks[9], (1,), H),
    )


if __name__ == "__main__":
    B, S, WORD_DIM, HIDDEN_DIM, NUM_STEP = 16, 8, 32, 32, 3

    key = jax.random.PRNGKey(0)
    k_q, k_l, k_p = jax.random.split(key, 3)
    question = jax.random.normal(k_q, (B, S, WORD_DIM), jnp.float32)
    lengths = jax.random.randint(k_l, (B,), 1, S + 1)
    question_mask = (jnp.arange(S)[None, :] < lengths[:, None]).astype(jnp.float32)

    params = init_params(k_p, WORD_DIM, HIDDEN_DIM, NUM_STEP)

    insts, hidden, atts = instruction_forward(
        question, question_mask, params,
        num_step=NUM_STEP, hidden_dim=HIDDEN_DIM, batch_tile=8)
    jax.block_until_ready(hidden)

    insts_ref, hidden_ref, atts_ref = reference_forward(
        question, question_mask, params, num_step=NUM_STEP, hidden_dim=HIDDEN_DIM)

    assert hidden.shape == (B, 1, HIDDEN_DIM)
    assert all(x.shape == (B, HIDDEN_DIM) for x in insts)
    assert all(a.shape == (B, S) for a in atts)
    # bf16 weights/activations on the MXU -> slightly looser than a pure-f32 2e-3.
    TOL = dict(atol=2e-2, rtol=2e-2)
    assert jnp.allclose(hidden, hidden_ref, **TOL)
    for a, r in zip(insts, insts_ref):
        assert jnp.allclose(a, r, **TOL)
    for a, r in zip(atts, atts_ref):
        assert jnp.allclose(a, r, **TOL)

    print("KERNEL_OK")
</pallas_src>

<mosaic_0001>
module attributes {stable_mosaic.version = 11 : i64} {
  func.func @_instruction_kernel(%arg0: i32, %arg1: memref<8x8x32xbf16, #tpu.memory_space<vmem>>, %arg2: memref<8x8xf32, #tpu.memory_space<vmem>>, %arg3: memref<4x32x32xbf16, #tpu.memory_space<vmem>>, %arg4: memref<4x32x32xbf16, #tpu.memory_space<vmem>>, %arg5: memref<4x1x32xf32, #tpu.memory_space<vmem>>, %arg6: memref<3x32x32xbf16, #tpu.memory_space<vmem>>, %arg7: memref<3x1x32xf32, #tpu.memory_space<vmem>>, %arg8: memref<32x32xbf16, #tpu.memory_space<vmem>>, %arg9: memref<32x32xbf16, #tpu.memory_space<vmem>>, %arg10: memref<1x32xf32, #tpu.memory_space<vmem>>, %arg11: memref<1x32xf32, #tpu.memory_space<vmem>>, %arg12: memref<1xf32, #tpu.memory_space<smem>>, %arg13: memref<3x8x32xf32, #tpu.memory_space<vmem>>, %arg14: memref<8x32xf32, #tpu.memory_space<vmem>>, %arg15: memref<3x8x8xf32, #tpu.memory_space<vmem>>, %arg16: memref<8x8x32xf32, #tpu.memory_space<vmem>>, %arg17: memref<8x8x32xf32, #tpu.memory_space<vmem>>, %arg18: memref<8x8x32xf32, #tpu.memory_space<vmem>>, %arg19: memref<8x8x32xf32, #tpu.memory_space<vmem>>, %arg20: memref<8x8x32xf32, #tpu.memory_space<vmem>>) attributes {dimension_semantics = [#tpu.dimension_semantics<parallel>], iteration_bounds = array<i64: 2>, scalar_prefetch = 0 : i64, scratch_operands = 5 : i64, tpu.core_type = #tpu.core_type<tc>, window_params = [{transform_indices = @transform_0, window_bounds = array<i64: 8, 8, 32>}, {transform_indices = @transform_1, window_bounds = array<i64: 8, 8>}, {pipeline_mode = #tpu.pipeline_mode<synchronous>, transform_indices = @transform_2, window_bounds = array<i64: 4, 32, 32>}, {pipeline_mode = #tpu.pipeline_mode<synchronous>, transform_indices = @transform_3, window_bounds = array<i64: 4, 32, 32>}, {pipeline_mode = #tpu.pipeline_mode<synchronous>, transform_indices = @transform_4, window_bounds = array<i64: 4, 1, 32>}, {pipeline_mode = #tpu.pipeline_mode<synchronous>, transform_indices = @transform_5, window_bounds = array<i64: 3, 32, 32>}, {pipeline_mode = #tpu.pipeline_mode<synchronous>, transform_indices = @transform_6, window_bounds = array<i64: 3, 1, 32>}, {pipeline_mode = #tpu.pipeline_mode<synchronous>, transform_indices = @transform_7, window_bounds = array<i64: 32, 32>}, {pipeline_mode = #tpu.pipeline_mode<synchronous>, transform_indices = @transform_8, window_bounds = array<i64: 32, 32>}, {pipeline_mode = #tpu.pipeline_mode<synchronous>, transform_indices = @transform_9, window_bounds = array<i64: 1, 32>}, {pipeline_mode = #tpu.pipeline_mode<synchronous>, transform_indices = @transform_10, window_bounds = array<i64: 1, 32>}, {transform_indices = @transform_11, window_bounds = array<i64: 1>}, {transform_indices = @transform_12, window_bounds = array<i64: 3, 8, 32>}, {transform_indices = @transform_13, window_bounds = array<i64: 8, 32>}, {transform_indices = @transform_14, window_bounds = array<i64: 3, 8, 8>}]} {
    %c0 = arith.constant 0 : index
    %c0_0 = arith.constant 0 : index
    %c0_1 = arith.constant 0 : index
    %0 = vector.load %arg1[%c0, %c0_0, %c0_1] : memref<8x8x32xbf16, #tpu.memory_space<vmem>>, vector<8x8x32xbf16>
    %1 = vector.shape_cast %0 : vector<8x8x32xbf16> to vector<64x32xbf16>
    %c0_2 = arith.constant 0 : index
    %c0_3 = arith.constant 0 : index
    %c0_4 = arith.constant 0 : index
    %2 = vector.load %arg3[%c0_2, %c0_3, %c0_4] : memref<4x32x32xbf16, #tpu.memory_space<vmem>>, vector<1x32x32xbf16>
    %3 = vector.shape_cast %2 : vector<1x32x32xbf16> to vector<32x32xbf16>
    %cst = arith.constant dense<0.000000e+00> : vector<64x32xf32>
    %4 = tpu.matmul %1, %3, %cst {dimension_numbers = #tpu.dot_dimension_numbers<[1], [0], [0], [1], [0, 0, 1, 1], [], []>} : vector<64x32xbf16>, vector<32x32xbf16>, vector<64x32xf32> -> vector<64x32xf32>
    %c0_5 = arith.constant 0 : index
    %c0_6 = arith.constant 0 : index
    %c0_7 = arith.constant 0 : index
    %5 = vector.load %arg5[%c0_5, %c0_6, %c0_7] : memref<4x1x32xf32, #tpu.memory_space<vmem>>, vector<1x1x32xf32>
    %6 = vector.shape_cast %5 : vector<1x1x32xf32> to vector<1x32xf32>
    %7 = vector.broadcast %6 : vector<1x32xf32> to vector<64x32xf32>
    %8 = arith.addf %4, %7 : vector<64x32xf32>
    %9 = vector.shape_cast %8 : vector<64x32xf32> to vector<8x8x32xf32>
    %c0_8 = arith.constant 0 : index
    %c0_9 = arith.constant 0 : index
    %c0_10 = arith.constant 0 : index
    %10 = vector.load %arg16[%c0_8, %c0_9, %c0_10] : memref<8x8x32xf32, #tpu.memory_space<vmem>>, vector<8x8x32xf32>
    tpu.vector_store %arg16[%c0_8, %c0_9, %c0_10], %9 {strides = array<i32>} : memref<8x8x32xf32, #tpu.memory_space<vmem>>, vector<8x8x32xf32>,
    %c1 = arith.constant 1 : index
    %c0_11 = arith.constant 0 : index
    %c0_12 = arith.constant 0 : index
    %11 = vector.load %arg3[%c1, %c0_11, %c0_12] : memref<4x32x32xbf16, #tpu.memory_space<vmem>>, vector<1x32x32xbf16>
    %12 = vector.shape_cast %11 : vector<1x32x32xbf16> to vector<32x32xbf16>
    %cst_13 = arith.constant dense<0.000000e+00> : vector<64x32xf32>
    %13 = tpu.matmul %1, %12, %cst_13 {dimension_numbers = #tpu.dot_dimension_numbers<[1], [0], [0], [1], [0, 0, 1, 1], [], []>} : vector<64x32xbf16>, vector<32x32xbf16>, vector<64x32xf32> -> vector<64x32xf32>
    %c1_14 = arith.constant 1 : index
    %c0_15 = arith.constant 0 : index
    %c0_16 = arith.constant 0 : index
    %14 = vector.load %arg5[%c1_14, %c0_15, %c0_16] : memref<4x1x32xf32, #tpu.memory_space<vmem>>, vector<1x1x32xf32>
    %15 = vector.shape_cast %14 : vector<1x1x32xf32> to vector<1x32xf32>
    %16 = vector.broadcast %15 : vector<1x32xf32> to vector<64x32xf32>
    %17 = arith.addf %13, %16 : vector<64x32xf32>
    %18 = vector.shape_cast %17 : vector<64x32xf32> to vector<8x8x32xf32>
    %c0_17 = arith.constant 0 : index
    %c0_18 = arith.constant 0 : index
    %c0_19 = arith.constant 0 : index
    %19 = vector.load %arg17[%c0_17, %c0_18, %c0_19] : memref<8x8x32xf32, #tpu.memory_space<vmem>>, vector<8x8x32xf32>
    tpu.vector_store %arg17[%c0_17, %c0_18, %c0_19], %18 {strides = array<i32>} : memref<8x8x32xf32, #tpu.memory_space<vmem>>, vector<8x8x32xf32>,
    %c2 = arith.constant 2 : index
    %c0_20 = arith.constant 0 : index
    %c0_21 = arith.constant 0 : index
    %20 = vector.load %arg3[%c2, %c0_20, %c0_21] : memref<4x32x32xbf16, #tpu.memory_space<vmem>>, vector<1x32x32xbf16>
    %21 = vector.shape_cast %20 : vector<1x32x32xbf16> to vector<32x32xbf16>
    %cst_22 = arith.constant dense<0.000000e+00> : vector<64x32xf32>
    %22 = tpu.matmul %1, %21, %cst_22 {dimension_numbers = #tpu.dot_dimension_numbers<[1], [0], [0], [1], [0, 0, 1, 1], [], []>} : vector<64x32xbf16>, vector<32x32xbf16>, vector<64x32xf32> -> vector<64x32xf32>
    %c2_23 = arith.constant 2 : index
    %c0_24 = arith.constant 0 : index
    %c0_25 = arith.constant 0 : index
    %23 = vector.load %arg5[%c2_23, %c0_24, %c0_25] : memref<4x1x32xf32, #tpu.memory_space<vmem>>, vector<1x1x32xf32>
    %24 = vector.shape_cast %23 : vector<1x1x32xf32> to vector<1x32xf32>
    %25 = vector.broadcast %24 : vector<1x32xf32> to vector<64x32xf32>
    %26 = arith.addf %22, %25 : vector<64x32xf32>
    %27 = vector.shape_cast %26 : vector<64x32xf32> to vector<8x8x32xf32>
    %c0_26 = arith.constant 0 : index
    %c0_27 = arith.constant 0 : index
    %c0_28 = arith.constant 0 : index
    %28 = vector.load %arg18[%c0_26, %c0_27, %c0_28] : memref<8x8x32xf32, #tpu.memory_space<vmem>>, vector<8x8x32xf32>
    tpu.vector_store %arg18[%c0_26, %c0_27, %c0_28], %27 {strides = array<i32>} : memref<8x8x32xf32, #tpu.memory_space<vmem>>, vector<8x8x32xf32>,
    %c3 = arith.constant 3 : index
    %c0_29 = arith.constant 0 : index
    %c0_30 = arith.constant 0 : index
    %29 = vector.load %arg3[%c3, %c0_29, %c0_30] : memref<4x32x32xbf16, #tpu.memory_space<vmem>>, vector<1x32x32xbf16>
    %30 = vector.shape_cast %29 : vector<1x32x32xbf16> to vector<32x32xbf16>
    %cst_31 = arith.constant dense<0.000000e+00> : vector<64x32xf32>
    %31 = tpu.matmul %1, %30, %cst_31 {dimension_numbers = #tpu.dot_dimension_numbers<[1], [0], [0], [1], [0, 0, 1, 1], [], []>} : vector<64x32xbf16>, vector<32x32xbf16>, vector<64x32xf32> -> vector<64x32xf32>
    %c3_32 = arith.constant 3 : index
    %c0_33 = arith.constant 0 : index
    %c0_34 = arith.constant 0 : index
    %32 = vector.load %arg5[%c3_32, %c0_33, %c0_34] : memref<4x1x32xf32, #tpu.memory_space<vmem>>, vector<1x1x32xf32>
    %33 = vector.shape_cast %32 : vector<1x1x32xf32> to vector<1x32xf32>
    %34 = vector.broadcast %33 : vector<1x32xf32> to vector<64x32xf32>
    %35 = arith.addf %31, %34 : vector<64x32xf32>
    %36 = vector.shape_cast %35 : vector<64x32xf32> to vector<8x8x32xf32>
    %c0_35 = arith.constant 0 : index
    %c0_36 = arith.constant 0 : index
    %c0_37 = arith.constant 0 : index
    %37 = vector.load %arg19[%c0_35, %c0_36, %c0_37] : memref<8x8x32xf32, #tpu.memory_space<vmem>>, vector<8x8x32xf32>
    tpu.vector_store %arg19[%c0_35, %c0_36, %c0_37], %36 {strides = array<i32>} : memref<8x8x32xf32, #tpu.memory_space<vmem>>, vector<8x8x32xf32>,
    %c0_38 = arith.constant 0 : index
    %c0_39 = arith.constant 0 : index
    %c0_40 = arith.constant 0 : index
    %38 = vector.load %arg4[%c0_38, %c0_39, %c0_40] : memref<4x32x32xbf16, #tpu.memory_space<vmem>>, vector<1x32x32xbf16>
    %39 = vector.shape_cast %38 : vector<1x32x32xbf16> to vector<32x32xbf16>
    %c1_41 = arith.constant 1 : index
    %c0_42 = arith.constant 0 : index
    %c0_43 = arith.constant 0 : index
    %40 = vector.load %arg4[%c1_41, %c0_42, %c0_43] : memref<4x32x32xbf16, #tpu.memory_space<vmem>>, vector<1x32x32xbf16>
    %41 = vector.shape_cast %40 : vector<1x32x32xbf16> to vector<32x32xbf16>
    %c2_44 = arith.constant 2 : index
    %c0_45 = arith.constant 0 : index
    %c0_46 = arith.constant 0 : index
    %42 = vector.load %arg4[%c2_44, %c0_45, %c0_46] : memref<4x32x32xbf16, #tpu.memory_space<vmem>>, vector<1x32x32xbf16>
    %43 = vector.shape_cast %42 : vector<1x32x32xbf16> to vector<32x32xbf16>
    %c3_47 = arith.constant 3 : index
    %c0_48 = arith.constant 0 : index
    %c0_49 = arith.constant 0 : index
    %44 = vector.load %arg4[%c3_47, %c0_48, %c0_49] : memref<4x32x32xbf16, #tpu.memory_space<vmem>>, vector<1x32x32xbf16>
    %45 = vector.shape_cast %44 : vector<1x32x32xbf16> to vector<32x32xbf16>
    %c0_50 = arith.constant 0 : index
    %c0_51 = arith.constant 0 : index
    %46 = vector.load %arg2[%c0_50, %c0_51] : memref<8x8xf32, #tpu.memory_space<vmem>>, vector<8x8xf32>
    %cst_52 = arith.constant 0.000000e+00 : f32
    %47 = vector.broadcast %cst_52 : f32 to vector<8x8xf32>
    %48 = arith.cmpf ogt, %46, %47 : vector<8x8xf32>
    %cst_53 = arith.constant 0.000000e+00 : f32
    %49 = vector.broadcast %cst_53 : f32 to vector<8x32xf32>
    %cst_54 = arith.constant 0.000000e+00 : f32
    %50 = vector.broadcast %cst_54 : f32 to vector<8x32xf32>
    %51 = arith.truncf %49 : vector<8x32xf32> to vector<8x32xbf16>
    %c0_55 = arith.constant 0 : index
    %c0_56 = arith.constant 0 : index
    %c0_57 = arith.constant 0 : index
    %52 = vector.load %arg16[%c0_55, %c0_56, %c0_57] : memref<8x8x32xf32, #tpu.memory_space<vmem>>, vector<8x1x32xf32>
    %53 = vector.shape_cast %52 : vector<8x1x32xf32> to vector<8x32xf32>
    %cst_58 = arith.constant dense<0.000000e+00> : vector<8x32xf32>
    %54 = tpu.matmul %51, %39, %cst_58 {dimension_numbers = #tpu.dot_dimension_numbers<[1], [0], [0], [1], [0, 0, 1, 1], [], []>} : vector<8x32xbf16>, vector<32x32xbf16>, vector<8x32xf32> -> vector<8x32xf32>
    %55 = arith.addf %53, %54 : vector<8x32xf32>
    %c0_59 = arith.constant 0 : index
    %c0_60 = arith.constant 0 : index
    %c0_61 = arith.constant 0 : index
    %56 = vector.load %arg17[%c0_59, %c0_60, %c0_61] : memref<8x8x32xf32, #tpu.memory_space<vmem>>, vector<8x1x32xf32>
    %57 = vector.shape_cast %56 : vector<8x1x32xf32> to vector<8x32xf32>
    %cst_62 = arith.constant dense<0.000000e+00> : vector<8x32xf32>
    %58 = tpu.matmul %51, %41, %cst_62 {dimension_numbers = #tpu.dot_dimension_numbers<[1], [0], [0], [1], [0, 0, 1, 1], [], []>} : vector<8x32xbf16>, vector<32x32xbf16>, vector<8x32xf32> -> vector<8x32xf32>
    %59 = arith.addf %57, %58 : vector<8x32xf32>
    %c0_63 = arith.constant 0 : index
    %c0_64 = arith.constant 0 : index
    %c0_65 = arith.constant 0 : index
    %60 = vector.load %arg18[%c0_63, %c0_64, %c0_65] : memref<8x8x32xf32, #tpu.memory_space<vmem>>, vector<8x1x32xf32>
    %61 = vector.shape_cast %60 : vector<8x1x32xf32> to vector<8x32xf32>
    %cst_66 = arith.constant dense<0.000000e+00> : vector<8x32xf32>
    %62 = tpu.matmul %51, %43, %cst_66 {dimension_numbers = #tpu.dot_dimension_numbers<[1], [0], [0], [1], [0, 0, 1, 1], [], []>} : vector<8x32xbf16>, vector<32x32xbf16>, vector<8x32xf32> -> vector<8x32xf32>
    %63 = arith.addf %61, %62 : vector<8x32xf32>
    %c0_67 = arith.constant 0 : index
    %c0_68 = arith.constant 0 : index
    %c0_69 = arith.constant 0 : index
    %64 = vector.load %arg19[%c0_67, %c0_68, %c0_69] : memref<8x8x32xf32, #tpu.memory_space<vmem>>, vector<8x1x32xf32>
    %65 = vector.shape_cast %64 : vector<8x1x32xf32> to vector<8x32xf32>
    %cst_70 = arith.constant dense<0.000000e+00> : vector<8x32xf32>
    %66 = tpu.matmul %51, %45, %cst_70 {dimension_numbers = #tpu.dot_dimension_numbers<[1], [0], [0], [1], [0, 0, 1, 1], [], []>} : vector<8x32xbf16>, vector<32x32xbf16>, vector<8x32xf32> -> vector<8x32xf32>
    %67 = arith.addf %65, %66 : vector<8x32xf32>
    %68 = arith.negf %55 : vector<8x32xf32>
    %69 = math.exp %68 : vector<8x32xf32>
    %cst_71 = arith.constant 1.000000e+00 : f32
    %70 = vector.broadcast %cst_71 : f32 to vector<8x32xf32>
    %71 = arith.addf %70, %69 : vector<8x32xf32>
    %72 = arith.divf %70, %71 : vector<8x32xf32>
    %73 = arith.negf %59 : vector<8x32xf32>
    %74 = math.exp %73 : vector<8x32xf32>
    %cst_72 = arith.constant 1.000000e+00 : f32
    %75 = vector.broadcast %cst_72 : f32 to vector<8x32xf32>
    %76 = arith.addf %75, %74 : vector<8x32xf32>
    %77 = arith.divf %75, %76 : vector<8x32xf32>
    %78 = math.tanh %63 : vector<8x32xf32>
    %79 = arith.negf %67 : vector<8x32xf32>
    %80 = math.exp %79 : vector<8x32xf32>
    %cst_73 = arith.constant 1.000000e+00 : f32
    %81 = vector.broadcast %cst_73 : f32 to vector<8x32xf32>
    %82 = arith.addf %81, %80 : vector<8x32xf32>
    %83 = arith.divf %81, %82 : vector<8x32xf32>
    %84 = arith.mulf %77, %50 : vector<8x32xf32>
    %85 = arith.mulf %72, %78 : vector<8x32xf32>
    %86 = arith.addf %84, %85 : vector<8x32xf32>
    %87 = math.tanh %86 : vector<8x32xf32>
    %88 = arith.mulf %83, %87 : vector<8x32xf32>
    %89 = vector.extract_strided_slice %48 {offsets = [0, 0], sizes = [8, 1], strides = [1, 1]} : vector<8x8xi1> to vector<8x1xi1>
    %cst_74 = arith.constant 0.000000e+00 : f32
    %90 = vector.shape_cast %89 : vector<8x1xi1> to vector<8x1xi1>
    %91 = vector.broadcast %90 : vector<8x1xi1> to vector<8x32xi1>
    %92 = vector.broadcast %cst_74 : f32 to vector<8x32xf32>
    %93 = arith.select %91, %88, %92 : vector<8x32xi1>, vector<8x32xf32>
    %94 = vector.shape_cast %93 : vector<8x32xf32> to vector<8x1x32xf32>
    %c0_75 = arith.constant 0 : index
    %c0_76 = arith.constant 0 : index
    %c0_77 = arith.constant 0 : index
    %95 = vector.load %arg20[%c0_75, %c0_76, %c0_77] : memref<8x8x32xf32, #tpu.memory_space<vmem>>, vector<8x1x32xf32>
    tpu.vector_store %arg20[%c0_75, %c0_76, %c0_77], %94 {strides = array<i32>} : memref<8x8x32xf32, #tpu.memory_space<vmem>>, vector<8x1x32xf32>,
    %96 = vector.shape_cast %89 : vector<8x1xi1> to vector<8x1xi1>
    %97 = vector.broadcast %96 : vector<8x1xi1> to vector<8x32xi1>
    %98 = arith.select %97, %86, %50 : vector<8x32xi1>, vector<8x32xf32>
    %99 = vector.shape_cast %89 : vector<8x1xi1> to vector<8x1xi1>
    %100 = vector.broadcast %99 : vector<8x1xi1> to vector<8x32xi1>
    %101 = arith.select %100, %88, %49 : vector<8x32xi1>, vector<8x32xf32>
    %102 = arith.truncf %101 : vector<8x32xf32> to vector<8x32xbf16>
    %c0_78 = arith.constant 0 : index
    %c1_79 = arith.constant 1 : index
    %c0_80 = arith.constant 0 : index
    %103 = vector.load %arg16[%c0_78, %c1_79, %c0_80] : memref<8x8x32xf32, #tpu.memory_space<vmem>>, vector<8x1x32xf32>
    %104 = vector.shape_cast %103 : vector<8x1x32xf32> to vector<8x32xf32>
    %cst_81 = arith.constant dense<0.000000e+00> : vector<8x32xf32>
    %105 = tpu.matmul %102, %39, %cst_81 {dimension_numbers = #tpu.dot_dimension_numbers<[1], [0], [0], [1], [0, 0, 1, 1], [], []>} : vector<8x32xbf16>, vector<32x32xbf16>, vector<8x32xf32> -> vector<8x32xf32>
    %106 = arith.addf %104, %105 : vector<8x32xf32>
    %c0_82 = arith.constant 0 : index
    %c1_83 = arith.constant 1 : index
    %c0_84 = arith.constant 0 : index
    %107 = vector.load %arg17[%c0_82, %c1_83, %c0_84] : memref<8x8x32xf32, #tpu.memory_space<vmem>>, vector<8x1x32xf32>
    %108 = vector.shape_cast %107 : vector<8x1x32xf32> to vector<8x32xf32>
    %cst_85 = arith.constant dense<0.000000e+00> : vector<8x32xf32>
    %109 = tpu.matmul %102, %41, %cst_85 {dimension_numbers = #tpu.dot_dimension_numbers<[1], [0], [0], [1], [0, 0, 1, 1], [], []>} : vector<8x32xbf16>, vector<32x32xbf16>, vector<8x32xf32> -> vector<8x32xf32>
    %110 = arith.addf %108, %109 : vector<8x32xf32>
    %c0_86 = arith.constant 0 : index
    %c1_87 = arith.constant 1 : index
    %c0_88 = arith.constant 0 : index
    %111 = vector.load %arg18[%c0_86, %c1_87, %c0_88] : memref<8x8x32xf32, #tpu.memory_space<vmem>>, vector<8x1x32xf32>
    %112 = vector.shape_cast %111 : vector<8x1x32xf32> to vector<8x32xf32>
    %cst_89 = arith.constant dense<0.000000e+00> : vector<8x32xf32>
    %113 = tpu.matmul %102, %43, %cst_89 {dimension_numbers = #tpu.dot_dimension_numbers<[1], [0], [0], [1], [0, 0, 1, 1], [], []>} : vector<8x32xbf16>, vector<32x32xbf16>, vector<8x32xf32> -> vector<8x32xf32>
    %114 = arith.addf %112, %113 : vector<8x32xf32>
    %c0_90 = arith.constant 0 : index
    %c1_91 = arith.constant 1 : index
    %c0_92 = arith.constant 0 : index
    %115 = vector.load %arg19[%c0_90, %c1_91, %c0_92] : memref<8x8x32xf32, #tpu.memory_space<vmem>>, vector<8x1x32xf32>
    %116 = vector.shape_cast %115 : vector<8x1x32xf32> to vector<8x32xf32>
    %cst_93 = arith.constant dense<0.000000e+00> : vector<8x32xf32>
    %117 = tpu.matmul %102, %45, %cst_93 {dimension_numbers = #tpu.dot_dimension_numbers<[1], [0], [0], [1], [0, 0, 1, 1], [], []>} : vector<8x32xbf16>, vector<32x32xbf16>, vector<8x32xf32> -> vector<8x32xf32>
    %118 = arith.addf %116, %117 : vector<8x32xf32>
    %119 = arith.negf %106 : vector<8x32xf32>
    %120 = math.exp %119 : vector<8x32xf32>
    %cst_94 = arith.constant 1.000000e+00 : f32
    %121 = vector.broadcast %cst_94 : f32 to vector<8x32xf32>
    %122 = arith.addf %121, %120 : vector<8x32xf32>
    %123 = arith.divf %121, %122 : vector<8x32xf32>
    %124 = arith.negf %110 : vector<8x32xf32>
    %125 = math.exp %124 : vector<8x32xf32>
    %cst_95 = arith.constant 1.000000e+00 : f32
    %126 = vector.broadcast %cst_95 : f32 to vector<8x32xf32>
    %127 = arith.addf %126, %125 : vector<8x32xf32>
    %128 = arith.divf %126, %127 : vector<8x32xf32>
    %129 = math.tanh %114 : vector<8x32xf32>
    %130 = arith.negf %118 : vector<8x32xf32>
    %131 = math.exp %130 : vector<8x32xf32>
    %cst_96 = arith.constant 1.000000e+00 : f32
    %132 = vector.broadcast %cst_96 : f32 to vector<8x32xf32>
    %133 = arith.addf %132, %131 : vector<8x32xf32>
    %134 = arith.divf %132, %133 : vector<8x32xf32>
    %135 = arith.mulf %128, %98 : vector<8x32xf32>
    %136 = arith.mulf %123, %129 : vector<8x32xf32>
    %137 = arith.addf %135, %136 : vector<8x32xf32>
    %138 = math.tanh %137 : vector<8x32xf32>
    %139 = arith.mulf %134, %138 : vector<8x32xf32>
    %140 = vector.extract_strided_slice %48 {offsets = [0, 1], sizes = [8, 1], strides = [1, 1]} : vector<8x8xi1> to vector<8x1xi1>
    %cst_97 = arith.constant 0.000000e+00 : f32
    %141 = vector.shape_cast %140 : vector<8x1xi1> to vector<8x1xi1>
    %142 = vector.broadcast %141 : vector<8x1xi1> to vector<8x32xi1>
    %143 = vector.broadcast %cst_97 : f32 to vector<8x32xf32>
    %144 = arith.select %142, %139, %143 : vector<8x32xi1>, vector<8x32xf32>
    %145 = vector.shape_cast %144 : vector<8x32xf32> to vector<8x1x32xf32>
    %c0_98 = arith.constant 0 : index
    %c1_99 = arith.constant 1 : index
    %c0_100 = arith.constant 0 : index
    %146 = vector.load %arg20[%c0_98, %c1_99, %c0_100] : memref<8x8x32xf32, #tpu.memory_space<vmem>>, vector<8x1x32xf32>
    tpu.vector_store %arg20[%c0_98, %c1_99, %c0_100], %145 {strides = array<i32>} : memref<8x8x32xf32, #tpu.memory_space<vmem>>, vector<8x1x32xf32>,
    %147 = vector.shape_cast %140 : vector<8x1xi1> to vector<8x1xi1>
    %148 = vector.broadcast %147 : vector<8x1xi1> to vector<8x32xi1>
    %149 = arith.select %148, %137, %98 : vector<8x32xi1>, vector<8x32xf32>
    %150 = vector.shape_cast %140 : vector<8x1xi1> to vector<8x1xi1>
    %151 = vector.broadcast %150 : vector<8x1xi1> to vector<8x32xi1>
    %152 = arith.select %151, %139, %101 : vector<8x32xi1>, vector<8x32xf32>
    %153 = arith.truncf %152 : vector<8x32xf32> to vector<8x32xbf16>
    %c0_101 = arith.constant 0 : index
    %c2_102 = arith.constant 2 : index
    %c0_103 = arith.constant 0 : index
    %154 = vector.load %arg16[%c0_101, %c2_102, %c0_103] : memref<8x8x32xf32, #tpu.memory_space<vmem>>, vector<8x1x32xf32>
    %155 = vector.shape_cast %154 : vector<8x1x32xf32> to vector<8x32xf32>
    %cst_104 = arith.constant dense<0.000000e+00> : vector<8x32xf32>
    %156 = tpu.matmul %153, %39, %cst_104 {dimension_numbers = #tpu.dot_dimension_numbers<[1], [0], [0], [1], [0, 0, 1, 1], [], []>} : vector<8x32xbf16>, vector<32x32xbf16>, vector<8x32xf32> -> vector<8x32xf32>
    %157 = arith.addf %155, %156 : vector<8x32xf32>
    %c0_105 = arith.constant 0 : index
    %c2_106 = arith.constant 2 : index
    %c0_107 = arith.constant 0 : index
    %158 = vector.load %arg17[%c0_105, %c2_106, %c0_107] : memref<8x8x32xf32, #tpu.memory_space<vmem>>, vector<8x1x32xf32>
    %159 = vector.shape_cast %158 : vector<8x1x32xf32> to vector<8x32xf32>
    %cst_108 = arith.constant dense<0.000000e+00> : vector<8x32xf32>
    %160 = tpu.matmul %153, %41, %cst_108 {dimension_numbers = #tpu.dot_dimension_numbers<[1], [0], [0], [1], [0, 0, 1, 1], [], []>} : vector<8x32xbf16>, vector<32x32xbf16>, vector<8x32xf32> -> vector<8x32xf32>
    %161 = arith.addf %159, %160 : vector<8x32xf32>
    %c0_109 = arith.constant 0 : index
    %c2_110 = arith.constant 2 : index
    %c0_111 = arith.constant 0 : index
    %162 = vector.load %arg18[%c0_109, %c2_110, %c0_111] : memref<8x8x32xf32, #tpu.memory_space<vmem>>, vector<8x1x32xf32>
    %163 = vector.shape_cast %162 : vector<8x1x32xf32> to vector<8x32xf32>
    %cst_112 = arith.constant dense<0.000000e+00> : vector<8x32xf32>
    %164 = tpu.matmul %153, %43, %cst_112 {dimension_numbers = #tpu.dot_dimension_numbers<[1], [0], [0], [1], [0, 0, 1, 1], [], []>} : vector<8x32xbf16>, vector<32x32xbf16>, vector<8x32xf32> -> vector<8x32xf32>
    %165 = arith.addf %163, %164 : vector<8x32xf32>
    %c0_113 = arith.constant 0 : index
    %c2_114 = arith.constant 2 : index
    %c0_115 = arith.constant 0 : index
    %166 = vector.load %arg19[%c0_113, %c2_114, %c0_115] : memref<8x8x32xf32, #tpu.memory_space<vmem>>, vector<8x1x32xf32>
    %167 = vector.shape_cast %166 : vector<8x1x32xf32> to vector<8x32xf32>
    %cst_116 = arith.constant dense<0.000000e+00> : vector<8x32xf32>
    %168 = tpu.matmul %153, %45, %cst_116 {dimension_numbers = #tpu.dot_dimension_numbers<[1], [0], [0], [1], [0, 0, 1, 1], [], []>} : vector<8x32xbf16>, vector<32x32xbf16>, vector<8x32xf32> -> vector<8x32xf32>
    %169 = arith.addf %167, %168 : vector<8x32xf32>
    %170 = arith.negf %157 : vector<8x32xf32>
    %171 = math.exp %170 : vector<8x32xf32>
    %cst_117 = arith.constant 1.000000e+00 : f32
    %172 = vector.broadcast %cst_117 : f32 to vector<8x32xf32>
    %173 = arith.addf %172, %171 : vector<8x32xf32>
    %174 = arith.divf %172, %173 : vector<8x32xf32>
    %175 = arith.negf %161 : vector<8x32xf32>
    %176 = math.exp %175 : vector<8x32xf32>
    %cst_118 = arith.constant 1.000000e+00 : f32
    %177 = vector.broadcast %cst_118 : f32 to vector<8x32xf32>
    %178 = arith.addf %177, %176 : vector<8x32xf32>
    %179 = arith.divf %177, %178 : vector<8x32xf32>
    %180 = math.tanh %165 : vector<8x32xf32>
    %181 = arith.negf %169 : vector<8x32xf32>
    %182 = math.exp %181 : vector<8x32xf32>
    %cst_119 = arith.constant 1.000000e+00 : f32
    %183 = vector.broadcast %cst_119 : f32 to vector<8x32xf32>
    %184 = arith.addf %183, %182 : vector<8x32xf32>
    %185 = arith.divf %183, %184 : vector<8x32xf32>
    %186 = arith.mulf %179, %149 : vector<8x32xf32>
    %187 = arith.mulf %174, %180 : vector<8x32xf32>
    %188 = arith.addf %186, %187 : vector<8x32xf32>
    %189 = math.tanh %188 : vector<8x32xf32>
    %190 = arith.mulf %185, %189 : vector<8x32xf32>
    %191 = vector.extract_strided_slice %48 {offsets = [0, 2], sizes = [8, 1], strides = [1, 1]} : vector<8x8xi1> to vector<8x1xi1>
    %cst_120 = arith.constant 0.000000e+00 : f32
    %192 = vector.shape_cast %191 : vector<8x1xi1> to vector<8x1xi1>
    %193 = vector.broadcast %192 : vector<8x1xi1> to vector<8x32xi1>
    %194 = vector.broadcast %cst_120 : f32 to vector<8x32xf32>
    %195 = arith.select %193, %190, %194 : vector<8x32xi1>, vector<8x32xf32>
    %196 = vector.shape_cast %195 : vector<8x32xf32> to vector<8x1x32xf32>
    %c0_121 = arith.constant 0 : index
    %c2_122 = arith.constant 2 : index
    %c0_123 = arith.constant 0 : index
    %197 = vector.load %arg20[%c0_121, %c2_122, %c0_123] : memref<8x8x32xf32, #tpu.memory_space<vmem>>, vector<8x1x32xf32>
    tpu.vector_store %arg20[%c0_121, %c2_122, %c0_123], %196 {strides = array<i32>} : memref<8x8x32xf32, #tpu.memory_space<vmem>>, vector<8x1x32xf32>,
    %198 = vector.shape_cast %191 : vector<8x1xi1> to vector<8x1xi1>
    %199 = vector.broadcast %198 : vector<8x1xi1> to vector<8x32xi1>
    %200 = arith.select %199, %188, %149 : vector<8x32xi1>, vector<8x32xf32>
    %201 = vector.shape_cast %191 : vector<8x1xi1> to vector<8x1xi1>
    %202 = vector.broadcast %201 : vector<8x1xi1> to vector<8x32xi1>
    %203 = arith.select %202, %190, %152 : vector<8x32xi1>, vector<8x32xf32>
    %204 = arith.truncf %203 : vector<8x32xf32> to vector<8x32xbf16>
    %c0_124 = arith.constant 0 : index
    %c3_125 = arith.constant 3 : index
    %c0_126 = arith.constant 0 : index
    %205 = vector.load %arg16[%c0_124, %c3_125, %c0_126] : memref<8x8x32xf32, #tpu.memory_space<vmem>>, vector<8x1x32xf32>
    %206 = vector.shape_cast %205 : vector<8x1x32xf32> to vector<8x32xf32>
    %cst_127 = arith.constant dense<0.000000e+00> : vector<8x32xf32>
    %207 = tpu.matmul %204, %39, %cst_127 {dimension_numbers = #tpu.dot_dimension_numbers<[1], [0], [0], [1], [0, 0, 1, 1], [], []>} : vector<8x32xbf16>, vector<32x32xbf16>, vector<8x32xf32> -> vector<8x32xf32>
    %208 = arith.addf %206, %207 : vector<8x32xf32>
    %c0_128 = arith.constant 0 : index
    %c3_129 = arith.constant 3 : index
    %c0_130 = arith.constant 0 : index
    %209 = vector.load %arg17[%c0_128, %c3_129, %c0_130] : memref<8x8x32xf32, #tpu.memory_space<vmem>>, vector<8x1x32xf32>
    %210 = vector.shape_cast %209 : vector<8x1x32xf32> to vector<8x32xf32>
    %cst_131 = arith.constant dense<0.000000e+00> : vector<8x32xf32>
    %211 = tpu.matmul %204, %41, %cst_131 {dimension_numbers = #tpu.dot_dimension_numbers<[1], [0], [0], [1], [0, 0, 1, 1], [], []>} : vector<8x32xbf16>, vector<32x32xbf16>, vector<8x32xf32> -> vector<8x32xf32>
    %212 = arith.addf %210, %211 : vector<8x32xf32>
    %c0_132 = arith.constant 0 : index
    %c3_133 = arith.constant 3 : index
    %c0_134 = arith.constant 0 : index
    %213 = vector.load %arg18[%c0_132, %c3_133, %c0_134] : memref<8x8x32xf32, #tpu.memory_space<vmem>>, vector<8x1x32xf32>
    %214 = vector.shape_cast %213 : vector<8x1x32xf32> to vector<8x32xf32>
    %cst_135 = arith.constant dense<0.000000e+00> : vector<8x32xf32>
    %215 = tpu.matmul %204, %43, %cst_135 {dimension_numbers = #tpu.dot_dimension_numbers<[1], [0], [0], [1], [0, 0, 1, 1], [], []>} : vector<8x32xbf16>, vector<32x32xbf16>, vector<8x32xf32> -> vector<8x32xf32>
    %216 = arith.addf %214, %215 : vector<8x32xf32>
    %c0_136 = arith.constant 0 : index
    %c3_137 = arith.constant 3 : index
    %c0_138 = arith.constant 0 : index
    %217 = vector.load %arg19[%c0_136, %c3_137, %c0_138] : memref<8x8x32xf32, #tpu.memory_space<vmem>>, vector<8x1x32xf32>
    %218 = vector.shape_cast %217 : vector<8x1x32xf32> to vector<8x32xf32>
    %cst_139 = arith.constant dense<0.000000e+00> : vector<8x32xf32>
    %219 = tpu.matmul %204, %45, %cst_139 {dimension_numbers = #tpu.dot_dimension_numbers<[1], [0], [0], [1], [0, 0, 1, 1], [], []>} : vector<8x32xbf16>, vector<32x32xbf16>, vector<8x32xf32> -> vector<8x32xf32>
    %220 = arith.addf %218, %219 : vector<8x32xf32>
    %221 = arith.negf %208 : vector<8x32xf32>
    %222 = math.exp %221 : vector<8x32xf32>
    %cst_140 = arith.constant 1.000000e+00 : f32
    %223 = vector.broadcast %cst_140 : f32 to vector<8x32xf32>
    %224 = arith.addf %223, %222 : vector<8x32xf32>
    %225 = arith.divf %223, %224 : vector<8x32xf32>
    %226 = arith.negf %212 : vector<8x32xf32>
    %227 = math.exp %226 : vector<8x32xf32>
    %cst_141 = arith.constant 1.000000e+00 : f32
    %228 = vector.broadcast %cst_141 : f32 to vector<8x32xf32>
    %229 = arith.addf %228, %227 : vector<8x32xf32>
    %230 = arith.divf %228, %229 : vector<8x32xf32>
    %231 = math.tanh %216 : vector<8x32xf32>
    %232 = arith.negf %220 : vector<8x32xf32>
    %233 = math.exp %232 : vector<8x32xf32>
    %cst_142 = arith.constant 1.000000e+00 : f32
    %234 = vector.broadcast %cst_142 : f32 to vector<8x32xf32>
    %235 = arith.addf %234, %233 : vector<8x32xf32>
    %236 = arith.divf %234, %235 : vector<8x32xf32>
    %237 = arith.mulf %230, %200 : vector<8x32xf32>
    %238 = arith.mulf %225, %231 : vector<8x32xf32>
    %239 = arith.addf %237, %238 : vector<8x32xf32>
    %240 = math.tanh %239 : vector<8x32xf32>
    %241 = arith.mulf %236, %240 : vector<8x32xf32>
    %242 = vector.extract_strided_slice %48 {offsets = [0, 3], sizes = [8, 1], strides = [1, 1]} : vector<8x8xi1> to vector<8x1xi1>
    %cst_143 = arith.constant 0.000000e+00 : f32
    %243 = vector.shape_cast %242 : vector<8x1xi1> to vector<8x1xi1>
    %244 = vector.broadcast %243 : vector<8x1xi1> to vector<8x32xi1>
    %245 = vector.broadcast %cst_143 : f32 to vector<8x32xf32>
    %246 = arith.select %244, %241, %245 : vector<8x32xi1>, vector<8x32xf32>
    %247 = vector.shape_cast %246 : vector<8x32xf32> to vector<8x1x32xf32>
    %c0_144 = arith.constant 0 : index
    %c3_145 = arith.constant 3 : index
    %c0_146 = arith.constant 0 : index
    %248 = vector.load %arg20[%c0_144, %c3_145, %c0_146] : memref<8x8x32xf32, #tpu.memory_space<vmem>>, vector<8x1x32xf32>
    tpu.vector_store %arg20[%c0_144, %c3_145, %c0_146], %247 {strides = array<i32>} : memref<8x8x32xf32, #tpu.memory_space<vmem>>, vector<8x1x32xf32>,
    %249 = vector.shape_cast %242 : vector<8x1xi1> to vector<8x1xi1>
    %250 = vector.broadcast %249 : vector<8x1xi1> to vector<8x32xi1>
    %251 = arith.select %250, %239, %200 : vector<8x32xi1>, vector<8x32xf32>
    %252 = vector.shape_cast %242 : vector<8x1xi1> to vector<8x1xi1>
    %253 = vector.broadcast %252 : vector<8x1xi1> to vector<8x32xi1>
    %254 = arith.select %253, %241, %203 : vector<8x32xi1>, vector<8x32xf32>
    %255 = arith.truncf %254 : vector<8x32xf32> to vector<8x32xbf16>
    %c0_147 = arith.constant 0 : index
    %c4 = arith.constant 4 : index
    %c0_148 = arith.constant 0 : index
    %256 = vector.load %arg16[%c0_147, %c4, %c0_148] : memref<8x8x32xf32, #tpu.memory_space<vmem>>, vector<8x1x32xf32>
    %257 = vector.shape_cast %256 : vector<8x1x32xf32> to vector<8x32xf32>
    %cst_149 = arith.constant dense<0.000000e+00> : vector<8x32xf32>
    %258 = tpu.matmul %255, %39, %cst_149 {dimension_numbers = #tpu.dot_dimension_numbers<[1], [0], [0], [1], [0, 0, 1, 1], [], []>} : vector<8x32xbf16>, vector<32x32xbf16>, vector<8x32xf32> -> vector<8x32xf32>
    %259 = arith.addf %257, %258 : vector<8x32xf32>
    %c0_150 = arith.constant 0 : index
    %c4_151 = arith.constant 4 : index
    %c0_152 = arith.constant 0 : index
    %260 = vector.load %arg17[%c0_150, %c4_151, %c0_152] : memref<8x8x32xf32, #tpu.memory_space<vmem>>, vector<8x1x32xf32>
    %261 = vector.shape_cast %260 : vector<8x1x32xf32> to vector<8x32xf32>
    %cst_153 = arith.constant dense<0.000000e+00> : vector<8x32xf32>
    %262 = tpu.matmul %255, %41, %cst_153 {dimension_numbers = #tpu.dot_dimension_numbers<[1], [0], [0], [1], [0, 0, 1, 1], [], []>} : vector<8x32xbf16>, vector<32x32xbf16>, vector<8x32xf32> -> vector<8x32xf32>
    %263 = arith.addf %261, %262 : vector<8x32xf32>
    %c0_154 = arith.constant 0 : index
    %c4_155 = arith.constant 4 : index
    %c0_156 = arith.constant 0 : index
    %264 = vector.load %arg18[%c0_154, %c4_155, %c0_156] : memref<8x8x32xf32, #tpu.memory_space<vmem>>, vector<8x1x32xf32>
    %265 = vector.shape_cast %264 : vector<8x1x32xf32> to vector<8x32xf32>
    %cst_157 = arith.constant dense<0.000000e+00> : vector<8x32xf32>
    %266 = tpu.matmul %255, %43, %cst_157 {dimension_numbers = #tpu.dot_dimension_numbers<[1], [0], [0], [1], [0, 0, 1, 1], [], []>} : vector<8x32xbf16>, vector<32x32xbf16>, vector<8x32xf32> -> vector<8x32xf32>
    %267 = arith.addf %265, %266 : vector<8x32xf32>
    %c0_158 = arith.constant 0 : index
    %c4_159 = arith.constant 4 : index
    %c0_160 = arith.constant 0 : index
    %268 = vector.load %arg19[%c0_158, %c4_159, %c0_160] : memref<8x8x32xf32, #tpu.memory_space<vmem>>, vector<8x1x32xf32>
    %269 = vector.shape_cast %268 : vector<8x1x32xf32> to vector<8x32xf32>
    %cst_161 = arith.constant dense<0.000000e+00> : vector<8x32xf32>
    %270 = tpu.matmul %255, %45, %cst_161 {dimension_numbers = #tpu.dot_dimension_numbers<[1], [0], [0], [1], [0, 0, 1, 1], [], []>} : vector<8x32xbf16>, vector<32x32xbf16>, vector<8x32xf32> -> vector<8x32xf32>
    %271 = arith.addf %269, %270 : vector<8x32xf32>
    %272 = arith.negf %259 : vector<8x32xf32>
    %273 = math.exp %272 : vector<8x32xf32>
    %cst_162 = arith.constant 1.000000e+00 : f32
    %274 = vector.broadcast %cst_162 : f32 to vector<8x32xf32>
    %275 = arith.addf %274, %273 : vector<8x32xf32>
    %276 = arith.divf %274, %275 : vector<8x32xf32>
    %277 = arith.negf %263 : vector<8x32xf32>
    %278 = math.exp %277 : vector<8x32xf32>
    %cst_163 = arith.constant 1.000000e+00 : f32
    %279 = vector.broadcast %cst_163 : f32 to vector<8x32xf32>
    %280 = arith.addf %279, %278 : vector<8x32xf32>
    %281 = arith.divf %279, %280 : vector<8x32xf32>
    %282 = math.tanh %267 : vector<8x32xf32>
    %283 = arith.negf %271 : vector<8x32xf32>
    %284 = math.exp %283 : vector<8x32xf32>
    %cst_164 = arith.constant 1.000000e+00 : f32
    %285 = vector.broadcast %cst_164 : f32 to vector<8x32xf32>
    %286 = arith.addf %285, %284 : vector<8x32xf32>
    %287 = arith.divf %285, %286 : vector<8x32xf32>
    %288 = arith.mulf %281, %251 : vector<8x32xf32>
    %289 = arith.mulf %276, %282 : vector<8x32xf32>
    %290 = arith.addf %288, %289 : vector<8x32xf32>
    %291 = math.tanh %290 : vector<8x32xf32>
    %292 = arith.mulf %287, %291 : vector<8x32xf32>
    %293 = vector.extract_strided_slice %48 {offsets = [0, 4], sizes = [8, 1], strides = [1, 1]} : vector<8x8xi1> to vector<8x1xi1>
    %cst_165 = arith.constant 0.000000e+00 : f32
    %294 = vector.shape_cast %293 : vector<8x1xi1> to vector<8x1xi1>
    %295 = vector.broadcast %294 : vector<8x1xi1> to vector<8x32xi1>
    %296 = vector.broadcast %cst_165 : f32 to vector<8x32xf32>
    %297 = arith.select %295, %292, %296 : vector<8x32xi1>, vector<8x32xf32>
    %298 = vector.shape_cast %297 : vector<8x32xf32> to vector<8x1x32xf32>
    %c0_166 = arith.constant 0 : index
    %c4_167 = arith.constant 4 : index
    %c0_168 = arith.constant 0 : index
    %299 = vector.load %arg20[%c0_166, %c4_167, %c0_168] : memref<8x8x32xf32, #tpu.memory_space<vmem>>, vector<8x1x32xf32>
    tpu.vector_store %arg20[%c0_166, %c4_167, %c0_168], %298 {strides = array<i32>} : memref<8x8x32xf32, #tpu.memory_space<vmem>>, vector<8x1x32xf32>,
    %300 = vector.shape_cast %293 : vector<8x1xi1> to vector<8x1xi1>
    %301 = vector.broadcast %300 : vector<8x1xi1> to vector<8x32xi1>
    %302 = arith.select %301, %290, %251 : vector<8x32xi1>, vector<8x32xf32>
    %303 = vector.shape_cast %293 : vector<8x1xi1> to vector<8x1xi1>
    %304 = vector.broadcast %303 : vector<8x1xi1> to vector<8x32xi1>
    %305 = arith.select %304, %292, %254 : vector<8x32xi1>, vector<8x32xf32>
    %306 = arith.truncf %305 : vector<8x32xf32> to vector<8x32xbf16>
    %c0_169 = arith.constant 0 : index
    %c5 = arith.constant 5 : index
    %c0_170 = arith.constant 0 : index
    %307 = vector.load %arg16[%c0_169, %c5, %c0_170] : memref<8x8x32xf32, #tpu.memory_space<vmem>>, vector<8x1x32xf32>
    %308 = vector.shape_cast %307 : vector<8x1x32xf32> to vector<8x32xf32>
    %cst_171 = arith.constant dense<0.000000e+00> : vector<8x32xf32>
    %309 = tpu.matmul %306, %39, %cst_171 {dimension_numbers = #tpu.dot_dimension_numbers<[1], [0], [0], [1], [0, 0, 1, 1], [], []>} : vector<8x32xbf16>, vector<32x32xbf16>, vector<8x32xf32> -> vector<8x32xf32>
    %310 = arith.addf %308, %309 : vector<8x32xf32>
    %c0_172 = arith.constant 0 : index
    %c5_173 = arith.constant 5 : index
    %c0_174 = arith.constant 0 : index
    %311 = vector.load %arg17[%c0_172, %c5_173, %c0_174] : memref<8x8x32xf32, #tpu.memory_space<vmem>>, vector<8x1x32xf32>
    %312 = vector.shape_cast %311 : vector<8x1x32xf32> to vector<8x32xf32>
    %cst_175 = arith.constant dense<0.000000e+00> : vector<8x32xf32>
    %313 = tpu.matmul %306, %41, %cst_175 {dimension_numbers = #tpu.dot_dimension_numbers<[1], [0], [0], [1], [0, 0, 1, 1], [], []>} : vector<8x32xbf16>, vector<32x32xbf16>, vector<8x32xf32> -> vector<8x32xf32>
    %314 = arith.addf %312, %313 : vector<8x32xf32>
    %c0_176 = arith.constant 0 : index
    %c5_177 = arith.constant 5 : index
    %c0_178 = arith.constant 0 : index
    %315 = vector.load %arg18[%c0_176, %c5_177, %c0_178] : memref<8x8x32xf32, #tpu.memory_space<vmem>>, vector<8x1x32xf32>
    %316 = vector.shape_cast %315 : vector<8x1x32xf32> to vector<8x32xf32>
    %cst_179 = arith.constant dense<0.000000e+00> : vector<8x32xf32>
    %317 = tpu.matmul %306, %43, %cst_179 {dimension_numbers = #tpu.dot_dimension_numbers<[1], [0], [0], [1], [0, 0, 1, 1], [], []>} : vector<8x32xbf16>, vector<32x32xbf16>, vector<8x32xf32> -> vector<8x32xf32>
    %318 = arith.addf %316, %317 : vector<8x32xf32>
    %c0_180 = arith.constant 0 : index
    %c5_181 = arith.constant 5 : index
    %c0_182 = arith.constant 0 : index
    %319 = vector.load %arg19[%c0_180, %c5_181, %c0_182] : memref<8x8x32xf32, #tpu.memory_space<vmem>>, vector<8x1x32xf32>
    %320 = vector.shape_cast %319 : vector<8x1x32xf32> to vector<8x32xf32>
    %cst_183 = arith.constant dense<0.000000e+00> : vector<8x32xf32>
    %321 = tpu.matmul %306, %45, %cst_183 {dimension_numbers = #tpu.dot_dimension_numbers<[1], [0], [0], [1], [0, 0, 1, 1], [], []>} : vector<8x32xbf16>, vector<32x32xbf16>, vector<8x32xf32> -> vector<8x32xf32>
    %322 = arith.addf %320, %321 : vector<8x32xf32>
    %323 = arith.negf %310 : vector<8x32xf32>
    %324 = math.exp %323 : vector<8x32xf32>
    %cst_184 = arith.constant 1.000000e+00 : f32
    %325 = vector.broadcast %cst_184 : f32 to vector<8x32xf32>
    %326 = arith.addf %325, %324 : vector<8x32xf32>
    %327 = arith.divf %325, %326 : vector<8x32xf32>
    %328 = arith.negf %314 : vector<8x32xf32>
    %329 = math.exp %328 : vector<8x32xf32>
    %cst_185 = arith.constant 1.000000e+00 : f32
    %330 = vector.broadcast %cst_185 : f32 to vector<8x32xf32>
    %331 = arith.addf %330, %329 : vector<8x32xf32>
    %332 = arith.divf %330, %331 : vector<8x32xf32>
    %333 = math.tanh %318 : vector<8x32xf32>
    %334 = arith.negf %322 : vector<8x32xf32>
    %335 = math.exp %334 : vector<8x32xf32>
    %cst_186 = arith.constant 1.000000e+00 : f32
    %336 = vector.broadcast %cst_186 : f32 to vector<8x32xf32>
    %337 = arith.addf %336, %335 : vector<8x32xf32>
    %338 = arith.divf %336, %337 : vector<8x32xf32>
    %339 = arith.mulf %332, %302 : vector<8x32xf32>
    %340 = arith.mulf %327, %333 : vector<8x32xf32>
    %341 = arith.addf %339, %340 : vector<8x32xf32>
    %342 = math.tanh %341 : vector<8x32xf32>
    %343 = arith.mulf %338, %342 : vector<8x32xf32>
    %344 = vector.extract_strided_slice %48 {offsets = [0, 5], sizes = [8, 1], strides = [1, 1]} : vector<8x8xi1> to vector<8x1xi1>
    %cst_187 = arith.constant 0.000000e+00 : f32
    %345 = vector.shape_cast %344 : vector<8x1xi1> to vector<8x1xi1>
    %346 = vector.broadcast %345 : vector<8x1xi1> to vector<8x32xi1>
    %347 = vector.broadcast %cst_187 : f32 to vector<8x32xf32>
    %348 = arith.select %346, %343, %347 : vector<8x32xi1>, vector<8x32xf32>
    %349 = vector.shape_cast %348 : vector<8x32xf32> to vector<8x1x32xf32>
    %c0_188 = arith.constant 0 : index
    %c5_189 = arith.constant 5 : index
    %c0_190 = arith.constant 0 : index
    %350 = vector.load %arg20[%c0_188, %c5_189, %c0_190] : memref<8x8x32xf32, #tpu.memory_space<vmem>>, vector<8x1x32xf32>
    tpu.vector_store %arg20[%c0_188, %c5_189, %c0_190], %349 {strides = array<i32>} : memref<8x8x32xf32, #tpu.memory_space<vmem>>, vector<8x1x32xf32>,
    %351 = vector.shape_cast %344 : vector<8x1xi1> to vector<8x1xi1>
    %352 = vector.broadcast %351 : vector<8x1xi1> to vector<8x32xi1>
    %353 = arith.select %352, %341, %302 : vector<8x32xi1>, vector<8x32xf32>
    %354 = vector.shape_cast %344 : vector<8x1xi1> to vector<8x1xi1>
    %355 = vector.broadcast %354 : vector<8x1xi1> to vector<8x32xi1>
    %356 = arith.select %355, %343, %305 : vector<8x32xi1>, vector<8x32xf32>
    %357 = arith.truncf %356 : vector<8x32xf32> to vector<8x32xbf16>
    %c0_191 = arith.constant 0 : index
    %c6 = arith.constant 6 : index
    %c0_192 = arith.constant 0 : index
    %358 = vector.load %arg16[%c0_191, %c6, %c0_192] : memref<8x8x32xf32, #tpu.memory_space<vmem>>, vector<8x1x32xf32>
    %359 = vector.shape_cast %358 : vector<8x1x32xf32> to vector<8x32xf32>
    %cst_193 = arith.constant dense<0.000000e+00> : vector<8x32xf32>
    %360 = tpu.matmul %357, %39, %cst_193 {dimension_numbers = #tpu.dot_dimension_numbers<[1], [0], [0], [1], [0, 0, 1, 1], [], []>} : vector<8x32xbf16>, vector<32x32xbf16>, vector<8x32xf32> -> vector<8x32xf32>
    %361 = arith.addf %359, %360 : vector<8x32xf32>
    %c0_194 = arith.constant 0 : index
    %c6_195 = arith.constant 6 : index
    %c0_196 = arith.constant 0 : index
    %362 = vector.load %arg17[%c0_194, %c6_195, %c0_196] : memref<8x8x32xf32, #tpu.memory_space<vmem>>, vector<8x1x32xf32>
    %363 = vector.shape_cast %362 : vector<8x1x32xf32> to vector<8x32xf32>
    %cst_197 = arith.constant dense<0.000000e+00> : vector<8x32xf32>
    %364 = tpu.matmul %357, %41, %cst_197 {dimension_numbers = #tpu.dot_dimension_numbers<[1], [0], [0], [1], [0, 0, 1, 1], [], []>} : vector<8x32xbf16>, vector<32x32xbf16>, vector<8x32xf32> -> vector<8x32xf32>
    %365 = arith.addf %363, %364 : vector<8x32xf32>
    %c0_198 = arith.constant 0 : index
    %c6_199 = arith.constant 6 : index
    %c0_200 = arith.constant 0 : index
    %366 = vector.load %arg18[%c0_198, %c6_199, %c0_200] : memref<8x8x32xf32, #tpu.memory_space<vmem>>, vector<8x1x32xf32>
    %367 = vector.shape_cast %366 : vector<8x1x32xf32> to vector<8x32xf32>
    %cst_201 = arith.constant dense<0.000000e+00> : vector<8x32xf32>
    %368 = tpu.matmul %357, %43, %cst_201 {dimension_numbers = #tpu.dot_dimension_numbers<[1], [0], [0], [1], [0, 0, 1, 1], [], []>} : vector<8x32xbf16>, vector<32x32xbf16>, vector<8x32xf32> -> vector<8x32xf32>
    %369 = arith.addf %367, %368 : vector<8x32xf32>
    %c0_202 = arith.constant 0 : index
    %c6_203 = arith.constant 6 : index
    %c0_204 = arith.constant 0 : index
    %370 = vector.load %arg19[%c0_202, %c6_203, %c0_204] : memref<8x8x32xf32, #tpu.memory_space<vmem>>, vector<8x1x32xf32>
    %371 = vector.shape_cast %370 : vector<8x1x32xf32> to vector<8x32xf32>
    %cst_205 = arith.constant dense<0.000000e+00> : vector<8x32xf32>
    %372 = tpu.matmul %357, %45, %cst_205 {dimension_numbers = #tpu.dot_dimension_numbers<[1], [0], [0], [1], [0, 0, 1, 1], [], []>} : vector<8x32xbf16>, vector<32x32xbf16>, vector<8x32xf32> -> vector<8x32xf32>
    %373 = arith.addf %371, %372 : vector<8x32xf32>
    %374 = arith.negf %361 : vector<8x32xf32>
    %375 = math.exp %374 : vector<8x32xf32>
    %cst_206 = arith.constant 1.000000e+00 : f32
    %376 = vector.broadcast %cst_206 : f32 to vector<8x32xf32>
    %377 = arith.addf %376, %375 : vector<8x32xf32>
    %378 = arith.divf %376, %377 : vector<8x32xf32>
    %379 = arith.negf %365 : vector<8x32xf32>
    %380 = math.exp %379 : vector<8x32xf32>
    %cst_207 = arith.constant 1.000000e+00 : f32
    %381 = vector.broadcast %cst_207 : f32 to vector<8x32xf32>
    %382 = arith.addf %381, %380 : vector<8x32xf32>
    %383 = arith.divf %381, %382 : vector<8x32xf32>
    %384 = math.tanh %369 : vector<8x32xf32>
    %385 = arith.negf %373 : vector<8x32xf32>
    %386 = math.exp %385 : vector<8x32xf32>
    %cst_208 = arith.constant 1.000000e+00 : f32
    %387 = vector.broadcast %cst_208 : f32 to vector<8x32xf32>
    %388 = arith.addf %387, %386 : vector<8x32xf32>
    %389 = arith.divf %387, %388 : vector<8x32xf32>
    %390 = arith.mulf %383, %353 : vector<8x32xf32>
    %391 = arith.mulf %378, %384 : vector<8x32xf32>
    %392 = arith.addf %390, %391 : vector<8x32xf32>
    %393 = math.tanh %392 : vector<8x32xf32>
    %394 = arith.mulf %389, %393 : vector<8x32xf32>
    %395 = vector.extract_strided_slice %48 {offsets = [0, 6], sizes = [8, 1], strides = [1, 1]} : vector<8x8xi1> to vector<8x1xi1>
    %cst_209 = arith.constant 0.000000e+00 : f32
    %396 = vector.shape_cast %395 : vector<8x1xi1> to vector<8x1xi1>
    %397 = vector.broadcast %396 : vector<8x1xi1> to vector<8x32xi1>
    %398 = vector.broadcast %cst_209 : f32 to vector<8x32xf32>
    %399 = arith.select %397, %394, %398 : vector<8x32xi1>, vector<8x32xf32>
    %400 = vector.shape_cast %399 : vector<8x32xf32> to vector<8x1x32xf32>
    %c0_210 = arith.constant 0 : index
    %c6_211 = arith.constant 6 : index
    %c0_212 = arith.constant 0 : index
    %401 = vector.load %arg20[%c0_210, %c6_211, %c0_212] : memref<8x8x32xf32, #tpu.memory_space<vmem>>, vector<8x1x32xf32>
    tpu.vector_store %arg20[%c0_210, %c6_211, %c0_212], %400 {strides = array<i32>} : memref<8x8x32xf32, #tpu.memory_space<vmem>>, vector<8x1x32xf32>,
    %402 = vector.shape_cast %395 : vector<8x1xi1> to vector<8x1xi1>
    %403 = vector.broadcast %402 : vector<8x1xi1> to vector<8x32xi1>
    %404 = arith.select %403, %392, %353 : vector<8x32xi1>, vector<8x32xf32>
    %405 = vector.shape_cast %395 : vector<8x1xi1> to vector<8x1xi1>
    %406 = vector.broadcast %405 : vector<8x1xi1> to vector<8x32xi1>
    %407 = arith.select %406, %394, %356 : vector<8x32xi1>, vector<8x32xf32>
    %408 = arith.truncf %407 : vector<8x32xf32> to vector<8x32xbf16>
    %c0_213 = arith.constant 0 : index
    %c7 = arith.constant 7 : index
    %c0_214 = arith.constant 0 : index
    %409 = vector.load %arg16[%c0_213, %c7, %c0_214] : memref<8x8x32xf32, #tpu.memory_space<vmem>>, vector<8x1x32xf32>
    %410 = vector.shape_cast %409 : vector<8x1x32xf32> to vector<8x32xf32>
    %cst_215 = arith.constant dense<0.000000e+00> : vector<8x32xf32>
    %411 = tpu.matmul %408, %39, %cst_215 {dimension_numbers = #tpu.dot_dimension_numbers<[1], [0], [0], [1], [0, 0, 1, 1], [], []>} : vector<8x32xbf16>, vector<32x32xbf16>, vector<8x32xf32> -> vector<8x32xf32>
    %412 = arith.addf %410, %411 : vector<8x32xf32>
    %c0_216 = arith.constant 0 : index
    %c7_217 = arith.constant 7 : index
    %c0_218 = arith.constant 0 : index
    %413 = vector.load %arg17[%c0_216, %c7_217, %c0_218] : memref<8x8x32xf32, #tpu.memory_space<vmem>>, vector<8x1x32xf32>
    %414 = vector.shape_cast %413 : vector<8x1x32xf32> to vector<8x32xf32>
    %cst_219 = arith.constant dense<0.000000e+00> : vector<8x32xf32>
    %415 = tpu.matmul %408, %41, %cst_219 {dimension_numbers = #tpu.dot_dimension_numbers<[1], [0], [0], [1], [0, 0, 1, 1], [], []>} : vector<8x32xbf16>, vector<32x32xbf16>, vector<8x32xf32> -> vector<8x32xf32>
    %416 = arith.addf %414, %415 : vector<8x32xf32>
    %c0_220 = arith.constant 0 : index
    %c7_221 = arith.constant 7 : index
    %c0_222 = arith.constant 0 : index
    %417 = vector.load %arg18[%c0_220, %c7_221, %c0_222] : memref<8x8x32xf32, #tpu.memory_space<vmem>>, vector<8x1x32xf32>
    %418 = vector.shape_cast %417 : vector<8x1x32xf32> to vector<8x32xf32>
    %cst_223 = arith.constant dense<0.000000e+00> : vector<8x32xf32>
    %419 = tpu.matmul %408, %43, %cst_223 {dimension_numbers = #tpu.dot_dimension_numbers<[1], [0], [0], [1], [0, 0, 1, 1], [], []>} : vector<8x32xbf16>, vector<32x32xbf16>, vector<8x32xf32> -> vector<8x32xf32>
    %420 = arith.addf %418, %419 : vector<8x32xf32>
    %c0_224 = arith.constant 0 : index
    %c7_225 = arith.constant 7 : index
    %c0_226 = arith.constant 0 : index
    %421 = vector.load %arg19[%c0_224, %c7_225, %c0_226] : memref<8x8x32xf32, #tpu.memory_space<vmem>>, vector<8x1x32xf32>
    %422 = vector.shape_cast %421 : vector<8x1x32xf32> to vector<8x32xf32>
    %cst_227 = arith.constant dense<0.000000e+00> : vector<8x32xf32>
    %423 = tpu.matmul %408, %45, %cst_227 {dimension_numbers = #tpu.dot_dimension_numbers<[1], [0], [0], [1], [0, 0, 1, 1], [], []>} : vector<8x32xbf16>, vector<32x32xbf16>, vector<8x32xf32> -> vector<8x32xf32>
    %424 = arith.addf %422, %423 : vector<8x32xf32>
    %425 = arith.negf %412 : vector<8x32xf32>
    %426 = math.exp %425 : vector<8x32xf32>
    %cst_228 = arith.constant 1.000000e+00 : f32
    %427 = vector.broadcast %cst_228 : f32 to vector<8x32xf32>
    %428 = arith.addf %427, %426 : vector<8x32xf32>
    %429 = arith.divf %427, %428 : vector<8x32xf32>
    %430 = arith.negf %416 : vector<8x32xf32>
    %431 = math.exp %430 : vector<8x32xf32>
    %cst_229 = arith.constant 1.000000e+00 : f32
    %432 = vector.broadcast %cst_229 : f32 to vector<8x32xf32>
    %433 = arith.addf %432, %431 : vector<8x32xf32>
    %434 = arith.divf %432, %433 : vector<8x32xf32>
    %435 = math.tanh %420 : vector<8x32xf32>
    %436 = arith.negf %424 : vector<8x32xf32>
    %437 = math.exp %436 : vector<8x32xf32>
    %cst_230 = arith.constant 1.000000e+00 : f32
    %438 = vector.broadcast %cst_230 : f32 to vector<8x32xf32>
    %439 = arith.addf %438, %437 : vector<8x32xf32>
    %440 = arith.divf %438, %439 : vector<8x32xf32>
    %441 = arith.mulf %434, %404 : vector<8x32xf32>
    %442 = arith.mulf %429, %435 : vector<8x32xf32>
    %443 = arith.addf %441, %442 : vector<8x32xf32>
    %444 = math.tanh %443 : vector<8x32xf32>
    %445 = arith.mulf %440, %444 : vector<8x32xf32>
    %446 = vector.extract_strided_slice %48 {offsets = [0, 7], sizes = [8, 1], strides = [1, 1]} : vector<8x8xi1> to vector<8x1xi1>
    %cst_231 = arith.constant 0.000000e+00 : f32
    %447 = vector.shape_cast %446 : vector<8x1xi1> to vector<8x1xi1>
    %448 = vector.broadcast %447 : vector<8x1xi1> to vector<8x32xi1>
    %449 = vector.broadcast %cst_231 : f32 to vector<8x32xf32>
    %450 = arith.select %448, %445, %449 : vector<8x32xi1>, vector<8x32xf32>
    %451 = vector.shape_cast %450 : vector<8x32xf32> to vector<8x1x32xf32>
    %c0_232 = arith.constant 0 : index
    %c7_233 = arith.constant 7 : index
    %c0_234 = arith.constant 0 : index
    %452 = vector.load %arg20[%c0_232, %c7_233, %c0_234] : memref<8x8x32xf32, #tpu.memory_space<vmem>>, vector<8x1x32xf32>
    tpu.vector_store %arg20[%c0_232, %c7_233, %c0_234], %451 {strides = array<i32>} : memref<8x8x32xf32, #tpu.memory_space<vmem>>, vector<8x1x32xf32>,
    %453 = vector.shape_cast %446 : vector<8x1xi1> to vector<8x1xi1>
    %454 = vector.broadcast %453 : vector<8x1xi1> to vector<8x32xi1>
    %455 = arith.select %454, %445, %407 : vector<8x32xi1>, vector<8x32xf32>
    %c0_235 = arith.constant 0 : index
    %c0_236 = arith.constant 0 : index
    %456 = vector.load %arg14[%c0_235, %c0_236] : memref<8x32xf32, #tpu.memory_space<vmem>>, vector<8x32xf32>
    tpu.vector_store %arg14[%c0_235, %c0_236], %455 {strides = array<i32>} : memref<8x32xf32, #tpu.memory_space<vmem>>, vector<8x32xf32>,
    %c0_237 = arith.constant 0 : index
    %c0_238 = arith.constant 0 : index
    %c0_239 = arith.constant 0 : index
    %457 = vector.load %arg20[%c0_237, %c0_238, %c0_239] : memref<8x8x32xf32, #tpu.memory_space<vmem>>, vector<8x8x32xf32>
    %c0_240 = arith.constant 0 : index
    %c0_241 = arith.constant 0 : index
    %458 = vector.load %arg11[%c0_240, %c0_241] : memref<1x32xf32, #tpu.memory_space<vmem>>, vector<1x32xf32>
    %c0_242 = arith.constant 0 : index
    %459 = memref.load %arg12[%c0_242] : memref<1xf32, #tpu.memory_space<smem>>
    %460 = arith.truncf %455 : vector<8x32xf32> to vector<8x32xbf16>
    %cst_243 = arith.constant 0.000000e+00 : f32
    %461 = vector.broadcast %cst_243 : f32 to vector<8x32xf32>
    %c0_244 = arith.constant 0 : index
    %c0_245 = arith.constant 0 : index
    %c0_246 = arith.constant 0 : index
    %462 = vector.load %arg6[%c0_244, %c0_245, %c0_246] : memref<3x32x32xbf16, #tpu.memory_space<vmem>>, vector<1x32x32xbf16>
    %463 = vector.shape_cast %462 : vector<1x32x32xbf16> to vector<32x32xbf16>
    %cst_247 = arith.constant dense<0.000000e+00> : vector<8x32xf32>
    %464 = tpu.matmul %460, %463, %cst_247 {dimension_numbers = #tpu.dot_dimension_numbers<[1], [0], [0], [1], [0, 0, 1, 1], [], []>} : vector<8x32xbf16>, vector<32x32xbf16>, vector<8x32xf32> -> vector<8x32xf32>
    %c0_248 = arith.constant 0 : index
    %c0_249 = arith.constant 0 : index
    %c0_250 = arith.constant 0 : index
    %465 = vector.load %arg7[%c0_248, %c0_249, %c0_250] : memref<3x1x32xf32, #tpu.memory_space<vmem>>, vector<1x1x32xf32>
    %466 = vector.shape_cast %465 : vector<1x1x32xf32> to vector<1x32xf32>
    %467 = vector.broadcast %466 : vector<1x32xf32> to vector<8x32xf32>
    %468 = arith.addf %464, %467 : vector<8x32xf32>
    %469 = arith.truncf %461 : vector<8x32xf32> to vector<8x32xbf16>
    %c0_251 = arith.constant 0 : index
    %c0_252 = arith.constant 0 : index
    %470 = vector.load %arg8[%c0_251, %c0_252] : memref<32x32xbf16, #tpu.memory_space<vmem>>, vector<32x32xbf16>
    %cst_253 = arith.constant dense<0.000000e+00> : vector<8x32xf32>
    %471 = tpu.matmul %469, %470, %cst_253 {dimension_numbers = #tpu.dot_dimension_numbers<[1], [0], [0], [1], [0, 0, 1, 1], [], []>} : vector<8x32xbf16>, vector<32x32xbf16>, vector<8x32xf32> -> vector<8x32xf32>
    %472 = arith.truncf %468 : vector<8x32xf32> to vector<8x32xbf16>
    %c0_254 = arith.constant 0 : index
    %c0_255 = arith.constant 0 : index
    %473 = vector.load %arg9[%c0_254, %c0_255] : memref<32x32xbf16, #tpu.memory_space<vmem>>, vector<32x32xbf16>
    %cst_256 = arith.constant dense<0.000000e+00> : vector<8x32xf32>
    %474 = tpu.matmul %472, %473, %cst_256 {dimension_numbers = #tpu.dot_dimension_numbers<[1], [0], [0], [1], [0, 0, 1, 1], [], []>} : vector<8x32xbf16>, vector<32x32xbf16>, vector<8x32xf32> -> vector<8x32xf32>
    %475 = arith.addf %471, %474 : vector<8x32xf32>
    %c0_257 = arith.constant 0 : index
    %c0_258 = arith.constant 0 : index
    %476 = vector.load %arg10[%c0_257, %c0_258] : memref<1x32xf32, #tpu.memory_space<vmem>>, vector<1x32xf32>
    %477 = vector.broadcast %476 : vector<1x32xf32> to vector<8x32xf32>
    %478 = arith.addf %475, %477 : vector<8x32xf32>
    %479 = vector.broadcast %458 : vector<1x32xf32> to vector<8x32xf32>
    %480 = arith.mulf %478, %479 : vector<8x32xf32>
    %481 = vector.shape_cast %480 : vector<8x32xf32> to vector<8x1x32xf32>
    %482 = vector.broadcast %481 : vector<8x1x32xf32> to vector<8x8x32xf32>
    %483 = arith.mulf %457, %482 : vector<8x8x32xf32>
    %cst_259 = arith.constant dense<0.000000e+00> : vector<8x8xf32>
    %484 = vector.multi_reduction <add>, %483, %cst_259 [2] : vector<8x8x32xf32> to vector<8x8xf32>
    %485 = vector.broadcast %459 : f32 to vector<8x8xf32>
    %486 = arith.addf %484, %485 : vector<8x8xf32>
    %cst_260 = arith.constant -1.000000e+20 : f32
    %487 = vector.broadcast %cst_260 : f32 to vector<8x8xf32>
    %488 = arith.select %48, %486, %487 : vector<8x8xi1>, vector<8x8xf32>
    %cst_261 = arith.constant dense<0xFF800000> : vector<8xf32>
    %489 = vector.multi_reduction <maximumf>, %488, %cst_261 [1] : vector<8x8xf32> to vector<8xf32>
    %490 = vector.shape_cast %489 : vector<8xf32> to vector<8x1xf32>
    %491 = vector.broadcast %490 : vector<8x1xf32> to vector<8x8xf32>
    %492 = arith.subf %488, %491 : vector<8x8xf32>
    %493 = math.exp %492 : vector<8x8xf32>
    %cst_262 = arith.constant dense<0.000000e+00> : vector<8xf32>
    %494 = vector.multi_reduction <add>, %493, %cst_262 [1] : vector<8x8xf32> to vector<8xf32>
    %495 = vector.shape_cast %494 : vector<8xf32> to vector<8x1xf32>
    %496 = tpu.reciprocal %495 {approx = true} : vector<8x1xf32> -> vector<8x1xf32>
    %497 = vector.broadcast %496 : vector<8x1xf32> to vector<8x8xf32>
    %498 = arith.mulf %493, %497 : vector<8x8xf32>
    %499 = vector.shape_cast %498 : vector<8x8xf32> to vector<8x8x1xf32>
    %500 = vector.broadcast %499 : vector<8x8x1xf32> to vector<8x8x32xf32>
    %501 = arith.mulf %500, %457 : vector<8x8x32xf32>
    %cst_263 = arith.constant dense<0.000000e+00> : vector<8x32xf32>
    %502 = vector.multi_reduction <add>, %501, %cst_263 [1] : vector<8x8x32xf32> to vector<8x32xf32>
    %c0_264 = arith.constant 0 : index
    %c0_265 = arith.constant 0 : index
    %c0_266 = arith.constant 0 : index
    %503 = vector.load %arg13[%c0_264, %c0_265, %c0_266] : memref<3x8x32xf32, #tpu.memory_space<vmem>>, vector<1x8x32xf32>
    %504 = vector.shape_cast %503 : vector<1x8x32xf32> to vector<8x32xf32>
    %505 = vector.shape_cast %502 : vector<8x32xf32> to vector<1x8x32xf32>
    tpu.vector_store %arg13[%c0_264, %c0_265, %c0_266], %505 {strides = array<i32>} : memref<3x8x32xf32, #tpu.memory_space<vmem>>, vector<1x8x32xf32>,
    %c0_267 = arith.constant 0 : index
    %c0_268 = arith.constant 0 : index
    %c0_269 = arith.constant 0 : index
    %506 = vector.load %arg15[%c0_267, %c0_268, %c0_269] : memref<3x8x8xf32, #tpu.memory_space<vmem>>, vector<1x8x8xf32>
    %507 = vector.shape_cast %506 : vector<1x8x8xf32> to vector<8x8xf32>
    %508 = vector.shape_cast %498 : vector<8x8xf32> to vector<1x8x8xf32>
    tpu.vector_store %arg15[%c0_267, %c0_268, %c0_269], %508 {strides = array<i32>} : memref<3x8x8xf32, #tpu.memory_space<vmem>>, vector<1x8x8xf32>,
    %c1_270 = arith.constant 1 : index
    %c0_271 = arith.constant 0 : index
    %c0_272 = arith.constant 0 : index
    %509 = vector.load %arg6[%c1_270, %c0_271, %c0_272] : memref<3x32x32xbf16, #tpu.memory_space<vmem>>, vector<1x32x32xbf16>
    %510 = vector.shape_cast %509 : vector<1x32x32xbf16> to vector<32x32xbf16>
    %cst_273 = arith.constant dense<0.000000e+00> : vector<8x32xf32>
    %511 = tpu.matmul %460, %510, %cst_273 {dimension_numbers = #tpu.dot_dimension_numbers<[1], [0], [0], [1], [0, 0, 1, 1], [], []>} : vector<8x32xbf16>, vector<32x32xbf16>, vector<8x32xf32> -> vector<8x32xf32>
    %c1_274 = arith.constant 1 : index
    %c0_275 = arith.constant 0 : index
    %c0_276 = arith.constant 0 : index
    %512 = vector.load %arg7[%c1_274, %c0_275, %c0_276] : memref<3x1x32xf32, #tpu.memory_space<vmem>>, vector<1x1x32xf32>
    %513 = vector.shape_cast %512 : vector<1x1x32xf32> to vector<1x32xf32>
    %514 = vector.broadcast %513 : vector<1x32xf32> to vector<8x32xf32>
    %515 = arith.addf %511, %514 : vector<8x32xf32>
    %516 = arith.truncf %502 : vector<8x32xf32> to vector<8x32xbf16>
    %c0_277 = arith.constant 0 : index
    %c0_278 = arith.constant 0 : index
    %517 = vector.load %arg8[%c0_277, %c0_278] : memref<32x32xbf16, #tpu.memory_space<vmem>>, vector<32x32xbf16>
    %cst_279 = arith.constant dense<0.000000e+00> : vector<8x32xf32>
    %518 = tpu.matmul %516, %517, %cst_279 {dimension_numbers = #tpu.dot_dimension_numbers<[1], [0], [0], [1], [0, 0, 1, 1], [], []>} : vector<8x32xbf16>, vector<32x32xbf16>, vector<8x32xf32> -> vector<8x32xf32>
    %519 = arith.truncf %515 : vector<8x32xf32> to vector<8x32xbf16>
    %c0_280 = arith.constant 0 : index
    %c0_281 = arith.constant 0 : index
    %520 = vector.load %arg9[%c0_280, %c0_281] : memref<32x32xbf16, #tpu.memory_space<vmem>>, vector<32x32xbf16>
    %cst_282 = arith.constant dense<0.000000e+00> : vector<8x32xf32>
    %521 = tpu.matmul %519, %520, %cst_282 {dimension_numbers = #tpu.dot_dimension_numbers<[1], [0], [0], [1], [0, 0, 1, 1], [], []>} : vector<8x32xbf16>, vector<32x32xbf16>, vector<8x32xf32> -> vector<8x32xf32>
    %522 = arith.addf %518, %521 : vector<8x32xf32>
    %c0_283 = arith.constant 0 : index
    %c0_284 = arith.constant 0 : index
    %523 = vector.load %arg10[%c0_283, %c0_284] : memref<1x32xf32, #tpu.memory_space<vmem>>, vector<1x32xf32>
    %524 = vector.broadcast %523 : vector<1x32xf32> to vector<8x32xf32>
    %525 = arith.addf %522, %524 : vector<8x32xf32>
    %526 = vector.broadcast %458 : vector<1x32xf32> to vector<8x32xf32>
    %527 = arith.mulf %525, %526 : vector<8x32xf32>
    %528 = vector.shape_cast %527 : vector<8x32xf32> to vector<8x1x32xf32>
    %529 = vector.broadcast %528 : vector<8x1x32xf32> to vector<8x8x32xf32>
    %530 = arith.mulf %457, %529 : vector<8x8x32xf32>
    %cst_285 = arith.constant dense<0.000000e+00> : vector<8x8xf32>
    %531 = vector.multi_reduction <add>, %530, %cst_285 [2] : vector<8x8x32xf32> to vector<8x8xf32>
    %532 = vector.broadcast %459 : f32 to vector<8x8xf32>
    %533 = arith.addf %531, %532 : vector<8x8xf32>
    %cst_286 = arith.constant -1.000000e+20 : f32
    %534 = vector.broadcast %cst_286 : f32 to vector<8x8xf32>
    %535 = arith.select %48, %533, %534 : vector<8x8xi1>, vector<8x8xf32>
    %cst_287 = arith.constant dense<0xFF800000> : vector<8xf32>
    %536 = vector.multi_reduction <maximumf>, %535, %cst_287 [1] : vector<8x8xf32> to vector<8xf32>
    %537 = vector.shape_cast %536 : vector<8xf32> to vector<8x1xf32>
    %538 = vector.broadcast %537 : vector<8x1xf32> to vector<8x8xf32>
    %539 = arith.subf %535, %538 : vector<8x8xf32>
    %540 = math.exp %539 : vector<8x8xf32>
    %cst_288 = arith.constant dense<0.000000e+00> : vector<8xf32>
    %541 = vector.multi_reduction <add>, %540, %cst_288 [1] : vector<8x8xf32> to vector<8xf32>
    %542 = vector.shape_cast %541 : vector<8xf32> to vector<8x1xf32>
    %543 = tpu.reciprocal %542 {approx = true} : vector<8x1xf32> -> vector<8x1xf32>
    %544 = vector.broadcast %543 : vector<8x1xf32> to vector<8x8xf32>
    %545 = arith.mulf %540, %544 : vector<8x8xf32>
    %546 = vector.shape_cast %545 : vector<8x8xf32> to vector<8x8x1xf32>
    %547 = vector.broadcast %546 : vector<8x8x1xf32> to vector<8x8x32xf32>
    %548 = arith.mulf %547, %457 : vector<8x8x32xf32>
    %cst_289 = arith.constant dense<0.000000e+00> : vector<8x32xf32>
    %549 = vector.multi_reduction <add>, %548, %cst_289 [1] : vector<8x8x32xf32> to vector<8x32xf32>
    %c1_290 = arith.constant 1 : index
    %c0_291 = arith.constant 0 : index
    %c0_292 = arith.constant 0 : index
    %550 = vector.load %arg13[%c1_290, %c0_291, %c0_292] : memref<3x8x32xf32, #tpu.memory_space<vmem>>, vector<1x8x32xf32>
    %551 = vector.shape_cast %550 : vector<1x8x32xf32> to vector<8x32xf32>
    %552 = vector.shape_cast %549 : vector<8x32xf32> to vector<1x8x32xf32>
    tpu.vector_store %arg13[%c1_290, %c0_291, %c0_292], %552 {strides = array<i32>} : memref<3x8x32xf32, #tpu.memory_space<vmem>>, vector<1x8x32xf32>,
    %c1_293 = arith.constant 1 : index
    %c0_294 = arith.constant 0 : index
    %c0_295 = arith.constant 0 : index
    %553 = vector.load %arg15[%c1_293, %c0_294, %c0_295] : memref<3x8x8xf32, #tpu.memory_space<vmem>>, vector<1x8x8xf32>
    %554 = vector.shape_cast %553 : vector<1x8x8xf32> to vector<8x8xf32>
    %555 = vector.shape_cast %545 : vector<8x8xf32> to vector<1x8x8xf32>
    tpu.vector_store %arg15[%c1_293, %c0_294, %c0_295], %555 {strides = array<i32>} : memref<3x8x8xf32, #tpu.memory_space<vmem>>, vector<1x8x8xf32>,
    %c2_296 = arith.constant 2 : index
    %c0_297 = arith.constant 0 : index
    %c0_298 = arith.constant 0 : index
    %556 = vector.load %arg6[%c2_296, %c0_297, %c0_298] : memref<3x32x32xbf16, #tpu.memory_space<vmem>>, vector<1x32x32xbf16>
    %557 = vector.shape_cast %556 : vector<1x32x32xbf16> to vector<32x32xbf16>
    %cst_299 = arith.constant dense<0.000000e+00> : vector<8x32xf32>
    %558 = tpu.matmul %460, %557, %cst_299 {dimension_numbers = #tpu.dot_dimension_numbers<[1], [0], [0], [1], [0, 0, 1, 1], [], []>} : vector<8x32xbf16>, vector<32x32xbf16>, vector<8x32xf32> -> vector<8x32xf32>
    %c2_300 = arith.constant 2 : index
    %c0_301 = arith.constant 0 : index
    %c0_302 = arith.constant 0 : index
    %559 = vector.load %arg7[%c2_300, %c0_301, %c0_302] : memref<3x1x32xf32, #tpu.memory_space<vmem>>, vector<1x1x32xf32>
    %560 = vector.shape_cast %559 : vector<1x1x32xf32> to vector<1x32xf32>
    %561 = vector.broadcast %560 : vector<1x32xf32> to vector<8x32xf32>
    %562 = arith.addf %558, %561 : vector<8x32xf32>
    %563 = arith.truncf %549 : vector<8x32xf32> to vector<8x32xbf16>
    %c0_303 = arith.constant 0 : index
    %c0_304 = arith.constant 0 : index
    %564 = vector.load %arg8[%c0_303, %c0_304] : memref<32x32xbf16, #tpu.memory_space<vmem>>, vector<32x32xbf16>
    %cst_305 = arith.constant dense<0.000000e+00> : vector<8x32xf32>
    %565 = tpu.matmul %563, %564, %cst_305 {dimension_numbers = #tpu.dot_dimension_numbers<[1], [0], [0], [1], [0, 0, 1, 1], [], []>} : vector<8x32xbf16>, vector<32x32xbf16>, vector<8x32xf32> -> vector<8x32xf32>
    %566 = arith.truncf %562 : vector<8x32xf32> to vector<8x32xbf16>
    %c0_306 = arith.constant 0 : index
    %c0_307 = arith.constant 0 : index
    %567 = vector.load %arg9[%c0_306, %c0_307] : memref<32x32xbf16, #tpu.memory_space<vmem>>, vector<32x32xbf16>
    %cst_308 = arith.constant dense<0.000000e+00> : vector<8x32xf32>
    %568 = tpu.matmul %566, %567, %cst_308 {dimension_numbers = #tpu.dot_dimension_numbers<[1], [0], [0], [1], [0, 0, 1, 1], [], []>} : vector<8x32xbf16>, vector<32x32xbf16>, vector<8x32xf32> -> vector<8x32xf32>
    %569 = arith.addf %565, %568 : vector<8x32xf32>
    %c0_309 = arith.constant 0 : index
    %c0_310 = arith.constant 0 : index
    %570 = vector.load %arg10[%c0_309, %c0_310] : memref<1x32xf32, #tpu.memory_space<vmem>>, vector<1x32xf32>
    %571 = vector.broadcast %570 : vector<1x32xf32> to vector<8x32xf32>
    %572 = arith.addf %569, %571 : vector<8x32xf32>
    %573 = vector.broadcast %458 : vector<1x32xf32> to vector<8x32xf32>
    %574 = arith.mulf %572, %573 : vector<8x32xf32>
    %575 = vector.shape_cast %574 : vector<8x32xf32> to vector<8x1x32xf32>
    %576 = vector.broadcast %575 : vector<8x1x32xf32> to vector<8x8x32xf32>
    %577 = arith.mulf %457, %576 : vector<8x8x32xf32>
    %cst_311 = arith.constant dense<0.000000e+00> : vector<8x8xf32>
    %578 = vector.multi_reduction <add>, %577, %cst_311 [2] : vector<8x8x32xf32> to vector<8x8xf32>
    %579 = vector.broadcast %459 : f32 to vector<8x8xf32>
    %580 = arith.addf %578, %579 : vector<8x8xf32>
    %cst_312 = arith.constant -1.000000e+20 : f32
    %581 = vector.broadcast %cst_312 : f32 to vector<8x8xf32>
    %582 = arith.select %48, %580, %581 : vector<8x8xi1>, vector<8x8xf32>
    %cst_313 = arith.constant dense<0xFF800000> : vector<8xf32>
    %583 = vector.multi_reduction <maximumf>, %582, %cst_313 [1] : vector<8x8xf32> to vector<8xf32>
    %584 = vector.shape_cast %583 : vector<8xf32> to vector<8x1xf32>
    %585 = vector.broadcast %584 : vector<8x1xf32> to vector<8x8xf32>
    %586 = arith.subf %582, %585 : vector<8x8xf32>
    %587 = math.exp %586 : vector<8x8xf32>
    %cst_314 = arith.constant dense<0.000000e+00> : vector<8xf32>
    %588 = vector.multi_reduction <add>, %587, %cst_314 [1] : vector<8x8xf32> to vector<8xf32>
    %589 = vector.shape_cast %588 : vector<8xf32> to vector<8x1xf32>
    %590 = tpu.reciprocal %589 {approx = true} : vector<8x1xf32> -> vector<8x1xf32>
    %591 = vector.broadcast %590 : vector<8x1xf32> to vector<8x8xf32>
    %592 = arith.mulf %587, %591 : vector<8x8xf32>
    %593 = vector.shape_cast %592 : vector<8x8xf32> to vector<8x8x1xf32>
    %594 = vector.broadcast %593 : vector<8x8x1xf32> to vector<8x8x32xf32>
    %595 = arith.mulf %594, %457 : vector<8x8x32xf32>
    %cst_315 = arith.constant dense<0.000000e+00> : vector<8x32xf32>
    %596 = vector.multi_reduction <add>, %595, %cst_315 [1] : vector<8x8x32xf32> to vector<8x32xf32>
    %c2_316 = arith.constant 2 : index
    %c0_317 = arith.constant 0 : index
    %c0_318 = arith.constant 0 : index
    %597 = vector.load %arg13[%c2_316, %c0_317, %c0_318] : memref<3x8x32xf32, #tpu.memory_space<vmem>>, vector<1x8x32xf32>
    %598 = vector.shape_cast %597 : vector<1x8x32xf32> to vector<8x32xf32>
    %599 = vector.shape_cast %596 : vector<8x32xf32> to vector<1x8x32xf32>
    tpu.vector_store %arg13[%c2_316, %c0_317, %c0_318], %599 {strides = array<i32>} : memref<3x8x32xf32, #tpu.memory_space<vmem>>, vector<1x8x32xf32>,
    %c2_319 = arith.constant 2 : index
    %c0_320 = arith.constant 0 : index
    %c0_321 = arith.constant 0 : index
    %600 = vector.load %arg15[%c2_319, %c0_320, %c0_321] : memref<3x8x8xf32, #tpu.memory_space<vmem>>, vector<1x8x8xf32>
    %601 = vector.shape_cast %600 : vector<1x8x8xf32> to vector<8x8xf32>
    %602 = vector.shape_cast %592 : vector<8x8xf32> to vector<1x8x8xf32>
    tpu.vector_store %arg15[%c2_319, %c0_320, %c0_321], %602 {strides = array<i32>} : memref<3x8x8xf32, #tpu.memory_space<vmem>>, vector<1x8x8xf32>,
    return
  }
  func.func @transform_0(%arg0: i32) -> (i32, i32, i32) {
    %c0_i32 = arith.constant 0 : i32
    %c0_i32_0 = arith.constant 0 : i32
    %c0_i32_1 = arith.constant 0 : i32
    return %arg0, %c0_i32, %c0_i32_0 : i32, i32, i32
  }
  func.func @transform_1(%arg0: i32) -> (i32, i32) {
    %c0_i32 = arith.constant 0 : i32
    %c0_i32_0 = arith.constant 0 : i32
    return %arg0, %c0_i32 : i32, i32
  }
  func.func @transform_2(%arg0: i32) -> (i32, i32, i32) {
    %c0_i32 = arith.constant 0 : i32
    %c0_i32_0 = arith.constant 0 : i32
    %c0_i32_1 = arith.constant 0 : i32
    %c0_i32_2 = arith.constant 0 : i32
    return %c0_i32, %c0_i32_0, %c0_i32_1 : i32, i32, i32
  }
  func.func @transform_3(%arg0: i32) -> (i32, i32, i32) {
    %c0_i32 = arith.constant 0 : i32
    %c0_i32_0 = arith.constant 0 : i32
    %c0_i32_1 = arith.constant 0 : i32
    %c0_i32_2 = arith.constant 0 : i32
    return %c0_i32, %c0_i32_0, %c0_i32_1 : i32, i32, i32
  }
  func.func @transform_4(%arg0: i32) -> (i32, i32, i32) {
    %c0_i32 = arith.constant 0 : i32
    %c0_i32_0 = arith.constant 0 : i32
    %c0_i32_1 = arith.constant 0 : i32
    %c0_i32_2 = arith.constant 0 : i32
    return %c0_i32, %c0_i32_0, %c0_i32_1 : i32, i32, i32
  }
  func.func @transform_5(%arg0: i32) -> (i32, i32, i32) {
    %c0_i32 = arith.constant 0 : i32
    %c0_i32_0 = arith.constant 0 : i32
    %c0_i32_1 = arith.constant 0 : i32
    %c0_i32_2 = arith.constant 0 : i32
    return %c0_i32, %c0_i32_0, %c0_i32_1 : i32, i32, i32
  }
  func.func @transform_6(%arg0: i32) -> (i32, i32, i32) {
    %c0_i32 = arith.constant 0 : i32
    %c0_i32_0 = arith.constant 0 : i32
    %c0_i32_1 = arith.constant 0 : i32
    %c0_i32_2 = arith.constant 0 : i32
    return %c0_i32, %c0_i32_0, %c0_i32_1 : i32, i32, i32
  }
  func.func @transform_7(%arg0: i32) -> (i32, i32) {
    %c0_i32 = arith.constant 0 : i32
    %c0_i32_0 = arith.constant 0 : i32
    %c0_i32_1 = arith.constant 0 : i32
    return %c0_i32, %c0_i32_0 : i32, i32
  }
  func.func @transform_8(%arg0: i32) -> (i32, i32) {
    %c0_i32 = arith.constant 0 : i32
    %c0_i32_0 = arith.constant 0 : i32
    %c0_i32_1 = arith.constant 0 : i32
    return %c0_i32, %c0_i32_0 : i32, i32
  }
  func.func @transform_9(%arg0: i32) -> (i32, i32) {
    %c0_i32 = arith.constant 0 : i32
    %c0_i32_0 = arith.constant 0 : i32
    %c0_i32_1 = arith.constant 0 : i32
    return %c0_i32, %c0_i32_0 : i32, i32
  }
  func.func @transform_10(%arg0: i32) -> (i32, i32) {
    %c0_i32 = arith.constant 0 : i32
    %c0_i32_0 = arith.constant 0 : i32
    %c0_i32_1 = arith.constant 0 : i32
    return %c0_i32, %c0_i32_0 : i32, i32
  }
  func.func @transform_11(%arg0: i32) -> i32 {
    %c0_i32 = arith.constant 0 : i32
    %c0_i32_0 = arith.constant 0 : i32
    return %c0_i32 : i32
  }
  func.func @transform_12(%arg0: i32) -> (i32, i32, i32) {
    %c0_i32 = arith.constant 0 : i32
    %c0_i32_0 = arith.constant 0 : i32
    %c0_i32_1 = arith.constant 0 : i32
    return %c0_i32, %arg0, %c0_i32_0 : i32, i32, i32
  }
  func.func @transform_13(%arg0: i32) -> (i32, i32) {
    %c0_i32 = arith.constant 0 : i32
    %c0_i32_0 = arith.constant 0 : i32
    return %arg0, %c0_i32 : i32, i32
  }
  func.func @transform_14(%arg0: i32) -> (i32, i32, i32) {
    %c0_i32 = arith.constant 0 : i32
    %c0_i32_0 = arith.constant 0 : i32
    %c0_i32_1 = arith.constant 0 : i32
    return %c0_i32, %arg0, %c0_i32_0 : i32, i32, i32
  }
}

</mosaic_0001>

<llo_original>
// kernel: tpu_custom_call.1
$region0: #{tpu_custom_call.1}
  #allocation0 [shape = 'u32[]', space=smem, size = 0x4, offset = 0x4, fixed_abs, tag = 'smem constant byte address 0x4 - core index']
  #allocation1 [shape = 'u32[144,128]{1,0:T(1,128)}', space=vmem, size = 0x12000, scoped, tag = 'internal scratch']
  #allocation2 [shape = 'f32[8,8,32]{2,1,0:T(8,128)}', space=vmem, size = 0x8000, scoped, tag = 'scratch operand']
  #allocation3 [shape = 'f32[8,8,32]{2,1,0:T(8,128)}', space=vmem, size = 0x8000, scoped, tag = 'scratch operand']
  #allocation4 [shape = 'f32[8,8,32]{2,1,0:T(8,128)}', space=vmem, size = 0x8000, scoped, tag = 'scratch operand']
  #allocation5 [shape = 'f32[8,8,32]{2,1,0:T(8,128)}', space=vmem, size = 0x8000, scoped, tag = 'scratch operand']
  #allocation6 [shape = 'f32[8,8,32]{2,1,0:T(8,128)}', space=vmem, size = 0x8000, scoped, tag = 'scratch operand']
  #allocation7 [shape = 'f32[1]{0:T(128)S(6)}', space=smem, size = 0x200, scoped, tag = 'scoped memory for tpu_custom_call.1']
  %s0 = inlined_call_operand.hbm [shape: bf16[16,8,32], index: 0, kind: input, shape index: {}]
  %s1 = inlined_call_operand.vmem [shape: f32[16,8], index: 1, kind: input, shape index: {}]
  %s2 = inlined_call_operand.hbm [shape: bf16[4,32,32], index: 2, kind: input, shape index: {}]
  %s3 = inlined_call_operand.hbm [shape: bf16[4,32,32], index: 3, kind: input, shape index: {}]
  %s4 = inlined_call_operand.vmem [shape: f32[4,1,32], index: 4, kind: input, shape index: {}]
  %s5 = inlined_call_operand.hbm [shape: bf16[3,32,32], index: 5, kind: input, shape index: {}]
  %s6 = inlined_call_operand.vmem [shape: f32[3,1,32], index: 6, kind: input, shape index: {}]
  %s7 = inlined_call_operand.vmem [shape: bf16[32,32], index: 7, kind: input, shape index: {}]
  %s8 = inlined_call_operand.vmem [shape: bf16[32,32], index: 8, kind: input, shape index: {}]
  %s9 = inlined_call_operand.vmem [shape: f32[1,32], index: 9, kind: input, shape index: {}]
  %s10 = inlined_call_operand.vmem [shape: f32[1,32], index: 10, kind: input, shape index: {}]
  %s11 = inlined_call_operand.<no memory space> [shape: f32[1], index: 11, kind: input, shape index: {}]
  %s12 = inlined_call_operand.hbm [shape: f32[3,16,32], index: 12, kind: output, shape index: {0}]
  %s13 = inlined_call_operand.hbm [shape: f32[16,32], index: 13, kind: output, shape index: {1}]
  %s14 = inlined_call_operand.vmem [shape: f32[3,16,8], index: 14, kind: output, shape index: {2}]
  %15 = xla_tuple %s12, %s13, %s14
  %s16 = sld [smem:[#allocation0]]
  $region147: #{tpu_custom_call.1} parent=0
    _
  %s18 = ssub.s32 1, %s16
  %s19 = scalar_select 0, %s18, %s16
  %20 = sst [smem:[#allocation7]] %s11
  $region1: #{tpu_custom_call.1} parent=0
    #allocation8 [shape = 'u8[32768]{0}', space=vmem, size = 0x8000, scoped, tag = 'input window, operand 0']
    #allocation9 [shape = 's32[2]{0}', space=sflag, size = 0x8, scoped, tag = 'scoped memory for tpu_custom_call.1']
    #allocation10 [shape = 's32[2]{0}', space=sflag, size = 0x8, scoped, tag = 'scoped memory for tpu_custom_call.1']
    #allocation11 [shape = 'u8[32768]{0}', space=vmem, size = 0x8000, scoped, tag = 'input window, operand 2, single buffered']
    #allocation12 [shape = 's32[1]{0}', space=sflag, size = 0x4, scoped, tag = 'scoped memory for tpu_custom_call.1']
    #allocation13 [shape = 'u8[32768]{0}', space=vmem, size = 0x8000, scoped, tag = 'input window, operand 3, single buffered']
    #allocation14 [shape = 'u8[24576]{0}', space=vmem, size = 0x6000, scoped, tag = 'input window, operand 5, single buffered']
    #allocation15 [shape = 's32[1]{0}', space=sflag, size = 0x4, scoped, tag = 'scoped memory for tpu_custom_call.1']
    #allocation16 [shape = 'u8[24576]{0}', space=vmem, size = 0x6000, scoped, tag = 'output window, operand 0']
    #allocation17 [shape = 'u8[8192]{0}', space=vmem, size = 0x2000, scoped, tag = 'output window, operand 1']
    #allocation18 [shape = 's32[2]{0}', space=sflag, size = 0x8, scoped, tag = 'scoped memory for tpu_custom_call.1']
    #allocation19 [shape = 'u8[24576]{0}', space=vmem, size = 0x6000, scoped, tag = 'output window, operand 2']
    %21 = vsyncpa [#allocation9], 0
    %s22 = scalar_lea.sflag [#allocation9], 1
    %23 = vsyncpa %s22, 0
    %24 = vsyncpa [#allocation12], 0
    %25 = vsyncpa [#allocation15], 0
    %26 = vsyncpa [#allocation10], 0
    %s27 = scalar_lea.sflag [#allocation10], 1
    %28 = vsyncpa %s27, 0
    %29 = vsyncpa [#allocation18], 0
    %s30 = scalar_lea.sflag [#allocation18], 1
    %31 = vsyncpa %s30, 0
    loop: start=0, step=1, limit=4
    $region2: #{tpu_custom_call.1} parent=1 // loop_pre_header
      _
    $region3: #{tpu_custom_call.1} parent=1 // loop_header
      %s33 = sphi 0, %s37
      %p34 = scmp.ge.s32.totalorder %s33, 4
      %s43 = sphi 0, %s45
      %s46 = sphi 0, %s43
      %s47 = sphi 0, %s46
      %s63 = sphi 0, %s47
      %s69 = sphi 0, %s71
      %s72 = sphi 0, %s69
      %s73 = sphi 0, %s72
      %s89 = sphi 0, %s73
      %s93 = sphi 0, %s93
      %s95 = sphi 0, %s93
      %s96 = sphi 0, %s95
      %s110 = sphi 0, %s96
      %s114 = sphi 0, %s114
      %s116 = sphi 0, %s114
      %s117 = sphi 0, %s116
      %s131 = sphi 0, %s117
      %s135 = sphi 0, %s135
      %s137 = sphi 0, %s135
      %s138 = sphi 0, %s137
      %s152 = sphi 0, %s138
      %s156 = sphi 0, %s156
      %s158 = sphi 0, %s156
      %s159 = sphi 0, %s158
      %s173 = sphi 0, %s159
      %s177 = sphi 0, %s177
      %s179 = sphi 0, %s177
      %s180 = sphi 0, %s179
      %s194 = sphi 0, %s180
      %s198 = sphi 0, %s198
      %s200 = sphi 0, %s198
      %s201 = sphi 0, %s200
      %s215 = sphi 0, %s201
      %s219 = sphi 0, %s219
      %s221 = sphi 0, %s219
      %s222 = sphi 0, %s221
      %s236 = sphi 0, %s222
      %s240 = sphi 0, %s240
      %s242 = sphi 0, %s240
      %s243 = sphi 0, %s242
      %s257 = sphi 0, %s243
      %s261 = sphi 0, %s261
      %s263 = sphi 0, %s261
      %s264 = sphi 0, %s263
      %s278 = sphi 0, %s264
      %s282 = sphi 0, %s282
      %s284 = sphi 0, %s282
      %s285 = sphi 0, %s284
      %s299 = sphi 0, %s285
      %s305 = sphi 0, %s307
      %s308 = sphi 0, %s305
      %s309 = sphi 0, %s308
      %s325 = sphi 0, %s309
      %s331 = sphi 0, %s333
      %s334 = sphi 0, %s331
      %s335 = sphi 0, %s334
      %s351 = sphi 0, %s335
      %s357 = sphi 0, %s359
      %s360 = sphi 0, %s357
      %s361 = sphi 0, %s360
      %s377 = sphi 0, %s361
    $region4: #{tpu_custom_call.1} parent=1 // loop_header_branch
      %36 = sbr.rel (%p34) target = $region8
    $region5: #{tpu_custom_call.1} parent=1 // loop_body
      %s38 = ssub.s32 %s33, 1
      %s39 = ssub.s32 %s33, 2
      %s40 = sadd.s32 %s33, 1
      %s41 = ssub.s32 %s33, %s40
      %p42 = scmp.eq.s32.totalorder %s41, 0
      %s44 = sadd.s32 %s43, 1
      %s45 = scalar_select %p42, %s43, %s44
      %p48 = pneg %p42
      %p49 = scmp.eq.s32.totalorder %s33, 1
      %p50 = por %p48, %p49
      %p51 = scmp.ne.s32.totalorder %s43, %s46
      %p52 = scmp.eq.s32.totalorder %s33, 0
      %p53 = por %p51, %p52
      %p54 = scmp.ne.s32.totalorder %s43, %s46
      %p55 = scmp.eq.s32.totalorder %s38, 1
      %p56 = por %p54, %p55
      %p57 = scmp.ne.s32.totalorder %s46, %s47
      %p58 = scmp.eq.s32.totalorder %s38, 0
      %p59 = por %p57, %p58
      %p60 = scmp.ne.s32.totalorder %s46, %s47
      %p61 = scmp.eq.s32.totalorder %s39, 1
      %p62 = por %p60, %p61
      %p64 = scmp.ne.s32.totalorder %s47, %s63
      %p65 = scmp.eq.s32.totalorder %s39, 0
      %p66 = por %p64, %p65
      %s67 = ssub.s32 %s33, %s40
      %p68 = scmp.eq.s32.totalorder %s67, 0
      %s70 = sadd.s32 %s69, 1
      %s71 = scalar_select %p68, %s69, %s70
      %p74 = pneg %p68
      %p75 = scmp.eq.s32.totalorder %s33, 1
      %p76 = por %p74, %p75
      %p77 = scmp.ne.s32.totalorder %s69, %s72
      %p78 = scmp.eq.s32.totalorder %s33, 0
      %p79 = por %p77, %p78
      %p80 = scmp.ne.s32.totalorder %s69, %s72
      %p81 = scmp.eq.s32.totalorder %s38, 1
      %p82 = por %p80, %p81
      %p83 = scmp.ne.s32.totalorder %s72, %s73
      %p84 = scmp.eq.s32.totalorder %s38, 0
      %p85 = por %p83, %p84
      %p86 = scmp.ne.s32.totalorder %s72, %s73
      %p87 = scmp.eq.s32.totalorder %s39, 1
      %p88 = por %p86, %p87
      %p90 = scmp.ne.s32.totalorder %s73, %s89
      %p91 = scmp.eq.s32.totalorder %s39, 0
      %p92 = por %p90, %p91
      %s94 = sadd.s32 %s93, 1
      %p97 = scmp.eq.s32.totalorder %s33, 1
      %p98 = scmp.ne.s32.totalorder %s93, %s95
      %p99 = scmp.eq.s32.totalorder %s33, 0
      %p100 = por %p98, %p99
      %p101 = scmp.ne.s32.totalorder %s93, %s95
      %p102 = scmp.eq.s32.totalorder %s38, 1
      %p103 = por %p101, %p102
      %p104 = scmp.ne.s32.totalorder %s95, %s96
      %p105 = scmp.eq.s32.totalorder %s38, 0
      %p106 = por %p104, %p105
      %p107 = scmp.ne.s32.totalorder %s95, %s96
      %p108 = scmp.eq.s32.totalorder %s39, 1
      %p109 = por %p107, %p108
      %p111 = scmp.ne.s32.totalorder %s96, %s110
      %p112 = scmp.eq.s32.totalorder %s39, 0
      %p113 = por %p111, %p112
      %s115 = sadd.s32 %s114, 1
      %p118 = scmp.eq.s32.totalorder %s33, 1
      %p119 = scmp.ne.s32.totalorder %s114, %s116
      %p120 = scmp.eq.s32.totalorder %s33, 0
      %p121 = por %p119, %p120
      %p122 = scmp.ne.s32.totalorder %s114, %s116
      %p123 = scmp.eq.s32.totalorder %s38, 1
      %p124 = por %p122, %p123
      %p125 = scmp.ne.s32.totalorder %s116, %s117
      %p126 = scmp.eq.s32.totalorder %s38, 0
      %p127 = por %p125, %p126
      %p128 = scmp.ne.s32.totalorder %s116, %s117
      %p129 = scmp.eq.s32.totalorder %s39, 1
      %p130 = por %p128, %p129
      %p132 = scmp.ne.s32.totalorder %s117, %s131
      %p133 = scmp.eq.s32.totalorder %s39, 0
      %p134 = por %p132, %p133
      %s136 = sadd.s32 %s135, 1
      %p139 = scmp.eq.s32.totalorder %s33, 1
      %p140 = scmp.ne.s32.totalorder %s135, %s137
      %p141 = scmp.eq.s32.totalorder %s33, 0
      %p142 = por %p140, %p141
      %p143 = scmp.ne.s32.totalorder %s135, %s137
      %p144 = scmp.eq.s32.totalorder %s38, 1
      %p145 = por %p143, %p144
      %p146 = scmp.ne.s32.totalorder %s137, %s138
      %p147 = scmp.eq.s32.totalorder %s38, 0
      %p148 = por %p146, %p147
      %p149 = scmp.ne.s32.totalorder %s137, %s138
      %p150 = scmp.eq.s32.totalorder %s39, 1
      %p151 = por %p149, %p150
      %p153 = scmp.ne.s32.totalorder %s138, %s152
      %p154 = scmp.eq.s32.totalorder %s39, 0
      %p155 = por %p153, %p154
      %s157 = sadd.s32 %s156, 1
      %p160 = scmp.eq.s32.totalorder %s33, 1
      %p161 = scmp.ne.s32.totalorder %s156, %s158
      %p162 = scmp.eq.s32.totalorder %s33, 0
      %p163 = por %p161, %p162
      %p164 = scmp.ne.s32.totalorder %s156, %s158
      %p165 = scmp.eq.s32.totalorder %s38, 1
      %p166 = por %p164, %p165
      %p167 = scmp.ne.s32.totalorder %s158, %s159
      %p168 = scmp.eq.s32.totalorder %s38, 0
      %p169 = por %p167, %p168
      %p170 = scmp.ne.s32.totalorder %s158, %s159
      %p171 = scmp.eq.s32.totalorder %s39, 1
      %p172 = por %p170, %p171
      %p174 = scmp.ne.s32.totalorder %s159, %s173
      %p175 = scmp.eq.s32.totalorder %s39, 0
      %p176 = por %p174, %p175
      %s178 = sadd.s32 %s177, 1
      %p181 = scmp.eq.s32.totalorder %s33, 1
      %p182 = scmp.ne.s32.totalorder %s177, %s179
      %p183 = scmp.eq.s32.totalorder %s33, 0
      %p184 = por %p182, %p183
      %p185 = scmp.ne.s32.totalorder %s177, %s179
      %p186 = scmp.eq.s32.totalorder %s38, 1
      %p187 = por %p185, %p186
      %p188 = scmp.ne.s32.totalorder %s179, %s180
      %p189 = scmp.eq.s32.totalorder %s38, 0
      %p190 = por %p188, %p189
      %p191 = scmp.ne.s32.totalorder %s179, %s180
      %p192 = scmp.eq.s32.totalorder %s39, 1
      %p193 = por %p191, %p192
      %p195 = scmp.ne.s32.totalorder %s180, %s194
      %p196 = scmp.eq.s32.totalorder %s39, 0
      %p197 = por %p195, %p196
      %s199 = sadd.s32 %s198, 1
      %p202 = scmp.eq.s32.totalorder %s33, 1
      %p203 = scmp.ne.s32.totalorder %s198, %s200
      %p204 = scmp.eq.s32.totalorder %s33, 0
      %p205 = por %p203, %p204
      %p206 = scmp.ne.s32.totalorder %s198, %s200
      %p207 = scmp.eq.s32.totalorder %s38, 1
      %p208 = por %p206, %p207
      %p209 = scmp.ne.s32.totalorder %s200, %s201
      %p210 = scmp.eq.s32.totalorder %s38, 0
      %p211 = por %p209, %p210
      %p212 = scmp.ne.s32.totalorder %s200, %s201
      %p213 = scmp.eq.s32.totalorder %s39, 1
      %p214 = por %p212, %p213
      %p216 = scmp.ne.s32.totalorder %s201, %s215
      %p217 = scmp.eq.s32.totalorder %s39, 0
      %p218 = por %p216, %p217
      %s220 = sadd.s32 %s219, 1
      %p223 = scmp.eq.s32.totalorder %s33, 1
      %p224 = scmp.ne.s32.totalorder %s219, %s221
      %p225 = scmp.eq.s32.totalorder %s33, 0
      %p226 = por %p224, %p225
      %p227 = scmp.ne.s32.totalorder %s219, %s221
      %p228 = scmp.eq.s32.totalorder %s38, 1
      %p229 = por %p227, %p228
      %p230 = scmp.ne.s32.totalorder %s221, %s222
      %p231 = scmp.eq.s32.totalorder %s38, 0
      %p232 = por %p230, %p231
      %p233 = scmp.ne.s32.totalorder %s221, %s222
      %p234 = scmp.eq.s32.totalorder %s39, 1
      %p235 = por %p233, %p234
      %p237 = scmp.ne.s32.totalorder %s222, %s236
      %p238 = scmp.eq.s32.totalorder %s39, 0
      %p239 = por %p237, %p238
      %s241 = sadd.s32 %s240, 1
      %p244 = scmp.eq.s32.totalorder %s33, 1
      %p245 = scmp.ne.s32.totalorder %s240, %s242
      %p246 = scmp.eq.s32.totalorder %s33, 0
      %p247 = por %p245, %p246
      %p248 = scmp.ne.s32.totalorder %s240, %s242
      %p249 = scmp.eq.s32.totalorder %s38, 1
      %p250 = por %p248, %p249
      %p251 = scmp.ne.s32.totalorder %s242, %s243
      %p252 = scmp.eq.s32.totalorder %s38, 0
      %p253 = por %p251, %p252
      %p254 = scmp.ne.s32.totalorder %s242, %s243
      %p255 = scmp.eq.s32.totalorder %s39, 1
      %p256 = por %p254, %p255
      %p258 = scmp.ne.s32.totalorder %s243, %s257
      %p259 = scmp.eq.s32.totalorder %s39, 0
      %p260 = por %p258, %p259
      %s262 = sadd.s32 %s261, 1
      %p265 = scmp.eq.s32.totalorder %s33, 1
      %p266 = scmp.ne.s32.totalorder %s261, %s263
      %p267 = scmp.eq.s32.totalorder %s33, 0
      %p268 = por %p266, %p267
      %p269 = scmp.ne.s32.totalorder %s261, %s263
      %p270 = scmp.eq.s32.totalorder %s38, 1
      %p271 = por %p269, %p270
      %p272 = scmp.ne.s32.totalorder %s263, %s264
      %p273 = scmp.eq.s32.totalorder %s38, 0
      %p274 = por %p272, %p273
      %p275 = scmp.ne.s32.totalorder %s263, %s264
      %p276 = scmp.eq.s32.totalorder %s39, 1
      %p277 = por %p275, %p276
      %p279 = scmp.ne.s32.totalorder %s264, %s278
      %p280 = scmp.eq.s32.totalorder %s39, 0
      %p281 = por %p279, %p280
      %s283 = sadd.s32 %s282, 1
      %p286 = scmp.eq.s32.totalorder %s33, 1
      %p287 = scmp.ne.s32.totalorder %s282, %s284
      %p288 = scmp.eq.s32.totalorder %s33, 0
      %p289 = por %p287, %p288
      %p290 = scmp.ne.s32.totalorder %s282, %s284
      %p291 = scmp.eq.s32.totalorder %s38, 1
      %p292 = por %p290, %p291
      %p293 = scmp.ne.s32.totalorder %s284, %s285
      %p294 = scmp.eq.s32.totalorder %s38, 0
      %p295 = por %p293, %p294
      %p296 = scmp.ne.s32.totalorder %s284, %s285
      %p297 = scmp.eq.s32.totalorder %s39, 1
      %p298 = por %p296, %p297
      %p300 = scmp.ne.s32.totalorder %s285, %s299
      %p301 = scmp.eq.s32.totalorder %s39, 0
      %p302 = por %p300, %p301
      %s303 = ssub.s32 %s33, %s40
      %p304 = scmp.eq.s32.totalorder %s303, 0
      %s306 = sadd.s32 %s305, 1
      %s307 = scalar_select %p304, %s305, %s306
      %p310 = pneg %p304
      %p311 = scmp.eq.s32.totalorder %s33, 1
      %p312 = por %p310, %p311
      %p313 = scmp.ne.s32.totalorder %s305, %s308
      %p314 = scmp.eq.s32.totalorder %s33, 0
      %p315 = por %p313, %p314
      %p316 = scmp.ne.s32.totalorder %s305, %s308
      %p317 = scmp.eq.s32.totalorder %s38, 1
      %p318 = por %p316, %p317
      %p319 = scmp.ne.s32.totalorder %s308, %s309
      %p320 = scmp.eq.s32.totalorder %s38, 0
      %p321 = por %p319, %p320
      %p322 = scmp.ne.s32.totalorder %s308, %s309
      %p323 = scmp.eq.s32.totalorder %s39, 1
      %p324 = por %p322, %p323
      %p326 = scmp.ne.s32.totalorder %s309, %s325
      %p327 = scmp.eq.s32.totalorder %s39, 0
      %p328 = por %p326, %p327
      %s329 = ssub.s32 %s33, %s40
      %p330 = scmp.eq.s32.totalorder %s329, 0
      %s332 = sadd.s32 %s331, 1
      %s333 = scalar_select %p330, %s331, %s332
      %p336 = pneg %p330
      %p337 = scmp.eq.s32.totalorder %s33, 1
      %p338 = por %p336, %p337
      %p339 = scmp.ne.s32.totalorder %s331, %s334
      %p340 = scmp.eq.s32.totalorder %s33, 0
      %p341 = por %p339, %p340
      %p342 = scmp.ne.s32.totalorder %s331, %s334
      %p343 = scmp.eq.s32.totalorder %s38, 1
      %p344 = por %p342, %p343
      %p345 = scmp.ne.s32.totalorder %s334, %s335
      %p346 = scmp.eq.s32.totalorder %s38, 0
      %p347 = por %p345, %p346
      %p348 = scmp.ne.s32.totalorder %s334, %s335
      %p349 = scmp.eq.s32.totalorder %s39, 1
      %p350 = por %p348, %p349
      %p352 = scmp.ne.s32.totalorder %s335, %s351
      %p353 = scmp.eq.s32.totalorder %s39, 0
      %p354 = por %p352, %p353
      %s355 = ssub.s32 %s33, %s40
      %p356 = scmp.eq.s32.totalorder %s355, 0
      %s358 = sadd.s32 %s357, 1
      %s359 = scalar_select %p356, %s357, %s358
      %p362 = pneg %p356
      %p363 = scmp.eq.s32.totalorder %s33, 1
      %p364 = por %p362, %p363
      %p365 = scmp.ne.s32.totalorder %s357, %s360
      %p366 = scmp.eq.s32.totalorder %s33, 0
      %p367 = por %p365, %p366
      %p368 = scmp.ne.s32.totalorder %s357, %s360
      %p369 = scmp.eq.s32.totalorder %s38, 1
      %p370 = por %p368, %p369
      %p371 = scmp.ne.s32.totalorder %s360, %s361
      %p372 = scmp.eq.s32.totalorder %s38, 0
      %p373 = por %p371, %p372
      %p374 = scmp.ne.s32.totalorder %s360, %s361
      %p375 = scmp.eq.s32.totalorder %s39, 1
      %p376 = por %p374, %p375
      %p378 = scmp.ne.s32.totalorder %s361, %s377
      %p379 = scmp.eq.s32.totalorder %s39, 0
      %p380 = por %p378, %p379
      %p381 = scmp.le.s32.totalorder 1, %s33
      %p382 = scmp.lt.s32.totalorder %s33, 3
      %p383 = pnand %p381, %p382
      %p384 = pneg %p383
      // Predicated region
      $region9: #{tpu_custom_call.1} parent=5 // pred_check
        _
      $region10: #{tpu_custom_call.1} parent=5 // pred_check_branch
        %386 = sbr.rel (%p383) target = $region12
      $region11: #{tpu_custom_call.1} parent=5 // pred_region
        %s387 = ssub.s32 %s33, 1
        // Predicated region
        $region13: #{tpu_custom_call.1} parent=11 // pred_check
          %p388 = pneg %p106
        $region14: #{tpu_custom_call.1} parent=11 // pred_check_branch
          %390 = sbr.rel (%p388) target = $region16
        $region15: #{tpu_custom_call.1} parent=11 // pred_region
          %s392 = ssub.s32 1024, 1024
          %393 = vsyncadd [#allocation12], %s392
          %s394 = sshll.u32 [#allocation11], 4
          %s395 = int_to_ptr.vmem [resolvable:$true] %s394
          %400 = dma.hbm_to_vmem [thread:$0]  %s2, 1024, %s395, [#allocation12], 64, 64, 4
        $region16: #{tpu_custom_call.1} parent=11 // pred_fallthru
          _
        // Predicated region
        $region17: #{tpu_custom_call.1} parent=11 // pred_check
          %p401 = pneg %p127
        $region18: #{tpu_custom_call.1} parent=11 // pred_check_branch
          %403 = sbr.rel (%p401) target = $region20
        $region19: #{tpu_custom_call.1} parent=11 // pred_region
          %s405 = ssub.s32 1024, 1024
          %406 = vsyncadd [#allocation12], %s405
          %s407 = sshll.u32 [#allocation13], 4
          %s408 = int_to_ptr.vmem [resolvable:$true] %s407
          %413 = dma.hbm_to_vmem [thread:$0]  %s3, 1024, %s408, [#allocation12], 64, 64, 4
        $region20: #{tpu_custom_call.1} parent=11 // pred_fallthru
          _
        // Predicated region
        $region21: #{tpu_custom_call.1} parent=11 // pred_check
          %p414 = pneg %p148
        $region22: #{tpu_custom_call.1} parent=11 // pred_check_branch
          %416 = sbr.rel (%p414) target = $region24
        $region23: #{tpu_custom_call.1} parent=11 // pred_region
          _
        $region24: #{tpu_custom_call.1} parent=11 // pred_fallthru
          _
        // Predicated region
        $region25: #{tpu_custom_call.1} parent=11 // pred_check
          %p417 = pneg %p169
        $region26: #{tpu_custom_call.1} parent=11 // pred_check_branch
          %419 = sbr.rel (%p417) target = $region28
        $region27: #{tpu_custom_call.1} parent=11 // pred_region
          %s421 = ssub.s32 768, 768
          %422 = vsyncadd [#allocation15], %s421
          %s423 = sshll.u32 [#allocation14], 4
          %s424 = int_to_ptr.vmem [resolvable:$true] %s423
          %429 = dma.hbm_to_vmem [thread:$0]  %s5, 768, %s424, [#allocation15], 64, 64, 4
        $region28: #{tpu_custom_call.1} parent=11 // pred_fallthru
          _
        // Predicated region
        $region29: #{tpu_custom_call.1} parent=11 // pred_check
          %p430 = pneg %p190
        $region30: #{tpu_custom_call.1} parent=11 // pred_check_branch
          %432 = sbr.rel (%p430) target = $region32
        $region31: #{tpu_custom_call.1} parent=11 // pred_region
          _
        $region32: #{tpu_custom_call.1} parent=11 // pred_fallthru
          _
        // Predicated region
        $region33: #{tpu_custom_call.1} parent=11 // pred_check
          %p433 = pneg %p211
        $region34: #{tpu_custom_call.1} parent=11 // pred_check_branch
          %435 = sbr.rel (%p433) target = $region36
        $region35: #{tpu_custom_call.1} parent=11 // pred_region
          _
        $region36: #{tpu_custom_call.1} parent=11 // pred_fallthru
          _
        // Predicated region
        $region37: #{tpu_custom_call.1} parent=11 // pred_check
          %p436 = pneg %p232
        $region38: #{tpu_custom_call.1} parent=11 // pred_check_branch
          %438 = sbr.rel (%p436) target = $region40
        $region39: #{tpu_custom_call.1} parent=11 // pred_region
          _
        $region40: #{tpu_custom_call.1} parent=11 // pred_fallthru
          _
        // Predicated region
        $region41: #{tpu_custom_call.1} parent=11 // pred_check
          %p439 = pneg %p253
        $region42: #{tpu_custom_call.1} parent=11 // pred_check_branch
          %441 = sbr.rel (%p439) target = $region44
        $region43: #{tpu_custom_call.1} parent=11 // pred_region
          _
        $region44: #{tpu_custom_call.1} parent=11 // pred_fallthru
          _
        // Predicated region
        $region45: #{tpu_custom_call.1} parent=11 // pred_check
          %p442 = pneg %p274
        $region46: #{tpu_custom_call.1} parent=11 // pred_check_branch
          %444 = sbr.rel (%p442) target = $region48
        $region47: #{tpu_custom_call.1} parent=11 // pred_region
          _
        $region48: #{tpu_custom_call.1} parent=11 // pred_fallthru
          _
        // Predicated region
        $region49: #{tpu_custom_call.1} parent=11 // pred_check
          %p445 = pneg %p295
        $region50: #{tpu_custom_call.1} parent=11 // pred_check_branch
          %447 = sbr.rel (%p445) target = $region52
        $region51: #{tpu_custom_call.1} parent=11 // pred_region
          _
        $region52: #{tpu_custom_call.1} parent=11 // pred_fallthru
          _
      $region12: #{tpu_custom_call.1} parent=5 // pred_fallthru
        _
      %p448 = scmp.lt.s32.totalorder %s33, 2
      // Predicated region
      $region53: #{tpu_custom_call.1} parent=5 // pred_check
        %p449 = pneg %p448
      $region54: #{tpu_custom_call.1} parent=5 // pred_check_branch
        %451 = sbr.rel (%p449) target = $region56
      $region55: #{tpu_custom_call.1} parent=5 // pred_region
        // Predicated region
        $region57: #{tpu_custom_call.1} parent=55 // pred_check
          %p452 = pneg %p53
        $region58: #{tpu_custom_call.1} parent=55 // pred_check_branch
          %454 = sbr.rel (%p452) target = $region60
        $region59: #{tpu_custom_call.1} parent=55 // pred_region
          %s455 = sand.u32 %s43, 1
          %s456 = scalar_lea.sflag [#allocation9], %s455
          %s457 = sand.u32 %s43, 1
          %s458 = smul.addr %s457, 32
          %s459 = scalar_lea.vmem [#allocation8], %s458
          %s460 = smul.u32 8, %s33
          %s462 = ssub.s32 512, 512
          %463 = vsyncadd %s456, %s462
          %s464 = smul.addr %s460, 64
          %s465 = scalar_lea.hbm %s0, %s464
          %s466 = sshll.u32 %s459, 4
          %s467 = int_to_ptr.vmem [resolvable:$true] %s466
          %472 = dma.hbm_to_vmem [thread:$0]  %s465, 512, %s467, %s456, 64, 64, 4
        $region60: #{tpu_custom_call.1} parent=55 // pred_fallthru
          _
        // Predicated region
        $region61: #{tpu_custom_call.1} parent=55 // pred_check
          %p473 = pneg %p79
        $region62: #{tpu_custom_call.1} parent=55 // pred_check_branch
          %475 = sbr.rel (%p473) target = $region64
        $region63: #{tpu_custom_call.1} parent=55 // pred_region
          %p476 = scmp.lt.s32.totalorder %s33, 1
          %s477 = scalar_select %p476, %s33, 1
          %s478 = smul.addr %s477, 8
          %s479 = scalar_lea.vmem %s1, %s478
        $region64: #{tpu_custom_call.1} parent=55 // pred_fallthru
          _
      $region56: #{tpu_custom_call.1} parent=5 // pred_fallthru
        _
      %p480 = scmp.le.s32.totalorder 1, %s33
      %p481 = scmp.lt.s32.totalorder %s33, 3
      %p482 = pnand %p480, %p481
      %p483 = pneg %p482
      // Predicated region
      $region65: #{tpu_custom_call.1} parent=5 // pred_check
        _
      $region66: #{tpu_custom_call.1} parent=5 // pred_check_branch
        %485 = sbr.rel (%p482) target = $region68
      $region67: #{tpu_custom_call.1} parent=5 // pred_region
        %s486 = ssub.s32 %s33, 1
        %s487 = sand.u32 %s46, 1
        %s488 = scalar_lea.sflag [#allocation9], %s487
        %s489 = sand.u32 %s46, 1
        %s490 = smul.addr %s489, 32
        %s491 = scalar_lea.vmem [#allocation8], %s490
        // Predicated region
        $region69: #{tpu_custom_call.1} parent=67 // pred_check
          %p492 = pneg %p59
        $region70: #{tpu_custom_call.1} parent=67 // pred_check_branch
          %494 = sbr.rel (%p492) target = $region72
        $region71: #{tpu_custom_call.1} parent=67 // pred_region
          %495 = dma.done %s488, 512
        $region72: #{tpu_custom_call.1} parent=67 // pred_fallthru
          _
        // Predicated region
        $region73: #{tpu_custom_call.1} parent=67 // pred_check
          %p496 = pneg %p106
        $region74: #{tpu_custom_call.1} parent=67 // pred_check_branch
          %498 = sbr.rel (%p496) target = $region76
        $region75: #{tpu_custom_call.1} parent=67 // pred_region
          %499 = dma.done [#allocation12], 1024
        $region76: #{tpu_custom_call.1} parent=67 // pred_fallthru
          _
        // Predicated region
        $region77: #{tpu_custom_call.1} parent=67 // pred_check
          %p500 = pneg %p127
        $region78: #{tpu_custom_call.1} parent=67 // pred_check_branch
          %502 = sbr.rel (%p500) target = $region80
        $region79: #{tpu_custom_call.1} parent=67 // pred_region
          %503 = dma.done [#allocation12], 1024
        $region80: #{tpu_custom_call.1} parent=67 // pred_fallthru
          _
        // Predicated region
        $region81: #{tpu_custom_call.1} parent=67 // pred_check
          %p504 = pneg %p169
        $region82: #{tpu_custom_call.1} parent=67 // pred_check_branch
          %506 = sbr.rel (%p504) target = $region84
        $region83: #{tpu_custom_call.1} parent=67 // pred_region
          %507 = dma.done [#allocation15], 768
        $region84: #{tpu_custom_call.1} parent=67 // pred_fallthru
          _
        %s508 = sand.u32 %s46, 1
        %s509 = scalar_lea.sflag [#allocation9], %s508
        %s510 = sand.u32 %s46, 1
        %s511 = smul.addr %s510, 32
        %s512 = scalar_lea.vmem [#allocation8], %s511
        %p513 = pneg %p59
        %p514 = pneg %p56
        %p515 = scmp.lt.s32.totalorder %s38, 1
        %s516 = scalar_select %p515, %s38, 1
        %s517 = smul.addr %s516, 8
        %s518 = scalar_lea.vmem %s1, %s517
        %p519 = pneg %p85
        %p520 = pneg %p82
        %p521 = pneg %p106
        %p522 = pneg %p103
        %p523 = pneg %p127
        %p524 = pneg %p124
        %p525 = pneg %p148
        %p526 = pneg %p145
        %p527 = pneg %p169
        %p528 = pneg %p166
        %p529 = pneg %p190
        %p530 = pneg %p187
        %p531 = pneg %p211
        %p532 = pneg %p208
        %p533 = pneg %p232
        %p534 = pneg %p229
        %p535 = pneg %p253
        %p536 = pneg %p250
        %p537 = pneg %p274
        %p538 = pneg %p271
        %p539 = pneg %p295
        %p540 = pneg %p292
        %p541 = pneg %p321
        %p542 = pneg %p318
        %s543 = sand.u32 %s308, 1
        %s544 = scalar_lea.sflag [#allocation10], %s543
        %s545 = sand.u32 %s308, 1
        %s546 = smul.addr %s545, 24
        %s547 = scalar_lea.vmem [#allocation16], %s546
        %p548 = pneg %p347
        %p549 = pneg %p344
        %s550 = sand.u32 %s334, 1
        %s551 = scalar_lea.sflag [#allocation18], %s550
        %s552 = sand.u32 %s334, 1
        %s553 = smul.addr %s552, 8
        %s554 = scalar_lea.vmem [#allocation17], %s553
        %p555 = pneg %p373
        %p556 = pneg %p370
        %s557 = sand.u32 %s360, 1
        %s558 = sand.u32 %s360, 1
        %s559 = smul.addr %s558, 24
        %s560 = scalar_lea.vmem [#allocation19], %s559
        %s561 = smul.u32 8, %s38
        %p562 = scmp.lt.s32.totalorder %s38, 1
        %s563 = scalar_select %p562, %s38, 1
        %s564 = smul.addr %s563, 8
        %s565 = scalar_lea.vmem %s1, %s564
        %v567 = vld [vmem:[%s491] sm:$0xf]
        %v568 = vld [vmem:[%s491 + $0x4] sm:$0xf]
        %v569 = vld [vmem:[%s491 + $0x8] sm:$0xf]
        %v570 = vld [vmem:[%s491 + $0xc] sm:$0xf]
        %v571 = vld [vmem:[%s491 + $0x10] sm:$0xf]
        %v572 = vld [vmem:[%s491 + $0x14] sm:$0xf]
        %v573 = vld [vmem:[%s491 + $0x18] sm:$0xf]
        %v574 = vld [vmem:[%s491 + $0x1c] sm:$0xf]
        %v575 = vld [vmem:[#allocation11] sm:$0xf]
        %v576 = vld [vmem:[#allocation11 + $0x4] sm:$0xf]
        %v577 = vld [vmem:[#allocation11 + $0x8] sm:$0xf]
        %v578 = vld [vmem:[#allocation11 + $0xc] sm:$0xf]
        %v579 = vld [vmem:[%s4] sm:$0x1]
        %v581 = vlaneseq
        %v582 = vshrl.u32 %v581, 7
        %v583 = vsub.s32 0, %v582
        %v584 = vrot.slane %v579, %v583
        %v594 = vunpack.c.l.b16 %v567
        %v595 = vunpack.c.l.b16 %v568
        %v596 = vunpack.c.l.b16 %v569
        %v597 = vunpack.c.l.b16 %v570
        %v598 = vunpack.c.l.b16 %v571
        %v599 = vunpack.c.l.b16 %v572
        %v600 = vunpack.c.l.b16 %v573
        %v601 = vunpack.c.l.b16 %v574
        %v602 = vpack.c.b16 %v595, %v594
        %v603 = vpack.c.b16 %v597, %v596
        %v604 = vpack.c.b16 %v599, %v598
        %v605 = vpack.c.b16 %v601, %v600
        %v610 = vunpack.c.l.b16 %v575
        %v611 = vunpack.c.l.b16 %v576
        %v612 = vunpack.c.l.b16 %v577
        %v613 = vunpack.c.l.b16 %v578
        %v614 = vpack.c.b16 %v611, %v610
        %v615 = vpack.c.b16 %v613, %v612
        %vm618 = vcmask 261120
        %v620 = vsel %vm618, %v602, 0
        %v623 = vsel %vm618, %v603, 0
        %v626 = vsel %vm618, %v604, 0
        %v629 = vsel %vm618, %v605, 0
        %631 = vmatprep.subr.bf16.mxu0 0
        %632 = vmatpush1.bf16.msra.mxu0 %v614
        %633 = vmatprep.subr.bf16.mxu0 0
        %634 = vmatpush1.bf16.msra.mxu0 %v615
        %635 = vmatprep.subr.bf16.mxu0 0
        %636 = vmatpush1.bf16.msra.mxu0 0
        %637 = vmatprep.subr.bf16.mxu0 0
        %638 = vmatpush1.bf16.msra.mxu0 0
        %639 = vmatprep.subr.bf16.mxu0 0
        %640 = vmatpush1.bf16.msra.mxu0 0
        %641 = vmatprep.subr.bf16.mxu0 0
        %642 = vmatpush1.bf16.msra.mxu0 0
        %643 = vmatprep.subr.bf16.mxu0 0
        %644 = vmatpush1.bf16.msra.mxu0 0
        %645 = vmatprep.subr.bf16.mxu0 0
        %646 = vmatpush1.bf16.msra.mxu0 0
        %647 = vmatprep.subr.bf16.mxu0 0
        %648 = vmatpush1.bf16.msra.mxu0 0
        %649 = vmatprep.subr.bf16.mxu0 0
        %650 = vmatpush1.bf16.msra.mxu0 0
        %651 = vmatprep.subr.bf16.mxu0 0
        %652 = vmatpush1.bf16.msra.mxu0 0
        %653 = vmatprep.subr.bf16.mxu0 0
        %654 = vmatpush1.bf16.msra.mxu0 0
        %655 = vmatprep.subr.bf16.mxu0 0
        %656 = vmatpush1.bf16.msra.mxu0 0
        %657 = vmatprep.subr.bf16.mxu0 0
        %658 = vmatpush1.bf16.msra.mxu0 0
        %659 = vmatprep.subr.bf16.mxu0 0
        %660 = vmatpush1.bf16.msra.mxu0 0
        %661 = vmatprep.subr.bf16.mxu0 0
        %662 = vmatpush1.bf16.msra.mxu0 0
        %663 = vmatprep.mubr.bf16.mxu0 0
        %664 = vmatmul.mubr.bf16.gmra.mrb[0].mxu0 %v620
        %v665 = vpop.f32.mrb[0].mxu0
        %v666 = vadd.f32 %v584, %v665
        %v667 = vpop.f32.mrb[0].mxu0
        %v668 = vpop.f32.mrb[0].mxu0
        %v669 = vadd.f32 %v584, %v668
        %v670 = vpop.f32.mrb[0].mxu0
        %671 = vmatprep.mubr.bf16.mxu0 0
        %672 = vmatmul.mubr.bf16.gmra.mrb[0].mxu0 %v623
        %v673 = vpop.f32.mrb[0].mxu0
        %v674 = vadd.f32 %v584, %v673
        %v675 = vpop.f32.mrb[0].mxu0
        %v676 = vpop.f32.mrb[0].mxu0
        %v677 = vadd.f32 %v584, %v676
        %v678 = vpop.f32.mrb[0].mxu0
        %679 = vmatprep.mubr.bf16.mxu0 0
        %680 = vmatmul.mubr.bf16.gmra.mrb[0].mxu0 %v626
        %v681 = vpop.f32.mrb[0].mxu0
        %v682 = vadd.f32 %v584, %v681
        %v683 = vpop.f32.mrb[0].mxu0
        %v684 = vpop.f32.mrb[0].mxu0
        %v685 = vadd.f32 %v584, %v684
        %v686 = vpop.f32.mrb[0].mxu0
        %687 = vmatprep.mubr.bf16.mxu0 0
        %688 = vmatmul.mubr.bf16.gmra.mrb[0].mxu0 %v629
        %v689 = vpop.f32.mrb[0].mxu0
        %v690 = vadd.f32 %v584, %v689
        %v691 = vpop.f32.mrb[0].mxu0
        %v692 = vpop.f32.mrb[0].mxu0
        %v693 = vadd.f32 %v584, %v692
        %v694 = vpop.f32.mrb[0].mxu0
        %695 = vdwg.mxu0
        %696 = vst.msk [vmem:[#allocation2] sm:$0xff] %vm618, %v666
        %697 = vst.msk [vmem:[#allocation2 + $0x8] sm:$0xff] %vm618, %v669
        %698 = vst.msk [vmem:[#allocation2 + $0x10] sm:$0xff] %vm618, %v674
        %699 = vst.msk [vmem:[#allocation2 + $0x18] sm:$0xff] %vm618, %v677
        %700 = vst.msk [vmem:[#allocation2 + $0x20] sm:$0xff] %vm618, %v682
        %701 = vst.msk [vmem:[#allocation2 + $0x28] sm:$0xff] %vm618, %v685
        %702 = vst.msk [vmem:[#allocation2 + $0x30] sm:$0xff] %vm618, %v690
        %703 = vst.msk [vmem:[#allocation2 + $0x38] sm:$0xff] %vm618, %v693
        %s704 = scalar_lea.vmem [#allocation11], 16
        %v705 = vld [vmem:[%s704] sm:$0xf]
        %v706 = vld [vmem:[%s704 + $0x4] sm:$0xf]
        %v707 = vld [vmem:[%s704 + $0x8] sm:$0xf]
        %v708 = vld [vmem:[%s704 + $0xc] sm:$0xf]
        %s709 = scalar_lea.vmem %s4, 1
        %v710 = vld [vmem:[%s709] sm:$0x1]
        %v712 = vlaneseq
        %v713 = vshrl.u32 %v712, 7
        %v714 = vsub.s32 0, %v713
        %v715 = vrot.slane %v710, %v714
        %v721 = vunpack.c.l.b16 %v705
        %v722 = vunpack.c.l.b16 %v706
        %v723 = vunpack.c.l.b16 %v707
        %v724 = vunpack.c.l.b16 %v708
        %v725 = vpack.c.b16 %v722, %v721
        %v726 = vpack.c.b16 %v724, %v723
        %729 = vmatprep.subr.bf16.mxu0 0
        %730 = vmatpush1.bf16.msra.mxu0 %v725
        %731 = vmatprep.subr.bf16.mxu0 0
        %732 = vmatpush1.bf16.msra.mxu0 %v726
        %733 = vmatprep.subr.bf16.mxu0 0
        %734 = vmatpush1.bf16.msra.mxu0 0
        %735 = vmatprep.subr.bf16.mxu0 0
        %736 = vmatpush1.bf16.msra.mxu0 0
        %737 = vmatprep.subr.bf16.mxu0 0
        %738 = vmatpush1.bf16.msra.mxu0 0
        %739 = vmatprep.subr.bf16.mxu0 0
        %740 = vmatpush1.bf16.msra.mxu0 0
        %741 = vmatprep.subr.bf16.mxu0 0
        %742 = vmatpush1.bf16.msra.mxu0 0
        %743 = vmatprep.subr.bf16.mxu0 0
        %744 = vmatpush1.bf16.msra.mxu0 0
        %745 = vmatprep.subr.bf16.mxu0 0
        %746 = vmatpush1.bf16.msra.mxu0 0
        %747 = vmatprep.subr.bf16.mxu0 0
        %748 = vmatpush1.bf16.msra.mxu0 0
        %749 = vmatprep.subr.bf16.mxu0 0
        %750 = vmatpush1.bf16.msra.mxu0 0
        %751 = vmatprep.subr.bf16.mxu0 0
        %752 = vmatpush1.bf16.msra.mxu0 0
        %753 = vmatprep.subr.bf16.mxu0 0
        %754 = vmatpush1.bf16.msra.mxu0 0
        %755 = vmatprep.subr.bf16.mxu0 0
        %756 = vmatpush1.bf16.msra.mxu0 0
        %757 = vmatprep.subr.bf16.mxu0 0
        %758 = vmatpush1.bf16.msra.mxu0 0
        %759 = vmatprep.subr.bf16.mxu0 0
        %760 = vmatpush1.bf16.msra.mxu0 0
        %761 = vmatprep.mubr.bf16.mxu0 0
        %762 = vmatmul.mubr.bf16.gmra.mrb[0].mxu0 %v620
        %v763 = vpop.f32.mrb[0].mxu0
        %v764 = vadd.f32 %v715, %v763
        %v765 = vpop.f32.mrb[0].mxu0
        %v766 = vpop.f32.mrb[0].mxu0
        %v767 = vadd.f32 %v715, %v766
        %v768 = vpop.f32.mrb[0].mxu0
        %769 = vmatprep.mubr.bf16.mxu0 0
        %770 = vmatmul.mubr.bf16.gmra.mrb[0].mxu0 %v623
        %v771 = vpop.f32.mrb[0].mxu0
        %v772 = vadd.f32 %v715, %v771
        %v773 = vpop.f32.mrb[0].mxu0
        %v774 = vpop.f32.mrb[0].mxu0
        %v775 = vadd.f32 %v715, %v774
        %v776 = vpop.f32.mrb[0].mxu0
        %777 = vmatprep.mubr.bf16.mxu0 0
        %778 = vmatmul.mubr.bf16.gmra.mrb[0].mxu0 %v626
        %v779 = vpop.f32.mrb[0].mxu0
        %v780 = vadd.f32 %v715, %v779
        %v781 = vpop.f32.mrb[0].mxu0
        %v782 = vpop.f32.mrb[0].mxu0
        %v783 = vadd.f32 %v715, %v782
        %v784 = vpop.f32.mrb[0].mxu0
        %785 = vmatprep.mubr.bf16.mxu0 0
        %786 = vmatmul.mubr.bf16.gmra.mrb[0].mxu0 %v629
        %v787 = vpop.f32.mrb[0].mxu0
        %v788 = vadd.f32 %v715, %v787
        %v789 = vpop.f32.mrb[0].mxu0
        %v790 = vpop.f32.mrb[0].mxu0
        %v791 = vadd.f32 %v715, %v790
        %v792 = vpop.f32.mrb[0].mxu0
        %793 = vdwg.mxu0
        %794 = vst.msk [vmem:[#allocation3] sm:$0xff] %vm618, %v764
        %795 = vst.msk [vmem:[#allocation3 + $0x8] sm:$0xff] %vm618, %v767
        %796 = vst.msk [vmem:[#allocation3 + $0x10] sm:$0xff] %vm618, %v772
        %797 = vst.msk [vmem:[#allocation3 + $0x18] sm:$0xff] %vm618, %v775
        %798 = vst.msk [vmem:[#allocation3 + $0x20] sm:$0xff] %vm618, %v780
        %799 = vst.msk [vmem:[#allocation3 + $0x28] sm:$0xff] %vm618, %v783
        %800 = vst.msk [vmem:[#allocation3 + $0x30] sm:$0xff] %vm618, %v788
        %801 = vst.msk [vmem:[#allocation3 + $0x38] sm:$0xff] %vm618, %v791
        %s802 = scalar_lea.vmem [#allocation11], 32
        %v803 = vld [vmem:[%s802] sm:$0xf]
        %v804 = vld [vmem:[%s802 + $0x4] sm:$0xf]
        %v805 = vld [vmem:[%s802 + $0x8] sm:$0xf]
        %v806 = vld [vmem:[%s802 + $0xc] sm:$0xf]
        %s807 = scalar_lea.vmem %s4, 2
        %v808 = vld [vmem:[%s807] sm:$0x1]
        %v810 = vlaneseq
        %v811 = vshrl.u32 %v810, 7
        %v812 = vsub.s32 0, %v811
        %v813 = vrot.slane %v808, %v812
        %v819 = vunpack.c.l.b16 %v803
        %v820 = vunpack.c.l.b16 %v804
        %v821 = vunpack.c.l.b16 %v805
        %v822 = vunpack.c.l.b16 %v806
        %v823 = vpack.c.b16 %v820, %v819
        %v824 = vpack.c.b16 %v822, %v821
        %827 = vmatprep.subr.bf16.mxu0 0
        %828 = vmatpush1.bf16.msra.mxu0 %v823
        %829 = vmatprep.subr.bf16.mxu0 0
        %830 = vmatpush1.bf16.msra.mxu0 %v824
        %831 = vmatprep.subr.bf16.mxu0 0
        %832 = vmatpush1.bf16.msra.mxu0 0
        %833 = vmatprep.subr.bf16.mxu0 0
        %834 = vmatpush1.bf16.msra.mxu0 0
        %835 = vmatprep.subr.bf16.mxu0 0
        %836 = vmatpush1.bf16.msra.mxu0 0
        %837 = vmatprep.subr.bf16.mxu0 0
        %838 = vmatpush1.bf16.msra.mxu0 0
        %839 = vmatprep.subr.bf16.mxu0 0
        %840 = vmatpush1.bf16.msra.mxu0 0
        %841 = vmatprep.subr.bf16.mxu0 0
        %842 = vmatpush1.bf16.msra.mxu0 0
        %843 = vmatprep.subr.bf16.mxu0 0
        %844 = vmatpush1.bf16.msra.mxu0 0
        %845 = vmatprep.subr.bf16.mxu0 0
        %846 = vmatpush1.bf16.msra.mxu0 0
        %847 = vmatprep.subr.bf16.mxu0 0
        %848 = vmatpush1.bf16.msra.mxu0 0
        %849 = vmatprep.subr.bf16.mxu0 0
        %850 = vmatpush1.bf16.msra.mxu0 0
        %851 = vmatprep.subr.bf16.mxu0 0
        %852 = vmatpush1.bf16.msra.mxu0 0
        %853 = vmatprep.subr.bf16.mxu0 0
        %854 = vmatpush1.bf16.msra.mxu0 0
        %855 = vmatprep.subr.bf16.mxu0 0
        %856 = vmatpush1.bf16.msra.mxu0 0
        %857 = vmatprep.subr.bf16.mxu0 0
        %858 = vmatpush1.bf16.msra.mxu0 0
        %859 = vmatprep.mubr.bf16.mxu0 0
        %860 = vmatmul.mubr.bf16.gmra.mrb[0].mxu0 %v620
        %v861 = vpop.f32.mrb[0].mxu0
        %v862 = vadd.f32 %v813, %v861
        %v863 = vpop.f32.mrb[0].mxu0
        %v864 = vpop.f32.mrb[0].mxu0
        %v865 = vadd.f32 %v813, %v864
        %v866 = vpop.f32.mrb[0].mxu0
        %867 = vmatprep.mubr.bf16.mxu0 0
        %868 = vmatmul.mubr.bf16.gmra.mrb[0].mxu0 %v623
        %v869 = vpop.f32.mrb[0].mxu0
        %v870 = vadd.f32 %v813, %v869
        %v871 = vpop.f32.mrb[0].mxu0
        %v872 = vpop.f32.mrb[0].mxu0
        %v873 = vadd.f32 %v813, %v872
        %v874 = vpop.f32.mrb[0].mxu0
        %875 = vmatprep.mubr.bf16.mxu0 0
        %876 = vmatmul.mubr.bf16.gmra.mrb[0].mxu0 %v626
        %v877 = vpop.f32.mrb[0].mxu0
        %v878 = vadd.f32 %v813, %v877
        %v879 = vpop.f32.mrb[0].mxu0
        %v880 = vpop.f32.mrb[0].mxu0
        %v881 = vadd.f32 %v813, %v880
        %v882 = vpop.f32.mrb[0].mxu0
        %883 = vmatprep.mubr.bf16.mxu0 0
        %884 = vmatmul.mubr.bf16.gmra.mrb[0].mxu0 %v629
        %v885 = vpop.f32.mrb[0].mxu0
        %v886 = vadd.f32 %v813, %v885
        %v887 = vpop.f32.mrb[0].mxu0
        %v888 = vpop.f32.mrb[0].mxu0
        %v889 = vadd.f32 %v813, %v888
        %v890 = vpop.f32.mrb[0].mxu0
        %891 = vdwg.mxu0
        %892 = vst.msk [vmem:[#allocation4] sm:$0xff] %vm618, %v862
        %893 = vst.msk [vmem:[#allocation4 + $0x8] sm:$0xff] %vm618, %v865
        %894 = vst.msk [vmem:[#allocation4 + $0x10] sm:$0xff] %vm618, %v870
        %895 = vst.msk [vmem:[#allocation4 + $0x18] sm:$0xff] %vm618, %v873
        %896 = vst.msk [vmem:[#allocation4 + $0x20] sm:$0xff] %vm618, %v878
        %897 = vst.msk [vmem:[#allocation4 + $0x28] sm:$0xff] %vm618, %v881
        %898 = vst.msk [vmem:[#allocation4 + $0x30] sm:$0xff] %vm618, %v886
        %899 = vst.msk [vmem:[#allocation4 + $0x38] sm:$0xff] %vm618, %v889
        %s900 = scalar_lea.vmem [#allocation11], 48
        %v901 = vld [vmem:[%s900] sm:$0xf]
        %v902 = vld [vmem:[%s900 + $0x4] sm:$0xf]
        %v903 = vld [vmem:[%s900 + $0x8] sm:$0xf]
        %v904 = vld [vmem:[%s900 + $0xc] sm:$0xf]
        %s905 = scalar_lea.vmem %s4, 3
        %v906 = vld [vmem:[%s905] sm:$0x1]
        %v908 = vlaneseq
        %v909 = vshrl.u32 %v908, 7
        %v910 = vsub.s32 0, %v909
        %v911 = vrot.slane %v906, %v910
        %v917 = vunpack.c.l.b16 %v901
        %v918 = vunpack.c.l.b16 %v902
        %v919 = vunpack.c.l.b16 %v903
        %v920 = vunpack.c.l.b16 %v904
        %v921 = vpack.c.b16 %v918, %v917
        %v922 = vpack.c.b16 %v920, %v919
        %925 = vmatprep.subr.bf16.mxu0 0
        %926 = vmatpush1.bf16.msra.mxu0 %v921
        %927 = vmatprep.subr.bf16.mxu0 0
        %928 = vmatpush1.bf16.msra.mxu0 %v922
        %929 = vmatprep.subr.bf16.mxu0 0
        %930 = vmatpush1.bf16.msra.mxu0 0
        %931 = vmatprep.subr.bf16.mxu0 0
        %932 = vmatpush1.bf16.msra.mxu0 0
        %933 = vmatprep.subr.bf16.mxu0 0
        %934 = vmatpush1.bf16.msra.mxu0 0
        %935 = vmatprep.subr.bf16.mxu0 0
        %936 = vmatpush1.bf16.msra.mxu0 0
        %937 = vmatprep.subr.bf16.mxu0 0
        %938 = vmatpush1.bf16.msra.mxu0 0
        %939 = vmatprep.subr.bf16.mxu0 0
        %940 = vmatpush1.bf16.msra.mxu0 0
        %941 = vmatprep.subr.bf16.mxu0 0
        %942 = vmatpush1.bf16.msra.mxu0 0
        %943 = vmatprep.subr.bf16.mxu0 0
        %944 = vmatpush1.bf16.msra.mxu0 0
        %945 = vmatprep.subr.bf16.mxu0 0
        %946 = vmatpush1.bf16.msra.mxu0 0
        %947 = vmatprep.subr.bf16.mxu0 0
        %948 = vmatpush1.bf16.msra.mxu0 0
        %949 = vmatprep.subr.bf16.mxu0 0
        %950 = vmatpush1.bf16.msra.mxu0 0
        %951 = vmatprep.subr.bf16.mxu0 0
        %952 = vmatpush1.bf16.msra.mxu0 0
        %953 = vmatprep.subr.bf16.mxu0 0
        %954 = vmatpush1.bf16.msra.mxu0 0
        %955 = vmatprep.subr.bf16.mxu0 0
        %956 = vmatpush1.bf16.msra.mxu0 0
        %957 = vmatprep.mubr.bf16.mxu0 0
        %958 = vmatmul.mubr.bf16.gmra.mrb[0].mxu0 %v620
        %v959 = vpop.f32.mrb[0].mxu0
        %v960 = vadd.f32 %v911, %v959
        %v961 = vpop.f32.mrb[0].mxu0
        %v962 = vpop.f32.mrb[0].mxu0
        %v963 = vadd.f32 %v911, %v962
        %v964 = vpop.f32.mrb[0].mxu0
        %965 = vmatprep.mubr.bf16.mxu0 0
        %966 = vmatmul.mubr.bf16.gmra.mrb[0].mxu0 %v623
        %v967 = vpop.f32.mrb[0].mxu0
        %v968 = vadd.f32 %v911, %v967
        %v969 = vpop.f32.mrb[0].mxu0
        %v970 = vpop.f32.mrb[0].mxu0
        %v971 = vadd.f32 %v911, %v970
        %v972 = vpop.f32.mrb[0].mxu0
        %973 = vmatprep.mubr.bf16.mxu0 0
        %974 = vmatmul.mubr.bf16.gmra.mrb[0].mxu0 %v626
        %v975 = vpop.f32.mrb[0].mxu0
        %v976 = vadd.f32 %v911, %v975
        %v977 = vpop.f32.mrb[0].mxu0
        %v978 = vpop.f32.mrb[0].mxu0
        %v979 = vadd.f32 %v911, %v978
        %v980 = vpop.f32.mrb[0].mxu0
        %981 = vmatprep.mubr.bf16.mxu0 0
        %982 = vmatmul.mubr.bf16.gmra.mrb[0].mxu0 %v629
        %v983 = vpop.f32.mrb[0].mxu0
        %v984 = vadd.f32 %v911, %v983
        %v985 = vpop.f32.mrb[0].mxu0
        %v986 = vpop.f32.mrb[0].mxu0
        %v987 = vadd.f32 %v911, %v986
        %v988 = vpop.f32.mrb[0].mxu0
        %989 = vdwg.mxu0
        %990 = vst.msk [vmem:[#allocation5] sm:$0xff] %vm618, %v960
        %991 = vst.msk [vmem:[#allocation5 + $0x8] sm:$0xff] %vm618, %v963
        %992 = vst.msk [vmem:[#allocation5 + $0x10] sm:$0xff] %vm618, %v968
        %993 = vst.msk [vmem:[#allocation5 + $0x18] sm:$0xff] %vm618, %v971
        %994 = vst.msk [vmem:[#allocation5 + $0x20] sm:$0xff] %vm618, %v976
        %995 = vst.msk [vmem:[#allocation5 + $0x28] sm:$0xff] %vm618, %v979
        %996 = vst.msk [vmem:[#allocation5 + $0x30] sm:$0xff] %vm618, %v984
        %997 = vst.msk [vmem:[#allocation5 + $0x38] sm:$0xff] %vm618, %v987
        %v998 = vld [vmem:[#allocation13] sm:$0xf]
        %v999 = vld [vmem:[#allocation13 + $0x4] sm:$0xf]
        %v1000 = vld [vmem:[#allocation13 + $0x8] sm:$0xf]
        %v1001 = vld [vmem:[#allocation13 + $0xc] sm:$0xf]
        %s1002 = scalar_lea.vmem [#allocation13], 16
        %v1003 = vld [vmem:[%s1002] sm:$0xf]
        %v1004 = vld [vmem:[%s1002 + $0x4] sm:$0xf]
        %v1005 = vld [vmem:[%s1002 + $0x8] sm:$0xf]
        %v1006 = vld [vmem:[%s1002 + $0xc] sm:$0xf]
        %s1007 = scalar_lea.vmem [#allocation13], 32
        %v1008 = vld [vmem:[%s1007] sm:$0xf]
        %v1009 = vld [vmem:[%s1007 + $0x4] sm:$0xf]
        %v1010 = vld [vmem:[%s1007 + $0x8] sm:$0xf]
        %v1011 = vld [vmem:[%s1007 + $0xc] sm:$0xf]
        %s1012 = scalar_lea.vmem [#allocation13], 48
        %v1013 = vld [vmem:[%s1012] sm:$0xf]
        %v1014 = vld [vmem:[%s1012 + $0x4] sm:$0xf]
        %v1015 = vld [vmem:[%s1012 + $0x8] sm:$0xf]
        %v1016 = vld [vmem:[%s1012 + $0xc] sm:$0xf]
        %v1017 = vld [vmem:[%s565] sm:$0xff]
        %vm1018 = vcmp.gt.f32.partialorder %v1017, 0.0
        %v1019 = vld [vmem:[#allocation2] sm:$0x1]
        %v1020 = vld [vmem:[#allocation2 + $0x8] sm:$0x1]
        %v1021 = vld [vmem:[#allocation2 + $0x10] sm:$0x1]
        %v1022 = vld [vmem:[#allocation2 + $0x18] sm:$0x1]
        %v1023 = vld [vmem:[#allocation2 + $0x20] sm:$0x1]
        %v1024 = vld [vmem:[#allocation2 + $0x28] sm:$0x1]
        %v1025 = vld [vmem:[#allocation2 + $0x30] sm:$0x1]
        %v1026 = vld [vmem:[#allocation2 + $0x38] sm:$0x1]
        %v1031 = vunpack.c.l.b16 %v998
        %v1032 = vunpack.c.l.b16 %v999
        %v1033 = vunpack.c.l.b16 %v1000
        %v1034 = vunpack.c.l.b16 %v1001
        %v1035 = vpack.c.b16 %v1032, %v1031
        %v1036 = vpack.c.b16 %v1034, %v1033
        %v1040 = vsel %vm618, 0, 0
        %1042 = vmatprep.subr.bf16.mxu0 0
        %1043 = vmatpush1.bf16.msra.mxu0 %v1035
        %1044 = vmatprep.subr.bf16.mxu0 0
        %1045 = vmatpush1.bf16.msra.mxu0 %v1036
        %1046 = vmatprep.subr.bf16.mxu0 0
        %1047 = vmatpush1.bf16.msra.mxu0 0
        %1048 = vmatprep.subr.bf16.mxu0 0
        %1049 = vmatpush1.bf16.msra.mxu0 0
        %1050 = vmatprep.subr.bf16.mxu0 0
        %1051 = vmatpush1.bf16.msra.mxu0 0
        %1052 = vmatprep.subr.bf16.mxu0 0
        %1053 = vmatpush1.bf16.msra.mxu0 0
        %1054 = vmatprep.subr.bf16.mxu0 0
        %1055 = vmatpush1.bf16.msra.mxu0 0
        %1056 = vmatprep.subr.bf16.mxu0 0
        %1057 = vmatpush1.bf16.msra.mxu0 0
        %1058 = vmatprep.subr.bf16.mxu0 0
        %1059 = vmatpush1.bf16.msra.mxu0 0
        %1060 = vmatprep.subr.bf16.mxu0 0
        %1061 = vmatpush1.bf16.msra.mxu0 0
        %1062 = vmatprep.subr.bf16.mxu0 0
        %1063 = vmatpush1.bf16.msra.mxu0 0
        %1064 = vmatprep.subr.bf16.mxu0 0
        %1065 = vmatpush1.bf16.msra.mxu0 0
        %1066 = vmatprep.subr.bf16.mxu0 0
        %1067 = vmatpush1.bf16.msra.mxu0 0
        %1068 = vmatprep.subr.bf16.mxu0 0
        %1069 = vmatpush1.bf16.msra.mxu0 0
        %1070 = vmatprep.subr.bf16.mxu0 0
        %1071 = vmatpush1.bf16.msra.mxu0 0
        %1072 = vmatprep.subr.bf16.mxu0 0
        %1073 = vmatpush1.bf16.msra.mxu0 0
        %1074 = vmatprep.mubr.bf16.mxu0 0
        %1075 = vmatmul.mubr.bf16.gmra.mrb[0].mxu0 %v1040
        %v1076 = vpop.f32.mrb[0].mxu0
        %v1077 = vadd.f32 0.0, %v1076
        %v1078 = vpop.f32.mrb[0].mxu0
        %v1079 = vpop.f32.mrb[0].mxu0
        %v1080 = vpop.f32.mrb[0].mxu0
        %1081 = vdwg.mxu0
        %v1083 = vrot.slane %v1077, 1
        %v1084 = vrot.slane %v1077, 2
        %v1085 = vrot.slane %v1077, 3
        %v1086 = vrot.slane %v1077, 4
        %v1087 = vrot.slane %v1077, 5
        %v1088 = vrot.slane %v1077, 6
        %v1089 = vrot.slane %v1077, 7
        %v1098 = vadd.f32 %v1019, %v1077
        %v1099 = vadd.f32 %v1020, %v1083
        %v1100 = vadd.f32 %v1021, %v1084
        %v1101 = vadd.f32 %v1022, %v1085
        %v1102 = vadd.f32 %v1023, %v1086
        %v1103 = vadd.f32 %v1024, %v1087
        %v1104 = vadd.f32 %v1025, %v1088
        %v1105 = vadd.f32 %v1026, %v1089
        %v1106 = vld [vmem:[#allocation3] sm:$0x1]
        %v1107 = vld [vmem:[#allocation3 + $0x8] sm:$0x1]
        %v1108 = vld [vmem:[#allocation3 + $0x10] sm:$0x1]
        %v1109 = vld [vmem:[#allocation3 + $0x18] sm:$0x1]
        %v1110 = vld [vmem:[#allocation3 + $0x20] sm:$0x1]
        %v1111 = vld [vmem:[#allocation3 + $0x28] sm:$0x1]
        %v1112 = vld [vmem:[#allocation3 + $0x30] sm:$0x1]
        %v1113 = vld [vmem:[#allocation3 + $0x38] sm:$0x1]
        %v1118 = vunpack.c.l.b16 %v1003
        %v1119 = vunpack.c.l.b16 %v1004
        %v1120 = vunpack.c.l.b16 %v1005
        %v1121 = vunpack.c.l.b16 %v1006
        %v1122 = vpack.c.b16 %v1119, %v1118
        %v1123 = vpack.c.b16 %v1121, %v1120
        %1126 = vmatprep.subr.bf16.mxu0 0
        %1127 = vmatpush1.bf16.msra.mxu0 %v1122
        %1128 = vmatprep.subr.bf16.mxu0 0
        %1129 = vmatpush1.bf16.msra.mxu0 %v1123
        %1130 = vmatprep.subr.bf16.mxu0 0
        %1131 = vmatpush1.bf16.msra.mxu0 0
        %1132 = vmatprep.subr.bf16.mxu0 0
        %1133 = vmatpush1.bf16.msra.mxu0 0
        %1134 = vmatprep.subr.bf16.mxu0 0
        %1135 = vmatpush1.bf16.msra.mxu0 0
        %1136 = vmatprep.subr.bf16.mxu0 0
        %1137 = vmatpush1.bf16.msra.mxu0 0
        %1138 = vmatprep.subr.bf16.mxu0 0
        %1139 = vmatpush1.bf16.msra.mxu0 0
        %1140 = vmatprep.subr.bf16.mxu0 0
        %1141 = vmatpush1.bf16.msra.mxu0 0
        %1142 = vmatprep.subr.bf16.mxu0 0
        %1143 = vmatpush1.bf16.msra.mxu0 0
        %1144 = vmatprep.subr.bf16.mxu0 0
        %1145 = vmatpush1.bf16.msra.mxu0 0
        %1146 = vmatprep.subr.bf16.mxu0 0
        %1147 = vmatpush1.bf16.msra.mxu0 0
        %1148 = vmatprep.subr.bf16.mxu0 0
        %1149 = vmatpush1.bf16.msra.mxu0 0
        %1150 = vmatprep.subr.bf16.mxu0 0
        %1151 = vmatpush1.bf16.msra.mxu0 0
        %1152 = vmatprep.subr.bf16.mxu0 0
        %1153 = vmatpush1.bf16.msra.mxu0 0
        %1154 = vmatprep.subr.bf16.mxu0 0
        %1155 = vmatpush1.bf16.msra.mxu0 0
        %1156 = vmatprep.subr.bf16.mxu0 0
        %1157 = vmatpush1.bf16.msra.mxu0 0
        %1158 = vmatprep.mubr.bf16.mxu0 0
        %1159 = vmatmul.mubr.bf16.gmra.mrb[0].mxu0 %v1040
        %v1160 = vpop.f32.mrb[0].mxu0
        %v1161 = vadd.f32 0.0, %v1160
        %v1162 = vpop.f32.mrb[0].mxu0
        %v1163 = vpop.f32.mrb[0].mxu0
        %v1164 = vpop.f32.mrb[0].mxu0
        %1165 = vdwg.mxu0
        %v1167 = vrot.slane %v1161, 1
        %v1168 = vrot.slane %v1161, 2
        %v1169 = vrot.slane %v1161, 3
        %v1170 = vrot.slane %v1161, 4
        %v1171 = vrot.slane %v1161, 5
        %v1172 = vrot.slane %v1161, 6
        %v1173 = vrot.slane %v1161, 7
        %v1182 = vadd.f32 %v1106, %v1161
        %v1183 = vadd.f32 %v1107, %v1167
        %v1184 = vadd.f32 %v1108, %v1168
        %v1185 = vadd.f32 %v1109, %v1169
        %v1186 = vadd.f32 %v1110, %v1170
        %v1187 = vadd.f32 %v1111, %v1171
        %v1188 = vadd.f32 %v1112, %v1172
        %v1189 = vadd.f32 %v1113, %v1173
        %v1190 = vld [vmem:[#allocation4] sm:$0x1]
        %v1191 = vld [vmem:[#allocation4 + $0x8] sm:$0x1]
        %v1192 = vld [vmem:[#allocation4 + $0x10] sm:$0x1]
        %v1193 = vld [vmem:[#allocation4 + $0x18] sm:$0x1]
        %v1194 = vld [vmem:[#allocation4 + $0x20] sm:$0x1]
        %v1195 = vld [vmem:[#allocation4 + $0x28] sm:$0x1]
        %v1196 = vld [vmem:[#allocation4 + $0x30] sm:$0x1]
        %v1197 = vld [vmem:[#allocation4 + $0x38] sm:$0x1]
        %v1202 = vunpack.c.l.b16 %v1008
        %v1203 = vunpack.c.l.b16 %v1009
        %v1204 = vunpack.c.l.b16 %v1010
        %v1205 = vunpack.c.l.b16 %v1011
        %v1206 = vpack.c.b16 %v1203, %v1202
        %v1207 = vpack.c.b16 %v1205, %v1204
        %1210 = vmatprep.subr.bf16.mxu0 0
        %1211 = vmatpush1.bf16.msra.mxu0 %v1206
        %1212 = vmatprep.subr.bf16.mxu0 0
        %1213 = vmatpush1.bf16.msra.mxu0 %v1207
        %1214 = vmatprep.subr.bf16.mxu0 0
        %1215 = vmatpush1.bf16.msra.mxu0 0
        %1216 = vmatprep.subr.bf16.mxu0 0
        %1217 = vmatpush1.bf16.msra.mxu0 0
        %1218 = vmatprep.subr.bf16.mxu0 0
        %1219 = vmatpush1.bf16.msra.mxu0 0
        %1220 = vmatprep.subr.bf16.mxu0 0
        %1221 = vmatpush1.bf16.msra.mxu0 0
        %1222 = vmatprep.subr.bf16.mxu0 0
        %1223 = vmatpush1.bf16.msra.mxu0 0
        %1224 = vmatprep.subr.bf16.mxu0 0
        %1225 = vmatpush1.bf16.msra.mxu0 0
        %1226 = vmatprep.subr.bf16.mxu0 0
        %1227 = vmatpush1.bf16.msra.mxu0 0
        %1228 = vmatprep.subr.bf16.mxu0 0
        %1229 = vmatpush1.bf16.msra.mxu0 0
        %1230 = vmatprep.subr.bf16.mxu0 0
        %1231 = vmatpush1.bf16.msra.mxu0 0
        %1232 = vmatprep.subr.bf16.mxu0 0
        %1233 = vmatpush1.bf16.msra.mxu0 0
        %1234 = vmatprep.subr.bf16.mxu0 0
        %1235 = vmatpush1.bf16.msra.mxu0 0
        %1236 = vmatprep.subr.bf16.mxu0 0
        %1237 = vmatpush1.bf16.msra.mxu0 0
        %1238 = vmatprep.subr.bf16.mxu0 0
        %1239 = vmatpush1.bf16.msra.mxu0 0
        %1240 = vmatprep.subr.bf16.mxu0 0
        %1241 = vmatpush1.bf16.msra.mxu0 0
        %1242 = vmatprep.mubr.bf16.mxu0 0
        %1243 = vmatmul.mubr.bf16.gmra.mrb[0].mxu0 %v1040
        %v1244 = vpop.f32.mrb[0].mxu0
        %v1245 = vadd.f32 0.0, %v1244
        %v1246 = vpop.f32.mrb[0].mxu0
        %v1247 = vpop.f32.mrb[0].mxu0
        %v1248 = vpop.f32.mrb[0].mxu0
        %1249 = vdwg.mxu0
        %v1251 = vrot.slane %v1245, 1
        %v1252 = vrot.slane %v1245, 2
        %v1253 = vrot.slane %v1245, 3
        %v1254 = vrot.slane %v1245, 4
        %v1255 = vrot.slane %v1245, 5
        %v1256 = vrot.slane %v1245, 6
        %v1257 = vrot.slane %v1245, 7
        %v1266 = vadd.f32 %v1190, %v1245
        %v1267 = vadd.f32 %v1191, %v1251
        %v1268 = vadd.f32 %v1192, %v1252
        %v1269 = vadd.f32 %v1193, %v1253
        %v1270 = vadd.f32 %v1194, %v1254
        %v1271 = vadd.f32 %v1195, %v1255
        %v1272 = vadd.f32 %v1196, %v1256
        %v1273 = vadd.f32 %v1197, %v1257
        %v1274 = vld [vmem:[#allocation5] sm:$0x1]
        %v1275 = vld [vmem:[#allocation5 + $0x8] sm:$0x1]
        %v1276 = vld [vmem:[#allocation5 + $0x10] sm:$0x1]
        %v1277 = vld [vmem:[#allocation5 + $0x18] sm:$0x1]
        %v1278 = vld [vmem:[#allocation5 + $0x20] sm:$0x1]
        %v1279 = vld [vmem:[#allocation5 + $0x28] sm:$0x1]
        %v1280 = vld [vmem:[#allocation5 + $0x30] sm:$0x1]
        %v1281 = vld [vmem:[#allocation5 + $0x38] sm:$0x1]
        %v1286 = vunpack.c.l.b16 %v1013
        %v1287 = vunpack.c.l.b16 %v1014
        %v1288 = vunpack.c.l.b16 %v1015
        %v1289 = vunpack.c.l.b16 %v1016
        %v1290 = vpack.c.b16 %v1287, %v1286
        %v1291 = vpack.c.b16 %v1289, %v1288
        %1294 = vmatprep.subr.bf16.mxu0 0
        %1295 = vmatpush1.bf16.msra.mxu0 %v1290
        %1296 = vmatprep.subr.bf16.mxu0 0
        %1297 = vmatpush1.bf16.msra.mxu0 %v1291
        %1298 = vmatprep.subr.bf16.mxu0 0
        %1299 = vmatpush1.bf16.msra.mxu0 0
        %1300 = vmatprep.subr.bf16.mxu0 0
        %1301 = vmatpush1.bf16.msra.mxu0 0
        %1302 = vmatprep.subr.bf16.mxu0 0
        %1303 = vmatpush1.bf16.msra.mxu0 0
        %1304 = vmatprep.subr.bf16.mxu0 0
        %1305 = vmatpush1.bf16.msra.mxu0 0
        %1306 = vmatprep.subr.bf16.mxu0 0
        %1307 = vmatpush1.bf16.msra.mxu0 0
        %1308 = vmatprep.subr.bf16.mxu0 0
        %1309 = vmatpush1.bf16.msra.mxu0 0
        %1310 = vmatprep.subr.bf16.mxu0 0
        %1311 = vmatpush1.bf16.msra.mxu0 0
        %1312 = vmatprep.subr.bf16.mxu0 0
        %1313 = vmatpush1.bf16.msra.mxu0 0
        %1314 = vmatprep.subr.bf16.mxu0 0
        %1315 = vmatpush1.bf16.msra.mxu0 0
        %1316 = vmatprep.subr.bf16.mxu0 0
        %1317 = vmatpush1.bf16.msra.mxu0 0
        %1318 = vmatprep.subr.bf16.mxu0 0
        %1319 = vmatpush1.bf16.msra.mxu0 0
        %1320 = vmatprep.subr.bf16.mxu0 0
        %1321 = vmatpush1.bf16.msra.mxu0 0
        %1322 = vmatprep.subr.bf16.mxu0 0
        %1323 = vmatpush1.bf16.msra.mxu0 0
        %1324 = vmatprep.subr.bf16.mxu0 0
        %1325 = vmatpush1.bf16.msra.mxu0 0
        %1326 = vmatprep.mubr.bf16.mxu0 0
        %1327 = vmatmul.mubr.bf16.gmra.mrb[0].mxu0 %v1040
        %v1328 = vpop.f32.mrb[0].mxu0
        %v1329 = vadd.f32 0.0, %v1328
        %v1330 = vpop.f32.mrb[0].mxu0
        %v1331 = vpop.f32.mrb[0].mxu0
        %v1332 = vpop.f32.mrb[0].mxu0
        %1333 = vdwg.mxu0
        %v1335 = vrot.slane %v1329, 1
        %v1336 = vrot.slane %v1329, 2
        %v1337 = vrot.slane %v1329, 3
        %v1338 = vrot.slane %v1329, 4
        %v1339 = vrot.slane %v1329, 5
        %v1340 = vrot.slane %v1329, 6
        %v1341 = vrot.slane %v1329, 7
        %v1350 = vadd.f32 %v1274, %v1329
        %v1351 = vadd.f32 %v1275, %v1335
        %v1352 = vadd.f32 %v1276, %v1336
        %v1353 = vadd.f32 %v1277, %v1337
        %v1354 = vadd.f32 %v1278, %v1338
        %v1355 = vadd.f32 %v1279, %v1339
        %v1356 = vadd.f32 %v1280, %v1340
        %v1357 = vadd.f32 %v1281, %v1341
        %v1358 = vxor.u32 %v1098, 2147483648
        %v1359 = vxor.u32 %v1099, 2147483648
        %v1360 = vxor.u32 %v1100, 2147483648
        %v1361 = vxor.u32 %v1101, 2147483648
        %v1362 = vxor.u32 %v1102, 2147483648
        %v1363 = vxor.u32 %v1103, 2147483648
        %v1364 = vxor.u32 %v1104, 2147483648
        %v1365 = vxor.u32 %v1105, 2147483648
        %v1366 = vmul.f32 %v1358, 1.442695
        %v1367 = vpow.pop %v1366
        %v1368 = vmul.f32 %v1359, 1.442695
        %v1369 = vpow.pop %v1368
        %v1370 = vmul.f32 %v1360, 1.442695
        %v1371 = vpow.pop %v1370
        %v1372 = vmul.f32 %v1361, 1.442695
        %v1373 = vpow.pop %v1372
        %v1374 = vmul.f32 %v1362, 1.442695
        %v1375 = vpow.pop %v1374
        %v1376 = vmul.f32 %v1363, 1.442695
        %v1377 = vpow.pop %v1376
        %v1378 = vmul.f32 %v1364, 1.442695
        %v1379 = vpow.pop %v1378
        %v1380 = vmul.f32 %v1365, 1.442695
        %v1381 = vpow.pop %v1380
        %v1382 = vadd.f32 %v1367, 1.0
        %v1383 = vadd.f32 %v1369, 1.0
        %v1384 = vadd.f32 %v1371, 1.0
        %v1385 = vadd.f32 %v1373, 1.0
        %v1386 = vadd.f32 %v1375, 1.0
        %v1387 = vadd.f32 %v1377, 1.0
        %v1388 = vadd.f32 %v1379, 1.0
        %v1389 = vadd.f32 %v1381, 1.0
        %v1390 = vrcp.pop %v1382
        %v1391 = vmul.f32 1.0, %v1390
        %v1392 = vrcp.pop %v1383
        %v1393 = vmul.f32 1.0, %v1392
        %v1394 = vrcp.pop %v1384
        %v1395 = vmul.f32 1.0, %v1394
        %v1396 = vrcp.pop %v1385
        %v1397 = vmul.f32 1.0, %v1396
        %v1398 = vrcp.pop %v1386
        %v1399 = vmul.f32 1.0, %v1398
        %v1400 = vrcp.pop %v1387
        %v1401 = vmul.f32 1.0, %v1400
        %v1402 = vrcp.pop %v1388
        %v1403 = vmul.f32 1.0, %v1402
        %v1404 = vrcp.pop %v1389
        %v1405 = vmul.f32 1.0, %v1404
        %v1406 = vxor.u32 %v1182, 2147483648
        %v1407 = vxor.u32 %v1183, 2147483648
        %v1408 = vxor.u32 %v1184, 2147483648
        %v1409 = vxor.u32 %v1185, 2147483648
        %v1410 = vxor.u32 %v1186, 2147483648
        %v1411 = vxor.u32 %v1187, 2147483648
        %v1412 = vxor.u32 %v1188, 2147483648
        %v1413 = vxor.u32 %v1189, 2147483648
        %v1414 = vmul.f32 %v1406, 1.442695
        %v1415 = vpow.pop %v1414
        %v1416 = vmul.f32 %v1407, 1.442695
        %v1417 = vpow.pop %v1416
        %v1418 = vmul.f32 %v1408, 1.442695
        %v1419 = vpow.pop %v1418
        %v1420 = vmul.f32 %v1409, 1.442695
        %v1421 = vpow.pop %v1420
        %v1422 = vmul.f32 %v1410, 1.442695
        %v1423 = vpow.pop %v1422
        %v1424 = vmul.f32 %v1411, 1.442695
        %v1425 = vpow.pop %v1424
        %v1426 = vmul.f32 %v1412, 1.442695
        %v1427 = vpow.pop %v1426
        %v1428 = vmul.f32 %v1413, 1.442695
        %v1429 = vpow.pop %v1428
        %v1430 = vadd.f32 %v1415, 1.0
        %v1431 = vadd.f32 %v1417, 1.0
        %v1432 = vadd.f32 %v1419, 1.0
        %v1433 = vadd.f32 %v1421, 1.0
        %v1434 = vadd.f32 %v1423, 1.0
        %v1435 = vadd.f32 %v1425, 1.0
        %v1436 = vadd.f32 %v1427, 1.0
        %v1437 = vadd.f32 %v1429, 1.0
        %v1438 = vrcp.pop %v1430
        %v1439 = vmul.f32 1.0, %v1438
        %v1440 = vrcp.pop %v1431
        %v1441 = vmul.f32 1.0, %v1440
        %v1442 = vrcp.pop %v1432
        %v1443 = vmul.f32 1.0, %v1442
        %v1444 = vrcp.pop %v1433
        %v1445 = vmul.f32 1.0, %v1444
        %v1446 = vrcp.pop %v1434
        %v1447 = vmul.f32 1.0, %v1446
        %v1448 = vrcp.pop %v1435
        %v1449 = vmul.f32 1.0, %v1448
        %v1450 = vrcp.pop %v1436
        %v1451 = vmul.f32 1.0, %v1450
        %v1452 = vrcp.pop %v1437
        %v1453 = vmul.f32 1.0, %v1452
        %v1454 = vtanh.pop %v1266
        %v1455 = vtanh.pop %v1267
        %v1456 = vtanh.pop %v1268
        %v1457 = vtanh.pop %v1269
        %v1458 = vtanh.pop %v1270
        %v1459 = vtanh.pop %v1271
        %v1460 = vtanh.pop %v1272
        %v1461 = vtanh.pop %v1273
        %v1462 = vxor.u32 %v1350, 2147483648
        %v1463 = vxor.u32 %v1351, 2147483648
        %v1464 = vxor.u32 %v1352, 2147483648
        %v1465 = vxor.u32 %v1353, 2147483648
        %v1466 = vxor.u32 %v1354, 2147483648
        %v1467 = vxor.u32 %v1355, 2147483648
        %v1468 = vxor.u32 %v1356, 2147483648
        %v1469 = vxor.u32 %v1357, 2147483648
        %v1470 = vmul.f32 %v1462, 1.442695
        %v1471 = vpow.pop %v1470
        %v1472 = vmul.f32 %v1463, 1.442695
        %v1473 = vpow.pop %v1472
        %v1474 = vmul.f32 %v1464, 1.442695
        %v1475 = vpow.pop %v1474
        %v1476 = vmul.f32 %v1465, 1.442695
        %v1477 = vpow.pop %v1476
        %v1478 = vmul.f32 %v1466, 1.442695
        %v1479 = vpow.pop %v1478
        %v1480 = vmul.f32 %v1467, 1.442695
        %v1481 = vpow.pop %v1480
        %v1482 = vmul.f32 %v1468, 1.442695
        %v1483 = vpow.pop %v1482
        %v1484 = vmul.f32 %v1469, 1.442695
        %v1485 = vpow.pop %v1484
        %v1486 = vadd.f32 %v1471, 1.0
        %v1487 = vadd.f32 %v1473, 1.0
        %v1488 = vadd.f32 %v1475, 1.0
        %v1489 = vadd.f32 %v1477, 1.0
        %v1490 = vadd.f32 %v1479, 1.0
        %v1491 = vadd.f32 %v1481, 1.0
        %v1492 = vadd.f32 %v1483, 1.0
        %v1493 = vadd.f32 %v1485, 1.0
        %v1494 = vrcp.pop %v1486
        %v1495 = vmul.f32 1.0, %v1494
        %v1496 = vrcp.pop %v1487
        %v1497 = vmul.f32 1.0, %v1496
        %v1498 = vrcp.pop %v1488
        %v1499 = vmul.f32 1.0, %v1498
        %v1500 = vrcp.pop %v1489
        %v1501 = vmul.f32 1.0, %v1500
        %v1502 = vrcp.pop %v1490
        %v1503 = vmul.f32 1.0, %v1502
        %v1504 = vrcp.pop %v1491
        %v1505 = vmul.f32 1.0, %v1504
        %v1506 = vrcp.pop %v1492
        %v1507 = vmul.f32 1.0, %v1506
        %v1508 = vrcp.pop %v1493
        %v1509 = vmul.f32 1.0, %v1508
        %v1510 = vmul.f32 %v1439, 0.0
        %v1511 = vmul.f32 %v1441, 0.0
        %v1512 = vmul.f32 %v1443, 0.0
        %v1513 = vmul.f32 %v1445, 0.0
        %v1514 = vmul.f32 %v1447, 0.0
        %v1515 = vmul.f32 %v1449, 0.0
        %v1516 = vmul.f32 %v1451, 0.0
        %v1517 = vmul.f32 %v1453, 0.0
        %v1518 = vmul.f32 %v1391, %v1454
        %v1519 = vmul.f32 %v1393, %v1455
        %v1520 = vmul.f32 %v1395, %v1456
        %v1521 = vmul.f32 %v1397, %v1457
        %v1522 = vmul.f32 %v1399, %v1458
        %v1523 = vmul.f32 %v1401, %v1459
        %v1524 = vmul.f32 %v1403, %v1460
        %v1525 = vmul.f32 %v1405, %v1461
        %v1526 = vadd.f32 %v1510, %v1518
        %v1527 = vadd.f32 %v1511, %v1519
        %v1528 = vadd.f32 %v1512, %v1520
        %v1529 = vadd.f32 %v1513, %v1521
        %v1530 = vadd.f32 %v1514, %v1522
        %v1531 = vadd.f32 %v1515, %v1523
        %v1532 = vadd.f32 %v1516, %v1524
        %v1533 = vadd.f32 %v1517, %v1525
        %v1534 = vtanh.pop %v1526
        %v1535 = vtanh.pop %v1527
        %v1536 = vtanh.pop %v1528
        %v1537 = vtanh.pop %v1529
        %v1538 = vtanh.pop %v1530
        %v1539 = vtanh.pop %v1531
        %v1540 = vtanh.pop %v1532
        %v1541 = vtanh.pop %v1533
        %v1542 = vmul.f32 %v1495, %v1534
        %v1543 = vmul.f32 %v1497, %v1535
        %v1544 = vmul.f32 %v1499, %v1536
        %v1545 = vmul.f32 %v1501, %v1537
        %v1546 = vmul.f32 %v1503, %v1538
        %v1547 = vmul.f32 %v1505, %v1539
        %v1548 = vmul.f32 %v1507, %v1540
        %v1549 = vmul.f32 %v1509, %v1541
        %v1550 = vsel %vm1018, 1, 0
        %1551 = vset.pattern.permute.xlu0 0
        %1552 = vperm.xlu0 %1551, %v1550
        %v1553 = vpop.permute.xlu0 %1552
        %vm1554 = vcmp.eq.s32.totalorder %v1553, 1
        %v1563 = vrot.slane %v1543, 7
        %vm1564 = vcmask 1041409
        %v1565 = vsel %vm1564, %v1563, %v1542
        %v1566 = vrot.slane %v1544, 6
        %vm1567 = vcmask 1042434
        %v1568 = vsel %vm1567, %v1566, %v1565
        %v1569 = vrot.slane %v1545, 5
        %vm1570 = vcmask 1043459
        %v1571 = vsel %vm1570, %v1569, %v1568
        %v1572 = vrot.slane %v1546, 4
        %vm1573 = vcmask 1044484
        %v1574 = vsel %vm1573, %v1572, %v1571
        %v1575 = vrot.slane %v1547, 3
        %vm1576 = vcmask 1045509
        %v1577 = vsel %vm1576, %v1575, %v1574
        %v1578 = vrot.slane %v1548, 2
        %vm1579 = vcmask 1046534
        %v1580 = vsel %vm1579, %v1578, %v1577
        %v1581 = vrot.slane %v1549, 1
        %vm1582 = vcmask 1047559
        %v1583 = vsel %vm1582, %v1581, %v1580
        %v1585 = vsel %vm1554, %v1583, 0.0
        %v1587 = vcombine.high %v1585, %v1585
        %v1589 = vunpack.c.l.s4 1966171168
        %v1590 = vunpack.c.0.s8 %v1589
        %v1591 = vlaneseq
        %v1592 = vshrl.u32 %v1591, 7
        %v1593 = vsub.s32 %v1590, %v1592
        %v1594 = vrot.slane %v1585, %v1593
        %v1596 = vunpack.c.l.s4 1966171168
        %v1597 = vunpack.c.0.s8 %v1596
        %v1598 = vlaneseq
        %v1599 = vshrl.u32 %v1598, 7
        %v1600 = vsub.s32 %v1597, %v1599
        %v1601 = vrot.slane %v1587, %v1600
        %v1602 = vcombine.high %v1594, %v1594
        %v1603 = vcombine.high %v1601, %v1601
        %v1605 = vunpack.c.l.s4 1966171168
        %v1606 = vunpack.c.0.s8 %v1605
        %v1607 = vlaneseq
        %v1608 = vshrl.u32 %v1607, 7
        %v1609 = vsub.s32 %v1606, %v1608
        %v1610 = vrot.slane %v1594, %v1609
        %v1612 = vunpack.c.l.s4 1966171168
        %v1613 = vunpack.c.0.s8 %v1612
        %v1614 = vlaneseq
        %v1615 = vshrl.u32 %v1614, 7
        %v1616 = vsub.s32 %v1613, %v1615
        %v1617 = vrot.slane %v1601, %v1616
        %v1619 = vunpack.c.l.s4 1966171168
        %v1620 = vunpack.c.0.s8 %v1619
        %v1621 = vlaneseq
        %v1622 = vshrl.u32 %v1621, 7
        %v1623 = vsub.s32 %v1620, %v1622
        %v1624 = vrot.slane %v1602, %v1623
        %v1626 = vunpack.c.l.s4 1966171168
        %v1627 = vunpack.c.0.s8 %v1626
        %v1628 = vlaneseq
        %v1629 = vshrl.u32 %v1628, 7
        %v1630 = vsub.s32 %v1627, %v1629
        %v1631 = vrot.slane %v1603, %v1630
        %v1632 = vcombine.high %v1610, %v1610
        %v1633 = vcombine.high %v1617, %v1617
        %v1634 = vcombine.high %v1624, %v1624
        %v1635 = vcombine.high %v1631, %v1631
        %vm1644 = vcmask 253952
        %1645 = vst.msk [vmem:[#allocation6] sm:$0x1] %vm1644, %v1610
        %1646 = vst.msk [vmem:[#allocation6 + $0x8] sm:$0x1] %vm1644, %v1624
        %1647 = vst.msk [vmem:[#allocation6 + $0x10] sm:$0x1] %vm1644, %v1632
        %1648 = vst.msk [vmem:[#allocation6 + $0x18] sm:$0x1] %vm1644, %v1634
        %1649 = vst.msk [vmem:[#allocation6 + $0x20] sm:$0x1] %vm1644, %v1617
        %1650 = vst.msk [vmem:[#allocation6 + $0x28] sm:$0x1] %vm1644, %v1631
        %1651 = vst.msk [vmem:[#allocation6 + $0x30] sm:$0x1] %vm1644, %v1633
        %1652 = vst.msk [vmem:[#allocation6 + $0x38] sm:$0x1] %vm1644, %v1635
        %v1661 = vrot.slane %v1527, 7
        %v1662 = vsel %vm1564, %v1661, %v1526
        %v1663 = vrot.slane %v1528, 6
        %v1664 = vsel %vm1567, %v1663, %v1662
        %v1665 = vrot.slane %v1529, 5
        %v1666 = vsel %vm1570, %v1665, %v1664
        %v1667 = vrot.slane %v1530, 4
        %v1668 = vsel %vm1573, %v1667, %v1666
        %v1669 = vrot.slane %v1531, 3
        %v1670 = vsel %vm1576, %v1669, %v1668
        %v1671 = vrot.slane %v1532, 2
        %v1672 = vsel %vm1579, %v1671, %v1670
        %v1673 = vrot.slane %v1533, 1
        %v1674 = vsel %vm1582, %v1673, %v1672
        %v1676 = vsel %vm1554, %v1674, 0.0
        %v1677 = vpack.c.bf16 %v1585, %v1585
        %v1678 = vld [vmem:[#allocation2 + $0x1] sm:$0x1]
        %v1679 = vld [vmem:[#allocation2 + $0x9] sm:$0x1]
        %v1680 = vld [vmem:[#allocation2 + $0x11] sm:$0x1]
        %v1681 = vld [vmem:[#allocation2 + $0x19] sm:$0x1]
        %v1682 = vld [vmem:[#allocation2 + $0x21] sm:$0x1]
        %v1683 = vld [vmem:[#allocation2 + $0x29] sm:$0x1]
        %v1684 = vld [vmem:[#allocation2 + $0x31] sm:$0x1]
        %v1685 = vld [vmem:[#allocation2 + $0x39] sm:$0x1]
        %v1687 = vsel %vm618, %v1677, 0
        %1689 = vmatprep.subr.bf16.mxu0 0
        %1690 = vmatpush1.bf16.msra.mxu0 %v1035
        %1691 = vmatprep.subr.bf16.mxu0 0
        %1692 = vmatpush1.bf16.msra.mxu0 %v1036
        %1693 = vmatprep.subr.bf16.mxu0 0
        %1694 = vmatpush1.bf16.msra.mxu0 0
        %1695 = vmatprep.subr.bf16.mxu0 0
        %1696 = vmatpush1.bf16.msra.mxu0 0
        %1697 = vmatprep.subr.bf16.mxu0 0
        %1698 = vmatpush1.bf16.msra.mxu0 0
        %1699 = vmatprep.subr.bf16.mxu0 0
        %1700 = vmatpush1.bf16.msra.mxu0 0
        %1701 = vmatprep.subr.bf16.mxu0 0
        %1702 = vmatpush1.bf16.msra.mxu0 0
        %1703 = vmatprep.subr.bf16.mxu0 0
        %1704 = vmatpush1.bf16.msra.mxu0 0
        %1705 = vmatprep.subr.bf16.mxu0 0
        %1706 = vmatpush1.bf16.msra.mxu0 0
        %1707 = vmatprep.subr.bf16.mxu0 0
        %1708 = vmatpush1.bf16.msra.mxu0 0
        %1709 = vmatprep.subr.bf16.mxu0 0
        %1710 = vmatpush1.bf16.msra.mxu0 0
        %1711 = vmatprep.subr.bf16.mxu0 0
        %1712 = vmatpush1.bf16.msra.mxu0 0
        %1713 = vmatprep.subr.bf16.mxu0 0
        %1714 = vmatpush1.bf16.msra.mxu0 0
        %1715 = vmatprep.subr.bf16.mxu0 0
        %1716 = vmatpush1.bf16.msra.mxu0 0
        %1717 = vmatprep.subr.bf16.mxu0 0
        %1718 = vmatpush1.bf16.msra.mxu0 0
        %1719 = vmatprep.subr.bf16.mxu0 0
        %1720 = vmatpush1.bf16.msra.mxu0 0
        %1721 = vmatprep.mubr.bf16.mxu0 0
        %1722 = vmatmul.mubr.bf16.gmra.mrb[0].mxu0 %v1687
        %v1723 = vpop.f32.mrb[0].mxu0
        %v1724 = vadd.f32 0.0, %v1723
        %v1725 = vpop.f32.mrb[0].mxu0
        %v1726 = vpop.f32.mrb[0].mxu0
        %v1727 = vpop.f32.mrb[0].mxu0
        %1728 = vdwg.mxu0
        %v1730 = vrot.slane %v1724, 1
        %v1731 = vrot.slane %v1724, 2
        %v1732 = vrot.slane %v1724, 3
        %v1733 = vrot.slane %v1724, 4
        %v1734 = vrot.slane %v1724, 5
        %v1735 = vrot.slane %v1724, 6
        %v1736 = vrot.slane %v1724, 7
        %v1745 = vadd.f32 %v1678, %v1724
        %v1746 = vadd.f32 %v1679, %v1730
        %v1747 = vadd.f32 %v1680, %v1731
        %v1748 = vadd.f32 %v1681, %v1732
        %v1749 = vadd.f32 %v1682, %v1733
        %v1750 = vadd.f32 %v1683, %v1734
        %v1751 = vadd.f32 %v1684, %v1735
        %v1752 = vadd.f32 %v1685, %v1736
        %v1753 = vld [vmem:[#allocation3 + $0x1] sm:$0x1]
        %v1754 = vld [vmem:[#allocation3 + $0x9] sm:$0x1]
        %v1755 = vld [vmem:[#allocation3 + $0x11] sm:$0x1]
        %v1756 = vld [vmem:[#allocation3 + $0x19] sm:$0x1]
        %v1757 = vld [vmem:[#allocation3 + $0x21] sm:$0x1]
        %v1758 = vld [vmem:[#allocation3 + $0x29] sm:$0x1]
        %v1759 = vld [vmem:[#allocation3 + $0x31] sm:$0x1]
        %v1760 = vld [vmem:[#allocation3 + $0x39] sm:$0x1]
        %1761 = vmatprep.subr.bf16.mxu0 0
        %1762 = vmatpush1.bf16.msra.mxu0 %v1122
        %1763 = vmatprep.subr.bf16.mxu0 0
        %1764 = vmatpush1.bf16.msra.mxu0 %v1123
        %1765 = vmatprep.subr.bf16.mxu0 0
        %1766 = vmatpush1.bf16.msra.mxu0 0
        %1767 = vmatprep.subr.bf16.mxu0 0
        %1768 = vmatpush1.bf16.msra.mxu0 0
        %1769 = vmatprep.subr.bf16.mxu0 0
        %1770 = vmatpush1.bf16.msra.mxu0 0
        %1771 = vmatprep.subr.bf16.mxu0 0
        %1772 = vmatpush1.bf16.msra.mxu0 0
        %1773 = vmatprep.subr.bf16.mxu0 0
        %1774 = vmatpush1.bf16.msra.mxu0 0
        %1775 = vmatprep.subr.bf16.mxu0 0
        %1776 = vmatpush1.bf16.msra.mxu0 0
        %1777 = vmatprep.subr.bf16.mxu0 0
        %1778 = vmatpush1.bf16.msra.mxu0 0
        %1779 = vmatprep.subr.bf16.mxu0 0
        %1780 = vmatpush1.bf16.msra.mxu0 0
        %1781 = vmatprep.subr.bf16.mxu0 0
        %1782 = vmatpush1.bf16.msra.mxu0 0
        %1783 = vmatprep.subr.bf16.mxu0 0
        %1784 = vmatpush1.bf16.msra.mxu0 0
        %1785 = vmatprep.subr.bf16.mxu0 0
        %1786 = vmatpush1.bf16.msra.mxu0 0
        %1787 = vmatprep.subr.bf16.mxu0 0
        %1788 = vmatpush1.bf16.msra.mxu0 0
        %1789 = vmatprep.subr.bf16.mxu0 0
        %1790 = vmatpush1.bf16.msra.mxu0 0
        %1791 = vmatprep.subr.bf16.mxu0 0
        %1792 = vmatpush1.bf16.msra.mxu0 0
        %1793 = vmatprep.mubr.bf16.mxu0 0
        %1794 = vmatmul.mubr.bf16.gmra.mrb[0].mxu0 %v1687
        %v1795 = vpop.f32.mrb[0].mxu0
        %v1796 = vadd.f32 0.0, %v1795
        %v1797 = vpop.f32.mrb[0].mxu0
        %v1798 = vpop.f32.mrb[0].mxu0
        %v1799 = vpop.f32.mrb[0].mxu0
        %1800 = vdwg.mxu0
        %v1802 = vrot.slane %v1796, 1
        %v1803 = vrot.slane %v1796, 2
        %v1804 = vrot.slane %v1796, 3
        %v1805 = vrot.slane %v1796, 4
        %v1806 = vrot.slane %v1796, 5
        %v1807 = vrot.slane %v1796, 6
        %v1808 = vrot.slane %v1796, 7
        %v1817 = vadd.f32 %v1753, %v1796
        %v1818 = vadd.f32 %v1754, %v1802
        %v1819 = vadd.f32 %v1755, %v1803
        %v1820 = vadd.f32 %v1756, %v1804
        %v1821 = vadd.f32 %v1757, %v1805
        %v1822 = vadd.f32 %v1758, %v1806
        %v1823 = vadd.f32 %v1759, %v1807
        %v1824 = vadd.f32 %v1760, %v1808
        %v1825 = vld [vmem:[#allocation4 + $0x1] sm:$0x1]
        %v1826 = vld [vmem:[#allocation4 + $0x9] sm:$0x1]
        %v1827 = vld [vmem:[#allocation4 + $0x11] sm:$0x1]
        %v1828 = vld [vmem:[#allocation4 + $0x19] sm:$0x1]
        %v1829 = vld [vmem:[#allocation4 + $0x21] sm:$0x1]
        %v1830 = vld [vmem:[#allocation4 + $0x29] sm:$0x1]
        %v1831 = vld [vmem:[#allocation4 + $0x31] sm:$0x1]
        %v1832 = vld [vmem:[#allocation4 + $0x39] sm:$0x1]
        %1833 = vmatprep.subr.bf16.mxu0 0
        %1834 = vmatpush1.bf16.msra.mxu0 %v1206
        %1835 = vmatprep.subr.bf16.mxu0 0
        %1836 = vmatpush1.bf16.msra.mxu0 %v1207
        %1837 = vmatprep.subr.bf16.mxu0 0
        %1838 = vmatpush1.bf16.msra.mxu0 0
        %1839 = vmatprep.subr.bf16.mxu0 0
        %1840 = vmatpush1.bf16.msra.mxu0 0
        %1841 = vmatprep.subr.bf16.mxu0 0
        %1842 = vmatpush1.bf16.msra.mxu0 0
        %1843 = vmatprep.subr.bf16.mxu0 0
        %1844 = vmatpush1.bf16.msra.mxu0 0
        %1845 = vmatprep.subr.bf16.mxu0 0
        %1846 = vmatpush1.bf16.msra.mxu0 0
        %1847 = vmatprep.subr.bf16.mxu0 0
        %1848 = vmatpush1.bf16.msra.mxu0 0
        %1849 = vmatprep.subr.bf16.mxu0 0
        %1850 = vmatpush1.bf16.msra.mxu0 0
        %1851 = vmatprep.subr.bf16.mxu0 0
        %1852 = vmatpush1.bf16.msra.mxu0 0
        %1853 = vmatprep.subr.bf16.mxu0 0
        %1854 = vmatpush1.bf16.msra.mxu0 0
        %1855 = vmatprep.subr.bf16.mxu0 0
        %1856 = vmatpush1.bf16.msra.mxu0 0
        %1857 = vmatprep.subr.bf16.mxu0 0
        %1858 = vmatpush1.bf16.msra.mxu0 0
        %1859 = vmatprep.subr.bf16.mxu0 0
        %1860 = vmatpush1.bf16.msra.mxu0 0
        %1861 = vmatprep.subr.bf16.mxu0 0
        %1862 = vmatpush1.bf16.msra.mxu0 0
        %1863 = vmatprep.subr.bf16.mxu0 0
        %1864 = vmatpush1.bf16.msra.mxu0 0
        %1865 = vmatprep.mubr.bf16.mxu0 0
        %1866 = vmatmul.mubr.bf16.gmra.mrb[0].mxu0 %v1687
        %v1867 = vpop.f32.mrb[0].mxu0
        %v1868 = vadd.f32 0.0, %v1867
        %v1869 = vpop.f32.mrb[0].mxu0
        %v1870 = vpop.f32.mrb[0].mxu0
        %v1871 = vpop.f32.mrb[0].mxu0
        %1872 = vdwg.mxu0
        %v1874 = vrot.slane %v1868, 1
        %v1875 = vrot.slane %v1868, 2
        %v1876 = vrot.slane %v1868, 3
        %v1877 = vrot.slane %v1868, 4
        %v1878 = vrot.slane %v1868, 5
        %v1879 = vrot.slane %v1868, 6
        %v1880 = vrot.slane %v1868, 7
        %v1889 = vadd.f32 %v1825, %v1868
        %v1890 = vadd.f32 %v1826, %v1874
        %v1891 = vadd.f32 %v1827, %v1875
        %v1892 = vadd.f32 %v1828, %v1876
        %v1893 = vadd.f32 %v1829, %v1877
        %v1894 = vadd.f32 %v1830, %v1878
        %v1895 = vadd.f32 %v1831, %v1879
        %v1896 = vadd.f32 %v1832, %v1880
        %v1897 = vld [vmem:[#allocation5 + $0x1] sm:$0x1]
        %v1898 = vld [vmem:[#allocation5 + $0x9] sm:$0x1]
        %v1899 = vld [vmem:[#allocation5 + $0x11] sm:$0x1]
        %v1900 = vld [vmem:[#allocation5 + $0x19] sm:$0x1]
        %v1901 = vld [vmem:[#allocation5 + $0x21] sm:$0x1]
        %v1902 = vld [vmem:[#allocation5 + $0x29] sm:$0x1]
        %v1903 = vld [vmem:[#allocation5 + $0x31] sm:$0x1]
        %v1904 = vld [vmem:[#allocation5 + $0x39] sm:$0x1]
        %1905 = vmatprep.subr.bf16.mxu0 0
        %1906 = vmatpush1.bf16.msra.mxu0 %v1290
        %1907 = vmatprep.subr.bf16.mxu0 0
        %1908 = vmatpush1.bf16.msra.mxu0 %v1291
        %1909 = vmatprep.subr.bf16.mxu0 0
        %1910 = vmatpush1.bf16.msra.mxu0 0
        %1911 = vmatprep.subr.bf16.mxu0 0
        %1912 = vmatpush1.bf16.msra.mxu0 0
        %1913 = vmatprep.subr.bf16.mxu0 0
        %1914 = vmatpush1.bf16.msra.mxu0 0
        %1915 = vmatprep.subr.bf16.mxu0 0
        %1916 = vmatpush1.bf16.msra.mxu0 0
        %1917 = vmatprep.subr.bf16.mxu0 0
        %1918 = vmatpush1.bf16.msra.mxu0 0
        %1919 = vmatprep.subr.bf16.mxu0 0
        %1920 = vmatpush1.bf16.msra.mxu0 0
        %1921 = vmatprep.subr.bf16.mxu0 0
        %1922 = vmatpush1.bf16.msra.mxu0 0
        %1923 = vmatprep.subr.bf16.mxu0 0
        %1924 = vmatpush1.bf16.msra.mxu0 0
        %1925 = vmatprep.subr.bf16.mxu0 0
        %1926 = vmatpush1.bf16.msra.mxu0 0
        %1927 = vmatprep.subr.bf16.mxu0 0
        %1928 = vmatpush1.bf16.msra.mxu0 0
        %1929 = vmatprep.subr.bf16.mxu0 0
        %1930 = vmatpush1.bf16.msra.mxu0 0
        %1931 = vmatprep.subr.bf16.mxu0 0
        %1932 = vmatpush1.bf16.msra.mxu0 0
        %1933 = vmatprep.subr.bf16.mxu0 0
        %1934 = vmatpush1.bf16.msra.mxu0 0
        %1935 = vmatprep.subr.bf16.mxu0 0
        %1936 = vmatpush1.bf16.msra.mxu0 0
        %1937 = vmatprep.mubr.bf16.mxu0 0
        %1938 = vmatmul.mubr.bf16.gmra.mrb[0].mxu0 %v1687
        %v1939 = vpop.f32.mrb[0].mxu0
        %v1940 = vadd.f32 0.0, %v1939
        %v1941 = vpop.f32.mrb[0].mxu0
        %v1942 = vpop.f32.mrb[0].mxu0
        %v1943 = vpop.f32.mrb[0].mxu0
        %1944 = vdwg.mxu0
        %v1946 = vrot.slane %v1940, 1
        %v1947 = vrot.slane %v1940, 2
        %v1948 = vrot.slane %v1940, 3
        %v1949 = vrot.slane %v1940, 4
        %v1950 = vrot.slane %v1940, 5
        %v1951 = vrot.slane %v1940, 6
        %v1952 = vrot.slane %v1940, 7
        %v1961 = vadd.f32 %v1897, %v1940
        %v1962 = vadd.f32 %v1898, %v1946
        %v1963 = vadd.f32 %v1899, %v1947
        %v1964 = vadd.f32 %v1900, %v1948
        %v1965 = vadd.f32 %v1901, %v1949
        %v1966 = vadd.f32 %v1902, %v1950
        %v1967 = vadd.f32 %v1903, %v1951
        %v1968 = vadd.f32 %v1904, %v1952
        %v1969 = vxor.u32 %v1745, 2147483648
        %v1970 = vxor.u32 %v1746, 2147483648
        %v1971 = vxor.u32 %v1747, 2147483648
        %v1972 = vxor.u32 %v1748, 2147483648
        %v1973 = vxor.u32 %v1749, 2147483648
        %v1974 = vxor.u32 %v1750, 2147483648
        %v1975 = vxor.u32 %v1751, 2147483648
        %v1976 = vxor.u32 %v1752, 2147483648
        %v1977 = vmul.f32 %v1969, 1.442695
        %v1978 = vpow.pop %v1977
        %v1979 = vmul.f32 %v1970, 1.442695
        %v1980 = vpow.pop %v1979
        %v1981 = vmul.f32 %v1971, 1.442695
        %v1982 = vpow.pop %v1981
        %v1983 = vmul.f32 %v1972, 1.442695
        %v1984 = vpow.pop %v1983
        %v1985 = vmul.f32 %v1973, 1.442695
        %v1986 = vpow.pop %v1985
        %v1987 = vmul.f32 %v1974, 1.442695
        %v1988 = vpow.pop %v1987
        %v1989 = vmul.f32 %v1975, 1.442695
        %v1990 = vpow.pop %v1989
        %v1991 = vmul.f32 %v1976, 1.442695
        %v1992 = vpow.pop %v1991
        %v1993 = vadd.f32 %v1978, 1.0
        %v1994 = vadd.f32 %v1980, 1.0
        %v1995 = vadd.f32 %v1982, 1.0
        %v1996 = vadd.f32 %v1984, 1.0
        %v1997 = vadd.f32 %v1986, 1.0
        %v1998 = vadd.f32 %v1988, 1.0
        %v1999 = vadd.f32 %v1990, 1.0
        %v2000 = vadd.f32 %v1992, 1.0
        %v2001 = vrcp.pop %v1993
        %v2002 = vmul.f32 1.0, %v2001
        %v2003 = vrcp.pop %v1994
        %v2004 = vmul.f32 1.0, %v2003
        %v2005 = vrcp.pop %v1995
        %v2006 = vmul.f32 1.0, %v2005
        %v2007 = vrcp.pop %v1996
        %v2008 = vmul.f32 1.0, %v2007
        %v2009 = vrcp.pop %v1997
        %v2010 = vmul.f32 1.0, %v2009
        %v2011 = vrcp.pop %v1998
        %v2012 = vmul.f32 1.0, %v2011
        %v2013 = vrcp.pop %v1999
        %v2014 = vmul.f32 1.0, %v2013
        %v2015 = vrcp.pop %v2000
        %v2016 = vmul.f32 1.0, %v2015
        %v2017 = vxor.u32 %v1817, 2147483648
        %v2018 = vxor.u32 %v1818, 2147483648
        %v2019 = vxor.u32 %v1819, 2147483648
        %v2020 = vxor.u32 %v1820, 2147483648
        %v2021 = vxor.u32 %v1821, 2147483648
        %v2022 = vxor.u32 %v1822, 2147483648
        %v2023 = vxor.u32 %v1823, 2147483648
        %v2024 = vxor.u32 %v1824, 2147483648
        %v2025 = vmul.f32 %v2017, 1.442695
        %v2026 = vpow.pop %v2025
        %v2027 = vmul.f32 %v2018, 1.442695
        %v2028 = vpow.pop %v2027
        %v2029 = vmul.f32 %v2019, 1.442695
        %v2030 = vpow.pop %v2029
        %v2031 = vmul.f32 %v2020, 1.442695
        %v2032 = vpow.pop %v2031
        %v2033 = vmul.f32 %v2021, 1.442695
        %v2034 = vpow.pop %v2033
        %v2035 = vmul.f32 %v2022, 1.442695
        %v2036 = vpow.pop %v2035
        %v2037 = vmul.f32 %v2023, 1.442695
        %v2038 = vpow.pop %v2037
        %v2039 = vmul.f32 %v2024, 1.442695
        %v2040 = vpow.pop %v2039
        %v2041 = vadd.f32 %v2026, 1.0
        %v2042 = vadd.f32 %v2028, 1.0
        %v2043 = vadd.f32 %v2030, 1.0
        %v2044 = vadd.f32 %v2032, 1.0
        %v2045 = vadd.f32 %v2034, 1.0
        %v2046 = vadd.f32 %v2036, 1.0
        %v2047 = vadd.f32 %v2038, 1.0
        %v2048 = vadd.f32 %v2040, 1.0
        %v2049 = vrcp.pop %v2041
        %v2050 = vmul.f32 1.0, %v2049
        %v2051 = vrcp.pop %v2042
        %v2052 = vmul.f32 1.0, %v2051
        %v2053 = vrcp.pop %v2043
        %v2054 = vmul.f32 1.0, %v2053
        %v2055 = vrcp.pop %v2044
        %v2056 = vmul.f32 1.0, %v2055
        %v2057 = vrcp.pop %v2045
        %v2058 = vmul.f32 1.0, %v2057
        %v2059 = vrcp.pop %v2046
        %v2060 = vmul.f32 1.0, %v2059
        %v2061 = vrcp.pop %v2047
        %v2062 = vmul.f32 1.0, %v2061
        %v2063 = vrcp.pop %v2048
        %v2064 = vmul.f32 1.0, %v2063
        %v2065 = vtanh.pop %v1889
        %v2066 = vtanh.pop %v1890
        %v2067 = vtanh.pop %v1891
        %v2068 = vtanh.pop %v1892
        %v2069 = vtanh.pop %v1893
        %v2070 = vtanh.pop %v1894
        %v2071 = vtanh.pop %v1895
        %v2072 = vtanh.pop %v1896
        %v2073 = vxor.u32 %v1961, 2147483648
        %v2074 = vxor.u32 %v1962, 2147483648
        %v2075 = vxor.u32 %v1963, 2147483648
        %v2076 = vxor.u32 %v1964, 2147483648
        %v2077 = vxor.u32 %v1965, 2147483648
        %v2078 = vxor.u32 %v1966, 2147483648
        %v2079 = vxor.u32 %v1967, 2147483648
        %v2080 = vxor.u32 %v1968, 2147483648
        %v2081 = vmul.f32 %v2073, 1.442695
        %v2082 = vpow.pop %v2081
        %v2083 = vmul.f32 %v2074, 1.442695
        %v2084 = vpow.pop %v2083
        %v2085 = vmul.f32 %v2075, 1.442695
        %v2086 = vpow.pop %v2085
        %v2087 = vmul.f32 %v2076, 1.442695
        %v2088 = vpow.pop %v2087
        %v2089 = vmul.f32 %v2077, 1.442695
        %v2090 = vpow.pop %v2089
        %v2091 = vmul.f32 %v2078, 1.442695
        %v2092 = vpow.pop %v2091
        %v2093 = vmul.f32 %v2079, 1.442695
        %v2094 = vpow.pop %v2093
        %v2095 = vmul.f32 %v2080, 1.442695
        %v2096 = vpow.pop %v2095
        %v2097 = vadd.f32 %v2082, 1.0
        %v2098 = vadd.f32 %v2084, 1.0
        %v2099 = vadd.f32 %v2086, 1.0
        %v2100 = vadd.f32 %v2088, 1.0
        %v2101 = vadd.f32 %v2090, 1.0
        %v2102 = vadd.f32 %v2092, 1.0
        %v2103 = vadd.f32 %v2094, 1.0
        %v2104 = vadd.f32 %v2096, 1.0
        %v2105 = vrcp.pop %v2097
        %v2106 = vmul.f32 1.0, %v2105
        %v2107 = vrcp.pop %v2098
        %v2108 = vmul.f32 1.0, %v2107
        %v2109 = vrcp.pop %v2099
        %v2110 = vmul.f32 1.0, %v2109
        %v2111 = vrcp.pop %v2100
        %v2112 = vmul.f32 1.0, %v2111
        %v2113 = vrcp.pop %v2101
        %v2114 = vmul.f32 1.0, %v2113
        %v2115 = vrcp.pop %v2102
        %v2116 = vmul.f32 1.0, %v2115
        %v2117 = vrcp.pop %v2103
        %v2118 = vmul.f32 1.0, %v2117
        %v2119 = vrcp.pop %v2104
        %v2120 = vmul.f32 1.0, %v2119
        %v2122 = vrot.slane %v1676, 1
        %v2123 = vrot.slane %v1676, 2
        %v2124 = vrot.slane %v1676, 3
        %v2125 = vrot.slane %v1676, 4
        %v2126 = vrot.slane %v1676, 5
        %v2127 = vrot.slane %v1676, 6
        %v2128 = vrot.slane %v1676, 7
        %v2137 = vmul.f32 %v2050, %v1676
        %v2138 = vmul.f32 %v2052, %v2122
        %v2139 = vmul.f32 %v2054, %v2123
        %v2140 = vmul.f32 %v2056, %v2124
        %v2141 = vmul.f32 %v2058, %v2125
        %v2142 = vmul.f32 %v2060, %v2126
        %v2143 = vmul.f32 %v2062, %v2127
        %v2144 = vmul.f32 %v2064, %v2128
        %v2145 = vmul.f32 %v2002, %v2065
        %v2146 = vmul.f32 %v2004, %v2066
        %v2147 = vmul.f32 %v2006, %v2067
        %v2148 = vmul.f32 %v2008, %v2068
        %v2149 = vmul.f32 %v2010, %v2069
        %v2150 = vmul.f32 %v2012, %v2070
        %v2151 = vmul.f32 %v2014, %v2071
        %v2152 = vmul.f32 %v2016, %v2072
        %v2153 = vadd.f32 %v2137, %v2145
        %v2154 = vadd.f32 %v2138, %v2146
        %v2155 = vadd.f32 %v2139, %v2147
        %v2156 = vadd.f32 %v2140, %v2148
        %v2157 = vadd.f32 %v2141, %v2149
        %v2158 = vadd.f32 %v2142, %v2150
        %v2159 = vadd.f32 %v2143, %v2151
        %v2160 = vadd.f32 %v2144, %v2152
        %v2161 = vtanh.pop %v2153
        %v2162 = vtanh.pop %v2154
        %v2163 = vtanh.pop %v2155
        %v2164 = vtanh.pop %v2156
        %v2165 = vtanh.pop %v2157
        %v2166 = vtanh.pop %v2158
        %v2167 = vtanh.pop %v2159
        %v2168 = vtanh.pop %v2160
        %v2169 = vmul.f32 %v2106, %v2161
        %v2170 = vmul.f32 %v2108, %v2162
        %v2171 = vmul.f32 %v2110, %v2163
        %v2172 = vmul.f32 %v2112, %v2164
        %v2173 = vmul.f32 %v2114, %v2165
        %v2174 = vmul.f32 %v2116, %v2166
        %v2175 = vmul.f32 %v2118, %v2167
        %v2176 = vmul.f32 %v2120, %v2168
        %2177 = vset.pattern.permute.xlu0 1
        %2178 = vperm.xlu0 %2177, %v1550
        %v2179 = vpop.permute.xlu0 %2178
        %vm2180 = vcmp.eq.s32.totalorder %v2179, 1
        %v2189 = vrot.slane %v2170, 7
        %v2190 = vsel %vm1564, %v2189, %v2169
        %v2191 = vrot.slane %v2171, 6
        %v2192 = vsel %vm1567, %v2191, %v2190
        %v2193 = vrot.slane %v2172, 5
        %v2194 = vsel %vm1570, %v2193, %v2192
        %v2195 = vrot.slane %v2173, 4
        %v2196 = vsel %vm1573, %v2195, %v2194
        %v2197 = vrot.slane %v2174, 3
        %v2198 = vsel %vm1576, %v2197, %v2196
        %v2199 = vrot.slane %v2175, 2
        %v2200 = vsel %vm1579, %v2199, %v2198
        %v2201 = vrot.slane %v2176, 1
        %v2202 = vsel %vm1582, %v2201, %v2200
        %v2204 = vsel %vm2180, %v2202, 0.0
        %v2206 = vcombine.high %v2204, %v2204
        %v2208 = vunpack.c.l.s4 1966171168
        %v2209 = vunpack.c.0.s8 %v2208
        %v2210 = vlaneseq
        %v2211 = vshrl.u32 %v2210, 7
        %v2212 = vsub.s32 %v2209, %v2211
        %v2213 = vrot.slane %v2204, %v2212
        %v2215 = vunpack.c.l.s4 1966171168
        %v2216 = vunpack.c.0.s8 %v2215
        %v2217 = vlaneseq
        %v2218 = vshrl.u32 %v2217, 7
        %v2219 = vsub.s32 %v2216, %v2218
        %v2220 = vrot.slane %v2206, %v2219
        %v2221 = vcombine.high %v2213, %v2213
        %v2222 = vcombine.high %v2220, %v2220
        %v2224 = vunpack.c.l.s4 1966171168
        %v2225 = vunpack.c.0.s8 %v2224
        %v2226 = vlaneseq
        %v2227 = vshrl.u32 %v2226, 7
        %v2228 = vsub.s32 %v2225, %v2227
        %v2229 = vrot.slane %v2213, %v2228
        %v2231 = vunpack.c.l.s4 1966171168
        %v2232 = vunpack.c.0.s8 %v2231
        %v2233 = vlaneseq
        %v2234 = vshrl.u32 %v2233, 7
        %v2235 = vsub.s32 %v2232, %v2234
        %v2236 = vrot.slane %v2220, %v2235
        %v2238 = vunpack.c.l.s4 1966171168
        %v2239 = vunpack.c.0.s8 %v2238
        %v2240 = vlaneseq
        %v2241 = vshrl.u32 %v2240, 7
        %v2242 = vsub.s32 %v2239, %v2241
        %v2243 = vrot.slane %v2221, %v2242
        %v2245 = vunpack.c.l.s4 1966171168
        %v2246 = vunpack.c.0.s8 %v2245
        %v2247 = vlaneseq
        %v2248 = vshrl.u32 %v2247, 7
        %v2249 = vsub.s32 %v2246, %v2248
        %v2250 = vrot.slane %v2222, %v2249
        %v2251 = vcombine.high %v2229, %v2229
        %v2252 = vcombine.high %v2236, %v2236
        %v2253 = vcombine.high %v2243, %v2243
        %v2254 = vcombine.high %v2250, %v2250
        %2263 = vst.msk [vmem:[#allocation6 + $0x1] sm:$0x1] %vm1644, %v2229
        %2264 = vst.msk [vmem:[#allocation6 + $0x9] sm:$0x1] %vm1644, %v2243
        %2265 = vst.msk [vmem:[#allocation6 + $0x11] sm:$0x1] %vm1644, %v2251
        %2266 = vst.msk [vmem:[#allocation6 + $0x19] sm:$0x1] %vm1644, %v2253
        %2267 = vst.msk [vmem:[#allocation6 + $0x21] sm:$0x1] %vm1644, %v2236
        %2268 = vst.msk [vmem:[#allocation6 + $0x29] sm:$0x1] %vm1644, %v2250
        %2269 = vst.msk [vmem:[#allocation6 + $0x31] sm:$0x1] %vm1644, %v2252
        %2270 = vst.msk [vmem:[#allocation6 + $0x39] sm:$0x1] %vm1644, %v2254
        %v2279 = vrot.slane %v2154, 7
        %v2280 = vsel %vm1564, %v2279, %v2153
        %v2281 = vrot.slane %v2155, 6
        %v2282 = vsel %vm1567, %v2281, %v2280
        %v2283 = vrot.slane %v2156, 5
        %v2284 = vsel %vm1570, %v2283, %v2282
        %v2285 = vrot.slane %v2157, 4
        %v2286 = vsel %vm1573, %v2285, %v2284
        %v2287 = vrot.slane %v2158, 3
        %v2288 = vsel %vm1576, %v2287, %v2286
        %v2289 = vrot.slane %v2159, 2
        %v2290 = vsel %vm1579, %v2289, %v2288
        %v2291 = vrot.slane %v2160, 1
        %v2292 = vsel %vm1582, %v2291, %v2290
        %v2294 = vsel %vm2180, %v2292, %v1676
        %v2295 = vsel %vm2180, %v2202, %v1585
        %v2296 = vpack.c.bf16 %v2295, %v2295
        %v2297 = vld [vmem:[#allocation2 + $0x2] sm:$0x1]
        %v2298 = vld [vmem:[#allocation2 + $0xa] sm:$0x1]
        %v2299 = vld [vmem:[#allocation2 + $0x12] sm:$0x1]
        %v2300 = vld [vmem:[#allocation2 + $0x1a] sm:$0x1]
        %v2301 = vld [vmem:[#allocation2 + $0x22] sm:$0x1]
        %v2302 = vld [vmem:[#allocation2 + $0x2a] sm:$0x1]
        %v2303 = vld [vmem:[#allocation2 + $0x32] sm:$0x1]
        %v2304 = vld [vmem:[#allocation2 + $0x3a] sm:$0x1]
        %v2306 = vsel %vm618, %v2296, 0
        %2308 = vmatprep.subr.bf16.mxu0 0
        %2309 = vmatpush1.bf16.msra.mxu0 %v1035
        %2310 = vmatprep.subr.bf16.mxu0 0
        %2311 = vmatpush1.bf16.msra.mxu0 %v1036
        %2312 = vmatprep.subr.bf16.mxu0 0
        %2313 = vmatpush1.bf16.msra.mxu0 0
        %2314 = vmatprep.subr.bf16.mxu0 0
        %2315 = vmatpush1.bf16.msra.mxu0 0
        %2316 = vmatprep.subr.bf16.mxu0 0
        %2317 = vmatpush1.bf16.msra.mxu0 0
        %2318 = vmatprep.subr.bf16.mxu0 0
        %2319 = vmatpush1.bf16.msra.mxu0 0
        %2320 = vmatprep.subr.bf16.mxu0 0
        %2321 = vmatpush1.bf16.msra.mxu0 0
        %2322 = vmatprep.subr.bf16.mxu0 0
        %2323 = vmatpush1.bf16.msra.mxu0 0
        %2324 = vmatprep.subr.bf16.mxu0 0
        %2325 = vmatpush1.bf16.msra.mxu0 0
        %2326 = vmatprep.subr.bf16.mxu0 0
        %2327 = vmatpush1.bf16.msra.mxu0 0
        %2328 = vmatprep.subr.bf16.mxu0 0
        %2329 = vmatpush1.bf16.msra.mxu0 0
        %2330 = vmatprep.subr.bf16.mxu0 0
        %2331 = vmatpush1.bf16.msra.mxu0 0
        %2332 = vmatprep.subr.bf16.mxu0 0
        %2333 = vmatpush1.bf16.msra.mxu0 0
        %2334 = vmatprep.subr.bf16.mxu0 0
        %2335 = vmatpush1.bf16.msra.mxu0 0
        %2336 = vmatprep.subr.bf16.mxu0 0
        %2337 = vmatpush1.bf16.msra.mxu0 0
        %2338 = vmatprep.subr.bf16.mxu0 0
        %2339 = vmatpush1.bf16.msra.mxu0 0
        %2340 = vmatprep.mubr.bf16.mxu0 0
        %2341 = vmatmul.mubr.bf16.gmra.mrb[0].mxu0 %v2306
        %v2342 = vpop.f32.mrb[0].mxu0
        %v2343 = vadd.f32 0.0, %v2342
        %v2344 = vpop.f32.mrb[0].mxu0
        %v2345 = vpop.f32.mrb[0].mxu0
        %v2346 = vpop.f32.mrb[0].mxu0
        %2347 = vdwg.mxu0
        %v2349 = vrot.slane %v2343, 1
        %v2350 = vrot.slane %v2343, 2
        %v2351 = vrot.slane %v2343, 3
        %v2352 = vrot.slane %v2343, 4
        %v2353 = vrot.slane %v2343, 5
        %v2354 = vrot.slane %v2343, 6
        %v2355 = vrot.slane %v2343, 7
        %v2364 = vadd.f32 %v2297, %v2343
        %v2365 = vadd.f32 %v2298, %v2349
        %v2366 = vadd.f32 %v2299, %v2350
        %v2367 = vadd.f32 %v2300, %v2351
        %v2368 = vadd.f32 %v2301, %v2352
        %v2369 = vadd.f32 %v2302, %v2353
        %v2370 = vadd.f32 %v2303, %v2354
        %v2371 = vadd.f32 %v2304, %v2355
        %v2372 = vld [vmem:[#allocation3 + $0x2] sm:$0x1]
        %v2373 = vld [vmem:[#allocation3 + $0xa] sm:$0x1]
        %v2374 = vld [vmem:[#allocation3 + $0x12] sm:$0x1]
        %v2375 = vld [vmem:[#allocation3 + $0x1a] sm:$0x1]
        %v2376 = vld [vmem:[#allocation3 + $0x22] sm:$0x1]
        %v2377 = vld [vmem:[#allocation3 + $0x2a] sm:$0x1]
        %v2378 = vld [vmem:[#allocation3 + $0x32] sm:$0x1]
        %v2379 = vld [vmem:[#allocation3 + $0x3a] sm:$0x1]
        %2380 = vmatprep.subr.bf16.mxu0 0
        %2381 = vmatpush1.bf16.msra.mxu0 %v1122
        %2382 = vmatprep.subr.bf16.mxu0 0
        %2383 = vmatpush1.bf16.msra.mxu0 %v1123
        %2384 = vmatprep.subr.bf16.mxu0 0
        %2385 = vmatpush1.bf16.msra.mxu0 0
        %2386 = vmatprep.subr.bf16.mxu0 0
        %2387 = vmatpush1.bf16.msra.mxu0 0
        %2388 = vmatprep.subr.bf16.mxu0 0
        %2389 = vmatpush1.bf16.msra.mxu0 0
        %2390 = vmatprep.subr.bf16.mxu0 0
        %2391 = vmatpush1.bf16.msra.mxu0 0
        %2392 = vmatprep.subr.bf16.mxu0 0
        %2393 = vmatpush1.bf16.msra.mxu0 0
        %2394 = vmatprep.subr.bf16.mxu0 0
        %2395 = vmatpush1.bf16.msra.mxu0 0
        %2396 = vmatprep.subr.bf16.mxu0 0
        %2397 = vmatpush1.bf16.msra.mxu0 0
        %2398 = vmatprep.subr.bf16.mxu0 0
        %2399 = vmatpush1.bf16.msra.mxu0 0
        %2400 = vmatprep.subr.bf16.mxu0 0
        %2401 = vmatpush1.bf16.msra.mxu0 0
        %2402 = vmatprep.subr.bf16.mxu0 0
        %2403 = vmatpush1.bf16.msra.mxu0 0
        %2404 = vmatprep.subr.bf16.mxu0 0
        %2405 = vmatpush1.bf16.msra.mxu0 0
        %2406 = vmatprep.subr.bf16.mxu0 0
        %2407 = vmatpush1.bf16.msra.mxu0 0
        %2408 = vmatprep.subr.bf16.mxu0 0
        %2409 = vmatpush1.bf16.msra.mxu0 0
        %2410 = vmatprep.subr.bf16.mxu0 0
        %2411 = vmatpush1.bf16.msra.mxu0 0
        %2412 = vmatprep.mubr.bf16.mxu0 0
        %2413 = vmatmul.mubr.bf16.gmra.mrb[0].mxu0 %v2306
        %v2414 = vpop.f32.mrb[0].mxu0
        %v2415 = vadd.f32 0.0, %v2414
        %v2416 = vpop.f32.mrb[0].mxu0
        %v2417 = vpop.f32.mrb[0].mxu0
        %v2418 = vpop.f32.mrb[0].mxu0
        %2419 = vdwg.mxu0
        %v2421 = vrot.slane %v2415, 1
        %v2422 = vrot.slane %v2415, 2
        %v2423 = vrot.slane %v2415, 3
        %v2424 = vrot.slane %v2415, 4
        %v2425 = vrot.slane %v2415, 5
        %v2426 = vrot.slane %v2415, 6
        %v2427 = vrot.slane %v2415, 7
        %v2436 = vadd.f32 %v2372, %v2415
        %v2437 = vadd.f32 %v2373, %v2421
        %v2438 = vadd.f32 %v2374, %v2422
        %v2439 = vadd.f32 %v2375, %v2423
        %v2440 = vadd.f32 %v2376, %v2424
        %v2441 = vadd.f32 %v2377, %v2425
        %v2442 = vadd.f32 %v2378, %v2426
        %v2443 = vadd.f32 %v2379, %v2427
        %v2444 = vld [vmem:[#allocation4 + $0x2] sm:$0x1]
        %v2445 = vld [vmem:[#allocation4 + $0xa] sm:$0x1]
        %v2446 = vld [vmem:[#allocation4 + $0x12] sm:$0x1]
        %v2447 = vld [vmem:[#allocation4 + $0x1a] sm:$0x1]
        %v2448 = vld [vmem:[#allocation4 + $0x22] sm:$0x1]
        %v2449 = vld [vmem:[#allocation4 + $0x2a] sm:$0x1]
        %v2450 = vld [vmem:[#allocation4 + $0x32] sm:$0x1]
        %v2451 = vld [vmem:[#allocation4 + $0x3a] sm:$0x1]
        %2452 = vmatprep.subr.bf16.mxu0 0
        %2453 = vmatpush1.bf16.msra.mxu0 %v1206
        %2454 = vmatprep.subr.bf16.mxu0 0
        %2455 = vmatpush1.bf16.msra.mxu0 %v1207
        %2456 = vmatprep.subr.bf16.mxu0 0
        %2457 = vmatpush1.bf16.msra.mxu0 0
        %2458 = vmatprep.subr.bf16.mxu0 0
        %2459 = vmatpush1.bf16.msra.mxu0 0
        %2460 = vmatprep.subr.bf16.mxu0 0
        %2461 = vmatpush1.bf16.msra.mxu0 0
        %2462 = vmatprep.subr.bf16.mxu0 0
        %2463 = vmatpush1.bf16.msra.mxu0 0
        %2464 = vmatprep.subr.bf16.mxu0 0
        %2465 = vmatpush1.bf16.msra.mxu0 0
        %2466 = vmatprep.subr.bf16.mxu0 0
        %2467 = vmatpush1.bf16.msra.mxu0 0
        %2468 = vmatprep.subr.bf16.mxu0 0
        %2469 = vmatpush1.bf16.msra.mxu0 0
        %2470 = vmatprep.subr.bf16.mxu0 0
        %2471 = vmatpush1.bf16.msra.mxu0 0
        %2472 = vmatprep.subr.bf16.mxu0 0
        %2473 = vmatpush1.bf16.msra.mxu0 0
        %2474 = vmatprep.subr.bf16.mxu0 0
        %2475 = vmatpush1.bf16.msra.mxu0 0
        %2476 = vmatprep.subr.bf16.mxu0 0
        %2477 = vmatpush1.bf16.msra.mxu0 0
        %2478 = vmatprep.subr.bf16.mxu0 0
        %2479 = vmatpush1.bf16.msra.mxu0 0
        %2480 = vmatprep.subr.bf16.mxu0 0
        %2481 = vmatpush1.bf16.msra.mxu0 0
        %2482 = vmatprep.subr.bf16.mxu0 0
        %2483 = vmatpush1.bf16.msra.mxu0 0
        %2484 = vmatprep.mubr.bf16.mxu0 0
        %2485 = vmatmul.mubr.bf16.gmra.mrb[0].mxu0 %v2306
        %v2486 = vpop.f32.mrb[0].mxu0
        %v2487 = vadd.f32 0.0, %v2486
        %v2488 = vpop.f32.mrb[0].mxu0
        %v2489 = vpop.f32.mrb[0].mxu0
        %v2490 = vpop.f32.mrb[0].mxu0
        %2491 = vdwg.mxu0
        %v2493 = vrot.slane %v2487, 1
        %v2494 = vrot.slane %v2487, 2
        %v2495 = vrot.slane %v2487, 3
        %v2496 = vrot.slane %v2487, 4
        %v2497 = vrot.slane %v2487, 5
        %v2498 = vrot.slane %v2487, 6
        %v2499 = vrot.slane %v2487, 7
        %v2508 = vadd.f32 %v2444, %v2487
        %v2509 = vadd.f32 %v2445, %v2493
        %v2510 = vadd.f32 %v2446, %v2494
        %v2511 = vadd.f32 %v2447, %v2495
        %v2512 = vadd.f32 %v2448, %v2496
        %v2513 = vadd.f32 %v2449, %v2497
        %v2514 = vadd.f32 %v2450, %v2498
        %v2515 = vadd.f32 %v2451, %v2499
        %v2516 = vld [vmem:[#allocation5 + $0x2] sm:$0x1]
        %v2517 = vld [vmem:[#allocation5 + $0xa] sm:$0x1]
        %v2518 = vld [vmem:[#allocation5 + $0x12] sm:$0x1]
        %v2519 = vld [vmem:[#allocation5 + $0x1a] sm:$0x1]
        %v2520 = vld [vmem:[#allocation5 + $0x22] sm:$0x1]
        %v2521 = vld [vmem:[#allocation5 + $0x2a] sm:$0x1]
        %v2522 = vld [vmem:[#allocation5 + $0x32] sm:$0x1]
        %v2523 = vld [vmem:[#allocation5 + $0x3a] sm:$0x1]
        %2524 = vmatprep.subr.bf16.mxu0 0
        %2525 = vmatpush1.bf16.msra.mxu0 %v1290
        %2526 = vmatprep.subr.bf16.mxu0 0
        %2527 = vmatpush1.bf16.msra.mxu0 %v1291
        %2528 = vmatprep.subr.bf16.mxu0 0
        %2529 = vmatpush1.bf16.msra.mxu0 0
        %2530 = vmatprep.subr.bf16.mxu0 0
        %2531 = vmatpush1.bf16.msra.mxu0 0
        %2532 = vmatprep.subr.bf16.mxu0 0
        %2533 = vmatpush1.bf16.msra.mxu0 0
        %2534 = vmatprep.subr.bf16.mxu0 0
        %2535 = vmatpush1.bf16.msra.mxu0 0
        %2536 = vmatprep.subr.bf16.mxu0 0
        %2537 = vmatpush1.bf16.msra.mxu0 0
        %2538 = vmatprep.subr.bf16.mxu0 0
        %2539 = vmatpush1.bf16.msra.mxu0 0
        %2540 = vmatprep.subr.bf16.mxu0 0
        %2541 = vmatpush1.bf16.msra.mxu0 0
        %2542 = vmatprep.subr.bf16.mxu0 0
        %2543 = vmatpush1.bf16.msra.mxu0 0
        %2544 = vmatprep.subr.bf16.mxu0 0
        %2545 = vmatpush1.bf16.msra.mxu0 0
        %2546 = vmatprep.subr.bf16.mxu0 0
        %2547 = vmatpush1.bf16.msra.mxu0 0
        %2548 = vmatprep.subr.bf16.mxu0 0
        %2549 = vmatpush1.bf16.msra.mxu0 0
        %2550 = vmatprep.subr.bf16.mxu0 0
        %2551 = vmatpush1.bf16.msra.mxu0 0
        %2552 = vmatprep.subr.bf16.mxu0 0
        %2553 = vmatpush1.bf16.msra.mxu0 0
        %2554 = vmatprep.subr.bf16.mxu0 0
        %2555 = vmatpush1.bf16.msra.mxu0 0
        %2556 = vmatprep.mubr.bf16.mxu0 0
        %2557 = vmatmul.mubr.bf16.gmra.mrb[0].mxu0 %v2306
        %v2558 = vpop.f32.mrb[0].mxu0
        %v2559 = vadd.f32 0.0, %v2558
        %v2560 = vpop.f32.mrb[0].mxu0
        %v2561 = vpop.f32.mrb[0].mxu0
        %v2562 = vpop.f32.mrb[0].mxu0
        %2563 = vdwg.mxu0
        %v2565 = vrot.slane %v2559, 1
        %v2566 = vrot.slane %v2559, 2
        %v2567 = vrot.slane %v2559, 3
        %v2568 = vrot.slane %v2559, 4
        %v2569 = vrot.slane %v2559, 5
        %v2570 = vrot.slane %v2559, 6
        %v2571 = vrot.slane %v2559, 7
        %v2580 = vadd.f32 %v2516, %v2559
        %v2581 = vadd.f32 %v2517, %v2565
        %v2582 = vadd.f32 %v2518, %v2566
        %v2583 = vadd.f32 %v2519, %v2567
        %v2584 = vadd.f32 %v2520, %v2568
        %v2585 = vadd.f32 %v2521, %v2569
        %v2586 = vadd.f32 %v2522, %v2570
        %v2587 = vadd.f32 %v2523, %v2571
        %v2588 = vxor.u32 %v2364, 2147483648
        %v2589 = vxor.u32 %v2365, 2147483648
        %v2590 = vxor.u32 %v2366, 2147483648
        %v2591 = vxor.u32 %v2367, 2147483648
        %v2592 = vxor.u32 %v2368, 2147483648
        %v2593 = vxor.u32 %v2369, 2147483648
        %v2594 = vxor.u32 %v2370, 2147483648
        %v2595 = vxor.u32 %v2371, 2147483648
        %v2596 = vmul.f32 %v2588, 1.442695
        %v2597 = vpow.pop %v2596
        %v2598 = vmul.f32 %v2589, 1.442695
        %v2599 = vpow.pop %v2598
        %v2600 = vmul.f32 %v2590, 1.442695
        %v2601 = vpow.pop %v2600
        %v2602 = vmul.f32 %v2591, 1.442695
        %v2603 = vpow.pop %v2602
        %v2604 = vmul.f32 %v2592, 1.442695
        %v2605 = vpow.pop %v2604
        %v2606 = vmul.f32 %v2593, 1.442695
        %v2607 = vpow.pop %v2606
        %v2608 = vmul.f32 %v2594, 1.442695
        %v2609 = vpow.pop %v2608
        %v2610 = vmul.f32 %v2595, 1.442695
        %v2611 = vpow.pop %v2610
        %v2612 = vadd.f32 %v2597, 1.0
        %v2613 = vadd.f32 %v2599, 1.0
        %v2614 = vadd.f32 %v2601, 1.0
        %v2615 = vadd.f32 %v2603, 1.0
        %v2616 = vadd.f32 %v2605, 1.0
        %v2617 = vadd.f32 %v2607, 1.0
        %v2618 = vadd.f32 %v2609, 1.0
        %v2619 = vadd.f32 %v2611, 1.0
        %v2620 = vrcp.pop %v2612
        %v2621 = vmul.f32 1.0, %v2620
        %v2622 = vrcp.pop %v2613
        %v2623 = vmul.f32 1.0, %v2622
        %v2624 = vrcp.pop %v2614
        %v2625 = vmul.f32 1.0, %v2624
        %v2626 = vrcp.pop %v2615
        %v2627 = vmul.f32 1.0, %v2626
        %v2628 = vrcp.pop %v2616
        %v2629 = vmul.f32 1.0, %v2628
        %v2630 = vrcp.pop %v2617
        %v2631 = vmul.f32 1.0, %v2630
        %v2632 = vrcp.pop %v2618
        %v2633 = vmul.f32 1.0, %v2632
        %v2634 = vrcp.pop %v2619
        %v2635 = vmul.f32 1.0, %v2634
        %v2636 = vxor.u32 %v2436, 2147483648
        %v2637 = vxor.u32 %v2437, 2147483648
        %v2638 = vxor.u32 %v2438, 2147483648
        %v2639 = vxor.u32 %v2439, 2147483648
        %v2640 = vxor.u32 %v2440, 2147483648
        %v2641 = vxor.u32 %v2441, 2147483648
        %v2642 = vxor.u32 %v2442, 2147483648
        %v2643 = vxor.u32 %v2443, 2147483648
        %v2644 = vmul.f32 %v2636, 1.442695
        %v2645 = vpow.pop %v2644
        %v2646 = vmul.f32 %v2637, 1.442695
        %v2647 = vpow.pop %v2646
        %v2648 = vmul.f32 %v2638, 1.442695
        %v2649 = vpow.pop %v2648
        %v2650 = vmul.f32 %v2639, 1.442695
        %v2651 = vpow.pop %v2650
        %v2652 = vmul.f32 %v2640, 1.442695
        %v2653 = vpow.pop %v2652
        %v2654 = vmul.f32 %v2641, 1.442695
        %v2655 = vpow.pop %v2654
        %v2656 = vmul.f32 %v2642, 1.442695
        %v2657 = vpow.pop %v2656
        %v2658 = vmul.f32 %v2643, 1.442695
        %v2659 = vpow.pop %v2658
        %v2660 = vadd.f32 %v2645, 1.0
        %v2661 = vadd.f32 %v2647, 1.0
        %v2662 = vadd.f32 %v2649, 1.0
        %v2663 = vadd.f32 %v2651, 1.0
        %v2664 = vadd.f32 %v2653, 1.0
        %v2665 = vadd.f32 %v2655, 1.0
        %v2666 = vadd.f32 %v2657, 1.0
        %v2667 = vadd.f32 %v2659, 1.0
        %v2668 = vrcp.pop %v2660
        %v2669 = vmul.f32 1.0, %v2668
        %v2670 = vrcp.pop %v2661
        %v2671 = vmul.f32 1.0, %v2670
        %v2672 = vrcp.pop %v2662
        %v2673 = vmul.f32 1.0, %v2672
        %v2674 = vrcp.pop %v2663
        %v2675 = vmul.f32 1.0, %v2674
        %v2676 = vrcp.pop %v2664
        %v2677 = vmul.f32 1.0, %v2676
        %v2678 = vrcp.pop %v2665
        %v2679 = vmul.f32 1.0, %v2678
        %v2680 = vrcp.pop %v2666
        %v2681 = vmul.f32 1.0, %v2680
        %v2682 = vrcp.pop %v2667
        %v2683 = vmul.f32 1.0, %v2682
        %v2684 = vtanh.pop %v2508
        %v2685 = vtanh.pop %v2509
        %v2686 = vtanh.pop %v2510
        %v2687 = vtanh.pop %v2511
        %v2688 = vtanh.pop %v2512
        %v2689 = vtanh.pop %v2513
        %v2690 = vtanh.pop %v2514
        %v2691 = vtanh.pop %v2515
        %v2692 = vxor.u32 %v2580, 2147483648
        %v2693 = vxor.u32 %v2581, 2147483648
        %v2694 = vxor.u32 %v2582, 2147483648
        %v2695 = vxor.u32 %v2583, 2147483648
        %v2696 = vxor.u32 %v2584, 2147483648
        %v2697 = vxor.u32 %v2585, 2147483648
        %v2698 = vxor.u32 %v2586, 2147483648
        %v2699 = vxor.u32 %v2587, 2147483648
        %v2700 = vmul.f32 %v2692, 1.442695
        %v2701 = vpow.pop %v2700
        %v2702 = vmul.f32 %v2693, 1.442695
        %v2703 = vpow.pop %v2702
        %v2704 = vmul.f32 %v2694, 1.442695
        %v2705 = vpow.pop %v2704
        %v2706 = vmul.f32 %v2695, 1.442695
        %v2707 = vpow.pop %v2706
        %v2708 = vmul.f32 %v2696, 1.442695
        %v2709 = vpow.pop %v2708
        %v2710 = vmul.f32 %v2697, 1.442695
        %v2711 = vpow.pop %v2710
        %v2712 = vmul.f32 %v2698, 1.442695
        %v2713 = vpow.pop %v2712
        %v2714 = vmul.f32 %v2699, 1.442695
        %v2715 = vpow.pop %v2714
        %v2716 = vadd.f32 %v2701, 1.0
        %v2717 = vadd.f32 %v2703, 1.0
        %v2718 = vadd.f32 %v2705, 1.0
        %v2719 = vadd.f32 %v2707, 1.0
        %v2720 = vadd.f32 %v2709, 1.0
        %v2721 = vadd.f32 %v2711, 1.0
        %v2722 = vadd.f32 %v2713, 1.0
        %v2723 = vadd.f32 %v2715, 1.0
        %v2724 = vrcp.pop %v2716
        %v2725 = vmul.f32 1.0, %v2724
        %v2726 = vrcp.pop %v2717
        %v2727 = vmul.f32 1.0, %v2726
        %v2728 = vrcp.pop %v2718
        %v2729 = vmul.f32 1.0, %v2728
        %v2730 = vrcp.pop %v2719
        %v2731 = vmul.f32 1.0, %v2730
        %v2732 = vrcp.pop %v2720
        %v2733 = vmul.f32 1.0, %v2732
        %v2734 = vrcp.pop %v2721
        %v2735 = vmul.f32 1.0, %v2734
        %v2736 = vrcp.pop %v2722
        %v2737 = vmul.f32 1.0, %v2736
        %v2738 = vrcp.pop %v2723
        %v2739 = vmul.f32 1.0, %v2738
        %v2741 = vrot.slane %v2294, 1
        %v2742 = vrot.slane %v2294, 2
        %v2743 = vrot.slane %v2294, 3
        %v2744 = vrot.slane %v2294, 4
        %v2745 = vrot.slane %v2294, 5
        %v2746 = vrot.slane %v2294, 6
        %v2747 = vrot.slane %v2294, 7
        %v2756 = vmul.f32 %v2669, %v2294
        %v2757 = vmul.f32 %v2671, %v2741
        %v2758 = vmul.f32 %v2673, %v2742
        %v2759 = vmul.f32 %v2675, %v2743
        %v2760 = vmul.f32 %v2677, %v2744
        %v2761 = vmul.f32 %v2679, %v2745
        %v2762 = vmul.f32 %v2681, %v2746
        %v2763 = vmul.f32 %v2683, %v2747
        %v2764 = vmul.f32 %v2621, %v2684
        %v2765 = vmul.f32 %v2623, %v2685
        %v2766 = vmul.f32 %v2625, %v2686
        %v2767 = vmul.f32 %v2627, %v2687
        %v2768 = vmul.f32 %v2629, %v2688
        %v2769 = vmul.f32 %v2631, %v2689
        %v2770 = vmul.f32 %v2633, %v2690
        %v2771 = vmul.f32 %v2635, %v2691
        %v2772 = vadd.f32 %v2756, %v2764
        %v2773 = vadd.f32 %v2757, %v2765
        %v2774 = vadd.f32 %v2758, %v2766
        %v2775 = vadd.f32 %v2759, %v2767
        %v2776 = vadd.f32 %v2760, %v2768
        %v2777 = vadd.f32 %v2761, %v2769
        %v2778 = vadd.f32 %v2762, %v2770
        %v2779 = vadd.f32 %v2763, %v2771
        %v2780 = vtanh.pop %v2772
        %v2781 = vtanh.pop %v2773
        %v2782 = vtanh.pop %v2774
        %v2783 = vtanh.pop %v2775
        %v2784 = vtanh.pop %v2776
        %v2785 = vtanh.pop %v2777
        %v2786 = vtanh.pop %v2778
        %v2787 = vtanh.pop %v2779
        %v2788 = vmul.f32 %v2725, %v2780
        %v2789 = vmul.f32 %v2727, %v2781
        %v2790 = vmul.f32 %v2729, %v2782
        %v2791 = vmul.f32 %v2731, %v2783
        %v2792 = vmul.f32 %v2733, %v2784
        %v2793 = vmul.f32 %v2735, %v2785
        %v2794 = vmul.f32 %v2737, %v2786
        %v2795 = vmul.f32 %v2739, %v2787
        %2796 = vset.pattern.permute.xlu0 2
        %2797 = vperm.xlu0 %2796, %v1550
        %v2798 = vpop.permute.xlu0 %2797
        %vm2799 = vcmp.eq.s32.totalorder %v2798, 1
        %v2808 = vrot.slane %v2789, 7
        %v2809 = vsel %vm1564, %v2808, %v2788
        %v2810 = vrot.slane %v2790, 6
        %v2811 = vsel %vm1567, %v2810, %v2809
        %v2812 = vrot.slane %v2791, 5
        %v2813 = vsel %vm1570, %v2812, %v2811
        %v2814 = vrot.slane %v2792, 4
        %v2815 = vsel %vm1573, %v2814, %v2813
        %v2816 = vrot.slane %v2793, 3
        %v2817 = vsel %vm1576, %v2816, %v2815
        %v2818 = vrot.slane %v2794, 2
        %v2819 = vsel %vm1579, %v2818, %v2817
        %v2820 = vrot.slane %v2795, 1
        %v2821 = vsel %vm1582, %v2820, %v2819
        %v2823 = vsel %vm2799, %v2821, 0.0
        %v2825 = vcombine.high %v2823, %v2823
        %v2827 = vunpack.c.l.s4 1966171168
        %v2828 = vunpack.c.0.s8 %v2827
        %v2829 = vlaneseq
        %v2830 = vshrl.u32 %v2829, 7
        %v2831 = vsub.s32 %v2828, %v2830
        %v2832 = vrot.slane %v2823, %v2831
        %v2834 = vunpack.c.l.s4 1966171168
        %v2835 = vunpack.c.0.s8 %v2834
        %v2836 = vlaneseq
        %v2837 = vshrl.u32 %v2836, 7
        %v2838 = vsub.s32 %v2835, %v2837
        %v2839 = vrot.slane %v2825, %v2838
        %v2840 = vcombine.high %v2832, %v2832
        %v2841 = vcombine.high %v2839, %v2839
        %v2843 = vunpack.c.l.s4 1966171168
        %v2844 = vunpack.c.0.s8 %v2843
        %v2845 = vlaneseq
        %v2846 = vshrl.u32 %v2845, 7
        %v2847 = vsub.s32 %v2844, %v2846
        %v2848 = vrot.slane %v2832, %v2847
        %v2850 = vunpack.c.l.s4 1966171168
        %v2851 = vunpack.c.0.s8 %v2850
        %v2852 = vlaneseq
        %v2853 = vshrl.u32 %v2852, 7
        %v2854 = vsub.s32 %v2851, %v2853
        %v2855 = vrot.slane %v2839, %v2854
        %v2857 = vunpack.c.l.s4 1966171168
        %v2858 = vunpack.c.0.s8 %v2857
        %v2859 = vlaneseq
        %v2860 = vshrl.u32 %v2859, 7
        %v2861 = vsub.s32 %v2858, %v2860
        %v2862 = vrot.slane %v2840, %v2861
        %v2864 = vunpack.c.l.s4 1966171168
        %v2865 = vunpack.c.0.s8 %v2864
        %v2866 = vlaneseq
        %v2867 = vshrl.u32 %v2866, 7
        %v2868 = vsub.s32 %v2865, %v2867
        %v2869 = vrot.slane %v2841, %v2868
        %v2870 = vcombine.high %v2848, %v2848
        %v2871 = vcombine.high %v2855, %v2855
        %v2872 = vcombine.high %v2862, %v2862
        %v2873 = vcombine.high %v2869, %v2869
        %2882 = vst.msk [vmem:[#allocation6 + $0x2] sm:$0x1] %vm1644, %v2848
        %2883 = vst.msk [vmem:[#allocation6 + $0xa] sm:$0x1] %vm1644, %v2862
        %2884 = vst.msk [vmem:[#allocation6 + $0x12] sm:$0x1] %vm1644, %v2870
        %2885 = vst.msk [vmem:[#allocation6 + $0x1a] sm:$0x1] %vm1644, %v2872
        %2886 = vst.msk [vmem:[#allocation6 + $0x22] sm:$0x1] %vm1644, %v2855
        %2887 = vst.msk [vmem:[#allocation6 + $0x2a] sm:$0x1] %vm1644, %v2869
        %2888 = vst.msk [vmem:[#allocation6 + $0x32] sm:$0x1] %vm1644, %v2871
        %2889 = vst.msk [vmem:[#allocation6 + $0x3a] sm:$0x1] %vm1644, %v2873
        %v2898 = vrot.slane %v2773, 7
        %v2899 = vsel %vm1564, %v2898, %v2772
        %v2900 = vrot.slane %v2774, 6
        %v2901 = vsel %vm1567, %v2900, %v2899
        %v2902 = vrot.slane %v2775, 5
        %v2903 = vsel %vm1570, %v2902, %v2901
        %v2904 = vrot.slane %v2776, 4
        %v2905 = vsel %vm1573, %v2904, %v2903
        %v2906 = vrot.slane %v2777, 3
        %v2907 = vsel %vm1576, %v2906, %v2905
        %v2908 = vrot.slane %v2778, 2
        %v2909 = vsel %vm1579, %v2908, %v2907
        %v2910 = vrot.slane %v2779, 1
        %v2911 = vsel %vm1582, %v2910, %v2909
        %v2913 = vsel %vm2799, %v2911, %v2294
        %v2914 = vsel %vm2799, %v2821, %v2295
        %v2915 = vpack.c.bf16 %v2914, %v2914
        %v2916 = vld [vmem:[#allocation2 + $0x3] sm:$0x1]
        %v2917 = vld [vmem:[#allocation2 + $0xb] sm:$0x1]
        %v2918 = vld [vmem:[#allocation2 + $0x13] sm:$0x1]
        %v2919 = vld [vmem:[#allocation2 + $0x1b] sm:$0x1]
        %v2920 = vld [vmem:[#allocation2 + $0x23] sm:$0x1]
        %v2921 = vld [vmem:[#allocation2 + $0x2b] sm:$0x1]
        %v2922 = vld [vmem:[#allocation2 + $0x33] sm:$0x1]
        %v2923 = vld [vmem:[#allocation2 + $0x3b] sm:$0x1]
        %v2925 = vsel %vm618, %v2915, 0
        %2927 = vmatprep.subr.bf16.mxu0 0
        %2928 = vmatpush1.bf16.msra.mxu0 %v1035
        %2929 = vmatprep.subr.bf16.mxu0 0
        %2930 = vmatpush1.bf16.msra.mxu0 %v1036
        %2931 = vmatprep.subr.bf16.mxu0 0
        %2932 = vmatpush1.bf16.msra.mxu0 0
        %2933 = vmatprep.subr.bf16.mxu0 0
        %2934 = vmatpush1.bf16.msra.mxu0 0
        %2935 = vmatprep.subr.bf16.mxu0 0
        %2936 = vmatpush1.bf16.msra.mxu0 0
        %2937 = vmatprep.subr.bf16.mxu0 0
        %2938 = vmatpush1.bf16.msra.mxu0 0
        %2939 = vmatprep.subr.bf16.mxu0 0
        %2940 = vmatpush1.bf16.msra.mxu0 0
        %2941 = vmatprep.subr.bf16.mxu0 0
        %2942 = vmatpush1.bf16.msra.mxu0 0
        %2943 = vmatprep.subr.bf16.mxu0 0
        %2944 = vmatpush1.bf16.msra.mxu0 0
        %2945 = vmatprep.subr.bf16.mxu0 0
        %2946 = vmatpush1.bf16.msra.mxu0 0
        %2947 = vmatprep.subr.bf16.mxu0 0
        %2948 = vmatpush1.bf16.msra.mxu0 0
        %2949 = vmatprep.subr.bf16.mxu0 0
        %2950 = vmatpush1.bf16.msra.mxu0 0
        %2951 = vmatprep.subr.bf16.mxu0 0
        %2952 = vmatpush1.bf16.msra.mxu0 0
        %2953 = vmatprep.subr.bf16.mxu0 0
        %2954 = vmatpush1.bf16.msra.mxu0 0
        %2955 = vmatprep.subr.bf16.mxu0 0
        %2956 = vmatpush1.bf16.msra.mxu0 0
        %2957 = vmatprep.subr.bf16.mxu0 0
        %2958 = vmatpush1.bf16.msra.mxu0 0
        %2959 = vmatprep.mubr.bf16.mxu0 0
        %2960 = vmatmul.mubr.bf16.gmra.mrb[0].mxu0 %v2925
        %v2961 = vpop.f32.mrb[0].mxu0
        %v2962 = vadd.f32 0.0, %v2961
        %v2963 = vpop.f32.mrb[0].mxu0
        %v2964 = vpop.f32.mrb[0].mxu0
        %v2965 = vpop.f32.mrb[0].mxu0
        %2966 = vdwg.mxu0
        %v2968 = vrot.slane %v2962, 1
        %v2969 = vrot.slane %v2962, 2
        %v2970 = vrot.slane %v2962, 3
        %v2971 = vrot.slane %v2962, 4
        %v2972 = vrot.slane %v2962, 5
        %v2973 = vrot.slane %v2962, 6
        %v2974 = vrot.slane %v2962, 7
        %v2983 = vadd.f32 %v2916, %v2962
        %v2984 = vadd.f32 %v2917, %v2968
        %v2985 = vadd.f32 %v2918, %v2969
        %v2986 = vadd.f32 %v2919, %v2970
        %v2987 = vadd.f32 %v2920, %v2971
        %v2988 = vadd.f32 %v2921, %v2972
        %v2989 = vadd.f32 %v2922, %v2973
        %v2990 = vadd.f32 %v2923, %v2974
        %v2991 = vld [vmem:[#allocation3 + $0x3] sm:$0x1]
        %v2992 = vld [vmem:[#allocation3 + $0xb] sm:$0x1]
        %v2993 = vld [vmem:[#allocation3 + $0x13] sm:$0x1]
        %v2994 = vld [vmem:[#allocation3 + $0x1b] sm:$0x1]
        %v2995 = vld [vmem:[#allocation3 + $0x23] sm:$0x1]
        %v2996 = vld [vmem:[#allocation3 + $0x2b] sm:$0x1]
        %v2997 = vld [vmem:[#allocation3 + $0x33] sm:$0x1]
        %v2998 = vld [vmem:[#allocation3 + $0x3b] sm:$0x1]
        %2999 = vmatprep.subr.bf16.mxu0 0
        %3000 = vmatpush1.bf16.msra.mxu0 %v1122
        %3001 = vmatprep.subr.bf16.mxu0 0
        %3002 = vmatpush1.bf16.msra.mxu0 %v1123
        %3003 = vmatprep.subr.bf16.mxu0 0
        %3004 = vmatpush1.bf16.msra.mxu0 0
        %3005 = vmatprep.subr.bf16.mxu0 0
        %3006 = vmatpush1.bf16.msra.mxu0 0
        %3007 = vmatprep.subr.bf16.mxu0 0
        %3008 = vmatpush1.bf16.msra.mxu0 0
        %3009 = vmatprep.subr.bf16.mxu0 0
        %3010 = vmatpush1.bf16.msra.mxu0 0
        %3011 = vmatprep.subr.bf16.mxu0 0
        %3012 = vmatpush1.bf16.msra.mxu0 0
        %3013 = vmatprep.subr.bf16.mxu0 0
        %3014 = vmatpush1.bf16.msra.mxu0 0
        %3015 = vmatprep.subr.bf16.mxu0 0
        %3016 = vmatpush1.bf16.msra.mxu0 0
        %3017 = vmatprep.subr.bf16.mxu0 0
        %3018 = vmatpush1.bf16.msra.mxu0 0
        %3019 = vmatprep.subr.bf16.mxu0 0
        %3020 = vmatpush1.bf16.msra.mxu0 0
        %3021 = vmatprep.subr.bf16.mxu0 0
        %3022 = vmatpush1.bf16.msra.mxu0 0
        %3023 = vmatprep.subr.bf16.mxu0 0
        %3024 = vmatpush1.bf16.msra.mxu0 0
        %3025 = vmatprep.subr.bf16.mxu0 0
        %3026 = vmatpush1.bf16.msra.mxu0 0
        %3027 = vmatprep.subr.bf16.mxu0 0
        %3028 = vmatpush1.bf16.msra.mxu0 0
        %3029 = vmatprep.subr.bf16.mxu0 0
        %3030 = vmatpush1.bf16.msra.mxu0 0
        %3031 = vmatprep.mubr.bf16.mxu0 0
        %3032 = vmatmul.mubr.bf16.gmra.mrb[0].mxu0 %v2925
        %v3033 = vpop.f32.mrb[0].mxu0
        %v3034 = vadd.f32 0.0, %v3033
        %v3035 = vpop.f32.mrb[0].mxu0
        %v3036 = vpop.f32.mrb[0].mxu0
        %v3037 = vpop.f32.mrb[0].mxu0
        %3038 = vdwg.mxu0
        %v3040 = vrot.slane %v3034, 1
        %v3041 = vrot.slane %v3034, 2
        %v3042 = vrot.slane %v3034, 3
        %v3043 = vrot.slane %v3034, 4
        %v3044 = vrot.slane %v3034, 5
        %v3045 = vrot.slane %v3034, 6
        %v3046 = vrot.slane %v3034, 7
        %v3055 = vadd.f32 %v2991, %v3034
        %v3056 = vadd.f32 %v2992, %v3040
        %v3057 = vadd.f32 %v2993, %v3041
        %v3058 = vadd.f32 %v2994, %v3042
        %v3059 = vadd.f32 %v2995, %v3043
        %v3060 = vadd.f32 %v2996, %v3044
        %v3061 = vadd.f32 %v2997, %v3045
        %v3062 = vadd.f32 %v2998, %v3046
        %v3063 = vld [vmem:[#allocation4 + $0x3] sm:$0x1]
        %v3064 = vld [vmem:[#allocation4 + $0xb] sm:$0x1]
        %v3065 = vld [vmem:[#allocation4 + $0x13] sm:$0x1]
        %v3066 = vld [vmem:[#allocation4 + $0x1b] sm:$0x1]
        %v3067 = vld [vmem:[#allocation4 + $0x23] sm:$0x1]
        %v3068 = vld [vmem:[#allocation4 + $0x2b] sm:$0x1]
        %v3069 = vld [vmem:[#allocation4 + $0x33] sm:$0x1]
        %v3070 = vld [vmem:[#allocation4 + $0x3b] sm:$0x1]
        %3071 = vmatprep.subr.bf16.mxu0 0
        %3072 = vmatpush1.bf16.msra.mxu0 %v1206
        %3073 = vmatprep.subr.bf16.mxu0 0
        %3074 = vmatpush1.bf16.msra.mxu0 %v1207
        %3075 = vmatprep.subr.bf16.mxu0 0
        %3076 = vmatpush1.bf16.msra.mxu0 0
        %3077 = vmatprep.subr.bf16.mxu0 0
        %3078 = vmatpush1.bf16.msra.mxu0 0
        %3079 = vmatprep.subr.bf16.mxu0 0
        %3080 = vmatpush1.bf16.msra.mxu0 0
        %3081 = vmatprep.subr.bf16.mxu0 0
        %3082 = vmatpush1.bf16.msra.mxu0 0
        %3083 = vmatprep.subr.bf16.mxu0 0
        %3084 = vmatpush1.bf16.msra.mxu0 0
        %3085 = vmatprep.subr.bf16.mxu0 0
        %3086 = vmatpush1.bf16.msra.mxu0 0
        %3087 = vmatprep.subr.bf16.mxu0 0
        %3088 = vmatpush1.bf16.msra.mxu0 0
        %3089 = vmatprep.subr.bf16.mxu0 0
        %3090 = vmatpush1.bf16.msra.mxu0 0
        %3091 = vmatprep.subr.bf16.mxu0 0
        %3092 = vmatpush1.bf16.msra.mxu0 0
        %3093 = vmatprep.subr.bf16.mxu0 0
        %3094 = vmatpush1.bf16.msra.mxu0 0
        %3095 = vmatprep.subr.bf16.mxu0 0
        %3096 = vmatpush1.bf16.msra.mxu0 0
        %3097 = vmatprep.subr.bf16.mxu0 0
        %3098 = vmatpush1.bf16.msra.mxu0 0
        %3099 = vmatprep.subr.bf16.mxu0 0
        %3100 = vmatpush1.bf16.msra.mxu0 0
        %3101 = vmatprep.subr.bf16.mxu0 0
        %3102 = vmatpush1.bf16.msra.mxu0 0
        %3103 = vmatprep.mubr.bf16.mxu0 0
        %3104 = vmatmul.mubr.bf16.gmra.mrb[0].mxu0 %v2925
        %v3105 = vpop.f32.mrb[0].mxu0
        %v3106 = vadd.f32 0.0, %v3105
        %v3107 = vpop.f32.mrb[0].mxu0
        %v3108 = vpop.f32.mrb[0].mxu0
        %v3109 = vpop.f32.mrb[0].mxu0
        %3110 = vdwg.mxu0
        %v3112 = vrot.slane %v3106, 1
        %v3113 = vrot.slane %v3106, 2
        %v3114 = vrot.slane %v3106, 3
        %v3115 = vrot.slane %v3106, 4
        %v3116 = vrot.slane %v3106, 5
        %v3117 = vrot.slane %v3106, 6
        %v3118 = vrot.slane %v3106, 7
        %v3127 = vadd.f32 %v3063, %v3106
        %v3128 = vadd.f32 %v3064, %v3112
        %v3129 = vadd.f32 %v3065, %v3113
        %v3130 = vadd.f32 %v3066, %v3114
        %v3131 = vadd.f32 %v3067, %v3115
        %v3132 = vadd.f32 %v3068, %v3116
        %v3133 = vadd.f32 %v3069, %v3117
        %v3134 = vadd.f32 %v3070, %v3118
        %v3135 = vld [vmem:[#allocation5 + $0x3] sm:$0x1]
        %v3136 = vld [vmem:[#allocation5 + $0xb] sm:$0x1]
        %v3137 = vld [vmem:[#allocation5 + $0x13] sm:$0x1]
        %v3138 = vld [vmem:[#allocation5 + $0x1b] sm:$0x1]
        %v3139 = vld [vmem:[#allocation5 + $0x23] sm:$0x1]
        %v3140 = vld [vmem:[#allocation5 + $0x2b] sm:$0x1]
        %v3141 = vld [vmem:[#allocation5 + $0x33] sm:$0x1]
        %v3142 = vld [vmem:[#allocation5 + $0x3b] sm:$0x1]
        %3143 = vmatprep.subr.bf16.mxu0 0
        %3144 = vmatpush1.bf16.msra.mxu0 %v1290
        %3145 = vmatprep.subr.bf16.mxu0 0
        %3146 = vmatpush1.bf16.msra.mxu0 %v1291
        %3147 = vmatprep.subr.bf16.mxu0 0
        %3148 = vmatpush1.bf16.msra.mxu0 0
        %3149 = vmatprep.subr.bf16.mxu0 0
        %3150 = vmatpush1.bf16.msra.mxu0 0
        %3151 = vmatprep.subr.bf16.mxu0 0
        %3152 = vmatpush1.bf16.msra.mxu0 0
        %3153 = vmatprep.subr.bf16.mxu0 0
        %3154 = vmatpush1.bf16.msra.mxu0 0
        %3155 = vmatprep.subr.bf16.mxu0 0
        %3156 = vmatpush1.bf16.msra.mxu0 0
        %3157 = vmatprep.subr.bf16.mxu0 0
        %3158 = vmatpush1.bf16.msra.mxu0 0
        %3159 = vmatprep.subr.bf16.mxu0 0
        %3160 = vmatpush1.bf16.msra.mxu0 0
        %3161 = vmatprep.subr.bf16.mxu0 0
        %3162 = vmatpush1.bf16.msra.mxu0 0
        %3163 = vmatprep.subr.bf16.mxu0 0
        %3164 = vmatpush1.bf16.msra.mxu0 0
        %3165 = vmatprep.subr.bf16.mxu0 0
        %3166 = vmatpush1.bf16.msra.mxu0 0
        %3167 = vmatprep.subr.bf16.mxu0 0
        %3168 = vmatpush1.bf16.msra.mxu0 0
        %3169 = vmatprep.subr.bf16.mxu0 0
        %3170 = vmatpush1.bf16.msra.mxu0 0
        %3171 = vmatprep.subr.bf16.mxu0 0
        %3172 = vmatpush1.bf16.msra.mxu0 0
        %3173 = vmatprep.subr.bf16.mxu0 0
        %3174 = vmatpush1.bf16.msra.mxu0 0
        %3175 = vmatprep.mubr.bf16.mxu0 0
        %3176 = vmatmul.mubr.bf16.gmra.mrb[0].mxu0 %v2925
        %v3177 = vpop.f32.mrb[0].mxu0
        %v3178 = vadd.f32 0.0, %v3177
        %v3179 = vpop.f32.mrb[0].mxu0
        %v3180 = vpop.f32.mrb[0].mxu0
        %v3181 = vpop.f32.mrb[0].mxu0
        %3182 = vdwg.mxu0
        %v3184 = vrot.slane %v3178, 1
        %v3185 = vrot.slane %v3178, 2
        %v3186 = vrot.slane %v3178, 3
        %v3187 = vrot.slane %v3178, 4
        %v3188 = vrot.slane %v3178, 5
        %v3189 = vrot.slane %v3178, 6
        %v3190 = vrot.slane %v3178, 7
        %v3199 = vadd.f32 %v3135, %v3178
        %v3200 = vadd.f32 %v3136, %v3184
        %v3201 = vadd.f32 %v3137, %v3185
        %v3202 = vadd.f32 %v3138, %v3186
        %v3203 = vadd.f32 %v3139, %v3187
        %v3204 = vadd.f32 %v3140, %v3188
        %v3205 = vadd.f32 %v3141, %v3189
        %v3206 = vadd.f32 %v3142, %v3190
        %v3207 = vxor.u32 %v2983, 2147483648
        %v3208 = vxor.u32 %v2984, 2147483648
        %v3209 = vxor.u32 %v2985, 2147483648
        %v3210 = vxor.u32 %v2986, 2147483648
        %v3211 = vxor.u32 %v2987, 2147483648
        %v3212 = vxor.u32 %v2988, 2147483648
        %v3213 = vxor.u32 %v2989, 2147483648
        %v3214 = vxor.u32 %v2990, 2147483648
        %v3215 = vmul.f32 %v3207, 1.442695
        %v3216 = vpow.pop %v3215
        %v3217 = vmul.f32 %v3208, 1.442695
        %v3218 = vpow.pop %v3217
        %v3219 = vmul.f32 %v3209, 1.442695
        %v3220 = vpow.pop %v3219
        %v3221 = vmul.f32 %v3210, 1.442695
        %v3222 = vpow.pop %v3221
        %v3223 = vmul.f32 %v3211, 1.442695
        %v3224 = vpow.pop %v3223
        %v3225 = vmul.f32 %v3212, 1.442695
        %v3226 = vpow.pop %v3225
        %v3227 = vmul.f32 %v3213, 1.442695
        %v3228 = vpow.pop %v3227
        %v3229 = vmul.f32 %v3214, 1.442695
        %v3230 = vpow.pop %v3229
        %v3231 = vadd.f32 %v3216, 1.0
        %v3232 = vadd.f32 %v3218, 1.0
        %v3233 = vadd.f32 %v3220, 1.0
        %v3234 = vadd.f32 %v3222, 1.0
        %v3235 = vadd.f32 %v3224, 1.0
        %v3236 = vadd.f32 %v3226, 1.0
        %v3237 = vadd.f32 %v3228, 1.0
        %v3238 = vadd.f32 %v3230, 1.0
        %v3239 = vrcp.pop %v3231
        %v3240 = vmul.f32 1.0, %v3239
        %v3241 = vrcp.pop %v3232
        %v3242 = vmul.f32 1.0, %v3241
        %v3243 = vrcp.pop %v3233
        %v3244 = vmul.f32 1.0, %v3243
        %v3245 = vrcp.pop %v3234
        %v3246 = vmul.f32 1.0, %v3245
        %v3247 = vrcp.pop %v3235
        %v3248 = vmul.f32 1.0, %v3247
        %v3249 = vrcp.pop %v3236
        %v3250 = vmul.f32 1.0, %v3249
        %v3251 = vrcp.pop %v3237
        %v3252 = vmul.f32 1.0, %v3251
        %v3253 = vrcp.pop %v3238
        %v3254 = vmul.f32 1.0, %v3253
        %v3255 = vxor.u32 %v3055, 2147483648
        %v3256 = vxor.u32 %v3056, 2147483648
        %v3257 = vxor.u32 %v3057, 2147483648
        %v3258 = vxor.u32 %v3058, 2147483648
        %v3259 = vxor.u32 %v3059, 2147483648
        %v3260 = vxor.u32 %v3060, 2147483648
        %v3261 = vxor.u32 %v3061, 2147483648
        %v3262 = vxor.u32 %v3062, 2147483648
        %v3263 = vmul.f32 %v3255, 1.442695
        %v3264 = vpow.pop %v3263
        %v3265 = vmul.f32 %v3256, 1.442695
        %v3266 = vpow.pop %v3265
        %v3267 = vmul.f32 %v3257, 1.442695
        %v3268 = vpow.pop %v3267
        %v3269 = vmul.f32 %v3258, 1.442695
        %v3270 = vpow.pop %v3269
        %v3271 = vmul.f32 %v3259, 1.442695
        %v3272 = vpow.pop %v3271
        %v3273 = vmul.f32 %v3260, 1.442695
        %v3274 = vpow.pop %v3273
        %v3275 = vmul.f32 %v3261, 1.442695
        %v3276 = vpow.pop %v3275
        %v3277 = vmul.f32 %v3262, 1.442695
        %v3278 = vpow.pop %v3277
        %v3279 = vadd.f32 %v3264, 1.0
        %v3280 = vadd.f32 %v3266, 1.0
        %v3281 = vadd.f32 %v3268, 1.0
        %v3282 = vadd.f32 %v3270, 1.0
        %v3283 = vadd.f32 %v3272, 1.0
        %v3284 = vadd.f32 %v3274, 1.0
        %v3285 = vadd.f32 %v3276, 1.0
        %v3286 = vadd.f32 %v3278, 1.0
        %v3287 = vrcp.pop %v3279
        %v3288 = vmul.f32 1.0, %v3287
        %v3289 = vrcp.pop %v3280
        %v3290 = vmul.f32 1.0, %v3289
        %v3291 = vrcp.pop %v3281
        %v3292 = vmul.f32 1.0, %v3291
        %v3293 = vrcp.pop %v3282
        %v3294 = vmul.f32 1.0, %v3293
        %v3295 = vrcp.pop %v3283
        %v3296 = vmul.f32 1.0, %v3295
        %v3297 = vrcp.pop %v3284
        %v3298 = vmul.f32 1.0, %v3297
        %v3299 = vrcp.pop %v3285
        %v3300 = vmul.f32 1.0, %v3299
        %v3301 = vrcp.pop %v3286
        %v3302 = vmul.f32 1.0, %v3301
        %v3303 = vtanh.pop %v3127
        %v3304 = vtanh.pop %v3128
        %v3305 = vtanh.pop %v3129
        %v3306 = vtanh.pop %v3130
        %v3307 = vtanh.pop %v3131
        %v3308 = vtanh.pop %v3132
        %v3309 = vtanh.pop %v3133
        %v3310 = vtanh.pop %v3134
        %v3311 = vxor.u32 %v3199, 2147483648
        %v3312 = vxor.u32 %v3200, 2147483648
        %v3313 = vxor.u32 %v3201, 2147483648
        %v3314 = vxor.u32 %v3202, 2147483648
        %v3315 = vxor.u32 %v3203, 2147483648
        %v3316 = vxor.u32 %v3204, 2147483648
        %v3317 = vxor.u32 %v3205, 2147483648
        %v3318 = vxor.u32 %v3206, 2147483648
        %v3319 = vmul.f32 %v3311, 1.442695
        %v3320 = vpow.pop %v3319
        %v3321 = vmul.f32 %v3312, 1.442695
        %v3322 = vpow.pop %v3321
        %v3323 = vmul.f32 %v3313, 1.442695
        %v3324 = vpow.pop %v3323
        %v3325 = vmul.f32 %v3314, 1.442695
        %v3326 = vpow.pop %v3325
        %v3327 = vmul.f32 %v3315, 1.442695
        %v3328 = vpow.pop %v3327
        %v3329 = vmul.f32 %v3316, 1.442695
        %v3330 = vpow.pop %v3329
        %v3331 = vmul.f32 %v3317, 1.442695
        %v3332 = vpow.pop %v3331
        %v3333 = vmul.f32 %v3318, 1.442695
        %v3334 = vpow.pop %v3333
        %v3335 = vadd.f32 %v3320, 1.0
        %v3336 = vadd.f32 %v3322, 1.0
        %v3337 = vadd.f32 %v3324, 1.0
        %v3338 = vadd.f32 %v3326, 1.0
        %v3339 = vadd.f32 %v3328, 1.0
        %v3340 = vadd.f32 %v3330, 1.0
        %v3341 = vadd.f32 %v3332, 1.0
        %v3342 = vadd.f32 %v3334, 1.0
        %v3343 = vrcp.pop %v3335
        %v3344 = vmul.f32 1.0, %v3343
        %v3345 = vrcp.pop %v3336
        %v3346 = vmul.f32 1.0, %v3345
        %v3347 = vrcp.pop %v3337
        %v3348 = vmul.f32 1.0, %v3347
        %v3349 = vrcp.pop %v3338
        %v3350 = vmul.f32 1.0, %v3349
        %v3351 = vrcp.pop %v3339
        %v3352 = vmul.f32 1.0, %v3351
        %v3353 = vrcp.pop %v3340
        %v3354 = vmul.f32 1.0, %v3353
        %v3355 = vrcp.pop %v3341
        %v3356 = vmul.f32 1.0, %v3355
        %v3357 = vrcp.pop %v3342
        %v3358 = vmul.f32 1.0, %v3357
        %v3360 = vrot.slane %v2913, 1
        %v3361 = vrot.slane %v2913, 2
        %v3362 = vrot.slane %v2913, 3
        %v3363 = vrot.slane %v2913, 4
        %v3364 = vrot.slane %v2913, 5
        %v3365 = vrot.slane %v2913, 6
        %v3366 = vrot.slane %v2913, 7
        %v3375 = vmul.f32 %v3288, %v2913
        %v3376 = vmul.f32 %v3290, %v3360
        %v3377 = vmul.f32 %v3292, %v3361
        %v3378 = vmul.f32 %v3294, %v3362
        %v3379 = vmul.f32 %v3296, %v3363
        %v3380 = vmul.f32 %v3298, %v3364
        %v3381 = vmul.f32 %v3300, %v3365
        %v3382 = vmul.f32 %v3302, %v3366
        %v3383 = vmul.f32 %v3240, %v3303
        %v3384 = vmul.f32 %v3242, %v3304
        %v3385 = vmul.f32 %v3244, %v3305
        %v3386 = vmul.f32 %v3246, %v3306
        %v3387 = vmul.f32 %v3248, %v3307
        %v3388 = vmul.f32 %v3250, %v3308
        %v3389 = vmul.f32 %v3252, %v3309
        %v3390 = vmul.f32 %v3254, %v3310
        %v3391 = vadd.f32 %v3375, %v3383
        %v3392 = vadd.f32 %v3376, %v3384
        %v3393 = vadd.f32 %v3377, %v3385
        %v3394 = vadd.f32 %v3378, %v3386
        %v3395 = vadd.f32 %v3379, %v3387
        %v3396 = vadd.f32 %v3380, %v3388
        %v3397 = vadd.f32 %v3381, %v3389
        %v3398 = vadd.f32 %v3382, %v3390
        %v3399 = vtanh.pop %v3391
        %v3400 = vtanh.pop %v3392
        %v3401 = vtanh.pop %v3393
        %v3402 = vtanh.pop %v3394
        %v3403 = vtanh.pop %v3395
        %v3404 = vtanh.pop %v3396
        %v3405 = vtanh.pop %v3397
        %v3406 = vtanh.pop %v3398
        %v3407 = vmul.f32 %v3344, %v3399
        %v3408 = vmul.f32 %v3346, %v3400
        %v3409 = vmul.f32 %v3348, %v3401
        %v3410 = vmul.f32 %v3350, %v3402
        %v3411 = vmul.f32 %v3352, %v3403
        %v3412 = vmul.f32 %v3354, %v3404
        %v3413 = vmul.f32 %v3356, %v3405
        %v3414 = vmul.f32 %v3358, %v3406
        %3415 = vset.pattern.permute.xlu0 3
        %3416 = vperm.xlu0 %3415, %v1550
        %v3417 = vpop.permute.xlu0 %3416
        %vm3418 = vcmp.eq.s32.totalorder %v3417, 1
        %v3427 = vrot.slane %v3408, 7
        %v3428 = vsel %vm1564, %v3427, %v3407
        %v3429 = vrot.slane %v3409, 6
        %v3430 = vsel %vm1567, %v3429, %v3428
        %v3431 = vrot.slane %v3410, 5
        %v3432 = vsel %vm1570, %v3431, %v3430
        %v3433 = vrot.slane %v3411, 4
        %v3434 = vsel %vm1573, %v3433, %v3432
        %v3435 = vrot.slane %v3412, 3
        %v3436 = vsel %vm1576, %v3435, %v3434
        %v3437 = vrot.slane %v3413, 2
        %v3438 = vsel %vm1579, %v3437, %v3436
        %v3439 = vrot.slane %v3414, 1
        %v3440 = vsel %vm1582, %v3439, %v3438
        %v3442 = vsel %vm3418, %v3440, 0.0
        %v3444 = vcombine.high %v3442, %v3442
        %v3446 = vunpack.c.l.s4 1966171168
        %v3447 = vunpack.c.0.s8 %v3446
        %v3448 = vlaneseq
        %v3449 = vshrl.u32 %v3448, 7
        %v3450 = vsub.s32 %v3447, %v3449
        %v3451 = vrot.slane %v3442, %v3450
        %v3453 = vunpack.c.l.s4 1966171168
        %v3454 = vunpack.c.0.s8 %v3453
        %v3455 = vlaneseq
        %v3456 = vshrl.u32 %v3455, 7
        %v3457 = vsub.s32 %v3454, %v3456
        %v3458 = vrot.slane %v3444, %v3457
        %v3459 = vcombine.high %v3451, %v3451
        %v3460 = vcombine.high %v3458, %v3458
        %v3462 = vunpack.c.l.s4 1966171168
        %v3463 = vunpack.c.0.s8 %v3462
        %v3464 = vlaneseq
        %v3465 = vshrl.u32 %v3464, 7
        %v3466 = vsub.s32 %v3463, %v3465
        %v3467 = vrot.slane %v3451, %v3466
        %v3469 = vunpack.c.l.s4 1966171168
        %v3470 = vunpack.c.0.s8 %v3469
        %v3471 = vlaneseq
        %v3472 = vshrl.u32 %v3471, 7
        %v3473 = vsub.s32 %v3470, %v3472
        %v3474 = vrot.slane %v3458, %v3473
        %v3476 = vunpack.c.l.s4 1966171168
        %v3477 = vunpack.c.0.s8 %v3476
        %v3478 = vlaneseq
        %v3479 = vshrl.u32 %v3478, 7
        %v3480 = vsub.s32 %v3477, %v3479
        %v3481 = vrot.slane %v3459, %v3480
        %v3483 = vunpack.c.l.s4 1966171168
        %v3484 = vunpack.c.0.s8 %v3483
        %v3485 = vlaneseq
        %v3486 = vshrl.u32 %v3485, 7
        %v3487 = vsub.s32 %v3484, %v3486
        %v3488 = vrot.slane %v3460, %v3487
        %v3489 = vcombine.high %v3467, %v3467
        %v3490 = vcombine.high %v3474, %v3474
        %v3491 = vcombine.high %v3481, %v3481
        %v3492 = vcombine.high %v3488, %v3488
        %3501 = vst.msk [vmem:[#allocation6 + $0x3] sm:$0x1] %vm1644, %v3467
        %3502 = vst.msk [vmem:[#allocation6 + $0xb] sm:$0x1] %vm1644, %v3481
        %3503 = vst.msk [vmem:[#allocation6 + $0x13] sm:$0x1] %vm1644, %v3489
        %3504 = vst.msk [vmem:[#allocation6 + $0x1b] sm:$0x1] %vm1644, %v3491
        %3505 = vst.msk [vmem:[#allocation6 + $0x23] sm:$0x1] %vm1644, %v3474
        %3506 = vst.msk [vmem:[#allocation6 + $0x2b] sm:$0x1] %vm1644, %v3488
        %3507 = vst.msk [vmem:[#allocation6 + $0x33] sm:$0x1] %vm1644, %v3490
        %3508 = vst.msk [vmem:[#allocation6 + $0x3b] sm:$0x1] %vm1644, %v3492
        %v3517 = vrot.slane %v3392, 7
        %v3518 = vsel %vm1564, %v3517, %v3391
        %v3519 = vrot.slane %v3393, 6
        %v3520 = vsel %vm1567, %v3519, %v3518
        %v3521 = vrot.slane %v3394, 5
        %v3522 = vsel %vm1570, %v3521, %v3520
        %v3523 = vrot.slane %v3395, 4
        %v3524 = vsel %vm1573, %v3523, %v3522
        %v3525 = vrot.slane %v3396, 3
        %v3526 = vsel %vm1576, %v3525, %v3524
        %v3527 = vrot.slane %v3397, 2
        %v3528 = vsel %vm1579, %v3527, %v3526
        %v3529 = vrot.slane %v3398, 1
        %v3530 = vsel %vm1582, %v3529, %v3528
        %v3532 = vsel %vm3418, %v3530, %v2913
        %v3533 = vsel %vm3418, %v3440, %v2914
        %v3534 = vpack.c.bf16 %v3533, %v3533
        %v3535 = vld [vmem:[#allocation2 + $0x4] sm:$0x1]
        %v3536 = vld [vmem:[#allocation2 + $0xc] sm:$0x1]
        %v3537 = vld [vmem:[#allocation2 + $0x14] sm:$0x1]
        %v3538 = vld [vmem:[#allocation2 + $0x1c] sm:$0x1]
        %v3539 = vld [vmem:[#allocation2 + $0x24] sm:$0x1]
        %v3540 = vld [vmem:[#allocation2 + $0x2c] sm:$0x1]
        %v3541 = vld [vmem:[#allocation2 + $0x34] sm:$0x1]
        %v3542 = vld [vmem:[#allocation2 + $0x3c] sm:$0x1]
        %v3544 = vsel %vm618, %v3534, 0
        %3546 = vmatprep.subr.bf16.mxu0 0
        %3547 = vmatpush1.bf16.msra.mxu0 %v1035
        %3548 = vmatprep.subr.bf16.mxu0 0
        %3549 = vmatpush1.bf16.msra.mxu0 %v1036
        %3550 = vmatprep.subr.bf16.mxu0 0
        %3551 = vmatpush1.bf16.msra.mxu0 0
        %3552 = vmatprep.subr.bf16.mxu0 0
        %3553 = vmatpush1.bf16.msra.mxu0 0
        %3554 = vmatprep.subr.bf16.mxu0 0
        %3555 = vmatpush1.bf16.msra.mxu0 0
        %3556 = vmatprep.subr.bf16.mxu0 0
        %3557 = vmatpush1.bf16.msra.mxu0 0
        %3558 = vmatprep.subr.bf16.mxu0 0
        %3559 = vmatpush1.bf16.msra.mxu0 0
        %3560 = vmatprep.subr.bf16.mxu0 0
        %3561 = vmatpush1.bf16.msra.mxu0 0
        %3562 = vmatprep.subr.bf16.mxu0 0
        %3563 = vmatpush1.bf16.msra.mxu0 0
        %3564 = vmatprep.subr.bf16.mxu0 0
        %3565 = vmatpush1.bf16.msra.mxu0 0
        %3566 = vmatprep.subr.bf16.mxu0 0
        %3567 = vmatpush1.bf16.msra.mxu0 0
        %3568 = vmatprep.subr.bf16.mxu0 0
        %3569 = vmatpush1.bf16.msra.mxu0 0
        %3570 = vmatprep.subr.bf16.mxu0 0
        %3571 = vmatpush1.bf16.msra.mxu0 0
        %3572 = vmatprep.subr.bf16.mxu0 0
        %3573 = vmatpush1.bf16.msra.mxu0 0
        %3574 = vmatprep.subr.bf16.mxu0 0
        %3575 = vmatpush1.bf16.msra.mxu0 0
        %3576 = vmatprep.subr.bf16.mxu0 0
        %3577 = vmatpush1.bf16.msra.mxu0 0
        %3578 = vmatprep.mubr.bf16.mxu0 0
        %3579 = vmatmul.mubr.bf16.gmra.mrb[0].mxu0 %v3544
        %v3580 = vpop.f32.mrb[0].mxu0
        %v3581 = vadd.f32 0.0, %v3580
        %v3582 = vpop.f32.mrb[0].mxu0
        %v3583 = vpop.f32.mrb[0].mxu0
        %v3584 = vpop.f32.mrb[0].mxu0
        %3585 = vdwg.mxu0
        %v3587 = vrot.slane %v3581, 1
        %v3588 = vrot.slane %v3581, 2
        %v3589 = vrot.slane %v3581, 3
        %v3590 = vrot.slane %v3581, 4
        %v3591 = vrot.slane %v3581, 5
        %v3592 = vrot.slane %v3581, 6
        %v3593 = vrot.slane %v3581, 7
        %v3602 = vadd.f32 %v3535, %v3581
        %v3603 = vadd.f32 %v3536, %v3587
        %v3604 = vadd.f32 %v3537, %v3588
        %v3605 = vadd.f32 %v3538, %v3589
        %v3606 = vadd.f32 %v3539, %v3590
        %v3607 = vadd.f32 %v3540, %v3591
        %v3608 = vadd.f32 %v3541, %v3592
        %v3609 = vadd.f32 %v3542, %v3593
        %v3610 = vld [vmem:[#allocation3 + $0x4] sm:$0x1]
        %v3611 = vld [vmem:[#allocation3 + $0xc] sm:$0x1]
        %v3612 = vld [vmem:[#allocation3 + $0x14] sm:$0x1]
        %v3613 = vld [vmem:[#allocation3 + $0x1c] sm:$0x1]
        %v3614 = vld [vmem:[#allocation3 + $0x24] sm:$0x1]
        %v3615 = vld [vmem:[#allocation3 + $0x2c] sm:$0x1]
        %v3616 = vld [vmem:[#allocation3 + $0x34] sm:$0x1]
        %v3617 = vld [vmem:[#allocation3 + $0x3c] sm:$0x1]
        %3618 = vmatprep.subr.bf16.mxu0 0
        %3619 = vmatpush1.bf16.msra.mxu0 %v1122
        %3620 = vmatprep.subr.bf16.mxu0 0
        %3621 = vmatpush1.bf16.msra.mxu0 %v1123
        %3622 = vmatprep.subr.bf16.mxu0 0
        %3623 = vmatpush1.bf16.msra.mxu0 0
        %3624 = vmatprep.subr.bf16.mxu0 0
        %3625 = vmatpush1.bf16.msra.mxu0 0
        %3626 = vmatprep.subr.bf16.mxu0 0
        %3627 = vmatpush1.bf16.msra.mxu0 0
        %3628 = vmatprep.subr.bf16.mxu0 0
        %3629 = vmatpush1.bf16.msra.mxu0 0
        %3630 = vmatprep.subr.bf16.mxu0 0
        %3631 = vmatpush1.bf16.msra.mxu0 0
        %3632 = vmatprep.subr.bf16.mxu0 0
        %3633 = vmatpush1.bf16.msra.mxu0 0
        %3634 = vmatprep.subr.bf16.mxu0 0
        %3635 = vmatpush1.bf16.msra.mxu0 0
        %3636 = vmatprep.subr.bf16.mxu0 0
        %3637 = vmatpush1.bf16.msra.mxu0 0
        %3638 = vmatprep.subr.bf16.mxu0 0
        %3639 = vmatpush1.bf16.msra.mxu0 0
        %3640 = vmatprep.subr.bf16.mxu0 0
        %3641 = vmatpush1.bf16.msra.mxu0 0
        %3642 = vmatprep.subr.bf16.mxu0 0
        %3643 = vmatpush1.bf16.msra.mxu0 0
        %3644 = vmatprep.subr.bf16.mxu0 0
        %3645 = vmatpush1.bf16.msra.mxu0 0
        %3646 = vmatprep.subr.bf16.mxu0 0
        %3647 = vmatpush1.bf16.msra.mxu0 0
        %3648 = vmatprep.subr.bf16.mxu0 0
        %3649 = vmatpush1.bf16.msra.mxu0 0
        %3650 = vmatprep.mubr.bf16.mxu0 0
        %3651 = vmatmul.mubr.bf16.gmra.mrb[0].mxu0 %v3544
        %v3652 = vpop.f32.mrb[0].mxu0
        %v3653 = vadd.f32 0.0, %v3652
        %v3654 = vpop.f32.mrb[0].mxu0
        %v3655 = vpop.f32.mrb[0].mxu0
        %v3656 = vpop.f32.mrb[0].mxu0
        %3657 = vdwg.mxu0
        %v3659 = vrot.slane %v3653, 1
        %v3660 = vrot.slane %v3653, 2
        %v3661 = vrot.slane %v3653, 3
        %v3662 = vrot.slane %v3653, 4
        %v3663 = vrot.slane %v3653, 5
        %v3664 = vrot.slane %v3653, 6
        %v3665 = vrot.slane %v3653, 7
        %v3674 = vadd.f32 %v3610, %v3653
        %v3675 = vadd.f32 %v3611, %v3659
        %v3676 = vadd.f32 %v3612, %v3660
        %v3677 = vadd.f32 %v3613, %v3661
        %v3678 = vadd.f32 %v3614, %v3662
        %v3679 = vadd.f32 %v3615, %v3663
        %v3680 = vadd.f32 %v3616, %v3664
        %v3681 = vadd.f32 %v3617, %v3665
        %v3682 = vld [vmem:[#allocation4 + $0x4] sm:$0x1]
        %v3683 = vld [vmem:[#allocation4 + $0xc] sm:$0x1]
        %v3684 = vld [vmem:[#allocation4 + $0x14] sm:$0x1]
        %v3685 = vld [vmem:[#allocation4 + $0x1c] sm:$0x1]
        %v3686 = vld [vmem:[#allocation4 + $0x24] sm:$0x1]
        %v3687 = vld [vmem:[#allocation4 + $0x2c] sm:$0x1]
        %v3688 = vld [vmem:[#allocation4 + $0x34] sm:$0x1]
        %v3689 = vld [vmem:[#allocation4 + $0x3c] sm:$0x1]
        %3690 = vmatprep.subr.bf16.mxu0 0
        %3691 = vmatpush1.bf16.msra.mxu0 %v1206
        %3692 = vmatprep.subr.bf16.mxu0 0
        %3693 = vmatpush1.bf16.msra.mxu0 %v1207
        %3694 = vmatprep.subr.bf16.mxu0 0
        %3695 = vmatpush1.bf16.msra.mxu0 0
        %3696 = vmatprep.subr.bf16.mxu0 0
        %3697 = vmatpush1.bf16.msra.mxu0 0
        %3698 = vmatprep.subr.bf16.mxu0 0
        %3699 = vmatpush1.bf16.msra.mxu0 0
        %3700 = vmatprep.subr.bf16.mxu0 0
        %3701 = vmatpush1.bf16.msra.mxu0 0
        %3702 = vmatprep.subr.bf16.mxu0 0
        %3703 = vmatpush1.bf16.msra.mxu0 0
        %3704 = vmatprep.subr.bf16.mxu0 0
        %3705 = vmatpush1.bf16.msra.mxu0 0
        %3706 = vmatprep.subr.bf16.mxu0 0
        %3707 = vmatpush1.bf16.msra.mxu0 0
        %3708 = vmatprep.subr.bf16.mxu0 0
        %3709 = vmatpush1.bf16.msra.mxu0 0
        %3710 = vmatprep.subr.bf16.mxu0 0
        %3711 = vmatpush1.bf16.msra.mxu0 0
        %3712 = vmatprep.subr.bf16.mxu0 0
        %3713 = vmatpush1.bf16.msra.mxu0 0
        %3714 = vmatprep.subr.bf16.mxu0 0
        %3715 = vmatpush1.bf16.msra.mxu0 0
        %3716 = vmatprep.subr.bf16.mxu0 0
        %3717 = vmatpush1.bf16.msra.mxu0 0
        %3718 = vmatprep.subr.bf16.mxu0 0
        %3719 = vmatpush1.bf16.msra.mxu0 0
        %3720 = vmatprep.subr.bf16.mxu0 0
        %3721 = vmatpush1.bf16.msra.mxu0 0
        %3722 = vmatprep.mubr.bf16.mxu0 0
        %3723 = vmatmul.mubr.bf16.gmra.mrb[0].mxu0 %v3544
        %v3724 = vpop.f32.mrb[0].mxu0
        %v3725 = vadd.f32 0.0, %v3724
        %v3726 = vpop.f32.mrb[0].mxu0
        %v3727 = vpop.f32.mrb[0].mxu0
        %v3728 = vpop.f32.mrb[0].mxu0
        %3729 = vdwg.mxu0
        %v3731 = vrot.slane %v3725, 1
        %v3732 = vrot.slane %v3725, 2
        %v3733 = vrot.slane %v3725, 3
        %v3734 = vrot.slane %v3725, 4
        %v3735 = vrot.slane %v3725, 5
        %v3736 = vrot.slane %v3725, 6
        %v3737 = vrot.slane %v3725, 7
        %v3746 = vadd.f32 %v3682, %v3725
        %v3747 = vadd.f32 %v3683, %v3731
        %v3748 = vadd.f32 %v3684, %v3732
        %v3749 = vadd.f32 %v3685, %v3733
        %v3750 = vadd.f32 %v3686, %v3734
        %v3751 = vadd.f32 %v3687, %v3735
        %v3752 = vadd.f32 %v3688, %v3736
        %v3753 = vadd.f32 %v3689, %v3737
        %v3754 = vld [vmem:[#allocation5 + $0x4] sm:$0x1]
        %v3755 = vld [vmem:[#allocation5 + $0xc] sm:$0x1]
        %v3756 = vld [vmem:[#allocation5 + $0x14] sm:$0x1]
        %v3757 = vld [vmem:[#allocation5 + $0x1c] sm:$0x1]
        %v3758 = vld [vmem:[#allocation5 + $0x24] sm:$0x1]
        %v3759 = vld [vmem:[#allocation5 + $0x2c] sm:$0x1]
        %v3760 = vld [vmem:[#allocation5 + $0x34] sm:$0x1]
        %v3761 = vld [vmem:[#allocation5 + $0x3c] sm:$0x1]
        %3762 = vmatprep.subr.bf16.mxu0 0
        %3763 = vmatpush1.bf16.msra.mxu0 %v1290
        %3764 = vmatprep.subr.bf16.mxu0 0
        %3765 = vmatpush1.bf16.msra.mxu0 %v1291
        %3766 = vmatprep.subr.bf16.mxu0 0
        %3767 = vmatpush1.bf16.msra.mxu0 0
        %3768 = vmatprep.subr.bf16.mxu0 0
        %3769 = vmatpush1.bf16.msra.mxu0 0
        %3770 = vmatprep.subr.bf16.mxu0 0
        %3771 = vmatpush1.bf16.msra.mxu0 0
        %3772 = vmatprep.subr.bf16.mxu0 0
        %3773 = vmatpush1.bf16.msra.mxu0 0
        %3774 = vmatprep.subr.bf16.mxu0 0
        %3775 = vmatpush1.bf16.msra.mxu0 0
        %3776 = vmatprep.subr.bf16.mxu0 0
        %3777 = vmatpush1.bf16.msra.mxu0 0
        %3778 = vmatprep.subr.bf16.mxu0 0
        %3779 = vmatpush1.bf16.msra.mxu0 0
        %3780 = vmatprep.subr.bf16.mxu0 0
        %3781 = vmatpush1.bf16.msra.mxu0 0
        %3782 = vmatprep.subr.bf16.mxu0 0
        %3783 = vmatpush1.bf16.msra.mxu0 0
        %3784 = vmatprep.subr.bf16.mxu0 0
        %3785 = vmatpush1.bf16.msra.mxu0 0
        %3786 = vmatprep.subr.bf16.mxu0 0
        %3787 = vmatpush1.bf16.msra.mxu0 0
        %3788 = vmatprep.subr.bf16.mxu0 0
        %3789 = vmatpush1.bf16.msra.mxu0 0
        %3790 = vmatprep.subr.bf16.mxu0 0
        %3791 = vmatpush1.bf16.msra.mxu0 0
        %3792 = vmatprep.subr.bf16.mxu0 0
        %3793 = vmatpush1.bf16.msra.mxu0 0
        %3794 = vmatprep.mubr.bf16.mxu0 0
        %3795 = vmatmul.mubr.bf16.gmra.mrb[0].mxu0 %v3544
        %v3796 = vpop.f32.mrb[0].mxu0
        %v3797 = vadd.f32 0.0, %v3796
        %v3798 = vpop.f32.mrb[0].mxu0
        %v3799 = vpop.f32.mrb[0].mxu0
        %v3800 = vpop.f32.mrb[0].mxu0
        %3801 = vdwg.mxu0
        %v3803 = vrot.slane %v3797, 1
        %v3804 = vrot.slane %v3797, 2
        %v3805 = vrot.slane %v3797, 3
        %v3806 = vrot.slane %v3797, 4
        %v3807 = vrot.slane %v3797, 5
        %v3808 = vrot.slane %v3797, 6
        %v3809 = vrot.slane %v3797, 7
        %v3818 = vadd.f32 %v3754, %v3797
        %v3819 = vadd.f32 %v3755, %v3803
        %v3820 = vadd.f32 %v3756, %v3804
        %v3821 = vadd.f32 %v3757, %v3805
        %v3822 = vadd.f32 %v3758, %v3806
        %v3823 = vadd.f32 %v3759, %v3807
        %v3824 = vadd.f32 %v3760, %v3808
        %v3825 = vadd.f32 %v3761, %v3809
        %v3826 = vxor.u32 %v3602, 2147483648
        %v3827 = vxor.u32 %v3603, 2147483648
        %v3828 = vxor.u32 %v3604, 2147483648
        %v3829 = vxor.u32 %v3605, 2147483648
        %v3830 = vxor.u32 %v3606, 2147483648
        %v3831 = vxor.u32 %v3607, 2147483648
        %v3832 = vxor.u32 %v3608, 2147483648
        %v3833 = vxor.u32 %v3609, 2147483648
        %v3834 = vmul.f32 %v3826, 1.442695
        %v3835 = vpow.pop %v3834
        %v3836 = vmul.f32 %v3827, 1.442695
        %v3837 = vpow.pop %v3836
        %v3838 = vmul.f32 %v3828, 1.442695
        %v3839 = vpow.pop %v3838
        %v3840 = vmul.f32 %v3829, 1.442695
        %v3841 = vpow.pop %v3840
        %v3842 = vmul.f32 %v3830, 1.442695
        %v3843 = vpow.pop %v3842
        %v3844 = vmul.f32 %v3831, 1.442695
        %v3845 = vpow.pop %v3844
        %v3846 = vmul.f32 %v3832, 1.442695
        %v3847 = vpow.pop %v3846
        %v3848 = vmul.f32 %v3833, 1.442695
        %v3849 = vpow.pop %v3848
        %v3850 = vadd.f32 %v3835, 1.0
        %v3851 = vadd.f32 %v3837, 1.0
        %v3852 = vadd.f32 %v3839, 1.0
        %v3853 = vadd.f32 %v3841, 1.0
        %v3854 = vadd.f32 %v3843, 1.0
        %v3855 = vadd.f32 %v3845, 1.0
        %v3856 = vadd.f32 %v3847, 1.0
        %v3857 = vadd.f32 %v3849, 1.0
        %v3858 = vrcp.pop %v3850
        %v3859 = vmul.f32 1.0, %v3858
        %v3860 = vrcp.pop %v3851
        %v3861 = vmul.f32 1.0, %v3860
        %v3862 = vrcp.pop %v3852
        %v3863 = vmul.f32 1.0, %v3862
        %v3864 = vrcp.pop %v3853
        %v3865 = vmul.f32 1.0, %v3864
        %v3866 = vrcp.pop %v3854
        %v3867 = vmul.f32 1.0, %v3866
        %v3868 = vrcp.pop %v3855
        %v3869 = vmul.f32 1.0, %v3868
        %v3870 = vrcp.pop %v3856
        %v3871 = vmul.f32 1.0, %v3870
        %v3872 = vrcp.pop %v3857
        %v3873 = vmul.f32 1.0, %v3872
        %v3874 = vxor.u32 %v3674, 2147483648
        %v3875 = vxor.u32 %v3675, 2147483648
        %v3876 = vxor.u32 %v3676, 2147483648
        %v3877 = vxor.u32 %v3677, 2147483648
        %v3878 = vxor.u32 %v3678, 2147483648
        %v3879 = vxor.u32 %v3679, 2147483648
        %v3880 = vxor.u32 %v3680, 2147483648
        %v3881 = vxor.u32 %v3681, 2147483648
        %v3882 = vmul.f32 %v3874, 1.442695
        %v3883 = vpow.pop %v3882
        %v3884 = vmul.f32 %v3875, 1.442695
        %v3885 = vpow.pop %v3884
        %v3886 = vmul.f32 %v3876, 1.442695
        %v3887 = vpow.pop %v3886
        %v3888 = vmul.f32 %v3877, 1.442695
        %v3889 = vpow.pop %v3888
        %v3890 = vmul.f32 %v3878, 1.442695
        %v3891 = vpow.pop %v3890
        %v3892 = vmul.f32 %v3879, 1.442695
        %v3893 = vpow.pop %v3892
        %v3894 = vmul.f32 %v3880, 1.442695
        %v3895 = vpow.pop %v3894
        %v3896 = vmul.f32 %v3881, 1.442695
        %v3897 = vpow.pop %v3896
        %v3898 = vadd.f32 %v3883, 1.0
        %v3899 = vadd.f32 %v3885, 1.0
        %v3900 = vadd.f32 %v3887, 1.0
        %v3901 = vadd.f32 %v3889, 1.0
        %v3902 = vadd.f32 %v3891, 1.0
        %v3903 = vadd.f32 %v3893, 1.0
        %v3904 = vadd.f32 %v3895, 1.0
        %v3905 = vadd.f32 %v3897, 1.0
        %v3906 = vrcp.pop %v3898
        %v3907 = vmul.f32 1.0, %v3906
        %v3908 = vrcp.pop %v3899
        %v3909 = vmul.f32 1.0, %v3908
        %v3910 = vrcp.pop %v3900
        %v3911 = vmul.f32 1.0, %v3910
        %v3912 = vrcp.pop %v3901
        %v3913 = vmul.f32 1.0, %v3912
        %v3914 = vrcp.pop %v3902
        %v3915 = vmul.f32 1.0, %v3914
        %v3916 = vrcp.pop %v3903
        %v3917 = vmul.f32 1.0, %v3916
        %v3918 = vrcp.pop %v3904
        %v3919 = vmul.f32 1.0, %v3918
        %v3920 = vrcp.pop %v3905
        %v3921 = vmul.f32 1.0, %v3920
        %v3922 = vtanh.pop %v3746
        %v3923 = vtanh.pop %v3747
        %v3924 = vtanh.pop %v3748
        %v3925 = vtanh.pop %v3749
        %v3926 = vtanh.pop %v3750
        %v3927 = vtanh.pop %v3751
        %v3928 = vtanh.pop %v3752
        %v3929 = vtanh.pop %v3753
        %v3930 = vxor.u32 %v3818, 2147483648
        %v3931 = vxor.u32 %v3819, 2147483648
        %v3932 = vxor.u32 %v3820, 2147483648
        %v3933 = vxor.u32 %v3821, 2147483648
        %v3934 = vxor.u32 %v3822, 2147483648
        %v3935 = vxor.u32 %v3823, 2147483648
        %v3936 = vxor.u32 %v3824, 2147483648
        %v3937 = vxor.u32 %v3825, 2147483648
        %v3938 = vmul.f32 %v3930, 1.442695
        %v3939 = vpow.pop %v3938
        %v3940 = vmul.f32 %v3931, 1.442695
        %v3941 = vpow.pop %v3940
        %v3942 = vmul.f32 %v3932, 1.442695
        %v3943 = vpow.pop %v3942
        %v3944 = vmul.f32 %v3933, 1.442695
        %v3945 = vpow.pop %v3944
        %v3946 = vmul.f32 %v3934, 1.442695
        %v3947 = vpow.pop %v3946
        %v3948 = vmul.f32 %v3935, 1.442695
        %v3949 = vpow.pop %v3948
        %v3950 = vmul.f32 %v3936, 1.442695
        %v3951 = vpow.pop %v3950
        %v3952 = vmul.f32 %v3937, 1.442695
        %v3953 = vpow.pop %v3952
        %v3954 = vadd.f32 %v3939, 1.0
        %v3955 = vadd.f32 %v3941, 1.0
        %v3956 = vadd.f32 %v3943, 1.0
        %v3957 = vadd.f32 %v3945, 1.0
        %v3958 = vadd.f32 %v3947, 1.0
        %v3959 = vadd.f32 %v3949, 1.0
        %v3960 = vadd.f32 %v3951, 1.0
        %v3961 = vadd.f32 %v3953, 1.0
        %v3962 = vrcp.pop %v3954
        %v3963 = vmul.f32 1.0, %v3962
        %v3964 = vrcp.pop %v3955
        %v3965 = vmul.f32 1.0, %v3964
        %v3966 = vrcp.pop %v3956
        %v3967 = vmul.f32 1.0, %v3966
        %v3968 = vrcp.pop %v3957
        %v3969 = vmul.f32 1.0, %v3968
        %v3970 = vrcp.pop %v3958
        %v3971 = vmul.f32 1.0, %v3970
        %v3972 = vrcp.pop %v3959
        %v3973 = vmul.f32 1.0, %v3972
        %v3974 = vrcp.pop %v3960
        %v3975 = vmul.f32 1.0, %v3974
        %v3976 = vrcp.pop %v3961
        %v3977 = vmul.f32 1.0, %v3976
        %v3979 = vrot.slane %v3532, 1
        %v3980 = vrot.slane %v3532, 2
        %v3981 = vrot.slane %v3532, 3
        %v3982 = vrot.slane %v3532, 4
        %v3983 = vrot.slane %v3532, 5
        %v3984 = vrot.slane %v3532, 6
        %v3985 = vrot.slane %v3532, 7
        %v3994 = vmul.f32 %v3907, %v3532
        %v3995 = vmul.f32 %v3909, %v3979
        %v3996 = vmul.f32 %v3911, %v3980
        %v3997 = vmul.f32 %v3913, %v3981
        %v3998 = vmul.f32 %v3915, %v3982
        %v3999 = vmul.f32 %v3917, %v3983
        %v4000 = vmul.f32 %v3919, %v3984
        %v4001 = vmul.f32 %v3921, %v3985
        %v4002 = vmul.f32 %v3859, %v3922
        %v4003 = vmul.f32 %v3861, %v3923
        %v4004 = vmul.f32 %v3863, %v3924
        %v4005 = vmul.f32 %v3865, %v3925
        %v4006 = vmul.f32 %v3867, %v3926
        %v4007 = vmul.f32 %v3869, %v3927
        %v4008 = vmul.f32 %v3871, %v3928
        %v4009 = vmul.f32 %v3873, %v3929
        %v4010 = vadd.f32 %v3994, %v4002
        %v4011 = vadd.f32 %v3995, %v4003
        %v4012 = vadd.f32 %v3996, %v4004
        %v4013 = vadd.f32 %v3997, %v4005
        %v4014 = vadd.f32 %v3998, %v4006
        %v4015 = vadd.f32 %v3999, %v4007
        %v4016 = vadd.f32 %v4000, %v4008
        %v4017 = vadd.f32 %v4001, %v4009
        %v4018 = vtanh.pop %v4010
        %v4019 = vtanh.pop %v4011
        %v4020 = vtanh.pop %v4012
        %v4021 = vtanh.pop %v4013
        %v4022 = vtanh.pop %v4014
        %v4023 = vtanh.pop %v4015
        %v4024 = vtanh.pop %v4016
        %v4025 = vtanh.pop %v4017
        %v4026 = vmul.f32 %v3963, %v4018
        %v4027 = vmul.f32 %v3965, %v4019
        %v4028 = vmul.f32 %v3967, %v4020
        %v4029 = vmul.f32 %v3969, %v4021
        %v4030 = vmul.f32 %v3971, %v4022
        %v4031 = vmul.f32 %v3973, %v4023
        %v4032 = vmul.f32 %v3975, %v4024
        %v4033 = vmul.f32 %v3977, %v4025
        %4034 = vset.pattern.permute.xlu0 4
        %4035 = vperm.xlu0 %4034, %v1550
        %v4036 = vpop.permute.xlu0 %4035
        %vm4037 = vcmp.eq.s32.totalorder %v4036, 1
        %v4046 = vrot.slane %v4027, 7
        %v4047 = vsel %vm1564, %v4046, %v4026
        %v4048 = vrot.slane %v4028, 6
        %v4049 = vsel %vm1567, %v4048, %v4047
        %v4050 = vrot.slane %v4029, 5
        %v4051 = vsel %vm1570, %v4050, %v4049
        %v4052 = vrot.slane %v4030, 4
        %v4053 = vsel %vm1573, %v4052, %v4051
        %v4054 = vrot.slane %v4031, 3
        %v4055 = vsel %vm1576, %v4054, %v4053
        %v4056 = vrot.slane %v4032, 2
        %v4057 = vsel %vm1579, %v4056, %v4055
        %v4058 = vrot.slane %v4033, 1
        %v4059 = vsel %vm1582, %v4058, %v4057
        %v4061 = vsel %vm4037, %v4059, 0.0
        %v4063 = vcombine.high %v4061, %v4061
        %v4065 = vunpack.c.l.s4 1966171168
        %v4066 = vunpack.c.0.s8 %v4065
        %v4067 = vlaneseq
        %v4068 = vshrl.u32 %v4067, 7
        %v4069 = vsub.s32 %v4066, %v4068
        %v4070 = vrot.slane %v4061, %v4069
        %v4072 = vunpack.c.l.s4 1966171168
        %v4073 = vunpack.c.0.s8 %v4072
        %v4074 = vlaneseq
        %v4075 = vshrl.u32 %v4074, 7
        %v4076 = vsub.s32 %v4073, %v4075
        %v4077 = vrot.slane %v4063, %v4076
        %v4078 = vcombine.high %v4070, %v4070
        %v4079 = vcombine.high %v4077, %v4077
        %v4081 = vunpack.c.l.s4 1966171168
        %v4082 = vunpack.c.0.s8 %v4081
        %v4083 = vlaneseq
        %v4084 = vshrl.u32 %v4083, 7
        %v4085 = vsub.s32 %v4082, %v4084
        %v4086 = vrot.slane %v4070, %v4085
        %v4088 = vunpack.c.l.s4 1966171168
        %v4089 = vunpack.c.0.s8 %v4088
        %v4090 = vlaneseq
        %v4091 = vshrl.u32 %v4090, 7
        %v4092 = vsub.s32 %v4089, %v4091
        %v4093 = vrot.slane %v4077, %v4092
        %v4095 = vunpack.c.l.s4 1966171168
        %v4096 = vunpack.c.0.s8 %v4095
        %v4097 = vlaneseq
        %v4098 = vshrl.u32 %v4097, 7
        %v4099 = vsub.s32 %v4096, %v4098
        %v4100 = vrot.slane %v4078, %v4099
        %v4102 = vunpack.c.l.s4 1966171168
        %v4103 = vunpack.c.0.s8 %v4102
        %v4104 = vlaneseq
        %v4105 = vshrl.u32 %v4104, 7
        %v4106 = vsub.s32 %v4103, %v4105
        %v4107 = vrot.slane %v4079, %v4106
        %v4108 = vcombine.high %v4086, %v4086
        %v4109 = vcombine.high %v4093, %v4093
        %v4110 = vcombine.high %v4100, %v4100
        %v4111 = vcombine.high %v4107, %v4107
        %4120 = vst.msk [vmem:[#allocation6 + $0x4] sm:$0x1] %vm1644, %v4086
        %4121 = vst.msk [vmem:[#allocation6 + $0xc] sm:$0x1] %vm1644, %v4100
        %4122 = vst.msk [vmem:[#allocation6 + $0x14] sm:$0x1] %vm1644, %v4108
        %4123 = vst.msk [vmem:[#allocation6 + $0x1c] sm:$0x1] %vm1644, %v4110
        %4124 = vst.msk [vmem:[#allocation6 + $0x24] sm:$0x1] %vm1644, %v4093
        %4125 = vst.msk [vmem:[#allocation6 + $0x2c] sm:$0x1] %vm1644, %v4107
        %4126 = vst.msk [vmem:[#allocation6 + $0x34] sm:$0x1] %vm1644, %v4109
        %4127 = vst.msk [vmem:[#allocation6 + $0x3c] sm:$0x1] %vm1644, %v4111
        %v4136 = vrot.slane %v4011, 7
        %v4137 = vsel %vm1564, %v4136, %v4010
        %v4138 = vrot.slane %v4012, 6
        %v4139 = vsel %vm1567, %v4138, %v4137
        %v4140 = vrot.slane %v4013, 5
        %v4141 = vsel %vm1570, %v4140, %v4139
        %v4142 = vrot.slane %v4014, 4
        %v4143 = vsel %vm1573, %v4142, %v4141
        %v4144 = vrot.slane %v4015, 3
        %v4145 = vsel %vm1576, %v4144, %v4143
        %v4146 = vrot.slane %v4016, 2
        %v4147 = vsel %vm1579, %v4146, %v4145
        %v4148 = vrot.slane %v4017, 1
        %v4149 = vsel %vm1582, %v4148, %v4147
        %v4151 = vsel %vm4037, %v4149, %v3532
        %v4152 = vsel %vm4037, %v4059, %v3533
        %v4153 = vpack.c.bf16 %v4152, %v4152
        %v4154 = vld [vmem:[#allocation2 + $0x5] sm:$0x1]
        %v4155 = vld [vmem:[#allocation2 + $0xd] sm:$0x1]
        %v4156 = vld [vmem:[#allocation2 + $0x15] sm:$0x1]
        %v4157 = vld [vmem:[#allocation2 + $0x1d] sm:$0x1]
        %v4158 = vld [vmem:[#allocation2 + $0x25] sm:$0x1]
        %v4159 = vld [vmem:[#allocation2 + $0x2d] sm:$0x1]
        %v4160 = vld [vmem:[#allocation2 + $0x35] sm:$0x1]
        %v4161 = vld [vmem:[#allocation2 + $0x3d] sm:$0x1]
        %v4163 = vsel %vm618, %v4153, 0
        %4165 = vmatprep.subr.bf16.mxu0 0
        %4166 = vmatpush1.bf16.msra.mxu0 %v1035
        %4167 = vmatprep.subr.bf16.mxu0 0
        %4168 = vmatpush1.bf16.msra.mxu0 %v1036
        %4169 = vmatprep.subr.bf16.mxu0 0
        %4170 = vmatpush1.bf16.msra.mxu0 0
        %4171 = vmatprep.subr.bf16.mxu0 0
        %4172 = vmatpush1.bf16.msra.mxu0 0
        %4173 = vmatprep.subr.bf16.mxu0 0
        %4174 = vmatpush1.bf16.msra.mxu0 0
        %4175 = vmatprep.subr.bf16.mxu0 0
        %4176 = vmatpush1.bf16.msra.mxu0 0
        %4177 = vmatprep.subr.bf16.mxu0 0
        %4178 = vmatpush1.bf16.msra.mxu0 0
        %4179 = vmatprep.subr.bf16.mxu0 0
        %4180 = vmatpush1.bf16.msra.mxu0 0
        %4181 = vmatprep.subr.bf16.mxu0 0
        %4182 = vmatpush1.bf16.msra.mxu0 0
        %4183 = vmatprep.subr.bf16.mxu0 0
        %4184 = vmatpush1.bf16.msra.mxu0 0
        %4185 = vmatprep.subr.bf16.mxu0 0
        %4186 = vmatpush1.bf16.msra.mxu0 0
        %4187 = vmatprep.subr.bf16.mxu0 0
        %4188 = vmatpush1.bf16.msra.mxu0 0
        %4189 = vmatprep.subr.bf16.mxu0 0
        %4190 = vmatpush1.bf16.msra.mxu0 0
        %4191 = vmatprep.subr.bf16.mxu0 0
        %4192 = vmatpush1.bf16.msra.mxu0 0
        %4193 = vmatprep.subr.bf16.mxu0 0
        %4194 = vmatpush1.bf16.msra.mxu0 0
        %4195 = vmatprep.subr.bf16.mxu0 0
        %4196 = vmatpush1.bf16.msra.mxu0 0
        %4197 = vmatprep.mubr.bf16.mxu0 0
        %4198 = vmatmul.mubr.bf16.gmra.mrb[0].mxu0 %v4163
        %v4199 = vpop.f32.mrb[0].mxu0
        %v4200 = vadd.f32 0.0, %v4199
        %v4201 = vpop.f32.mrb[0].mxu0
        %v4202 = vpop.f32.mrb[0].mxu0
        %v4203 = vpop.f32.mrb[0].mxu0
        %4204 = vdwg.mxu0
        %v4206 = vrot.slane %v4200, 1
        %v4207 = vrot.slane %v4200, 2
        %v4208 = vrot.slane %v4200, 3
        %v4209 = vrot.slane %v4200, 4
        %v4210 = vrot.slane %v4200, 5
        %v4211 = vrot.slane %v4200, 6
        %v4212 = vrot.slane %v4200, 7
        %v4221 = vadd.f32 %v4154, %v4200
        %v4222 = vadd.f32 %v4155, %v4206
        %v4223 = vadd.f32 %v4156, %v4207
        %v4224 = vadd.f32 %v4157, %v4208
        %v4225 = vadd.f32 %v4158, %v4209
        %v4226 = vadd.f32 %v4159, %v4210
        %v4227 = vadd.f32 %v4160, %v4211
        %v4228 = vadd.f32 %v4161, %v4212
        %v4229 = vld [vmem:[#allocation3 + $0x5] sm:$0x1]
        %v4230 = vld [vmem:[#allocation3 + $0xd] sm:$0x1]
        %v4231 = vld [vmem:[#allocation3 + $0x15] sm:$0x1]
        %v4232 = vld [vmem:[#allocation3 + $0x1d] sm:$0x1]
        %v4233 = vld [vmem:[#allocation3 + $0x25] sm:$0x1]
        %v4234 = vld [vmem:[#allocation3 + $0x2d] sm:$0x1]
        %v4235 = vld [vmem:[#allocation3 + $0x35] sm:$0x1]
        %v4236 = vld [vmem:[#allocation3 + $0x3d] sm:$0x1]
        %4237 = vmatprep.subr.bf16.mxu0 0
        %4238 = vmatpush1.bf16.msra.mxu0 %v1122
        %4239 = vmatprep.subr.bf16.mxu0 0
        %4240 = vmatpush1.bf16.msra.mxu0 %v1123
        %4241 = vmatprep.subr.bf16.mxu0 0
        %4242 = vmatpush1.bf16.msra.mxu0 0
        %4243 = vmatprep.subr.bf16.mxu0 0
        %4244 = vmatpush1.bf16.msra.mxu0 0
        %4245 = vmatprep.subr.bf16.mxu0 0
        %4246 = vmatpush1.bf16.msra.mxu0 0
        %4247 = vmatprep.subr.bf16.mxu0 0
        %4248 = vmatpush1.bf16.msra.mxu0 0
        %4249 = vmatprep.subr.bf16.mxu0 0
        %4250 = vmatpush1.bf16.msra.mxu0 0
        %4251 = vmatprep.subr.bf16.mxu0 0
        %4252 = vmatpush1.bf16.msra.mxu0 0
        %4253 = vmatprep.subr.bf16.mxu0 0
        %4254 = vmatpush1.bf16.msra.mxu0 0
        %4255 = vmatprep.subr.bf16.mxu0 0
        %4256 = vmatpush1.bf16.msra.mxu0 0
        %4257 = vmatprep.subr.bf16.mxu0 0
        %4258 = vmatpush1.bf16.msra.mxu0 0
        %4259 = vmatprep.subr.bf16.mxu0 0
        %4260 = vmatpush1.bf16.msra.mxu0 0
        %4261 = vmatprep.subr.bf16.mxu0 0
        %4262 = vmatpush1.bf16.msra.mxu0 0
        %4263 = vmatprep.subr.bf16.mxu0 0
        %4264 = vmatpush1.bf16.msra.mxu0 0
        %4265 = vmatprep.subr.bf16.mxu0 0
        %4266 = vmatpush1.bf16.msra.mxu0 0
        %4267 = vmatprep.subr.bf16.mxu0 0
        %4268 = vmatpush1.bf16.msra.mxu0 0
        %4269 = vmatprep.mubr.bf16.mxu0 0
        %4270 = vmatmul.mubr.bf16.gmra.mrb[0].mxu0 %v4163
        %v4271 = vpop.f32.mrb[0].mxu0
        %v4272 = vadd.f32 0.0, %v4271
        %v4273 = vpop.f32.mrb[0].mxu0
        %v4274 = vpop.f32.mrb[0].mxu0
        %v4275 = vpop.f32.mrb[0].mxu0
        %4276 = vdwg.mxu0
        %v4278 = vrot.slane %v4272, 1
        %v4279 = vrot.slane %v4272, 2
        %v4280 = vrot.slane %v4272, 3
        %v4281 = vrot.slane %v4272, 4
        %v4282 = vrot.slane %v4272, 5
        %v4283 = vrot.slane %v4272, 6
        %v4284 = vrot.slane %v4272, 7
        %v4293 = vadd.f32 %v4229, %v4272
        %v4294 = vadd.f32 %v4230, %v4278
        %v4295 = vadd.f32 %v4231, %v4279
        %v4296 = vadd.f32 %v4232, %v4280
        %v4297 = vadd.f32 %v4233, %v4281
        %v4298 = vadd.f32 %v4234, %v4282
        %v4299 = vadd.f32 %v4235, %v4283
        %v4300 = vadd.f32 %v4236, %v4284
        %v4301 = vld [vmem:[#allocation4 + $0x5] sm:$0x1]
        %v4302 = vld [vmem:[#allocation4 + $0xd] sm:$0x1]
        %v4303 = vld [vmem:[#allocation4 + $0x15] sm:$0x1]
        %v4304 = vld [vmem:[#allocation4 + $0x1d] sm:$0x1]
        %v4305 = vld [vmem:[#allocation4 + $0x25] sm:$0x1]
        %v4306 = vld [vmem:[#allocation4 + $0x2d] sm:$0x1]
        %v4307 = vld [vmem:[#allocation4 + $0x35] sm:$0x1]
        %v4308 = vld [vmem:[#allocation4 + $0x3d] sm:$0x1]
        %4309 = vmatprep.subr.bf16.mxu0 0
        %4310 = vmatpush1.bf16.msra.mxu0 %v1206
        %4311 = vmatprep.subr.bf16.mxu0 0
        %4312 = vmatpush1.bf16.msra.mxu0 %v1207
        %4313 = vmatprep.subr.bf16.mxu0 0
        %4314 = vmatpush1.bf16.msra.mxu0 0
        %4315 = vmatprep.subr.bf16.mxu0 0
        %4316 = vmatpush1.bf16.msra.mxu0 0
        %4317 = vmatprep.subr.bf16.mxu0 0
        %4318 = vmatpush1.bf16.msra.mxu0 0
        %4319 = vmatprep.subr.bf16.mxu0 0
        %4320 = vmatpush1.bf16.msra.mxu0 0
        %4321 = vmatprep.subr.bf16.mxu0 0
        %4322 = vmatpush1.bf16.msra.mxu0 0
        %4323 = vmatprep.subr.bf16.mxu0 0
        %4324 = vmatpush1.bf16.msra.mxu0 0
        %4325 = vmatprep.subr.bf16.mxu0 0
        %4326 = vmatpush1.bf16.msra.mxu0 0
        %4327 = vmatprep.subr.bf16.mxu0 0
        %4328 = vmatpush1.bf16.msra.mxu0 0
        %4329 = vmatprep.subr.bf16.mxu0 0
        %4330 = vmatpush1.bf16.msra.mxu0 0
        %4331 = vmatprep.subr.bf16.mxu0 0
        %4332 = vmatpush1.bf16.msra.mxu0 0
        %4333 = vmatprep.subr.bf16.mxu0 0
        %4334 = vmatpush1.bf16.msra.mxu0 0
        %4335 = vmatprep.subr.bf16.mxu0 0
        %4336 = vmatpush1.bf16.msra.mxu0 0
        %4337 = vmatprep.subr.bf16.mxu0 0
        %4338 = vmatpush1.bf16.msra.mxu0 0
        %4339 = vmatprep.subr.bf16.mxu0 0
        %4340 = vmatpush1.bf16.msra.mxu0 0
        %4341 = vmatprep.mubr.bf16.mxu0 0
        %4342 = vmatmul.mubr.bf16.gmra.mrb[0].mxu0 %v4163
        %v4343 = vpop.f32.mrb[0].mxu0
        %v4344 = vadd.f32 0.0, %v4343
        %v4345 = vpop.f32.mrb[0].mxu0
        %v4346 = vpop.f32.mrb[0].mxu0
        %v4347 = vpop.f32.mrb[0].mxu0
        %4348 = vdwg.mxu0
        %v4350 = vrot.slane %v4344, 1
        %v4351 = vrot.slane %v4344, 2
        %v4352 = vrot.slane %v4344, 3
        %v4353 = vrot.slane %v4344, 4
        %v4354 = vrot.slane %v4344, 5
        %v4355 = vrot.slane %v4344, 6
        %v4356 = vrot.slane %v4344, 7
        %v4365 = vadd.f32 %v4301, %v4344
        %v4366 = vadd.f32 %v4302, %v4350
        %v4367 = vadd.f32 %v4303, %v4351
        %v4368 = vadd.f32 %v4304, %v4352
        %v4369 = vadd.f32 %v4305, %v4353
        %v4370 = vadd.f32 %v4306, %v4354
        %v4371 = vadd.f32 %v4307, %v4355
        %v4372 = vadd.f32 %v4308, %v4356
        %v4373 = vld [vmem:[#allocation5 + $0x5] sm:$0x1]
        %v4374 = vld [vmem:[#allocation5 + $0xd] sm:$0x1]
        %v4375 = vld [vmem:[#allocation5 + $0x15] sm:$0x1]
        %v4376 = vld [vmem:[#allocation5 + $0x1d] sm:$0x1]
        %v4377 = vld [vmem:[#allocation5 + $0x25] sm:$0x1]
        %v4378 = vld [vmem:[#allocation5 + $0x2d] sm:$0x1]
        %v4379 = vld [vmem:[#allocation5 + $0x35] sm:$0x1]
        %v4380 = vld [vmem:[#allocation5 + $0x3d] sm:$0x1]
        %4381 = vmatprep.subr.bf16.mxu0 0
        %4382 = vmatpush1.bf16.msra.mxu0 %v1290
        %4383 = vmatprep.subr.bf16.mxu0 0
        %4384 = vmatpush1.bf16.msra.mxu0 %v1291
        %4385 = vmatprep.subr.bf16.mxu0 0
        %4386 = vmatpush1.bf16.msra.mxu0 0
        %4387 = vmatprep.subr.bf16.mxu0 0
        %4388 = vmatpush1.bf16.msra.mxu0 0
        %4389 = vmatprep.subr.bf16.mxu0 0
        %4390 = vmatpush1.bf16.msra.mxu0 0
        %4391 = vmatprep.subr.bf16.mxu0 0
        %4392 = vmatpush1.bf16.msra.mxu0 0
        %4393 = vmatprep.subr.bf16.mxu0 0
        %4394 = vmatpush1.bf16.msra.mxu0 0
        %4395 = vmatprep.subr.bf16.mxu0 0
        %4396 = vmatpush1.bf16.msra.mxu0 0
        %4397 = vmatprep.subr.bf16.mxu0 0
        %4398 = vmatpush1.bf16.msra.mxu0 0
        %4399 = vmatprep.subr.bf16.mxu0 0
        %4400 = vmatpush1.bf16.msra.mxu0 0
        %4401 = vmatprep.subr.bf16.mxu0 0
        %4402 = vmatpush1.bf16.msra.mxu0 0
        %4403 = vmatprep.subr.bf16.mxu0 0
        %4404 = vmatpush1.bf16.msra.mxu0 0
        %4405 = vmatprep.subr.bf16.mxu0 0
        %4406 = vmatpush1.bf16.msra.mxu0 0
        %4407 = vmatprep.subr.bf16.mxu0 0
        %4408 = vmatpush1.bf16.msra.mxu0 0
        %4409 = vmatprep.subr.bf16.mxu0 0
        %4410 = vmatpush1.bf16.msra.mxu0 0
        %4411 = vmatprep.subr.bf16.mxu0 0
        %4412 = vmatpush1.bf16.msra.mxu0 0
        %4413 = vmatprep.mubr.bf16.mxu0 0
        %4414 = vmatmul.mubr.bf16.gmra.mrb[0].mxu0 %v4163
        %v4415 = vpop.f32.mrb[0].mxu0
        %v4416 = vadd.f32 0.0, %v4415
        %v4417 = vpop.f32.mrb[0].mxu0
        %v4418 = vpop.f32.mrb[0].mxu0
        %v4419 = vpop.f32.mrb[0].mxu0
        %4420 = vdwg.mxu0
        %v4422 = vrot.slane %v4416, 1
        %v4423 = vrot.slane %v4416, 2
        %v4424 = vrot.slane %v4416, 3
        %v4425 = vrot.slane %v4416, 4
        %v4426 = vrot.slane %v4416, 5
        %v4427 = vrot.slane %v4416, 6
        %v4428 = vrot.slane %v4416, 7
        %v4437 = vadd.f32 %v4373, %v4416
        %v4438 = vadd.f32 %v4374, %v4422
        %v4439 = vadd.f32 %v4375, %v4423
        %v4440 = vadd.f32 %v4376, %v4424
        %v4441 = vadd.f32 %v4377, %v4425
        %v4442 = vadd.f32 %v4378, %v4426
        %v4443 = vadd.f32 %v4379, %v4427
        %v4444 = vadd.f32 %v4380, %v4428
        %v4445 = vxor.u32 %v4221, 2147483648
        %v4446 = vxor.u32 %v4222, 2147483648
        %v4447 = vxor.u32 %v4223, 2147483648
        %v4448 = vxor.u32 %v4224, 2147483648
        %v4449 = vxor.u32 %v4225, 2147483648
        %v4450 = vxor.u32 %v4226, 2147483648
        %v4451 = vxor.u32 %v4227, 2147483648
        %v4452 = vxor.u32 %v4228, 2147483648
        %v4453 = vmul.f32 %v4445, 1.442695
        %v4454 = vpow.pop %v4453
        %v4455 = vmul.f32 %v4446, 1.442695
        %v4456 = vpow.pop %v4455
        %v4457 = vmul.f32 %v4447, 1.442695
        %v4458 = vpow.pop %v4457
        %v4459 = vmul.f32 %v4448, 1.442695
        %v4460 = vpow.pop %v4459
        %v4461 = vmul.f32 %v4449, 1.442695
        %v4462 = vpow.pop %v4461
        %v4463 = vmul.f32 %v4450, 1.442695
        %v4464 = vpow.pop %v4463
        %v4465 = vmul.f32 %v4451, 1.442695
        %v4466 = vpow.pop %v4465
        %v4467 = vmul.f32 %v4452, 1.442695
        %v4468 = vpow.pop %v4467
        %v4469 = vadd.f32 %v4454, 1.0
        %v4470 = vadd.f32 %v4456, 1.0
        %v4471 = vadd.f32 %v4458, 1.0
        %v4472 = vadd.f32 %v4460, 1.0
        %v4473 = vadd.f32 %v4462, 1.0
        %v4474 = vadd.f32 %v4464, 1.0
        %v4475 = vadd.f32 %v4466, 1.0
        %v4476 = vadd.f32 %v4468, 1.0
        %v4477 = vrcp.pop %v4469
        %v4478 = vmul.f32 1.0, %v4477
        %v4479 = vrcp.pop %v4470
        %v4480 = vmul.f32 1.0, %v4479
        %v4481 = vrcp.pop %v4471
        %v4482 = vmul.f32 1.0, %v4481
        %v4483 = vrcp.pop %v4472
        %v4484 = vmul.f32 1.0, %v4483
        %v4485 = vrcp.pop %v4473
        %v4486 = vmul.f32 1.0, %v4485
        %v4487 = vrcp.pop %v4474
        %v4488 = vmul.f32 1.0, %v4487
        %v4489 = vrcp.pop %v4475
        %v4490 = vmul.f32 1.0, %v4489
        %v4491 = vrcp.pop %v4476
        %v4492 = vmul.f32 1.0, %v4491
        %v4493 = vxor.u32 %v4293, 2147483648
        %v4494 = vxor.u32 %v4294, 2147483648
        %v4495 = vxor.u32 %v4295, 2147483648
        %v4496 = vxor.u32 %v4296, 2147483648
        %v4497 = vxor.u32 %v4297, 2147483648
        %v4498 = vxor.u32 %v4298, 2147483648
        %v4499 = vxor.u32 %v4299, 2147483648
        %v4500 = vxor.u32 %v4300, 2147483648
        %v4501 = vmul.f32 %v4493, 1.442695
        %v4502 = vpow.pop %v4501
        %v4503 = vmul.f32 %v4494, 1.442695
        %v4504 = vpow.pop %v4503
        %v4505 = vmul.f32 %v4495, 1.442695
        %v4506 = vpow.pop %v4505
        %v4507 = vmul.f32 %v4496, 1.442695
        %v4508 = vpow.pop %v4507
        %v4509 = vmul.f32 %v4497, 1.442695
        %v4510 = vpow.pop %v4509
        %v4511 = vmul.f32 %v4498, 1.442695
        %v4512 = vpow.pop %v4511
        %v4513 = vmul.f32 %v4499, 1.442695
        %v4514 = vpow.pop %v4513
        %v4515 = vmul.f32 %v4500, 1.442695
        %v4516 = vpow.pop %v4515
        %v4517 = vadd.f32 %v4502, 1.0
        %v4518 = vadd.f32 %v4504, 1.0
        %v4519 = vadd.f32 %v4506, 1.0
        %v4520 = vadd.f32 %v4508, 1.0
        %v4521 = vadd.f32 %v4510, 1.0
        %v4522 = vadd.f32 %v4512, 1.0
        %v4523 = vadd.f32 %v4514, 1.0
        %v4524 = vadd.f32 %v4516, 1.0
        %v4525 = vrcp.pop %v4517
        %v4526 = vmul.f32 1.0, %v4525
        %v4527 = vrcp.pop %v4518
        %v4528 = vmul.f32 1.0, %v4527
        %v4529 = vrcp.pop %v4519
        %v4530 = vmul.f32 1.0, %v4529
        %v4531 = vrcp.pop %v4520
        %v4532 = vmul.f32 1.0, %v4531
        %v4533 = vrcp.pop %v4521
        %v4534 = vmul.f32 1.0, %v4533
        %v4535 = vrcp.pop %v4522
        %v4536 = vmul.f32 1.0, %v4535
        %v4537 = vrcp.pop %v4523
        %v4538 = vmul.f32 1.0, %v4537
        %v4539 = vrcp.pop %v4524
        %v4540 = vmul.f32 1.0, %v4539
        %v4541 = vtanh.pop %v4365
        %v4542 = vtanh.pop %v4366
        %v4543 = vtanh.pop %v4367
        %v4544 = vtanh.pop %v4368
        %v4545 = vtanh.pop %v4369
        %v4546 = vtanh.pop %v4370
        %v4547 = vtanh.pop %v4371
        %v4548 = vtanh.pop %v4372
        %v4549 = vxor.u32 %v4437, 2147483648
        %v4550 = vxor.u32 %v4438, 2147483648
        %v4551 = vxor.u32 %v4439, 2147483648
        %v4552 = vxor.u32 %v4440, 2147483648
        %v4553 = vxor.u32 %v4441, 2147483648
        %v4554 = vxor.u32 %v4442, 2147483648
        %v4555 = vxor.u32 %v4443, 2147483648
        %v4556 = vxor.u32 %v4444, 2147483648
        %v4557 = vmul.f32 %v4549, 1.442695
        %v4558 = vpow.pop %v4557
        %v4559 = vmul.f32 %v4550, 1.442695
        %v4560 = vpow.pop %v4559
        %v4561 = vmul.f32 %v4551, 1.442695
        %v4562 = vpow.pop %v4561
        %v4563 = vmul.f32 %v4552, 1.442695
        %v4564 = vpow.pop %v4563
        %v4565 = vmul.f32 %v4553, 1.442695
        %v4566 = vpow.pop %v4565
        %v4567 = vmul.f32 %v4554, 1.442695
        %v4568 = vpow.pop %v4567
        %v4569 = vmul.f32 %v4555, 1.442695
        %v4570 = vpow.pop %v4569
        %v4571 = vmul.f32 %v4556, 1.442695
        %v4572 = vpow.pop %v4571
        %v4573 = vadd.f32 %v4558, 1.0
        %v4574 = vadd.f32 %v4560, 1.0
        %v4575 = vadd.f32 %v4562, 1.0
        %v4576 = vadd.f32 %v4564, 1.0
        %v4577 = vadd.f32 %v4566, 1.0
        %v4578 = vadd.f32 %v4568, 1.0
        %v4579 = vadd.f32 %v4570, 1.0
        %v4580 = vadd.f32 %v4572, 1.0
        %v4581 = vrcp.pop %v4573
        %v4582 = vmul.f32 1.0, %v4581
        %v4583 = vrcp.pop %v4574
        %v4584 = vmul.f32 1.0, %v4583
        %v4585 = vrcp.pop %v4575
        %v4586 = vmul.f32 1.0, %v4585
        %v4587 = vrcp.pop %v4576
        %v4588 = vmul.f32 1.0, %v4587
        %v4589 = vrcp.pop %v4577
        %v4590 = vmul.f32 1.0, %v4589
        %v4591 = vrcp.pop %v4578
        %v4592 = vmul.f32 1.0, %v4591
        %v4593 = vrcp.pop %v4579
        %v4594 = vmul.f32 1.0, %v4593
        %v4595 = vrcp.pop %v4580
        %v4596 = vmul.f32 1.0, %v4595
        %v4598 = vrot.slane %v4151, 1
        %v4599 = vrot.slane %v4151, 2
        %v4600 = vrot.slane %v4151, 3
        %v4601 = vrot.slane %v4151, 4
        %v4602 = vrot.slane %v4151, 5
        %v4603 = vrot.slane %v4151, 6
        %v4604 = vrot.slane %v4151, 7
        %v4613 = vmul.f32 %v4526, %v4151
        %v4614 = vmul.f32 %v4528, %v4598
        %v4615 = vmul.f32 %v4530, %v4599
        %v4616 = vmul.f32 %v4532, %v4600
        %v4617 = vmul.f32 %v4534, %v4601
        %v4618 = vmul.f32 %v4536, %v4602
        %v4619 = vmul.f32 %v4538, %v4603
        %v4620 = vmul.f32 %v4540, %v4604
        %v4621 = vmul.f32 %v4478, %v4541
        %v4622 = vmul.f32 %v4480, %v4542
        %v4623 = vmul.f32 %v4482, %v4543
        %v4624 = vmul.f32 %v4484, %v4544
        %v4625 = vmul.f32 %v4486, %v4545
        %v4626 = vmul.f32 %v4488, %v4546
        %v4627 = vmul.f32 %v4490, %v4547
        %v4628 = vmul.f32 %v4492, %v4548
        %v4629 = vadd.f32 %v4613, %v4621
        %v4630 = vadd.f32 %v4614, %v4622
        %v4631 = vadd.f32 %v4615, %v4623
        %v4632 = vadd.f32 %v4616, %v4624
        %v4633 = vadd.f32 %v4617, %v4625
        %v4634 = vadd.f32 %v4618, %v4626
        %v4635 = vadd.f32 %v4619, %v4627
        %v4636 = vadd.f32 %v4620, %v4628
        %v4637 = vtanh.pop %v4629
        %v4638 = vtanh.pop %v4630
        %v4639 = vtanh.pop %v4631
        %v4640 = vtanh.pop %v4632
        %v4641 = vtanh.pop %v4633
        %v4642 = vtanh.pop %v4634
        %v4643 = vtanh.pop %v4635
        %v4644 = vtanh.pop %v4636
        %v4645 = vmul.f32 %v4582, %v4637
        %v4646 = vmul.f32 %v4584, %v4638
        %v4647 = vmul.f32 %v4586, %v4639
        %v4648 = vmul.f32 %v4588, %v4640
        %v4649 = vmul.f32 %v4590, %v4641
        %v4650 = vmul.f32 %v4592, %v4642
        %v4651 = vmul.f32 %v4594, %v4643
        %v4652 = vmul.f32 %v4596, %v4644
        %4653 = vset.pattern.permute.xlu0 5
        %4654 = vperm.xlu0 %4653, %v1550
        %v4655 = vpop.permute.xlu0 %4654
        %vm4656 = vcmp.eq.s32.totalorder %v4655, 1
        %v4665 = vrot.slane %v4646, 7
        %v4666 = vsel %vm1564, %v4665, %v4645
        %v4667 = vrot.slane %v4647, 6
        %v4668 = vsel %vm1567, %v4667, %v4666
        %v4669 = vrot.slane %v4648, 5
        %v4670 = vsel %vm1570, %v4669, %v4668
        %v4671 = vrot.slane %v4649, 4
        %v4672 = vsel %vm1573, %v4671, %v4670
        %v4673 = vrot.slane %v4650, 3
        %v4674 = vsel %vm1576, %v4673, %v4672
        %v4675 = vrot.slane %v4651, 2
        %v4676 = vsel %vm1579, %v4675, %v4674
        %v4677 = vrot.slane %v4652, 1
        %v4678 = vsel %vm1582, %v4677, %v4676
        %v4680 = vsel %vm4656, %v4678, 0.0
        %v4682 = vcombine.high %v4680, %v4680
        %v4684 = vunpack.c.l.s4 1966171168
        %v4685 = vunpack.c.0.s8 %v4684
        %v4686 = vlaneseq
        %v4687 = vshrl.u32 %v4686, 7
        %v4688 = vsub.s32 %v4685, %v4687
        %v4689 = vrot.slane %v4680, %v4688
        %v4691 = vunpack.c.l.s4 1966171168
        %v4692 = vunpack.c.0.s8 %v4691
        %v4693 = vlaneseq
        %v4694 = vshrl.u32 %v4693, 7
        %v4695 = vsub.s32 %v4692, %v4694
        %v4696 = vrot.slane %v4682, %v4695
        %v4697 = vcombine.high %v4689, %v4689
        %v4698 = vcombine.high %v4696, %v4696
        %v4700 = vunpack.c.l.s4 1966171168
        %v4701 = vunpack.c.0.s8 %v4700
        %v4702 = vlaneseq
        %v4703 = vshrl.u32 %v4702, 7
        %v4704 = vsub.s32 %v4701, %v4703
        %v4705 = vrot.slane %v4689, %v4704
        %v4707 = vunpack.c.l.s4 1966171168
        %v4708 = vunpack.c.0.s8 %v4707
        %v4709 = vlaneseq
        %v4710 = vshrl.u32 %v4709, 7
        %v4711 = vsub.s32 %v4708, %v4710
        %v4712 = vrot.slane %v4696, %v4711
        %v4714 = vunpack.c.l.s4 1966171168
        %v4715 = vunpack.c.0.s8 %v4714
        %v4716 = vlaneseq
        %v4717 = vshrl.u32 %v4716, 7
        %v4718 = vsub.s32 %v4715, %v4717
        %v4719 = vrot.slane %v4697, %v4718
        %v4721 = vunpack.c.l.s4 1966171168
        %v4722 = vunpack.c.0.s8 %v4721
        %v4723 = vlaneseq
        %v4724 = vshrl.u32 %v4723, 7
        %v4725 = vsub.s32 %v4722, %v4724
        %v4726 = vrot.slane %v4698, %v4725
        %v4727 = vcombine.high %v4705, %v4705
        %v4728 = vcombine.high %v4712, %v4712
        %v4729 = vcombine.high %v4719, %v4719
        %v4730 = vcombine.high %v4726, %v4726
        %4739 = vst.msk [vmem:[#allocation6 + $0x5] sm:$0x1] %vm1644, %v4705
        %4740 = vst.msk [vmem:[#allocation6 + $0xd] sm:$0x1] %vm1644, %v4719
        %4741 = vst.msk [vmem:[#allocation6 + $0x15] sm:$0x1] %vm1644, %v4727
        %4742 = vst.msk [vmem:[#allocation6 + $0x1d] sm:$0x1] %vm1644, %v4729
        %4743 = vst.msk [vmem:[#allocation6 + $0x25] sm:$0x1] %vm1644, %v4712
        %4744 = vst.msk [vmem:[#allocation6 + $0x2d] sm:$0x1] %vm1644, %v4726
        %4745 = vst.msk [vmem:[#allocation6 + $0x35] sm:$0x1] %vm1644, %v4728
        %4746 = vst.msk [vmem:[#allocation6 + $0x3d] sm:$0x1] %vm1644, %v4730
        %v4755 = vrot.slane %v4630, 7
        %v4756 = vsel %vm1564, %v4755, %v4629
        %v4757 = vrot.slane %v4631, 6
        %v4758 = vsel %vm1567, %v4757, %v4756
        %v4759 = vrot.slane %v4632, 5
        %v4760 = vsel %vm1570, %v4759, %v4758
        %v4761 = vrot.slane %v4633, 4
        %v4762 = vsel %vm1573, %v4761, %v4760
        %v4763 = vrot.slane %v4634, 3
        %v4764 = vsel %vm1576, %v4763, %v4762
        %v4765 = vrot.slane %v4635, 2
        %v4766 = vsel %vm1579, %v4765, %v4764
        %v4767 = vrot.slane %v4636, 1
        %v4768 = vsel %vm1582, %v4767, %v4766
        %v4770 = vsel %vm4656, %v4768, %v4151
        %v4771 = vsel %vm4656, %v4678, %v4152
        %v4772 = vpack.c.bf16 %v4771, %v4771
        %v4773 = vld [vmem:[#allocation2 + $0x6] sm:$0x1]
        %v4774 = vld [vmem:[#allocation2 + $0xe] sm:$0x1]
        %v4775 = vld [vmem:[#allocation2 + $0x16] sm:$0x1]
        %v4776 = vld [vmem:[#allocation2 + $0x1e] sm:$0x1]
        %v4777 = vld [vmem:[#allocation2 + $0x26] sm:$0x1]
        %v4778 = vld [vmem:[#allocation2 + $0x2e] sm:$0x1]
        %v4779 = vld [vmem:[#allocation2 + $0x36] sm:$0x1]
        %v4780 = vld [vmem:[#allocation2 + $0x3e] sm:$0x1]
        %v4782 = vsel %vm618, %v4772, 0
        %4784 = vmatprep.subr.bf16.mxu0 0
        %4785 = vmatpush1.bf16.msra.mxu0 %v1035
        %4786 = vmatprep.subr.bf16.mxu0 0
        %4787 = vmatpush1.bf16.msra.mxu0 %v1036
        %4788 = vmatprep.subr.bf16.mxu0 0
        %4789 = vmatpush1.bf16.msra.mxu0 0
        %4790 = vmatprep.subr.bf16.mxu0 0
        %4791 = vmatpush1.bf16.msra.mxu0 0
        %4792 = vmatprep.subr.bf16.mxu0 0
        %4793 = vmatpush1.bf16.msra.mxu0 0
        %4794 = vmatprep.subr.bf16.mxu0 0
        %4795 = vmatpush1.bf16.msra.mxu0 0
        %4796 = vmatprep.subr.bf16.mxu0 0
        %4797 = vmatpush1.bf16.msra.mxu0 0
        %4798 = vmatprep.subr.bf16.mxu0 0
        %4799 = vmatpush1.bf16.msra.mxu0 0
        %4800 = vmatprep.subr.bf16.mxu0 0
        %4801 = vmatpush1.bf16.msra.mxu0 0
        %4802 = vmatprep.subr.bf16.mxu0 0
        %4803 = vmatpush1.bf16.msra.mxu0 0
        %4804 = vmatprep.subr.bf16.mxu0 0
        %4805 = vmatpush1.bf16.msra.mxu0 0
        %4806 = vmatprep.subr.bf16.mxu0 0
        %4807 = vmatpush1.bf16.msra.mxu0 0
        %4808 = vmatprep.subr.bf16.mxu0 0
        %4809 = vmatpush1.bf16.msra.mxu0 0
        %4810 = vmatprep.subr.bf16.mxu0 0
        %4811 = vmatpush1.bf16.msra.mxu0 0
        %4812 = vmatprep.subr.bf16.mxu0 0
        %4813 = vmatpush1.bf16.msra.mxu0 0
        %4814 = vmatprep.subr.bf16.mxu0 0
        %4815 = vmatpush1.bf16.msra.mxu0 0
        %4816 = vmatprep.mubr.bf16.mxu0 0
        %4817 = vmatmul.mubr.bf16.gmra.mrb[0].mxu0 %v4782
        %v4818 = vpop.f32.mrb[0].mxu0
        %v4819 = vadd.f32 0.0, %v4818
        %v4820 = vpop.f32.mrb[0].mxu0
        %v4821 = vpop.f32.mrb[0].mxu0
        %v4822 = vpop.f32.mrb[0].mxu0
        %4823 = vdwg.mxu0
        %v4825 = vrot.slane %v4819, 1
        %v4826 = vrot.slane %v4819, 2
        %v4827 = vrot.slane %v4819, 3
        %v4828 = vrot.slane %v4819, 4
        %v4829 = vrot.slane %v4819, 5
        %v4830 = vrot.slane %v4819, 6
        %v4831 = vrot.slane %v4819, 7
        %v4840 = vadd.f32 %v4773, %v4819
        %v4841 = vadd.f32 %v4774, %v4825
        %v4842 = vadd.f32 %v4775, %v4826
        %v4843 = vadd.f32 %v4776, %v4827
        %v4844 = vadd.f32 %v4777, %v4828
        %v4845 = vadd.f32 %v4778, %v4829
        %v4846 = vadd.f32 %v4779, %v4830
        %v4847 = vadd.f32 %v4780, %v4831
        %v4848 = vld [vmem:[#allocation3 + $0x6] sm:$0x1]
        %v4849 = vld [vmem:[#allocation3 + $0xe] sm:$0x1]
        %v4850 = vld [vmem:[#allocation3 + $0x16] sm:$0x1]
        %v4851 = vld [vmem:[#allocation3 + $0x1e] sm:$0x1]
        %v4852 = vld [vmem:[#allocation3 + $0x26] sm:$0x1]
        %v4853 = vld [vmem:[#allocation3 + $0x2e] sm:$0x1]
        %v4854 = vld [vmem:[#allocation3 + $0x36] sm:$0x1]
        %v4855 = vld [vmem:[#allocation3 + $0x3e] sm:$0x1]
        %4856 = vmatprep.subr.bf16.mxu0 0
        %4857 = vmatpush1.bf16.msra.mxu0 %v1122
        %4858 = vmatprep.subr.bf16.mxu0 0
        %4859 = vmatpush1.bf16.msra.mxu0 %v1123
        %4860 = vmatprep.subr.bf16.mxu0 0
        %4861 = vmatpush1.bf16.msra.mxu0 0
        %4862 = vmatprep.subr.bf16.mxu0 0
        %4863 = vmatpush1.bf16.msra.mxu0 0
        %4864 = vmatprep.subr.bf16.mxu0 0
        %4865 = vmatpush1.bf16.msra.mxu0 0
        %4866 = vmatprep.subr.bf16.mxu0 0
        %4867 = vmatpush1.bf16.msra.mxu0 0
        %4868 = vmatprep.subr.bf16.mxu0 0
        %4869 = vmatpush1.bf16.msra.mxu0 0
        %4870 = vmatprep.subr.bf16.mxu0 0
        %4871 = vmatpush1.bf16.msra.mxu0 0
        %4872 = vmatprep.subr.bf16.mxu0 0
        %4873 = vmatpush1.bf16.msra.mxu0 0
        %4874 = vmatprep.subr.bf16.mxu0 0
        %4875 = vmatpush1.bf16.msra.mxu0 0
        %4876 = vmatprep.subr.bf16.mxu0 0
        %4877 = vmatpush1.bf16.msra.mxu0 0
        %4878 = vmatprep.subr.bf16.mxu0 0
        %4879 = vmatpush1.bf16.msra.mxu0 0
        %4880 = vmatprep.subr.bf16.mxu0 0
        %4881 = vmatpush1.bf16.msra.mxu0 0
        %4882 = vmatprep.subr.bf16.mxu0 0
        %4883 = vmatpush1.bf16.msra.mxu0 0
        %4884 = vmatprep.subr.bf16.mxu0 0
        %4885 = vmatpush1.bf16.msra.mxu0 0
        %4886 = vmatprep.subr.bf16.mxu0 0
        %4887 = vmatpush1.bf16.msra.mxu0 0
        %4888 = vmatprep.mubr.bf16.mxu0 0
        %4889 = vmatmul.mubr.bf16.gmra.mrb[0].mxu0 %v4782
        %v4890 = vpop.f32.mrb[0].mxu0
        %v4891 = vadd.f32 0.0, %v4890
        %v4892 = vpop.f32.mrb[0].mxu0
        %v4893 = vpop.f32.mrb[0].mxu0
        %v4894 = vpop.f32.mrb[0].mxu0
        %4895 = vdwg.mxu0
        %v4897 = vrot.slane %v4891, 1
        %v4898 = vrot.slane %v4891, 2
        %v4899 = vrot.slane %v4891, 3
        %v4900 = vrot.slane %v4891, 4
        %v4901 = vrot.slane %v4891, 5
        %v4902 = vrot.slane %v4891, 6
        %v4903 = vrot.slane %v4891, 7
        %v4912 = vadd.f32 %v4848, %v4891
        %v4913 = vadd.f32 %v4849, %v4897
        %v4914 = vadd.f32 %v4850, %v4898
        %v4915 = vadd.f32 %v4851, %v4899
        %v4916 = vadd.f32 %v4852, %v4900
        %v4917 = vadd.f32 %v4853, %v4901
        %v4918 = vadd.f32 %v4854, %v4902
        %v4919 = vadd.f32 %v4855, %v4903
        %v4920 = vld [vmem:[#allocation4 + $0x6] sm:$0x1]
        %v4921 = vld [vmem:[#allocation4 + $0xe] sm:$0x1]
        %v4922 = vld [vmem:[#allocation4 + $0x16] sm:$0x1]
        %v4923 = vld [vmem:[#allocation4 + $0x1e] sm:$0x1]
        %v4924 = vld [vmem:[#allocation4 + $0x26] sm:$0x1]
        %v4925 = vld [vmem:[#allocation4 + $0x2e] sm:$0x1]
        %v4926 = vld [vmem:[#allocation4 + $0x36] sm:$0x1]
        %v4927 = vld [vmem:[#allocation4 + $0x3e] sm:$0x1]
        %4928 = vmatprep.subr.bf16.mxu0 0
        %4929 = vmatpush1.bf16.msra.mxu0 %v1206
        %4930 = vmatprep.subr.bf16.mxu0 0
        %4931 = vmatpush1.bf16.msra.mxu0 %v1207
        %4932 = vmatprep.subr.bf16.mxu0 0
        %4933 = vmatpush1.bf16.msra.mxu0 0
        %4934 = vmatprep.subr.bf16.mxu0 0
        %4935 = vmatpush1.bf16.msra.mxu0 0
        %4936 = vmatprep.subr.bf16.mxu0 0
        %4937 = vmatpush1.bf16.msra.mxu0 0
        %4938 = vmatprep.subr.bf16.mxu0 0
        %4939 = vmatpush1.bf16.msra.mxu0 0
        %4940 = vmatprep.subr.bf16.mxu0 0
        %4941 = vmatpush1.bf16.msra.mxu0 0
        %4942 = vmatprep.subr.bf16.mxu0 0
        %4943 = vmatpush1.bf16.msra.mxu0 0
        %4944 = vmatprep.subr.bf16.mxu0 0
        %4945 = vmatpush1.bf16.msra.mxu0 0
        %4946 = vmatprep.subr.bf16.mxu0 0
        %4947 = vmatpush1.bf16.msra.mxu0 0
        %4948 = vmatprep.subr.bf16.mxu0 0
        %4949 = vmatpush1.bf16.msra.mxu0 0
        %4950 = vmatprep.subr.bf16.mxu0 0
        %4951 = vmatpush1.bf16.msra.mxu0 0
        %4952 = vmatprep.subr.bf16.mxu0 0
        %4953 = vmatpush1.bf16.msra.mxu0 0
        %4954 = vmatprep.subr.bf16.mxu0 0
        %4955 = vmatpush1.bf16.msra.mxu0 0
        %4956 = vmatprep.subr.bf16.mxu0 0
        %4957 = vmatpush1.bf16.msra.mxu0 0
        %4958 = vmatprep.subr.bf16.mxu0 0
        %4959 = vmatpush1.bf16.msra.mxu0 0
        %4960 = vmatprep.mubr.bf16.mxu0 0
        %4961 = vmatmul.mubr.bf16.gmra.mrb[0].mxu0 %v4782
        %v4962 = vpop.f32.mrb[0].mxu0
        %v4963 = vadd.f32 0.0, %v4962
        %v4964 = vpop.f32.mrb[0].mxu0
        %v4965 = vpop.f32.mrb[0].mxu0
        %v4966 = vpop.f32.mrb[0].mxu0
        %4967 = vdwg.mxu0
        %v4969 = vrot.slane %v4963, 1
        %v4970 = vrot.slane %v4963, 2
        %v4971 = vrot.slane %v4963, 3
        %v4972 = vrot.slane %v4963, 4
        %v4973 = vrot.slane %v4963, 5
        %v4974 = vrot.slane %v4963, 6
        %v4975 = vrot.slane %v4963, 7
        %v4984 = vadd.f32 %v4920, %v4963
        %v4985 = vadd.f32 %v4921, %v4969
        %v4986 = vadd.f32 %v4922, %v4970
        %v4987 = vadd.f32 %v4923, %v4971
        %v4988 = vadd.f32 %v4924, %v4972
        %v4989 = vadd.f32 %v4925, %v4973
        %v4990 = vadd.f32 %v4926, %v4974
        %v4991 = vadd.f32 %v4927, %v4975
        %v4992 = vld [vmem:[#allocation5 + $0x6] sm:$0x1]
        %v4993 = vld [vmem:[#allocation5 + $0xe] sm:$0x1]
        %v4994 = vld [vmem:[#allocation5 + $0x16] sm:$0x1]
        %v4995 = vld [vmem:[#allocation5 + $0x1e] sm:$0x1]
        %v4996 = vld [vmem:[#allocation5 + $0x26] sm:$0x1]
        %v4997 = vld [vmem:[#allocation5 + $0x2e] sm:$0x1]
        %v4998 = vld [vmem:[#allocation5 + $0x36] sm:$0x1]
        %v4999 = vld [vmem:[#allocation5 + $0x3e] sm:$0x1]
        %5000 = vmatprep.subr.bf16.mxu0 0
        %5001 = vmatpush1.bf16.msra.mxu0 %v1290
        %5002 = vmatprep.subr.bf16.mxu0 0
        %5003 = vmatpush1.bf16.msra.mxu0 %v1291
        %5004 = vmatprep.subr.bf16.mxu0 0
        %5005 = vmatpush1.bf16.msra.mxu0 0
        %5006 = vmatprep.subr.bf16.mxu0 0
        %5007 = vmatpush1.bf16.msra.mxu0 0
        %5008 = vmatprep.subr.bf16.mxu0 0
        %5009 = vmatpush1.bf16.msra.mxu0 0
        %5010 = vmatprep.subr.bf16.mxu0 0
        %5011 = vmatpush1.bf16.msra.mxu0 0
        %5012 = vmatprep.subr.bf16.mxu0 0
        %5013 = vmatpush1.bf16.msra.mxu0 0
        %5014 = vmatprep.subr.bf16.mxu0 0
        %5015 = vmatpush1.bf16.msra.mxu0 0
        %5016 = vmatprep.subr.bf16.mxu0 0
        %5017 = vmatpush1.bf16.msra.mxu0 0
        %5018 = vmatprep.subr.bf16.mxu0 0
        %5019 = vmatpush1.bf16.msra.mxu0 0
        %5020 = vmatprep.subr.bf16.mxu0 0
        %5021 = vmatpush1.bf16.msra.mxu0 0
        %5022 = vmatprep.subr.bf16.mxu0 0
        %5023 = vmatpush1.bf16.msra.mxu0 0
        %5024 = vmatprep.subr.bf16.mxu0 0
        %5025 = vmatpush1.bf16.msra.mxu0 0
        %5026 = vmatprep.subr.bf16.mxu0 0
        %5027 = vmatpush1.bf16.msra.mxu0 0
        %5028 = vmatprep.subr.bf16.mxu0 0
        %5029 = vmatpush1.bf16.msra.mxu0 0
        %5030 = vmatprep.subr.bf16.mxu0 0
        %5031 = vmatpush1.bf16.msra.mxu0 0
        %5032 = vmatprep.mubr.bf16.mxu0 0
        %5033 = vmatmul.mubr.bf16.gmra.mrb[0].mxu0 %v4782
        %v5034 = vpop.f32.mrb[0].mxu0
        %v5035 = vadd.f32 0.0, %v5034
        %v5036 = vpop.f32.mrb[0].mxu0
        %v5037 = vpop.f32.mrb[0].mxu0
        %v5038 = vpop.f32.mrb[0].mxu0
        %5039 = vdwg.mxu0
        %v5041 = vrot.slane %v5035, 1
        %v5042 = vrot.slane %v5035, 2
        %v5043 = vrot.slane %v5035, 3
        %v5044 = vrot.slane %v5035, 4
        %v5045 = vrot.slane %v5035, 5
        %v5046 = vrot.slane %v5035, 6
        %v5047 = vrot.slane %v5035, 7
        %v5056 = vadd.f32 %v4992, %v5035
        %v5057 = vadd.f32 %v4993, %v5041
        %v5058 = vadd.f32 %v4994, %v5042
        %v5059 = vadd.f32 %v4995, %v5043
        %v5060 = vadd.f32 %v4996, %v5044
        %v5061 = vadd.f32 %v4997, %v5045
        %v5062 = vadd.f32 %v4998, %v5046
        %v5063 = vadd.f32 %v4999, %v5047
        %v5064 = vxor.u32 %v4840, 2147483648
        %v5065 = vxor.u32 %v4841, 2147483648
        %v5066 = vxor.u32 %v4842, 2147483648
        %v5067 = vxor.u32 %v4843, 2147483648
        %v5068 = vxor.u32 %v4844, 2147483648
        %v5069 = vxor.u32 %v4845, 2147483648
        %v5070 = vxor.u32 %v4846, 2147483648
        %v5071 = vxor.u32 %v4847, 2147483648
        %v5072 = vmul.f32 %v5064, 1.442695
        %v5073 = vpow.pop %v5072
        %v5074 = vmul.f32 %v5065, 1.442695
        %v5075 = vpow.pop %v5074
        %v5076 = vmul.f32 %v5066, 1.442695
        %v5077 = vpow.pop %v5076
        %v5078 = vmul.f32 %v5067, 1.442695
        %v5079 = vpow.pop %v5078
        %v5080 = vmul.f32 %v5068, 1.442695
        %v5081 = vpow.pop %v5080
        %v5082 = vmul.f32 %v5069, 1.442695
        %v5083 = vpow.pop %v5082
        %v5084 = vmul.f32 %v5070, 1.442695
        %v5085 = vpow.pop %v5084
        %v5086 = vmul.f32 %v5071, 1.442695
        %v5087 = vpow.pop %v5086
        %v5088 = vadd.f32 %v5073, 1.0
        %v5089 = vadd.f32 %v5075, 1.0
        %v5090 = vadd.f32 %v5077, 1.0
        %v5091 = vadd.f32 %v5079, 1.0
        %v5092 = vadd.f32 %v5081, 1.0
        %v5093 = vadd.f32 %v5083, 1.0
        %v5094 = vadd.f32 %v5085, 1.0
        %v5095 = vadd.f32 %v5087, 1.0
        %v5096 = vrcp.pop %v5088
        %v5097 = vmul.f32 1.0, %v5096
        %v5098 = vrcp.pop %v5089
        %v5099 = vmul.f32 1.0, %v5098
        %v5100 = vrcp.pop %v5090
        %v5101 = vmul.f32 1.0, %v5100
        %v5102 = vrcp.pop %v5091
        %v5103 = vmul.f32 1.0, %v5102
        %v5104 = vrcp.pop %v5092
        %v5105 = vmul.f32 1.0, %v5104
        %v5106 = vrcp.pop %v5093
        %v5107 = vmul.f32 1.0, %v5106
        %v5108 = vrcp.pop %v5094
        %v5109 = vmul.f32 1.0, %v5108
        %v5110 = vrcp.pop %v5095
        %v5111 = vmul.f32 1.0, %v5110
        %v5112 = vxor.u32 %v4912, 2147483648
        %v5113 = vxor.u32 %v4913, 2147483648
        %v5114 = vxor.u32 %v4914, 2147483648
        %v5115 = vxor.u32 %v4915, 2147483648
        %v5116 = vxor.u32 %v4916, 2147483648
        %v5117 = vxor.u32 %v4917, 2147483648
        %v5118 = vxor.u32 %v4918, 2147483648
        %v5119 = vxor.u32 %v4919, 2147483648
        %v5120 = vmul.f32 %v5112, 1.442695
        %v5121 = vpow.pop %v5120
        %v5122 = vmul.f32 %v5113, 1.442695
        %v5123 = vpow.pop %v5122
        %v5124 = vmul.f32 %v5114, 1.442695
        %v5125 = vpow.pop %v5124
        %v5126 = vmul.f32 %v5115, 1.442695
        %v5127 = vpow.pop %v5126
        %v5128 = vmul.f32 %v5116, 1.442695
        %v5129 = vpow.pop %v5128
        %v5130 = vmul.f32 %v5117, 1.442695
        %v5131 = vpow.pop %v5130
        %v5132 = vmul.f32 %v5118, 1.442695
        %v5133 = vpow.pop %v5132
        %v5134 = vmul.f32 %v5119, 1.442695
        %v5135 = vpow.pop %v5134
        %v5136 = vadd.f32 %v5121, 1.0
        %v5137 = vadd.f32 %v5123, 1.0
        %v5138 = vadd.f32 %v5125, 1.0
        %v5139 = vadd.f32 %v5127, 1.0
        %v5140 = vadd.f32 %v5129, 1.0
        %v5141 = vadd.f32 %v5131, 1.0
        %v5142 = vadd.f32 %v5133, 1.0
        %v5143 = vadd.f32 %v5135, 1.0
        %v5144 = vrcp.pop %v5136
        %v5145 = vmul.f32 1.0, %v5144
        %v5146 = vrcp.pop %v5137
        %v5147 = vmul.f32 1.0, %v5146
        %v5148 = vrcp.pop %v5138
        %v5149 = vmul.f32 1.0, %v5148
        %v5150 = vrcp.pop %v5139
        %v5151 = vmul.f32 1.0, %v5150
        %v5152 = vrcp.pop %v5140
        %v5153 = vmul.f32 1.0, %v5152
        %v5154 = vrcp.pop %v5141
        %v5155 = vmul.f32 1.0, %v5154
        %v5156 = vrcp.pop %v5142
        %v5157 = vmul.f32 1.0, %v5156
        %v5158 = vrcp.pop %v5143
        %v5159 = vmul.f32 1.0, %v5158
        %v5160 = vtanh.pop %v4984
        %v5161 = vtanh.pop %v4985
        %v5162 = vtanh.pop %v4986
        %v5163 = vtanh.pop %v4987
        %v5164 = vtanh.pop %v4988
        %v5165 = vtanh.pop %v4989
        %v5166 = vtanh.pop %v4990
        %v5167 = vtanh.pop %v4991
        %v5168 = vxor.u32 %v5056, 2147483648
        %v5169 = vxor.u32 %v5057, 2147483648
        %v5170 = vxor.u32 %v5058, 2147483648
        %v5171 = vxor.u32 %v5059, 2147483648
        %v5172 = vxor.u32 %v5060, 2147483648
        %v5173 = vxor.u32 %v5061, 2147483648
        %v5174 = vxor.u32 %v5062, 2147483648
        %v5175 = vxor.u32 %v5063, 2147483648
        %v5176 = vmul.f32 %v5168, 1.442695
        %v5177 = vpow.pop %v5176
        %v5178 = vmul.f32 %v5169, 1.442695
        %v5179 = vpow.pop %v5178
        %v5180 = vmul.f32 %v5170, 1.442695
        %v5181 = vpow.pop %v5180
        %v5182 = vmul.f32 %v5171, 1.442695
        %v5183 = vpow.pop %v5182
        %v5184 = vmul.f32 %v5172, 1.442695
        %v5185 = vpow.pop %v5184
        %v5186 = vmul.f32 %v5173, 1.442695
        %v5187 = vpow.pop %v5186
        %v5188 = vmul.f32 %v5174, 1.442695
        %v5189 = vpow.pop %v5188
        %v5190 = vmul.f32 %v5175, 1.442695
        %v5191 = vpow.pop %v5190
        %v5192 = vadd.f32 %v5177, 1.0
        %v5193 = vadd.f32 %v5179, 1.0
        %v5194 = vadd.f32 %v5181, 1.0
        %v5195 = vadd.f32 %v5183, 1.0
        %v5196 = vadd.f32 %v5185, 1.0
        %v5197 = vadd.f32 %v5187, 1.0
        %v5198 = vadd.f32 %v5189, 1.0
        %v5199 = vadd.f32 %v5191, 1.0
        %v5200 = vrcp.pop %v5192
        %v5201 = vmul.f32 1.0, %v5200
        %v5202 = vrcp.pop %v5193
        %v5203 = vmul.f32 1.0, %v5202
        %v5204 = vrcp.pop %v5194
        %v5205 = vmul.f32 1.0, %v5204
        %v5206 = vrcp.pop %v5195
        %v5207 = vmul.f32 1.0, %v5206
        %v5208 = vrcp.pop %v5196
        %v5209 = vmul.f32 1.0, %v5208
        %v5210 = vrcp.pop %v5197
        %v5211 = vmul.f32 1.0, %v5210
        %v5212 = vrcp.pop %v5198
        %v5213 = vmul.f32 1.0, %v5212
        %v5214 = vrcp.pop %v5199
        %v5215 = vmul.f32 1.0, %v5214
        %v5217 = vrot.slane %v4770, 1
        %v5218 = vrot.slane %v4770, 2
        %v5219 = vrot.slane %v4770, 3
        %v5220 = vrot.slane %v4770, 4
        %v5221 = vrot.slane %v4770, 5
        %v5222 = vrot.slane %v4770, 6
        %v5223 = vrot.slane %v4770, 7
        %v5232 = vmul.f32 %v5145, %v4770
        %v5233 = vmul.f32 %v5147, %v5217
        %v5234 = vmul.f32 %v5149, %v5218
        %v5235 = vmul.f32 %v5151, %v5219
        %v5236 = vmul.f32 %v5153, %v5220
        %v5237 = vmul.f32 %v5155, %v5221
        %v5238 = vmul.f32 %v5157, %v5222
        %v5239 = vmul.f32 %v5159, %v5223
        %v5240 = vmul.f32 %v5097, %v5160
        %v5241 = vmul.f32 %v5099, %v5161
        %v5242 = vmul.f32 %v5101, %v5162
        %v5243 = vmul.f32 %v5103, %v5163
        %v5244 = vmul.f32 %v5105, %v5164
        %v5245 = vmul.f32 %v5107, %v5165
        %v5246 = vmul.f32 %v5109, %v5166
        %v5247 = vmul.f32 %v5111, %v5167
        %v5248 = vadd.f32 %v5232, %v5240
        %v5249 = vadd.f32 %v5233, %v5241
        %v5250 = vadd.f32 %v5234, %v5242
        %v5251 = vadd.f32 %v5235, %v5243
        %v5252 = vadd.f32 %v5236, %v5244
        %v5253 = vadd.f32 %v5237, %v5245
        %v5254 = vadd.f32 %v5238, %v5246
        %v5255 = vadd.f32 %v5239, %v5247
        %v5256 = vtanh.pop %v5248
        %v5257 = vtanh.pop %v5249
        %v5258 = vtanh.pop %v5250
        %v5259 = vtanh.pop %v5251
        %v5260 = vtanh.pop %v5252
        %v5261 = vtanh.pop %v5253
        %v5262 = vtanh.pop %v5254
        %v5263 = vtanh.pop %v5255
        %v5264 = vmul.f32 %v5201, %v5256
        %v5265 = vmul.f32 %v5203, %v5257
        %v5266 = vmul.f32 %v5205, %v5258
        %v5267 = vmul.f32 %v5207, %v5259
        %v5268 = vmul.f32 %v5209, %v5260
        %v5269 = vmul.f32 %v5211, %v5261
        %v5270 = vmul.f32 %v5213, %v5262
        %v5271 = vmul.f32 %v5215, %v5263
        %5272 = vset.pattern.permute.xlu0 6
        %5273 = vperm.xlu0 %5272, %v1550
        %v5274 = vpop.permute.xlu0 %5273
        %vm5275 = vcmp.eq.s32.totalorder %v5274, 1
        %v5284 = vrot.slane %v5265, 7
        %v5285 = vsel %vm1564, %v5284, %v5264
        %v5286 = vrot.slane %v5266, 6
        %v5287 = vsel %vm1567, %v5286, %v5285
        %v5288 = vrot.slane %v5267, 5
        %v5289 = vsel %vm1570, %v5288, %v5287
        %v5290 = vrot.slane %v5268, 4
        %v5291 = vsel %vm1573, %v5290, %v5289
        %v5292 = vrot.slane %v5269, 3
        %v5293 = vsel %vm1576, %v5292, %v5291
        %v5294 = vrot.slane %v5270, 2
        %v5295 = vsel %vm1579, %v5294, %v5293
        %v5296 = vrot.slane %v5271, 1
        %v5297 = vsel %vm1582, %v5296, %v5295
        %v5299 = vsel %vm5275, %v5297, 0.0
        %v5301 = vcombine.high %v5299, %v5299
        %v5303 = vunpack.c.l.s4 1966171168
        %v5304 = vunpack.c.0.s8 %v5303
        %v5305 = vlaneseq
        %v5306 = vshrl.u32 %v5305, 7
        %v5307 = vsub.s32 %v5304, %v5306
        %v5308 = vrot.slane %v5299, %v5307
        %v5310 = vunpack.c.l.s4 1966171168
        %v5311 = vunpack.c.0.s8 %v5310
        %v5312 = vlaneseq
        %v5313 = vshrl.u32 %v5312, 7
        %v5314 = vsub.s32 %v5311, %v5313
        %v5315 = vrot.slane %v5301, %v5314
        %v5316 = vcombine.high %v5308, %v5308
        %v5317 = vcombine.high %v5315, %v5315
        %v5319 = vunpack.c.l.s4 1966171168
        %v5320 = vunpack.c.0.s8 %v5319
        %v5321 = vlaneseq
        %v5322 = vshrl.u32 %v5321, 7
        %v5323 = vsub.s32 %v5320, %v5322
        %v5324 = vrot.slane %v5308, %v5323
        %v5326 = vunpack.c.l.s4 1966171168
        %v5327 = vunpack.c.0.s8 %v5326
        %v5328 = vlaneseq
        %v5329 = vshrl.u32 %v5328, 7
        %v5330 = vsub.s32 %v5327, %v5329
        %v5331 = vrot.slane %v5315, %v5330
        %v5333 = vunpack.c.l.s4 1966171168
        %v5334 = vunpack.c.0.s8 %v5333
        %v5335 = vlaneseq
        %v5336 = vshrl.u32 %v5335, 7
        %v5337 = vsub.s32 %v5334, %v5336
        %v5338 = vrot.slane %v5316, %v5337
        %v5340 = vunpack.c.l.s4 1966171168
        %v5341 = vunpack.c.0.s8 %v5340
        %v5342 = vlaneseq
        %v5343 = vshrl.u32 %v5342, 7
        %v5344 = vsub.s32 %v5341, %v5343
        %v5345 = vrot.slane %v5317, %v5344
        %v5346 = vcombine.high %v5324, %v5324
        %v5347 = vcombine.high %v5331, %v5331
        %v5348 = vcombine.high %v5338, %v5338
        %v5349 = vcombine.high %v5345, %v5345
        %5358 = vst.msk [vmem:[#allocation6 + $0x6] sm:$0x1] %vm1644, %v5324
        %5359 = vst.msk [vmem:[#allocation6 + $0xe] sm:$0x1] %vm1644, %v5338
        %5360 = vst.msk [vmem:[#allocation6 + $0x16] sm:$0x1] %vm1644, %v5346
        %5361 = vst.msk [vmem:[#allocation6 + $0x1e] sm:$0x1] %vm1644, %v5348
        %5362 = vst.msk [vmem:[#allocation6 + $0x26] sm:$0x1] %vm1644, %v5331
        %5363 = vst.msk [vmem:[#allocation6 + $0x2e] sm:$0x1] %vm1644, %v5345
        %5364 = vst.msk [vmem:[#allocation6 + $0x36] sm:$0x1] %vm1644, %v5347
        %5365 = vst.msk [vmem:[#allocation6 + $0x3e] sm:$0x1] %vm1644, %v5349
        %v5374 = vrot.slane %v5249, 7
        %v5375 = vsel %vm1564, %v5374, %v5248
        %v5376 = vrot.slane %v5250, 6
        %v5377 = vsel %vm1567, %v5376, %v5375
        %v5378 = vrot.slane %v5251, 5
        %v5379 = vsel %vm1570, %v5378, %v5377
        %v5380 = vrot.slane %v5252, 4
        %v5381 = vsel %vm1573, %v5380, %v5379
        %v5382 = vrot.slane %v5253, 3
        %v5383 = vsel %vm1576, %v5382, %v5381
        %v5384 = vrot.slane %v5254, 2
        %v5385 = vsel %vm1579, %v5384, %v5383
        %v5386 = vrot.slane %v5255, 1
        %v5387 = vsel %vm1582, %v5386, %v5385
        %v5389 = vsel %vm5275, %v5387, %v4770
        %v5390 = vsel %vm5275, %v5297, %v4771
        %v5391 = vpack.c.bf16 %v5390, %v5390
        %v5392 = vld [vmem:[#allocation2 + $0x7] sm:$0x1]
        %v5393 = vld [vmem:[#allocation2 + $0xf] sm:$0x1]
        %v5394 = vld [vmem:[#allocation2 + $0x17] sm:$0x1]
        %v5395 = vld [vmem:[#allocation2 + $0x1f] sm:$0x1]
        %v5396 = vld [vmem:[#allocation2 + $0x27] sm:$0x1]
        %v5397 = vld [vmem:[#allocation2 + $0x2f] sm:$0x1]
        %v5398 = vld [vmem:[#allocation2 + $0x37] sm:$0x1]
        %v5399 = vld [vmem:[#allocation2 + $0x3f] sm:$0x1]
        %v5401 = vsel %vm618, %v5391, 0
        %5403 = vmatprep.subr.bf16.mxu0 0
        %5404 = vmatpush1.bf16.msra.mxu0 %v1035
        %5405 = vmatprep.subr.bf16.mxu0 0
        %5406 = vmatpush1.bf16.msra.mxu0 %v1036
        %5407 = vmatprep.subr.bf16.mxu0 0
        %5408 = vmatpush1.bf16.msra.mxu0 0
        %5409 = vmatprep.subr.bf16.mxu0 0
        %5410 = vmatpush1.bf16.msra.mxu0 0
        %5411 = vmatprep.subr.bf16.mxu0 0
        %5412 = vmatpush1.bf16.msra.mxu0 0
        %5413 = vmatprep.subr.bf16.mxu0 0
        %5414 = vmatpush1.bf16.msra.mxu0 0
        %5415 = vmatprep.subr.bf16.mxu0 0
        %5416 = vmatpush1.bf16.msra.mxu0 0
        %5417 = vmatprep.subr.bf16.mxu0 0
        %5418 = vmatpush1.bf16.msra.mxu0 0
        %5419 = vmatprep.subr.bf16.mxu0 0
        %5420 = vmatpush1.bf16.msra.mxu0 0
        %5421 = vmatprep.subr.bf16.mxu0 0
        %5422 = vmatpush1.bf16.msra.mxu0 0
        %5423 = vmatprep.subr.bf16.mxu0 0
        %5424 = vmatpush1.bf16.msra.mxu0 0
        %5425 = vmatprep.subr.bf16.mxu0 0
        %5426 = vmatpush1.bf16.msra.mxu0 0
        %5427 = vmatprep.subr.bf16.mxu0 0
        %5428 = vmatpush1.bf16.msra.mxu0 0
        %5429 = vmatprep.subr.bf16.mxu0 0
        %5430 = vmatpush1.bf16.msra.mxu0 0
        %5431 = vmatprep.subr.bf16.mxu0 0
        %5432 = vmatpush1.bf16.msra.mxu0 0
        %5433 = vmatprep.subr.bf16.mxu0 0
        %5434 = vmatpush1.bf16.msra.mxu0 0
        %5435 = vmatprep.mubr.bf16.mxu0 0
        %5436 = vmatmul.mubr.bf16.gmra.mrb[0].mxu0 %v5401
        %v5437 = vpop.f32.mrb[0].mxu0
        %v5438 = vadd.f32 0.0, %v5437
        %v5439 = vpop.f32.mrb[0].mxu0
        %v5440 = vpop.f32.mrb[0].mxu0
        %v5441 = vpop.f32.mrb[0].mxu0
        %5442 = vdwg.mxu0
        %v5444 = vrot.slane %v5438, 1
        %v5445 = vrot.slane %v5438, 2
        %v5446 = vrot.slane %v5438, 3
        %v5447 = vrot.slane %v5438, 4
        %v5448 = vrot.slane %v5438, 5
        %v5449 = vrot.slane %v5438, 6
        %v5450 = vrot.slane %v5438, 7
        %v5459 = vadd.f32 %v5392, %v5438
        %v5460 = vadd.f32 %v5393, %v5444
        %v5461 = vadd.f32 %v5394, %v5445
        %v5462 = vadd.f32 %v5395, %v5446
        %v5463 = vadd.f32 %v5396, %v5447
        %v5464 = vadd.f32 %v5397, %v5448
        %v5465 = vadd.f32 %v5398, %v5449
        %v5466 = vadd.f32 %v5399, %v5450
        %v5467 = vld [vmem:[#allocation3 + $0x7] sm:$0x1]
        %v5468 = vld [vmem:[#allocation3 + $0xf] sm:$0x1]
        %v5469 = vld [vmem:[#allocation3 + $0x17] sm:$0x1]
        %v5470 = vld [vmem:[#allocation3 + $0x1f] sm:$0x1]
        %v5471 = vld [vmem:[#allocation3 + $0x27] sm:$0x1]
        %v5472 = vld [vmem:[#allocation3 + $0x2f] sm:$0x1]
        %v5473 = vld [vmem:[#allocation3 + $0x37] sm:$0x1]
        %v5474 = vld [vmem:[#allocation3 + $0x3f] sm:$0x1]
        %5475 = vmatprep.subr.bf16.mxu0 0
        %5476 = vmatpush1.bf16.msra.mxu0 %v1122
        %5477 = vmatprep.subr.bf16.mxu0 0
        %5478 = vmatpush1.bf16.msra.mxu0 %v1123
        %5479 = vmatprep.subr.bf16.mxu0 0
        %5480 = vmatpush1.bf16.msra.mxu0 0
        %5481 = vmatprep.subr.bf16.mxu0 0
        %5482 = vmatpush1.bf16.msra.mxu0 0
        %5483 = vmatprep.subr.bf16.mxu0 0
        %5484 = vmatpush1.bf16.msra.mxu0 0
        %5485 = vmatprep.subr.bf16.mxu0 0
        %5486 = vmatpush1.bf16.msra.mxu0 0
        %5487 = vmatprep.subr.bf16.mxu0 0
        %5488 = vmatpush1.bf16.msra.mxu0 0
        %5489 = vmatprep.subr.bf16.mxu0 0
        %5490 = vmatpush1.bf16.msra.mxu0 0
        %5491 = vmatprep.subr.bf16.mxu0 0
        %5492 = vmatpush1.bf16.msra.mxu0 0
        %5493 = vmatprep.subr.bf16.mxu0 0
        %5494 = vmatpush1.bf16.msra.mxu0 0
        %5495 = vmatprep.subr.bf16.mxu0 0
        %5496 = vmatpush1.bf16.msra.mxu0 0
        %5497 = vmatprep.subr.bf16.mxu0 0
        %5498 = vmatpush1.bf16.msra.mxu0 0
        %5499 = vmatprep.subr.bf16.mxu0 0
        %5500 = vmatpush1.bf16.msra.mxu0 0
        %5501 = vmatprep.subr.bf16.mxu0 0
        %5502 = vmatpush1.bf16.msra.mxu0 0
        %5503 = vmatprep.subr.bf16.mxu0 0
        %5504 = vmatpush1.bf16.msra.mxu0 0
        %5505 = vmatprep.subr.bf16.mxu0 0
        %5506 = vmatpush1.bf16.msra.mxu0 0
        %5507 = vmatprep.mubr.bf16.mxu0 0
        %5508 = vmatmul.mubr.bf16.gmra.mrb[0].mxu0 %v5401
        %v5509 = vpop.f32.mrb[0].mxu0
        %v5510 = vadd.f32 0.0, %v5509
        %v5511 = vpop.f32.mrb[0].mxu0
        %v5512 = vpop.f32.mrb[0].mxu0
        %v5513 = vpop.f32.mrb[0].mxu0
        %5514 = vdwg.mxu0
        %v5516 = vrot.slane %v5510, 1
        %v5517 = vrot.slane %v5510, 2
        %v5518 = vrot.slane %v5510, 3
        %v5519 = vrot.slane %v5510, 4
        %v5520 = vrot.slane %v5510, 5
        %v5521 = vrot.slane %v5510, 6
        %v5522 = vrot.slane %v5510, 7
        %v5531 = vadd.f32 %v5467, %v5510
        %v5532 = vadd.f32 %v5468, %v5516
        %v5533 = vadd.f32 %v5469, %v5517
        %v5534 = vadd.f32 %v5470, %v5518
        %v5535 = vadd.f32 %v5471, %v5519
        %v5536 = vadd.f32 %v5472, %v5520
        %v5537 = vadd.f32 %v5473, %v5521
        %v5538 = vadd.f32 %v5474, %v5522
        %v5539 = vld [vmem:[#allocation4 + $0x7] sm:$0x1]
        %v5540 = vld [vmem:[#allocation4 + $0xf] sm:$0x1]
        %v5541 = vld [vmem:[#allocation4 + $0x17] sm:$0x1]
        %v5542 = vld [vmem:[#allocation4 + $0x1f] sm:$0x1]
        %v5543 = vld [vmem:[#allocation4 + $0x27] sm:$0x1]
        %v5544 = vld [vmem:[#allocation4 + $0x2f] sm:$0x1]
        %v5545 = vld [vmem:[#allocation4 + $0x37] sm:$0x1]
        %v5546 = vld [vmem:[#allocation4 + $0x3f] sm:$0x1]
        %5547 = vmatprep.subr.bf16.mxu0 0
        %5548 = vmatpush1.bf16.msra.mxu0 %v1206
        %5549 = vmatprep.subr.bf16.mxu0 0
        %5550 = vmatpush1.bf16.msra.mxu0 %v1207
        %5551 = vmatprep.subr.bf16.mxu0 0
        %5552 = vmatpush1.bf16.msra.mxu0 0
        %5553 = vmatprep.subr.bf16.mxu0 0
        %5554 = vmatpush1.bf16.msra.mxu0 0
        %5555 = vmatprep.subr.bf16.mxu0 0
        %5556 = vmatpush1.bf16.msra.mxu0 0
        %5557 = vmatprep.subr.bf16.mxu0 0
        %5558 = vmatpush1.bf16.msra.mxu0 0
        %5559 = vmatprep.subr.bf16.mxu0 0
        %5560 = vmatpush1.bf16.msra.mxu0 0
        %5561 = vmatprep.subr.bf16.mxu0 0
        %5562 = vmatpush1.bf16.msra.mxu0 0
        %5563 = vmatprep.subr.bf16.mxu0 0
        %5564 = vmatpush1.bf16.msra.mxu0 0
        %5565 = vmatprep.subr.bf16.mxu0 0
        %5566 = vmatpush1.bf16.msra.mxu0 0
        %5567 = vmatprep.subr.bf16.mxu0 0
        %5568 = vmatpush1.bf16.msra.mxu0 0
        %5569 = vmatprep.subr.bf16.mxu0 0
        %5570 = vmatpush1.bf16.msra.mxu0 0
        %5571 = vmatprep.subr.bf16.mxu0 0
        %5572 = vmatpush1.bf16.msra.mxu0 0
        %5573 = vmatprep.subr.bf16.mxu0 0
        %5574 = vmatpush1.bf16.msra.mxu0 0
        %5575 = vmatprep.subr.bf16.mxu0 0
        %5576 = vmatpush1.bf16.msra.mxu0 0
        %5577 = vmatprep.subr.bf16.mxu0 0
        %5578 = vmatpush1.bf16.msra.mxu0 0
        %5579 = vmatprep.mubr.bf16.mxu0 0
        %5580 = vmatmul.mubr.bf16.gmra.mrb[0].mxu0 %v5401
        %v5581 = vpop.f32.mrb[0].mxu0
        %v5582 = vadd.f32 0.0, %v5581
        %v5583 = vpop.f32.mrb[0].mxu0
        %v5584 = vpop.f32.mrb[0].mxu0
        %v5585 = vpop.f32.mrb[0].mxu0
        %5586 = vdwg.mxu0
        %v5588 = vrot.slane %v5582, 1
        %v5589 = vrot.slane %v5582, 2
        %v5590 = vrot.slane %v5582, 3
        %v5591 = vrot.slane %v5582, 4
        %v5592 = vrot.slane %v5582, 5
        %v5593 = vrot.slane %v5582, 6
        %v5594 = vrot.slane %v5582, 7
        %v5603 = vadd.f32 %v5539, %v5582
        %v5604 = vadd.f32 %v5540, %v5588
        %v5605 = vadd.f32 %v5541, %v5589
        %v5606 = vadd.f32 %v5542, %v5590
        %v5607 = vadd.f32 %v5543, %v5591
        %v5608 = vadd.f32 %v5544, %v5592
        %v5609 = vadd.f32 %v5545, %v5593
        %v5610 = vadd.f32 %v5546, %v5594
        %v5611 = vld [vmem:[#allocation5 + $0x7] sm:$0x1]
        %v5612 = vld [vmem:[#allocation5 + $0xf] sm:$0x1]
        %v5613 = vld [vmem:[#allocation5 + $0x17] sm:$0x1]
        %v5614 = vld [vmem:[#allocation5 + $0x1f] sm:$0x1]
        %v5615 = vld [vmem:[#allocation5 + $0x27] sm:$0x1]
        %v5616 = vld [vmem:[#allocation5 + $0x2f] sm:$0x1]
        %v5617 = vld [vmem:[#allocation5 + $0x37] sm:$0x1]
        %v5618 = vld [vmem:[#allocation5 + $0x3f] sm:$0x1]
        %5619 = vmatprep.subr.bf16.mxu0 0
        %5620 = vmatpush1.bf16.msra.mxu0 %v1290
        %5621 = vmatprep.subr.bf16.mxu0 0
        %5622 = vmatpush1.bf16.msra.mxu0 %v1291
        %5623 = vmatprep.subr.bf16.mxu0 0
        %5624 = vmatpush1.bf16.msra.mxu0 0
        %5625 = vmatprep.subr.bf16.mxu0 0
        %5626 = vmatpush1.bf16.msra.mxu0 0
        %5627 = vmatprep.subr.bf16.mxu0 0
        %5628 = vmatpush1.bf16.msra.mxu0 0
        %5629 = vmatprep.subr.bf16.mxu0 0
        %5630 = vmatpush1.bf16.msra.mxu0 0
        %5631 = vmatprep.subr.bf16.mxu0 0
        %5632 = vmatpush1.bf16.msra.mxu0 0
        %5633 = vmatprep.subr.bf16.mxu0 0
        %5634 = vmatpush1.bf16.msra.mxu0 0
        %5635 = vmatprep.subr.bf16.mxu0 0
        %5636 = vmatpush1.bf16.msra.mxu0 0
        %5637 = vmatprep.subr.bf16.mxu0 0
        %5638 = vmatpush1.bf16.msra.mxu0 0
        %5639 = vmatprep.subr.bf16.mxu0 0
        %5640 = vmatpush1.bf16.msra.mxu0 0
        %5641 = vmatprep.subr.bf16.mxu0 0
        %5642 = vmatpush1.bf16.msra.mxu0 0
        %5643 = vmatprep.subr.bf16.mxu0 0
        %5644 = vmatpush1.bf16.msra.mxu0 0
        %5645 = vmatprep.subr.bf16.mxu0 0
        %5646 = vmatpush1.bf16.msra.mxu0 0
        %5647 = vmatprep.subr.bf16.mxu0 0
        %5648 = vmatpush1.bf16.msra.mxu0 0
        %5649 = vmatprep.subr.bf16.mxu0 0
        %5650 = vmatpush1.bf16.msra.mxu0 0
        %5651 = vmatprep.mubr.bf16.mxu0 0
        %5652 = vmatmul.mubr.bf16.gmra.mrb[0].mxu0 %v5401
        %v5653 = vpop.f32.mrb[0].mxu0
        %v5654 = vadd.f32 0.0, %v5653
        %v5655 = vpop.f32.mrb[0].mxu0
        %v5656 = vpop.f32.mrb[0].mxu0
        %v5657 = vpop.f32.mrb[0].mxu0
        %5658 = vdwg.mxu0
        %v5660 = vrot.slane %v5654, 1
        %v5661 = vrot.slane %v5654, 2
        %v5662 = vrot.slane %v5654, 3
        %v5663 = vrot.slane %v5654, 4
        %v5664 = vrot.slane %v5654, 5
        %v5665 = vrot.slane %v5654, 6
        %v5666 = vrot.slane %v5654, 7
        %v5675 = vadd.f32 %v5611, %v5654
        %v5676 = vadd.f32 %v5612, %v5660
        %v5677 = vadd.f32 %v5613, %v5661
        %v5678 = vadd.f32 %v5614, %v5662
        %v5679 = vadd.f32 %v5615, %v5663
        %v5680 = vadd.f32 %v5616, %v5664
        %v5681 = vadd.f32 %v5617, %v5665
        %v5682 = vadd.f32 %v5618, %v5666
        %v5683 = vxor.u32 %v5459, 2147483648
        %v5684 = vxor.u32 %v5460, 2147483648
        %v5685 = vxor.u32 %v5461, 2147483648
        %v5686 = vxor.u32 %v5462, 2147483648
        %v5687 = vxor.u32 %v5463, 2147483648
        %v5688 = vxor.u32 %v5464, 2147483648
        %v5689 = vxor.u32 %v5465, 2147483648
        %v5690 = vxor.u32 %v5466, 2147483648
        %v5691 = vmul.f32 %v5683, 1.442695
        %v5692 = vpow.pop %v5691
        %v5693 = vmul.f32 %v5684, 1.442695
        %v5694 = vpow.pop %v5693
        %v5695 = vmul.f32 %v5685, 1.442695
        %v5696 = vpow.pop %v5695
        %v5697 = vmul.f32 %v5686, 1.442695
        %v5698 = vpow.pop %v5697
        %v5699 = vmul.f32 %v5687, 1.442695
        %v5700 = vpow.pop %v5699
        %v5701 = vmul.f32 %v5688, 1.442695
        %v5702 = vpow.pop %v5701
        %v5703 = vmul.f32 %v5689, 1.442695
        %v5704 = vpow.pop %v5703
        %v5705 = vmul.f32 %v5690, 1.442695
        %v5706 = vpow.pop %v5705
        %v5707 = vadd.f32 %v5692, 1.0
        %v5708 = vadd.f32 %v5694, 1.0
        %v5709 = vadd.f32 %v5696, 1.0
        %v5710 = vadd.f32 %v5698, 1.0
        %v5711 = vadd.f32 %v5700, 1.0
        %v5712 = vadd.f32 %v5702, 1.0
        %v5713 = vadd.f32 %v5704, 1.0
        %v5714 = vadd.f32 %v5706, 1.0
        %v5715 = vrcp.pop %v5707
        %v5716 = vmul.f32 1.0, %v5715
        %v5717 = vrcp.pop %v5708
        %v5718 = vmul.f32 1.0, %v5717
        %v5719 = vrcp.pop %v5709
        %v5720 = vmul.f32 1.0, %v5719
        %v5721 = vrcp.pop %v5710
        %v5722 = vmul.f32 1.0, %v5721
        %v5723 = vrcp.pop %v5711
        %v5724 = vmul.f32 1.0, %v5723
        %v5725 = vrcp.pop %v5712
        %v5726 = vmul.f32 1.0, %v5725
        %v5727 = vrcp.pop %v5713
        %v5728 = vmul.f32 1.0, %v5727
        %v5729 = vrcp.pop %v5714
        %v5730 = vmul.f32 1.0, %v5729
        %v5731 = vxor.u32 %v5531, 2147483648
        %v5732 = vxor.u32 %v5532, 2147483648
        %v5733 = vxor.u32 %v5533, 2147483648
        %v5734 = vxor.u32 %v5534, 2147483648
        %v5735 = vxor.u32 %v5535, 2147483648
        %v5736 = vxor.u32 %v5536, 2147483648
        %v5737 = vxor.u32 %v5537, 2147483648
        %v5738 = vxor.u32 %v5538, 2147483648
        %v5739 = vmul.f32 %v5731, 1.442695
        %v5740 = vpow.pop %v5739
        %v5741 = vmul.f32 %v5732, 1.442695
        %v5742 = vpow.pop %v5741
        %v5743 = vmul.f32 %v5733, 1.442695
        %v5744 = vpow.pop %v5743
        %v5745 = vmul.f32 %v5734, 1.442695
        %v5746 = vpow.pop %v5745
        %v5747 = vmul.f32 %v5735, 1.442695
        %v5748 = vpow.pop %v5747
        %v5749 = vmul.f32 %v5736, 1.442695
        %v5750 = vpow.pop %v5749
        %v5751 = vmul.f32 %v5737, 1.442695
        %v5752 = vpow.pop %v5751
        %v5753 = vmul.f32 %v5738, 1.442695
        %v5754 = vpow.pop %v5753
        %v5755 = vadd.f32 %v5740, 1.0
        %v5756 = vadd.f32 %v5742, 1.0
        %v5757 = vadd.f32 %v5744, 1.0
        %v5758 = vadd.f32 %v5746, 1.0
        %v5759 = vadd.f32 %v5748, 1.0
        %v5760 = vadd.f32 %v5750, 1.0
        %v5761 = vadd.f32 %v5752, 1.0
        %v5762 = vadd.f32 %v5754, 1.0
        %v5763 = vrcp.pop %v5755
        %v5764 = vmul.f32 1.0, %v5763
        %v5765 = vrcp.pop %v5756
        %v5766 = vmul.f32 1.0, %v5765
        %v5767 = vrcp.pop %v5757
        %v5768 = vmul.f32 1.0, %v5767
        %v5769 = vrcp.pop %v5758
        %v5770 = vmul.f32 1.0, %v5769
        %v5771 = vrcp.pop %v5759
        %v5772 = vmul.f32 1.0, %v5771
        %v5773 = vrcp.pop %v5760
        %v5774 = vmul.f32 1.0, %v5773
        %v5775 = vrcp.pop %v5761
        %v5776 = vmul.f32 1.0, %v5775
        %v5777 = vrcp.pop %v5762
        %v5778 = vmul.f32 1.0, %v5777
        %v5779 = vtanh.pop %v5603
        %v5780 = vtanh.pop %v5604
        %v5781 = vtanh.pop %v5605
        %v5782 = vtanh.pop %v5606
        %v5783 = vtanh.pop %v5607
        %v5784 = vtanh.pop %v5608
        %v5785 = vtanh.pop %v5609
        %v5786 = vtanh.pop %v5610
        %v5787 = vxor.u32 %v5675, 2147483648
        %v5788 = vxor.u32 %v5676, 2147483648
        %v5789 = vxor.u32 %v5677, 2147483648
        %v5790 = vxor.u32 %v5678, 2147483648
        %v5791 = vxor.u32 %v5679, 2147483648
        %v5792 = vxor.u32 %v5680, 2147483648
        %v5793 = vxor.u32 %v5681, 2147483648
        %v5794 = vxor.u32 %v5682, 2147483648
        %v5795 = vmul.f32 %v5787, 1.442695
        %v5796 = vpow.pop %v5795
        %v5797 = vmul.f32 %v5788, 1.442695
        %v5798 = vpow.pop %v5797
        %v5799 = vmul.f32 %v5789, 1.442695
        %v5800 = vpow.pop %v5799
        %v5801 = vmul.f32 %v5790, 1.442695
        %v5802 = vpow.pop %v5801
        %v5803 = vmul.f32 %v5791, 1.442695
        %v5804 = vpow.pop %v5803
        %v5805 = vmul.f32 %v5792, 1.442695
        %v5806 = vpow.pop %v5805
        %v5807 = vmul.f32 %v5793, 1.442695
        %v5808 = vpow.pop %v5807
        %v5809 = vmul.f32 %v5794, 1.442695
        %v5810 = vpow.pop %v5809
        %v5811 = vadd.f32 %v5796, 1.0
        %v5812 = vadd.f32 %v5798, 1.0
        %v5813 = vadd.f32 %v5800, 1.0
        %v5814 = vadd.f32 %v5802, 1.0
        %v5815 = vadd.f32 %v5804, 1.0
        %v5816 = vadd.f32 %v5806, 1.0
        %v5817 = vadd.f32 %v5808, 1.0
        %v5818 = vadd.f32 %v5810, 1.0
        %v5819 = vrcp.pop %v5811
        %v5820 = vmul.f32 1.0, %v5819
        %v5821 = vrcp.pop %v5812
        %v5822 = vmul.f32 1.0, %v5821
        %v5823 = vrcp.pop %v5813
        %v5824 = vmul.f32 1.0, %v5823
        %v5825 = vrcp.pop %v5814
        %v5826 = vmul.f32 1.0, %v5825
        %v5827 = vrcp.pop %v5815
        %v5828 = vmul.f32 1.0, %v5827
        %v5829 = vrcp.pop %v5816
        %v5830 = vmul.f32 1.0, %v5829
        %v5831 = vrcp.pop %v5817
        %v5832 = vmul.f32 1.0, %v5831
        %v5833 = vrcp.pop %v5818
        %v5834 = vmul.f32 1.0, %v5833
        %v5836 = vrot.slane %v5389, 1
        %v5837 = vrot.slane %v5389, 2
        %v5838 = vrot.slane %v5389, 3
        %v5839 = vrot.slane %v5389, 4
        %v5840 = vrot.slane %v5389, 5
        %v5841 = vrot.slane %v5389, 6
        %v5842 = vrot.slane %v5389, 7
        %v5851 = vmul.f32 %v5764, %v5389
        %v5852 = vmul.f32 %v5766, %v5836
        %v5853 = vmul.f32 %v5768, %v5837
        %v5854 = vmul.f32 %v5770, %v5838
        %v5855 = vmul.f32 %v5772, %v5839
        %v5856 = vmul.f32 %v5774, %v5840
        %v5857 = vmul.f32 %v5776, %v5841
        %v5858 = vmul.f32 %v5778, %v5842
        %v5859 = vmul.f32 %v5716, %v5779
        %v5860 = vmul.f32 %v5718, %v5780
        %v5861 = vmul.f32 %v5720, %v5781
        %v5862 = vmul.f32 %v5722, %v5782
        %v5863 = vmul.f32 %v5724, %v5783
        %v5864 = vmul.f32 %v5726, %v5784
        %v5865 = vmul.f32 %v5728, %v5785
        %v5866 = vmul.f32 %v5730, %v5786
        %v5867 = vadd.f32 %v5851, %v5859
        %v5868 = vadd.f32 %v5852, %v5860
        %v5869 = vadd.f32 %v5853, %v5861
        %v5870 = vadd.f32 %v5854, %v5862
        %v5871 = vadd.f32 %v5855, %v5863
        %v5872 = vadd.f32 %v5856, %v5864
        %v5873 = vadd.f32 %v5857, %v5865
        %v5874 = vadd.f32 %v5858, %v5866
        %v5875 = vtanh.pop %v5867
        %v5876 = vtanh.pop %v5868
        %v5877 = vtanh.pop %v5869
        %v5878 = vtanh.pop %v5870
        %v5879 = vtanh.pop %v5871
        %v5880 = vtanh.pop %v5872
        %v5881 = vtanh.pop %v5873
        %v5882 = vtanh.pop %v5874
        %v5883 = vmul.f32 %v5820, %v5875
        %v5884 = vmul.f32 %v5822, %v5876
        %v5885 = vmul.f32 %v5824, %v5877
        %v5886 = vmul.f32 %v5826, %v5878
        %v5887 = vmul.f32 %v5828, %v5879
        %v5888 = vmul.f32 %v5830, %v5880
        %v5889 = vmul.f32 %v5832, %v5881
        %v5890 = vmul.f32 %v5834, %v5882
        %5891 = vset.pattern.permute.xlu0 7
        %5892 = vperm.xlu0 %5891, %v1550
        %v5893 = vpop.permute.xlu0 %5892
        %vm5894 = vcmp.eq.s32.totalorder %v5893, 1
        %v5903 = vrot.slane %v5884, 7
        %v5904 = vsel %vm1564, %v5903, %v5883
        %v5905 = vrot.slane %v5885, 6
        %v5906 = vsel %vm1567, %v5905, %v5904
        %v5907 = vrot.slane %v5886, 5
        %v5908 = vsel %vm1570, %v5907, %v5906
        %v5909 = vrot.slane %v5887, 4
        %v5910 = vsel %vm1573, %v5909, %v5908
        %v5911 = vrot.slane %v5888, 3
        %v5912 = vsel %vm1576, %v5911, %v5910
        %v5913 = vrot.slane %v5889, 2
        %v5914 = vsel %vm1579, %v5913, %v5912
        %v5915 = vrot.slane %v5890, 1
        %v5916 = vsel %vm1582, %v5915, %v5914
        %v5918 = vsel %vm5894, %v5916, 0.0
        %v5920 = vcombine.high %v5918, %v5918
        %v5922 = vunpack.c.l.s4 1966171168
        %v5923 = vunpack.c.0.s8 %v5922
        %v5924 = vlaneseq
        %v5925 = vshrl.u32 %v5924, 7
        %v5926 = vsub.s32 %v5923, %v5925
        %v5927 = vrot.slane %v5918, %v5926
        %v5929 = vunpack.c.l.s4 1966171168
        %v5930 = vunpack.c.0.s8 %v5929
        %v5931 = vlaneseq
        %v5932 = vshrl.u32 %v5931, 7
        %v5933 = vsub.s32 %v5930, %v5932
        %v5934 = vrot.slane %v5920, %v5933
        %v5935 = vcombine.high %v5927, %v5927
        %v5936 = vcombine.high %v5934, %v5934
        %v5938 = vunpack.c.l.s4 1966171168
        %v5939 = vunpack.c.0.s8 %v5938
        %v5940 = vlaneseq
        %v5941 = vshrl.u32 %v5940, 7
        %v5942 = vsub.s32 %v5939, %v5941
        %v5943 = vrot.slane %v5927, %v5942
        %v5945 = vunpack.c.l.s4 1966171168
        %v5946 = vunpack.c.0.s8 %v5945
        %v5947 = vlaneseq
        %v5948 = vshrl.u32 %v5947, 7
        %v5949 = vsub.s32 %v5946, %v5948
        %v5950 = vrot.slane %v5934, %v5949
        %v5952 = vunpack.c.l.s4 1966171168
        %v5953 = vunpack.c.0.s8 %v5952
        %v5954 = vlaneseq
        %v5955 = vshrl.u32 %v5954, 7
        %v5956 = vsub.s32 %v5953, %v5955
        %v5957 = vrot.slane %v5935, %v5956
        %v5959 = vunpack.c.l.s4 1966171168
        %v5960 = vunpack.c.0.s8 %v5959
        %v5961 = vlaneseq
        %v5962 = vshrl.u32 %v5961, 7
        %v5963 = vsub.s32 %v5960, %v5962
        %v5964 = vrot.slane %v5936, %v5963
        %v5965 = vcombine.high %v5943, %v5943
        %v5966 = vcombine.high %v5950, %v5950
        %v5967 = vcombine.high %v5957, %v5957
        %v5968 = vcombine.high %v5964, %v5964
        %5977 = vst.msk [vmem:[#allocation6 + $0x7] sm:$0x1] %vm1644, %v5943
        %5978 = vst.msk [vmem:[#allocation6 + $0xf] sm:$0x1] %vm1644, %v5957
        %5979 = vst.msk [vmem:[#allocation6 + $0x17] sm:$0x1] %vm1644, %v5965
        %5980 = vst.msk [vmem:[#allocation6 + $0x1f] sm:$0x1] %vm1644, %v5967
        %5981 = vst.msk [vmem:[#allocation6 + $0x27] sm:$0x1] %vm1644, %v5950
        %5982 = vst.msk [vmem:[#allocation6 + $0x2f] sm:$0x1] %vm1644, %v5964
        %5983 = vst.msk [vmem:[#allocation6 + $0x37] sm:$0x1] %vm1644, %v5966
        %5984 = vst.msk [vmem:[#allocation6 + $0x3f] sm:$0x1] %vm1644, %v5968
        %v5985 = vsel %vm5894, %v5916, %v5390
        %5986 = vst.msk [vmem:[%s554] sm:$0xff] %vm618, %v5985
        %v5987 = vld [vmem:[#allocation6] sm:$0xff]
        %v5988 = vld [vmem:[#allocation6 + $0x8] sm:$0xff]
        %v5989 = vld [vmem:[#allocation6 + $0x10] sm:$0xff]
        %v5990 = vld [vmem:[#allocation6 + $0x18] sm:$0xff]
        %v5991 = vld [vmem:[#allocation6 + $0x20] sm:$0xff]
        %v5992 = vld [vmem:[#allocation6 + $0x28] sm:$0xff]
        %v5993 = vld [vmem:[#allocation6 + $0x30] sm:$0xff]
        %v5994 = vld [vmem:[#allocation6 + $0x38] sm:$0xff]
        %v5995 = vld [vmem:[%s10] sm:$0x1]
        %s5996 = sld [smem:[#allocation7]]
        %v5997 = vpack.c.bf16 %v5985, %v5985
        %v5998 = vld [vmem:[#allocation14] sm:$0xf]
        %v5999 = vld [vmem:[#allocation14 + $0x4] sm:$0xf]
        %v6000 = vld [vmem:[#allocation14 + $0x8] sm:$0xf]
        %v6001 = vld [vmem:[#allocation14 + $0xc] sm:$0xf]
        %v6002 = vld [vmem:[%s6] sm:$0x1]
        %v6004 = vlaneseq
        %v6005 = vshrl.u32 %v6004, 7
        %v6006 = vsub.s32 0, %v6005
        %v6007 = vrot.slane %v6002, %v6006
        %v6013 = vunpack.c.l.b16 %v5998
        %v6014 = vunpack.c.l.b16 %v5999
        %v6015 = vunpack.c.l.b16 %v6000
        %v6016 = vunpack.c.l.b16 %v6001
        %v6017 = vpack.c.b16 %v6014, %v6013
        %v6018 = vpack.c.b16 %v6016, %v6015
        %v6022 = vsel %vm618, %v5997, 0
        %6024 = vmatprep.subr.bf16.mxu0 0
        %6025 = vmatpush1.bf16.msra.mxu0 %v6017
        %6026 = vmatprep.subr.bf16.mxu0 0
        %6027 = vmatpush1.bf16.msra.mxu0 %v6018
        %6028 = vmatprep.subr.bf16.mxu0 0
        %6029 = vmatpush1.bf16.msra.mxu0 0
        %6030 = vmatprep.subr.bf16.mxu0 0
        %6031 = vmatpush1.bf16.msra.mxu0 0
        %6032 = vmatprep.subr.bf16.mxu0 0
        %6033 = vmatpush1.bf16.msra.mxu0 0
        %6034 = vmatprep.subr.bf16.mxu0 0
        %6035 = vmatpush1.bf16.msra.mxu0 0
        %6036 = vmatprep.subr.bf16.mxu0 0
        %6037 = vmatpush1.bf16.msra.mxu0 0
        %6038 = vmatprep.subr.bf16.mxu0 0
        %6039 = vmatpush1.bf16.msra.mxu0 0
        %6040 = vmatprep.subr.bf16.mxu0 0
        %6041 = vmatpush1.bf16.msra.mxu0 0
        %6042 = vmatprep.subr.bf16.mxu0 0
        %6043 = vmatpush1.bf16.msra.mxu0 0
        %6044 = vmatprep.subr.bf16.mxu0 0
        %6045 = vmatpush1.bf16.msra.mxu0 0
        %6046 = vmatprep.subr.bf16.mxu0 0
        %6047 = vmatpush1.bf16.msra.mxu0 0
        %6048 = vmatprep.subr.bf16.mxu0 0
        %6049 = vmatpush1.bf16.msra.mxu0 0
        %6050 = vmatprep.subr.bf16.mxu0 0
        %6051 = vmatpush1.bf16.msra.mxu0 0
        %6052 = vmatprep.subr.bf16.mxu0 0
        %6053 = vmatpush1.bf16.msra.mxu0 0
        %6054 = vmatprep.subr.bf16.mxu0 0
        %6055 = vmatpush1.bf16.msra.mxu0 0
        %6056 = vmatprep.mubr.bf16.mxu0 0
        %6057 = vmatmul.mubr.bf16.gmra.mrb[0].mxu0 %v6022
        %v6058 = vpop.f32.mrb[0].mxu0
        %v6059 = vadd.f32 %v6007, %v6058
        %v6060 = vpop.f32.mrb[0].mxu0
        %v6061 = vpop.f32.mrb[0].mxu0
        %v6062 = vpop.f32.mrb[0].mxu0
        %6063 = vdwg.mxu0
        %v6064 = vld [vmem:[%s7] sm:$0xf]
        %v6065 = vld [vmem:[%s7 + $0x4] sm:$0xf]
        %v6066 = vld [vmem:[%s7 + $0x8] sm:$0xf]
        %v6067 = vld [vmem:[%s7 + $0xc] sm:$0xf]
        %v6068 = vpack.c.bf16 %v6059, %v6059
        %v6069 = vld [vmem:[%s8] sm:$0xf]
        %v6070 = vld [vmem:[%s8 + $0x4] sm:$0xf]
        %v6071 = vld [vmem:[%s8 + $0x8] sm:$0xf]
        %v6072 = vld [vmem:[%s8 + $0xc] sm:$0xf]
        %v6077 = vunpack.c.l.b16 %v6069
        %v6078 = vunpack.c.l.b16 %v6070
        %v6079 = vunpack.c.l.b16 %v6071
        %v6080 = vunpack.c.l.b16 %v6072
        %v6081 = vpack.c.b16 %v6078, %v6077
        %v6082 = vpack.c.b16 %v6080, %v6079
        %v6086 = vsel %vm618, %v6068, 0
        %6088 = vmatprep.subr.bf16.mxu0 0
        %6089 = vmatpush1.bf16.msra.mxu0 %v6081
        %6090 = vmatprep.subr.bf16.mxu0 0
        %6091 = vmatpush1.bf16.msra.mxu0 %v6082
        %6092 = vmatprep.subr.bf16.mxu0 0
        %6093 = vmatpush1.bf16.msra.mxu0 0
        %6094 = vmatprep.subr.bf16.mxu0 0
        %6095 = vmatpush1.bf16.msra.mxu0 0
        %6096 = vmatprep.subr.bf16.mxu0 0
        %6097 = vmatpush1.bf16.msra.mxu0 0
        %6098 = vmatprep.subr.bf16.mxu0 0
        %6099 = vmatpush1.bf16.msra.mxu0 0
        %6100 = vmatprep.subr.bf16.mxu0 0
        %6101 = vmatpush1.bf16.msra.mxu0 0
        %6102 = vmatprep.subr.bf16.mxu0 0
        %6103 = vmatpush1.bf16.msra.mxu0 0
        %6104 = vmatprep.subr.bf16.mxu0 0
        %6105 = vmatpush1.bf16.msra.mxu0 0
        %6106 = vmatprep.subr.bf16.mxu0 0
        %6107 = vmatpush1.bf16.msra.mxu0 0
        %6108 = vmatprep.subr.bf16.mxu0 0
        %6109 = vmatpush1.bf16.msra.mxu0 0
        %6110 = vmatprep.subr.bf16.mxu0 0
        %6111 = vmatpush1.bf16.msra.mxu0 0
        %6112 = vmatprep.subr.bf16.mxu0 0
        %6113 = vmatpush1.bf16.msra.mxu0 0
        %6114 = vmatprep.subr.bf16.mxu0 0
        %6115 = vmatpush1.bf16.msra.mxu0 0
        %6116 = vmatprep.subr.bf16.mxu0 0
        %6117 = vmatpush1.bf16.msra.mxu0 0
        %6118 = vmatprep.subr.bf16.mxu0 0
        %6119 = vmatpush1.bf16.msra.mxu0 0
        %6120 = vmatprep.mubr.bf16.mxu0 0
        %6121 = vmatmul.mubr.bf16.gmra.mrb[0].mxu0 %v6086
        %v6122 = vpop.f32.mrb[0].mxu0
        %v6123 = vadd.f32 0.0, %v6122
        %v6124 = vpop.f32.mrb[0].mxu0
        %v6125 = vpop.f32.mrb[0].mxu0
        %v6126 = vpop.f32.mrb[0].mxu0
        %6127 = vdwg.mxu0
        %v6132 = vunpack.c.l.b16 %v6064
        %v6133 = vunpack.c.l.b16 %v6065
        %v6134 = vunpack.c.l.b16 %v6066
        %v6135 = vunpack.c.l.b16 %v6067
        %v6136 = vpack.c.b16 %v6133, %v6132
        %v6137 = vpack.c.b16 %v6135, %v6134
        %6140 = vmatprep.subr.bf16.mxu0 0
        %6141 = vmatpush1.bf16.msra.mxu0 %v6136
        %6142 = vmatprep.subr.bf16.mxu0 0
        %6143 = vmatpush1.bf16.msra.mxu0 %v6137
        %6144 = vmatprep.subr.bf16.mxu0 0
        %6145 = vmatpush1.bf16.msra.mxu0 0
        %6146 = vmatprep.subr.bf16.mxu0 0
        %6147 = vmatpush1.bf16.msra.mxu0 0
        %6148 = vmatprep.subr.bf16.mxu0 0
        %6149 = vmatpush1.bf16.msra.mxu0 0
        %6150 = vmatprep.subr.bf16.mxu0 0
        %6151 = vmatpush1.bf16.msra.mxu0 0
        %6152 = vmatprep.subr.bf16.mxu0 0
        %6153 = vmatpush1.bf16.msra.mxu0 0
        %6154 = vmatprep.subr.bf16.mxu0 0
        %6155 = vmatpush1.bf16.msra.mxu0 0
        %6156 = vmatprep.subr.bf16.mxu0 0
        %6157 = vmatpush1.bf16.msra.mxu0 0
        %6158 = vmatprep.subr.bf16.mxu0 0
        %6159 = vmatpush1.bf16.msra.mxu0 0
        %6160 = vmatprep.subr.bf16.mxu0 0
        %6161 = vmatpush1.bf16.msra.mxu0 0
        %6162 = vmatprep.subr.bf16.mxu0 0
        %6163 = vmatpush1.bf16.msra.mxu0 0
        %6164 = vmatprep.subr.bf16.mxu0 0
        %6165 = vmatpush1.bf16.msra.mxu0 0
        %6166 = vmatprep.subr.bf16.mxu0 0
        %6167 = vmatpush1.bf16.msra.mxu0 0
        %6168 = vmatprep.subr.bf16.mxu0 0
        %6169 = vmatpush1.bf16.msra.mxu0 0
        %6170 = vmatprep.subr.bf16.mxu0 0
        %6171 = vmatpush1.bf16.msra.mxu0 0
        %6172 = vmatprep.mubr.bf16.mxu0 0
        %6173 = vmatmul.mubr.bf16.gmra.mrb[0].mxu0 %v1040
        %v6174 = vpop.f32.mrb[0].mxu0
        %v6175 = vadd.f32 %v6123, %v6174
        %v6176 = vpop.f32.mrb[0].mxu0
        %v6177 = vpop.f32.mrb[0].mxu0
        %v6178 = vpop.f32.mrb[0].mxu0
        %6179 = vdwg.mxu0
        %v6180 = vld [vmem:[%s9] sm:$0x1]
        %v6182 = vlaneseq
        %v6183 = vshrl.u32 %v6182, 7
        %v6184 = vsub.s32 0, %v6183
        %v6185 = vrot.slane %v6180, %v6184
        %v6187 = vadd.f32 %v6175, %v6185
        %v6189 = vlaneseq
        %v6190 = vshrl.u32 %v6189, 7
        %v6191 = vsub.s32 0, %v6190
        %v6192 = vrot.slane %v5995, %v6191
        %v6194 = vmul.f32 %v6187, %v6192
        %v6196 = vcombine.high %v6194, %v6194
        %v6198 = vunpack.c.l.s4 1966171168
        %v6199 = vunpack.c.0.s8 %v6198
        %v6200 = vlaneseq
        %v6201 = vshrl.u32 %v6200, 7
        %v6202 = vsub.s32 %v6199, %v6201
        %v6203 = vrot.slane %v6194, %v6202
        %v6205 = vunpack.c.l.s4 1966171168
        %v6206 = vunpack.c.0.s8 %v6205
        %v6207 = vlaneseq
        %v6208 = vshrl.u32 %v6207, 7
        %v6209 = vsub.s32 %v6206, %v6208
        %v6210 = vrot.slane %v6196, %v6209
        %v6211 = vcombine.high %v6203, %v6203
        %v6212 = vcombine.high %v6210, %v6210
        %v6214 = vunpack.c.l.s4 1966171168
        %v6215 = vunpack.c.0.s8 %v6214
        %v6216 = vlaneseq
        %v6217 = vshrl.u32 %v6216, 7
        %v6218 = vsub.s32 %v6215, %v6217
        %v6219 = vrot.slane %v6203, %v6218
        %v6221 = vunpack.c.l.s4 1966171168
        %v6222 = vunpack.c.0.s8 %v6221
        %v6223 = vlaneseq
        %v6224 = vshrl.u32 %v6223, 7
        %v6225 = vsub.s32 %v6222, %v6224
        %v6226 = vrot.slane %v6210, %v6225
        %v6228 = vunpack.c.l.s4 1966171168
        %v6229 = vunpack.c.0.s8 %v6228
        %v6230 = vlaneseq
        %v6231 = vshrl.u32 %v6230, 7
        %v6232 = vsub.s32 %v6229, %v6231
        %v6233 = vrot.slane %v6211, %v6232
        %v6235 = vunpack.c.l.s4 1966171168
        %v6236 = vunpack.c.0.s8 %v6235
        %v6237 = vlaneseq
        %v6238 = vshrl.u32 %v6237, 7
        %v6239 = vsub.s32 %v6236, %v6238
        %v6240 = vrot.slane %v6212, %v6239
        %v6241 = vcombine.high %v6219, %v6219
        %v6242 = vcombine.high %v6226, %v6226
        %v6243 = vcombine.high %v6233, %v6233
        %v6244 = vcombine.high %v6240, %v6240
        %v6245 = vlaneseq
        %v6246 = vshrl.u32 %v6245, 7
        %v6247 = vsub.s32 0, %v6246
        %v6248 = vrot.slane %v6219, %v6247
        %v6249 = vlaneseq
        %v6250 = vshrl.u32 %v6249, 7
        %v6251 = vsub.s32 0, %v6250
        %v6252 = vrot.slane %v6233, %v6251
        %v6253 = vlaneseq
        %v6254 = vshrl.u32 %v6253, 7
        %v6255 = vsub.s32 0, %v6254
        %v6256 = vrot.slane %v6241, %v6255
        %v6257 = vlaneseq
        %v6258 = vshrl.u32 %v6257, 7
        %v6259 = vsub.s32 0, %v6258
        %v6260 = vrot.slane %v6243, %v6259
        %v6261 = vlaneseq
        %v6262 = vshrl.u32 %v6261, 7
        %v6263 = vsub.s32 0, %v6262
        %v6264 = vrot.slane %v6226, %v6263
        %v6265 = vlaneseq
        %v6266 = vshrl.u32 %v6265, 7
        %v6267 = vsub.s32 0, %v6266
        %v6268 = vrot.slane %v6240, %v6267
        %v6269 = vlaneseq
        %v6270 = vshrl.u32 %v6269, 7
        %v6271 = vsub.s32 0, %v6270
        %v6272 = vrot.slane %v6242, %v6271
        %v6273 = vlaneseq
        %v6274 = vshrl.u32 %v6273, 7
        %v6275 = vsub.s32 0, %v6274
        %v6276 = vrot.slane %v6244, %v6275
        %v6285 = vmul.f32 %v5987, %v6248
        %v6286 = vmul.f32 %v5988, %v6252
        %v6287 = vmul.f32 %v5989, %v6256
        %v6288 = vmul.f32 %v5990, %v6260
        %v6289 = vmul.f32 %v5991, %v6264
        %v6290 = vmul.f32 %v5992, %v6268
        %v6291 = vmul.f32 %v5993, %v6272
        %v6292 = vmul.f32 %v5994, %v6276
        %v6293 = vsel %vm618, %v6285, 0.0
        %6294 = vadd.xlane.f32.xlu0 %v6293
        %v6295 = vpop.xlane.xlu0 %6294
        %v6296 = vsel %vm618, %v6286, 0.0
        %6297 = vadd.xlane.f32.xlu0 %v6296
        %v6298 = vpop.xlane.xlu0 %6297
        %v6299 = vsel %vm618, %v6287, 0.0
        %6300 = vadd.xlane.f32.xlu0 %v6299
        %v6301 = vpop.xlane.xlu0 %6300
        %v6302 = vsel %vm618, %v6288, 0.0
        %6303 = vadd.xlane.f32.xlu0 %v6302
        %v6304 = vpop.xlane.xlu0 %6303
        %v6305 = vsel %vm618, %v6289, 0.0
        %6306 = vadd.xlane.f32.xlu0 %v6305
        %v6307 = vpop.xlane.xlu0 %6306
        %v6308 = vsel %vm618, %v6290, 0.0
        %6309 = vadd.xlane.f32.xlu0 %v6308
        %v6310 = vpop.xlane.xlu0 %6309
        %v6311 = vsel %vm618, %v6291, 0.0
        %6312 = vadd.xlane.f32.xlu0 %v6311
        %v6313 = vpop.xlane.xlu0 %6312
        %v6314 = vsel %vm618, %v6292, 0.0
        %6315 = vadd.xlane.f32.xlu0 %v6314
        %v6316 = vpop.xlane.xlu0 %6315
        %v6317 = vstv %s5996
        %v6318 = vadd.f32 %v6295, %v6317
        %v6319 = vadd.f32 %v6298, %v6317
        %v6320 = vadd.f32 %v6301, %v6317
        %v6321 = vadd.f32 %v6304, %v6317
        %v6322 = vadd.f32 %v6307, %v6317
        %v6323 = vadd.f32 %v6310, %v6317
        %v6324 = vadd.f32 %v6313, %v6317
        %v6325 = vadd.f32 %v6316, %v6317
        %v6334 = vlaneseq
        %v6335 = vand.u32 %v6334, 127
        %v6336 = vlaneseq
        %v6337 = vshrl.u32 %v6336, 7
        %v6338 = vsub.s32 %v6335, %v6337
        %v6339 = vrot.slane %v6318, %v6338
        %v6340 = vlaneseq
        %v6341 = vshrl.u32 %v6340, 7
        %v6342 = vsub.s32 %v6335, %v6341
        %v6343 = vrot.slane %v6319, %v6342
        %v6344 = vlaneseq
        %v6345 = vshrl.u32 %v6344, 7
        %v6346 = vsub.s32 %v6335, %v6345
        %v6347 = vrot.slane %v6320, %v6346
        %v6348 = vlaneseq
        %v6349 = vshrl.u32 %v6348, 7
        %v6350 = vsub.s32 %v6335, %v6349
        %v6351 = vrot.slane %v6321, %v6350
        %v6352 = vlaneseq
        %v6353 = vshrl.u32 %v6352, 7
        %v6354 = vsub.s32 %v6335, %v6353
        %v6355 = vrot.slane %v6322, %v6354
        %v6356 = vlaneseq
        %v6357 = vshrl.u32 %v6356, 7
        %v6358 = vsub.s32 %v6335, %v6357
        %v6359 = vrot.slane %v6323, %v6358
        %v6360 = vlaneseq
        %v6361 = vshrl.u32 %v6360, 7
        %v6362 = vsub.s32 %v6335, %v6361
        %v6363 = vrot.slane %v6324, %v6362
        %v6364 = vlaneseq
        %v6365 = vshrl.u32 %v6364, 7
        %v6366 = vsub.s32 %v6335, %v6365
        %v6367 = vrot.slane %v6325, %v6366
        %v6368 = vsel %vm1564, %v6343, %v6339
        %v6369 = vsel %vm1567, %v6347, %v6368
        %v6370 = vsel %vm1570, %v6351, %v6369
        %v6371 = vsel %vm1573, %v6355, %v6370
        %v6372 = vsel %vm1576, %v6359, %v6371
        %v6373 = vsel %vm1579, %v6363, %v6372
        %v6374 = vsel %vm1582, %v6367, %v6373
        %v6376 = vsel %vm1018, %v6374, -1e+20
        %vm6377 = vcmask 64512
        %v6378 = vsel %vm6377, %v6376, -inf
        %6379 = vmax.xlane.f32.xlu0 %v6378
        %v6380 = vpop.xlane.xlu0 %6379
        %v6381 = vsub.f32 %v6376, %v6380
        %v6382 = vmul.f32 %v6381, 1.442695
        %v6383 = vpow.pop %v6382
        %v6384 = vsel %vm6377, %v6383, 0.0
        %6385 = vadd.xlane.f32.xlu0 %v6384
        %v6386 = vpop.xlane.xlu0 %6385
        %v6387 = vrcp.pop %v6386
        %v6388 = vmul.f32 %v6383, %v6387
        %v6389 = vlaneseq
        %v6390 = vshrl.u32 %v6389, 7
        %v6391 = vsub.s32 0, %v6390
        %v6392 = vrot.slane %v6388, %v6391
        %6394 = vbcast.lane.b32.xlu0 %v6392, 256
        %v6395 = vpop.permute.xlu0 %6394
        %v6396 = vlaneseq
        %v6397 = vshrl.u32 %v6396, 7
        %v6398 = vsub.s32 1, %v6397
        %v6399 = vrot.slane %v6388, %v6398
        %6401 = vbcast.lane.b32.xlu0 %v6399, 256
        %v6402 = vpop.permute.xlu0 %6401
        %v6403 = vlaneseq
        %v6404 = vshrl.u32 %v6403, 7
        %v6405 = vsub.s32 2, %v6404
        %v6406 = vrot.slane %v6388, %v6405
        %6408 = vbcast.lane.b32.xlu0 %v6406, 256
        %v6409 = vpop.permute.xlu0 %6408
        %v6410 = vlaneseq
        %v6411 = vshrl.u32 %v6410, 7
        %v6412 = vsub.s32 3, %v6411
        %v6413 = vrot.slane %v6388, %v6412
        %6415 = vbcast.lane.b32.xlu0 %v6413, 256
        %v6416 = vpop.permute.xlu0 %6415
        %v6417 = vlaneseq
        %v6418 = vshrl.u32 %v6417, 7
        %v6419 = vsub.s32 4, %v6418
        %v6420 = vrot.slane %v6388, %v6419
        %6422 = vbcast.lane.b32.xlu0 %v6420, 256
        %v6423 = vpop.permute.xlu0 %6422
        %v6424 = vlaneseq
        %v6425 = vshrl.u32 %v6424, 7
        %v6426 = vsub.s32 5, %v6425
        %v6427 = vrot.slane %v6388, %v6426
        %6429 = vbcast.lane.b32.xlu0 %v6427, 256
        %v6430 = vpop.permute.xlu0 %6429
        %v6431 = vlaneseq
        %v6432 = vshrl.u32 %v6431, 7
        %v6433 = vsub.s32 6, %v6432
        %v6434 = vrot.slane %v6388, %v6433
        %6436 = vbcast.lane.b32.xlu0 %v6434, 256
        %v6437 = vpop.permute.xlu0 %6436
        %v6438 = vlaneseq
        %v6439 = vshrl.u32 %v6438, 7
        %v6440 = vsub.s32 7, %v6439
        %v6441 = vrot.slane %v6388, %v6440
        %6443 = vbcast.lane.b32.xlu0 %v6441, 256
        %v6444 = vpop.permute.xlu0 %6443
        %v6445 = vmul.f32 %v6395, %v5987
        %v6446 = vmul.f32 %v6402, %v5988
        %v6447 = vmul.f32 %v6409, %v5989
        %v6448 = vmul.f32 %v6416, %v5990
        %v6449 = vmul.f32 %v6423, %v5991
        %v6450 = vmul.f32 %v6430, %v5992
        %v6451 = vmul.f32 %v6437, %v5993
        %v6452 = vmul.f32 %v6444, %v5994
        %v6453 = vsel %vm618, %v6445, 0.0
        %v6454 = vrot.slane %v6453, 4
        %v6455 = vadd.f32 %v6453, %v6454
        %v6456 = vrot.slane %v6455, 2
        %v6457 = vadd.f32 %v6455, %v6456
        %v6458 = vrot.slane %v6457, 1
        %v6459 = vadd.f32 %v6457, %v6458
        %v6460 = vsel %vm618, %v6446, 0.0
        %v6461 = vrot.slane %v6460, 4
        %v6462 = vadd.f32 %v6460, %v6461
        %v6463 = vrot.slane %v6462, 2
        %v6464 = vadd.f32 %v6462, %v6463
        %v6465 = vrot.slane %v6464, 1
        %v6466 = vadd.f32 %v6464, %v6465
        %v6467 = vsel %vm618, %v6447, 0.0
        %v6468 = vrot.slane %v6467, 4
        %v6469 = vadd.f32 %v6467, %v6468
        %v6470 = vrot.slane %v6469, 2
        %v6471 = vadd.f32 %v6469, %v6470
        %v6472 = vrot.slane %v6471, 1
        %v6473 = vadd.f32 %v6471, %v6472
        %v6474 = vsel %vm618, %v6448, 0.0
        %v6475 = vrot.slane %v6474, 4
        %v6476 = vadd.f32 %v6474, %v6475
        %v6477 = vrot.slane %v6476, 2
        %v6478 = vadd.f32 %v6476, %v6477
        %v6479 = vrot.slane %v6478, 1
        %v6480 = vadd.f32 %v6478, %v6479
        %v6481 = vsel %vm618, %v6449, 0.0
        %v6482 = vrot.slane %v6481, 4
        %v6483 = vadd.f32 %v6481, %v6482
        %v6484 = vrot.slane %v6483, 2
        %v6485 = vadd.f32 %v6483, %v6484
        %v6486 = vrot.slane %v6485, 1
        %v6487 = vadd.f32 %v6485, %v6486
        %v6488 = vsel %vm618, %v6450, 0.0
        %v6489 = vrot.slane %v6488, 4
        %v6490 = vadd.f32 %v6488, %v6489
        %v6491 = vrot.slane %v6490, 2
        %v6492 = vadd.f32 %v6490, %v6491
        %v6493 = vrot.slane %v6492, 1
        %v6494 = vadd.f32 %v6492, %v6493
        %v6495 = vsel %vm618, %v6451, 0.0
        %v6496 = vrot.slane %v6495, 4
        %v6497 = vadd.f32 %v6495, %v6496
        %v6498 = vrot.slane %v6497, 2
        %v6499 = vadd.f32 %v6497, %v6498
        %v6500 = vrot.slane %v6499, 1
        %v6501 = vadd.f32 %v6499, %v6500
        %v6502 = vsel %vm618, %v6452, 0.0
        %v6503 = vrot.slane %v6502, 4
        %v6504 = vadd.f32 %v6502, %v6503
        %v6505 = vrot.slane %v6504, 2
        %v6506 = vadd.f32 %v6504, %v6505
        %v6507 = vrot.slane %v6506, 1
        %v6508 = vadd.f32 %v6506, %v6507
        %v6517 = vsel %vm1564, %v6466, %v6459
        %v6518 = vsel %vm1567, %v6473, %v6517
        %v6519 = vsel %vm1570, %v6480, %v6518
        %v6520 = vsel %vm1573, %v6487, %v6519
        %v6521 = vsel %vm1576, %v6494, %v6520
        %v6522 = vsel %vm1579, %v6501, %v6521
        %v6523 = vsel %vm1582, %v6508, %v6522
        %6525 = vst.msk [vmem:[%s547] sm:$0xff] %vm618, %v6523
        %6526 = vst.msk [vmem:[%s560] sm:$0xff] %vm6377, %v6388
        %s6527 = scalar_lea.vmem [#allocation14], 16
        %v6528 = vld [vmem:[%s6527] sm:$0xf]
        %v6529 = vld [vmem:[%s6527 + $0x4] sm:$0xf]
        %v6530 = vld [vmem:[%s6527 + $0x8] sm:$0xf]
        %v6531 = vld [vmem:[%s6527 + $0xc] sm:$0xf]
        %s6532 = scalar_lea.vmem %s6, 1
        %v6533 = vld [vmem:[%s6532] sm:$0x1]
        %v6535 = vlaneseq
        %v6536 = vshrl.u32 %v6535, 7
        %v6537 = vsub.s32 0, %v6536
        %v6538 = vrot.slane %v6533, %v6537
        %v6544 = vunpack.c.l.b16 %v6528
        %v6545 = vunpack.c.l.b16 %v6529
        %v6546 = vunpack.c.l.b16 %v6530
        %v6547 = vunpack.c.l.b16 %v6531
        %v6548 = vpack.c.b16 %v6545, %v6544
        %v6549 = vpack.c.b16 %v6547, %v6546
        %6552 = vmatprep.subr.bf16.mxu0 0
        %6553 = vmatpush1.bf16.msra.mxu0 %v6548
        %6554 = vmatprep.subr.bf16.mxu0 0
        %6555 = vmatpush1.bf16.msra.mxu0 %v6549
        %6556 = vmatprep.subr.bf16.mxu0 0
        %6557 = vmatpush1.bf16.msra.mxu0 0
        %6558 = vmatprep.subr.bf16.mxu0 0
        %6559 = vmatpush1.bf16.msra.mxu0 0
        %6560 = vmatprep.subr.bf16.mxu0 0
        %6561 = vmatpush1.bf16.msra.mxu0 0
        %6562 = vmatprep.subr.bf16.mxu0 0
        %6563 = vmatpush1.bf16.msra.mxu0 0
        %6564 = vmatprep.subr.bf16.mxu0 0
        %6565 = vmatpush1.bf16.msra.mxu0 0
        %6566 = vmatprep.subr.bf16.mxu0 0
        %6567 = vmatpush1.bf16.msra.mxu0 0
        %6568 = vmatprep.subr.bf16.mxu0 0
        %6569 = vmatpush1.bf16.msra.mxu0 0
        %6570 = vmatprep.subr.bf16.mxu0 0
        %6571 = vmatpush1.bf16.msra.mxu0 0
        %6572 = vmatprep.subr.bf16.mxu0 0
        %6573 = vmatpush1.bf16.msra.mxu0 0
        %6574 = vmatprep.subr.bf16.mxu0 0
        %6575 = vmatpush1.bf16.msra.mxu0 0
        %6576 = vmatprep.subr.bf16.mxu0 0
        %6577 = vmatpush1.bf16.msra.mxu0 0
        %6578 = vmatprep.subr.bf16.mxu0 0
        %6579 = vmatpush1.bf16.msra.mxu0 0
        %6580 = vmatprep.subr.bf16.mxu0 0
        %6581 = vmatpush1.bf16.msra.mxu0 0
        %6582 = vmatprep.subr.bf16.mxu0 0
        %6583 = vmatpush1.bf16.msra.mxu0 0
        %6584 = vmatprep.mubr.bf16.mxu0 0
        %6585 = vmatmul.mubr.bf16.gmra.mrb[0].mxu0 %v6022
        %v6586 = vpop.f32.mrb[0].mxu0
        %v6587 = vadd.f32 %v6538, %v6586
        %v6588 = vpop.f32.mrb[0].mxu0
        %v6589 = vpop.f32.mrb[0].mxu0
        %v6590 = vpop.f32.mrb[0].mxu0
        %6591 = vdwg.mxu0
        %v6592 = vpack.c.bf16 %v6459, %v6459
        %v6593 = vpack.c.bf16 %v6466, %v6466
        %v6594 = vpack.c.bf16 %v6473, %v6473
        %v6595 = vpack.c.bf16 %v6480, %v6480
        %v6596 = vpack.c.bf16 %v6487, %v6487
        %v6597 = vpack.c.bf16 %v6494, %v6494
        %v6598 = vpack.c.bf16 %v6501, %v6501
        %v6599 = vpack.c.bf16 %v6508, %v6508
        %v6600 = vld [vmem:[%s7] sm:$0xf]
        %v6601 = vld [vmem:[%s7 + $0x4] sm:$0xf]
        %v6602 = vld [vmem:[%s7 + $0x8] sm:$0xf]
        %v6603 = vld [vmem:[%s7 + $0xc] sm:$0xf]
        %v6604 = vpack.c.bf16 %v6587, %v6587
        %v6605 = vld [vmem:[%s8] sm:$0xf]
        %v6606 = vld [vmem:[%s8 + $0x4] sm:$0xf]
        %v6607 = vld [vmem:[%s8 + $0x8] sm:$0xf]
        %v6608 = vld [vmem:[%s8 + $0xc] sm:$0xf]
        %v6613 = vunpack.c.l.b16 %v6605
        %v6614 = vunpack.c.l.b16 %v6606
        %v6615 = vunpack.c.l.b16 %v6607
        %v6616 = vunpack.c.l.b16 %v6608
        %v6617 = vpack.c.b16 %v6614, %v6613
        %v6618 = vpack.c.b16 %v6616, %v6615
        %v6622 = vsel %vm618, %v6604, 0
        %6624 = vmatprep.subr.bf16.mxu0 0
        %6625 = vmatpush1.bf16.msra.mxu0 %v6617
        %6626 = vmatprep.subr.bf16.mxu0 0
        %6627 = vmatpush1.bf16.msra.mxu0 %v6618
        %6628 = vmatprep.subr.bf16.mxu0 0
        %6629 = vmatpush1.bf16.msra.mxu0 0
        %6630 = vmatprep.subr.bf16.mxu0 0
        %6631 = vmatpush1.bf16.msra.mxu0 0
        %6632 = vmatprep.subr.bf16.mxu0 0
        %6633 = vmatpush1.bf16.msra.mxu0 0
        %6634 = vmatprep.subr.bf16.mxu0 0
        %6635 = vmatpush1.bf16.msra.mxu0 0
        %6636 = vmatprep.subr.bf16.mxu0 0
        %6637 = vmatpush1.bf16.msra.mxu0 0
        %6638 = vmatprep.subr.bf16.mxu0 0
        %6639 = vmatpush1.bf16.msra.mxu0 0
        %6640 = vmatprep.subr.bf16.mxu0 0
        %6641 = vmatpush1.bf16.msra.mxu0 0
        %6642 = vmatprep.subr.bf16.mxu0 0
        %6643 = vmatpush1.bf16.msra.mxu0 0
        %6644 = vmatprep.subr.bf16.mxu0 0
        %6645 = vmatpush1.bf16.msra.mxu0 0
        %6646 = vmatprep.subr.bf16.mxu0 0
        %6647 = vmatpush1.bf16.msra.mxu0 0
        %6648 = vmatprep.subr.bf16.mxu0 0
        %6649 = vmatpush1.bf16.msra.mxu0 0
        %6650 = vmatprep.subr.bf16.mxu0 0
        %6651 = vmatpush1.bf16.msra.mxu0 0
        %6652 = vmatprep.subr.bf16.mxu0 0
        %6653 = vmatpush1.bf16.msra.mxu0 0
        %6654 = vmatprep.subr.bf16.mxu0 0
        %6655 = vmatpush1.bf16.msra.mxu0 0
        %6656 = vmatprep.mubr.bf16.mxu0 0
        %6657 = vmatmul.mubr.bf16.gmra.mrb[0].mxu0 %v6622
        %v6658 = vpop.f32.mrb[0].mxu0
        %v6659 = vadd.f32 0.0, %v6658
        %v6660 = vpop.f32.mrb[0].mxu0
        %v6661 = vpop.f32.mrb[0].mxu0
        %v6662 = vpop.f32.mrb[0].mxu0
        %6663 = vdwg.mxu0
        %v6672 = vunpack.c.l.b16 %v6592
        %v6673 = vunpack.c.l.b16 %v6593
        %v6674 = vunpack.c.l.b16 %v6594
        %v6675 = vunpack.c.l.b16 %v6595
        %v6676 = vunpack.c.l.b16 %v6596
        %v6677 = vunpack.c.l.b16 %v6597
        %v6678 = vunpack.c.l.b16 %v6598
        %v6679 = vunpack.c.l.b16 %v6599
        %v6680 = vsel %vm1564, %v6673, %v6672
        %v6681 = vsel %vm1567, %v6674, %v6680
        %v6682 = vsel %vm1570, %v6675, %v6681
        %v6683 = vsel %vm1573, %v6676, %v6682
        %v6684 = vsel %vm1576, %v6677, %v6683
        %v6685 = vsel %vm1579, %v6678, %v6684
        %v6686 = vsel %vm1582, %v6679, %v6685
        %v6687 = vpack.c.b16 %v6686, %v6686
        %v6692 = vunpack.c.l.b16 %v6600
        %v6693 = vunpack.c.l.b16 %v6601
        %v6694 = vunpack.c.l.b16 %v6602
        %v6695 = vunpack.c.l.b16 %v6603
        %v6696 = vpack.c.b16 %v6693, %v6692
        %v6697 = vpack.c.b16 %v6695, %v6694
        %v6701 = vsel %vm618, %v6687, 0
        %6703 = vmatprep.subr.bf16.mxu0 0
        %6704 = vmatpush1.bf16.msra.mxu0 %v6696
        %6705 = vmatprep.subr.bf16.mxu0 0
        %6706 = vmatpush1.bf16.msra.mxu0 %v6697
        %6707 = vmatprep.subr.bf16.mxu0 0
        %6708 = vmatpush1.bf16.msra.mxu0 0
        %6709 = vmatprep.subr.bf16.mxu0 0
        %6710 = vmatpush1.bf16.msra.mxu0 0
        %6711 = vmatprep.subr.bf16.mxu0 0
        %6712 = vmatpush1.bf16.msra.mxu0 0
        %6713 = vmatprep.subr.bf16.mxu0 0
        %6714 = vmatpush1.bf16.msra.mxu0 0
        %6715 = vmatprep.subr.bf16.mxu0 0
        %6716 = vmatpush1.bf16.msra.mxu0 0
        %6717 = vmatprep.subr.bf16.mxu0 0
        %6718 = vmatpush1.bf16.msra.mxu0 0
        %6719 = vmatprep.subr.bf16.mxu0 0
        %6720 = vmatpush1.bf16.msra.mxu0 0
        %6721 = vmatprep.subr.bf16.mxu0 0
        %6722 = vmatpush1.bf16.msra.mxu0 0
        %6723 = vmatprep.subr.bf16.mxu0 0
        %6724 = vmatpush1.bf16.msra.mxu0 0
        %6725 = vmatprep.subr.bf16.mxu0 0
        %6726 = vmatpush1.bf16.msra.mxu0 0
        %6727 = vmatprep.subr.bf16.mxu0 0
        %6728 = vmatpush1.bf16.msra.mxu0 0
        %6729 = vmatprep.subr.bf16.mxu0 0
        %6730 = vmatpush1.bf16.msra.mxu0 0
        %6731 = vmatprep.subr.bf16.mxu0 0
        %6732 = vmatpush1.bf16.msra.mxu0 0
        %6733 = vmatprep.subr.bf16.mxu0 0
        %6734 = vmatpush1.bf16.msra.mxu0 0
        %6735 = vmatprep.mubr.bf16.mxu0 0
        %6736 = vmatmul.mubr.bf16.gmra.mrb[0].mxu0 %v6701
        %v6737 = vpop.f32.mrb[0].mxu0
        %v6738 = vadd.f32 %v6659, %v6737
        %v6739 = vpop.f32.mrb[0].mxu0
        %v6740 = vpop.f32.mrb[0].mxu0
        %v6741 = vpop.f32.mrb[0].mxu0
        %6742 = vdwg.mxu0
        %v6743 = vld [vmem:[%s9] sm:$0x1]
        %v6745 = vlaneseq
        %v6746 = vshrl.u32 %v6745, 7
        %v6747 = vsub.s32 0, %v6746
        %v6748 = vrot.slane %v6743, %v6747
        %v6750 = vadd.f32 %v6738, %v6748
        %v6751 = vmul.f32 %v6750, %v6192
        %v6753 = vcombine.high %v6751, %v6751
        %v6755 = vunpack.c.l.s4 1966171168
        %v6756 = vunpack.c.0.s8 %v6755
        %v6757 = vlaneseq
        %v6758 = vshrl.u32 %v6757, 7
        %v6759 = vsub.s32 %v6756, %v6758
        %v6760 = vrot.slane %v6751, %v6759
        %v6762 = vunpack.c.l.s4 1966171168
        %v6763 = vunpack.c.0.s8 %v6762
        %v6764 = vlaneseq
        %v6765 = vshrl.u32 %v6764, 7
        %v6766 = vsub.s32 %v6763, %v6765
        %v6767 = vrot.slane %v6753, %v6766
        %v6768 = vcombine.high %v6760, %v6760
        %v6769 = vcombine.high %v6767, %v6767
        %v6771 = vunpack.c.l.s4 1966171168
        %v6772 = vunpack.c.0.s8 %v6771
        %v6773 = vlaneseq
        %v6774 = vshrl.u32 %v6773, 7
        %v6775 = vsub.s32 %v6772, %v6774
        %v6776 = vrot.slane %v6760, %v6775
        %v6778 = vunpack.c.l.s4 1966171168
        %v6779 = vunpack.c.0.s8 %v6778
        %v6780 = vlaneseq
        %v6781 = vshrl.u32 %v6780, 7
        %v6782 = vsub.s32 %v6779, %v6781
        %v6783 = vrot.slane %v6767, %v6782
        %v6785 = vunpack.c.l.s4 1966171168
        %v6786 = vunpack.c.0.s8 %v6785
        %v6787 = vlaneseq
        %v6788 = vshrl.u32 %v6787, 7
        %v6789 = vsub.s32 %v6786, %v6788
        %v6790 = vrot.slane %v6768, %v6789
        %v6792 = vunpack.c.l.s4 1966171168
        %v6793 = vunpack.c.0.s8 %v6792
        %v6794 = vlaneseq
        %v6795 = vshrl.u32 %v6794, 7
        %v6796 = vsub.s32 %v6793, %v6795
        %v6797 = vrot.slane %v6769, %v6796
        %v6798 = vcombine.high %v6776, %v6776
        %v6799 = vcombine.high %v6783, %v6783
        %v6800 = vcombine.high %v6790, %v6790
        %v6801 = vcombine.high %v6797, %v6797
        %v6802 = vlaneseq
        %v6803 = vshrl.u32 %v6802, 7
        %v6804 = vsub.s32 0, %v6803
        %v6805 = vrot.slane %v6776, %v6804
        %v6806 = vlaneseq
        %v6807 = vshrl.u32 %v6806, 7
        %v6808 = vsub.s32 0, %v6807
        %v6809 = vrot.slane %v6790, %v6808
        %v6810 = vlaneseq
        %v6811 = vshrl.u32 %v6810, 7
        %v6812 = vsub.s32 0, %v6811
        %v6813 = vrot.slane %v6798, %v6812
        %v6814 = vlaneseq
        %v6815 = vshrl.u32 %v6814, 7
        %v6816 = vsub.s32 0, %v6815
        %v6817 = vrot.slane %v6800, %v6816
        %v6818 = vlaneseq
        %v6819 = vshrl.u32 %v6818, 7
        %v6820 = vsub.s32 0, %v6819
        %v6821 = vrot.slane %v6783, %v6820
        %v6822 = vlaneseq
        %v6823 = vshrl.u32 %v6822, 7
        %v6824 = vsub.s32 0, %v6823
        %v6825 = vrot.slane %v6797, %v6824
        %v6826 = vlaneseq
        %v6827 = vshrl.u32 %v6826, 7
        %v6828 = vsub.s32 0, %v6827
        %v6829 = vrot.slane %v6799, %v6828
        %v6830 = vlaneseq
        %v6831 = vshrl.u32 %v6830, 7
        %v6832 = vsub.s32 0, %v6831
        %v6833 = vrot.slane %v6801, %v6832
        %v6842 = vmul.f32 %v5987, %v6805
        %v6843 = vmul.f32 %v5988, %v6809
        %v6844 = vmul.f32 %v5989, %v6813
        %v6845 = vmul.f32 %v5990, %v6817
        %v6846 = vmul.f32 %v5991, %v6821
        %v6847 = vmul.f32 %v5992, %v6825
        %v6848 = vmul.f32 %v5993, %v6829
        %v6849 = vmul.f32 %v5994, %v6833
        %v6850 = vsel %vm618, %v6842, 0.0
        %6851 = vadd.xlane.f32.xlu0 %v6850
        %v6852 = vpop.xlane.xlu0 %6851
        %v6853 = vsel %vm618, %v6843, 0.0
        %6854 = vadd.xlane.f32.xlu0 %v6853
        %v6855 = vpop.xlane.xlu0 %6854
        %v6856 = vsel %vm618, %v6844, 0.0
        %6857 = vadd.xlane.f32.xlu0 %v6856
        %v6858 = vpop.xlane.xlu0 %6857
        %v6859 = vsel %vm618, %v6845, 0.0
        %6860 = vadd.xlane.f32.xlu0 %v6859
        %v6861 = vpop.xlane.xlu0 %6860
        %v6862 = vsel %vm618, %v6846, 0.0
        %6863 = vadd.xlane.f32.xlu0 %v6862
        %v6864 = vpop.xlane.xlu0 %6863
        %v6865 = vsel %vm618, %v6847, 0.0
        %6866 = vadd.xlane.f32.xlu0 %v6865
        %v6867 = vpop.xlane.xlu0 %6866
        %v6868 = vsel %vm618, %v6848, 0.0
        %6869 = vadd.xlane.f32.xlu0 %v6868
        %v6870 = vpop.xlane.xlu0 %6869
        %v6871 = vsel %vm618, %v6849, 0.0
        %6872 = vadd.xlane.f32.xlu0 %v6871
        %v6873 = vpop.xlane.xlu0 %6872
        %v6874 = vadd.f32 %v6852, %v6317
        %v6875 = vadd.f32 %v6855, %v6317
        %v6876 = vadd.f32 %v6858, %v6317
        %v6877 = vadd.f32 %v6861, %v6317
        %v6878 = vadd.f32 %v6864, %v6317
        %v6879 = vadd.f32 %v6867, %v6317
        %v6880 = vadd.f32 %v6870, %v6317
        %v6881 = vadd.f32 %v6873, %v6317
        %v6890 = vlaneseq
        %v6891 = vshrl.u32 %v6890, 7
        %v6892 = vsub.s32 %v6335, %v6891
        %v6893 = vrot.slane %v6874, %v6892
        %v6894 = vlaneseq
        %v6895 = vshrl.u32 %v6894, 7
        %v6896 = vsub.s32 %v6335, %v6895
        %v6897 = vrot.slane %v6875, %v6896
        %v6898 = vlaneseq
        %v6899 = vshrl.u32 %v6898, 7
        %v6900 = vsub.s32 %v6335, %v6899
        %v6901 = vrot.slane %v6876, %v6900
        %v6902 = vlaneseq
        %v6903 = vshrl.u32 %v6902, 7
        %v6904 = vsub.s32 %v6335, %v6903
        %v6905 = vrot.slane %v6877, %v6904
        %v6906 = vlaneseq
        %v6907 = vshrl.u32 %v6906, 7
        %v6908 = vsub.s32 %v6335, %v6907
        %v6909 = vrot.slane %v6878, %v6908
        %v6910 = vlaneseq
        %v6911 = vshrl.u32 %v6910, 7
        %v6912 = vsub.s32 %v6335, %v6911
        %v6913 = vrot.slane %v6879, %v6912
        %v6914 = vlaneseq
        %v6915 = vshrl.u32 %v6914, 7
        %v6916 = vsub.s32 %v6335, %v6915
        %v6917 = vrot.slane %v6880, %v6916
        %v6918 = vlaneseq
        %v6919 = vshrl.u32 %v6918, 7
        %v6920 = vsub.s32 %v6335, %v6919
        %v6921 = vrot.slane %v6881, %v6920
        %v6922 = vsel %vm1564, %v6897, %v6893
        %v6923 = vsel %vm1567, %v6901, %v6922
        %v6924 = vsel %vm1570, %v6905, %v6923
        %v6925 = vsel %vm1573, %v6909, %v6924
        %v6926 = vsel %vm1576, %v6913, %v6925
        %v6927 = vsel %vm1579, %v6917, %v6926
        %v6928 = vsel %vm1582, %v6921, %v6927
        %v6930 = vsel %vm1018, %v6928, -1e+20
        %v6931 = vsel %vm6377, %v6930, -inf
        %6932 = vmax.xlane.f32.xlu0 %v6931
        %v6933 = vpop.xlane.xlu0 %6932
        %v6934 = vsub.f32 %v6930, %v6933
        %v6935 = vmul.f32 %v6934, 1.442695
        %v6936 = vpow.pop %v6935
        %v6937 = vsel %vm6377, %v6936, 0.0
        %6938 = vadd.xlane.f32.xlu0 %v6937
        %v6939 = vpop.xlane.xlu0 %6938
        %v6940 = vrcp.pop %v6939
        %v6941 = vmul.f32 %v6936, %v6940
        %v6942 = vlaneseq
        %v6943 = vshrl.u32 %v6942, 7
        %v6944 = vsub.s32 0, %v6943
        %v6945 = vrot.slane %v6941, %v6944
        %6947 = vbcast.lane.b32.xlu0 %v6945, 256
        %v6948 = vpop.permute.xlu0 %6947
        %v6949 = vlaneseq
        %v6950 = vshrl.u32 %v6949, 7
        %v6951 = vsub.s32 1, %v6950
        %v6952 = vrot.slane %v6941, %v6951
        %6954 = vbcast.lane.b32.xlu0 %v6952, 256
        %v6955 = vpop.permute.xlu0 %6954
        %v6956 = vlaneseq
        %v6957 = vshrl.u32 %v6956, 7
        %v6958 = vsub.s32 2, %v6957
        %v6959 = vrot.slane %v6941, %v6958
        %6961 = vbcast.lane.b32.xlu0 %v6959, 256
        %v6962 = vpop.permute.xlu0 %6961
        %v6963 = vlaneseq
        %v6964 = vshrl.u32 %v6963, 7
        %v6965 = vsub.s32 3, %v6964
        %v6966 = vrot.slane %v6941, %v6965
        %6968 = vbcast.lane.b32.xlu0 %v6966, 256
        %v6969 = vpop.permute.xlu0 %6968
        %v6970 = vlaneseq
        %v6971 = vshrl.u32 %v6970, 7
        %v6972 = vsub.s32 4, %v6971
        %v6973 = vrot.slane %v6941, %v6972
        %6975 = vbcast.lane.b32.xlu0 %v6973, 256
        %v6976 = vpop.permute.xlu0 %6975
        %v6977 = vlaneseq
        %v6978 = vshrl.u32 %v6977, 7
        %v6979 = vsub.s32 5, %v6978
        %v6980 = vrot.slane %v6941, %v6979
        %6982 = vbcast.lane.b32.xlu0 %v6980, 256
        %v6983 = vpop.permute.xlu0 %6982
        %v6984 = vlaneseq
        %v6985 = vshrl.u32 %v6984, 7
        %v6986 = vsub.s32 6, %v6985
        %v6987 = vrot.slane %v6941, %v6986
        %6989 = vbcast.lane.b32.xlu0 %v6987, 256
        %v6990 = vpop.permute.xlu0 %6989
        %v6991 = vlaneseq
        %v6992 = vshrl.u32 %v6991, 7
        %v6993 = vsub.s32 7, %v6992
        %v6994 = vrot.slane %v6941, %v6993
        %6996 = vbcast.lane.b32.xlu0 %v6994, 256
        %v6997 = vpop.permute.xlu0 %6996
        %v6998 = vmul.f32 %v6948, %v5987
        %v6999 = vmul.f32 %v6955, %v5988
        %v7000 = vmul.f32 %v6962, %v5989
        %v7001 = vmul.f32 %v6969, %v5990
        %v7002 = vmul.f32 %v6976, %v5991
        %v7003 = vmul.f32 %v6983, %v5992
        %v7004 = vmul.f32 %v6990, %v5993
        %v7005 = vmul.f32 %v6997, %v5994
        %v7006 = vsel %vm618, %v6998, 0.0
        %v7007 = vrot.slane %v7006, 4
        %v7008 = vadd.f32 %v7006, %v7007
        %v7009 = vrot.slane %v7008, 2
        %v7010 = vadd.f32 %v7008, %v7009
        %v7011 = vrot.slane %v7010, 1
        %v7012 = vadd.f32 %v7010, %v7011
        %v7013 = vsel %vm618, %v6999, 0.0
        %v7014 = vrot.slane %v7013, 4
        %v7015 = vadd.f32 %v7013, %v7014
        %v7016 = vrot.slane %v7015, 2
        %v7017 = vadd.f32 %v7015, %v7016
        %v7018 = vrot.slane %v7017, 1
        %v7019 = vadd.f32 %v7017, %v7018
        %v7020 = vsel %vm618, %v7000, 0.0
        %v7021 = vrot.slane %v7020, 4
        %v7022 = vadd.f32 %v7020, %v7021
        %v7023 = vrot.slane %v7022, 2
        %v7024 = vadd.f32 %v7022, %v7023
        %v7025 = vrot.slane %v7024, 1
        %v7026 = vadd.f32 %v7024, %v7025
        %v7027 = vsel %vm618, %v7001, 0.0
        %v7028 = vrot.slane %v7027, 4
        %v7029 = vadd.f32 %v7027, %v7028
        %v7030 = vrot.slane %v7029, 2
        %v7031 = vadd.f32 %v7029, %v7030
        %v7032 = vrot.slane %v7031, 1
        %v7033 = vadd.f32 %v7031, %v7032
        %v7034 = vsel %vm618, %v7002, 0.0
        %v7035 = vrot.slane %v7034, 4
        %v7036 = vadd.f32 %v7034, %v7035
        %v7037 = vrot.slane %v7036, 2
        %v7038 = vadd.f32 %v7036, %v7037
        %v7039 = vrot.slane %v7038, 1
        %v7040 = vadd.f32 %v7038, %v7039
        %v7041 = vsel %vm618, %v7003, 0.0
        %v7042 = vrot.slane %v7041, 4
        %v7043 = vadd.f32 %v7041, %v7042
        %v7044 = vrot.slane %v7043, 2
        %v7045 = vadd.f32 %v7043, %v7044
        %v7046 = vrot.slane %v7045, 1
        %v7047 = vadd.f32 %v7045, %v7046
        %v7048 = vsel %vm618, %v7004, 0.0
        %v7049 = vrot.slane %v7048, 4
        %v7050 = vadd.f32 %v7048, %v7049
        %v7051 = vrot.slane %v7050, 2
        %v7052 = vadd.f32 %v7050, %v7051
        %v7053 = vrot.slane %v7052, 1
        %v7054 = vadd.f32 %v7052, %v7053
        %v7055 = vsel %vm618, %v7005, 0.0
        %v7056 = vrot.slane %v7055, 4
        %v7057 = vadd.f32 %v7055, %v7056
        %v7058 = vrot.slane %v7057, 2
        %v7059 = vadd.f32 %v7057, %v7058
        %v7060 = vrot.slane %v7059, 1
        %v7061 = vadd.f32 %v7059, %v7060
        %v7070 = vsel %vm1564, %v7019, %v7012
        %v7071 = vsel %vm1567, %v7026, %v7070
        %v7072 = vsel %vm1570, %v7033, %v7071
        %v7073 = vsel %vm1573, %v7040, %v7072
        %v7074 = vsel %vm1576, %v7047, %v7073
        %v7075 = vsel %vm1579, %v7054, %v7074
        %v7076 = vsel %vm1582, %v7061, %v7075
        %s7078 = scalar_lea.vmem %s547, 8 [#allocation16]
        %7079 = vst.msk [vmem:[%s7078] sm:$0xff] %vm618, %v7076
        %s7080 = scalar_lea.vmem %s560, 8 [#allocation19]
        %7081 = vst.msk [vmem:[%s7080] sm:$0xff] %vm6377, %v6941
        %s7082 = scalar_lea.vmem [#allocation14], 32
        %v7083 = vld [vmem:[%s7082] sm:$0xf]
        %v7084 = vld [vmem:[%s7082 + $0x4] sm:$0xf]
        %v7085 = vld [vmem:[%s7082 + $0x8] sm:$0xf]
        %v7086 = vld [vmem:[%s7082 + $0xc] sm:$0xf]
        %s7087 = scalar_lea.vmem %s6, 2
        %v7088 = vld [vmem:[%s7087] sm:$0x1]
        %v7090 = vlaneseq
        %v7091 = vshrl.u32 %v7090, 7
        %v7092 = vsub.s32 0, %v7091
        %v7093 = vrot.slane %v7088, %v7092
        %v7099 = vunpack.c.l.b16 %v7083
        %v7100 = vunpack.c.l.b16 %v7084
        %v7101 = vunpack.c.l.b16 %v7085
        %v7102 = vunpack.c.l.b16 %v7086
        %v7103 = vpack.c.b16 %v7100, %v7099
        %v7104 = vpack.c.b16 %v7102, %v7101
        %7107 = vmatprep.subr.bf16.mxu0 0
        %7108 = vmatpush1.bf16.msra.mxu0 %v7103
        %7109 = vmatprep.subr.bf16.mxu0 0
        %7110 = vmatpush1.bf16.msra.mxu0 %v7104
        %7111 = vmatprep.subr.bf16.mxu0 0
        %7112 = vmatpush1.bf16.msra.mxu0 0
        %7113 = vmatprep.subr.bf16.mxu0 0
        %7114 = vmatpush1.bf16.msra.mxu0 0
        %7115 = vmatprep.subr.bf16.mxu0 0
        %7116 = vmatpush1.bf16.msra.mxu0 0
        %7117 = vmatprep.subr.bf16.mxu0 0
        %7118 = vmatpush1.bf16.msra.mxu0 0
        %7119 = vmatprep.subr.bf16.mxu0 0
        %7120 = vmatpush1.bf16.msra.mxu0 0
        %7121 = vmatprep.subr.bf16.mxu0 0
        %7122 = vmatpush1.bf16.msra.mxu0 0
        %7123 = vmatprep.subr.bf16.mxu0 0
        %7124 = vmatpush1.bf16.msra.mxu0 0
        %7125 = vmatprep.subr.bf16.mxu0 0
        %7126 = vmatpush1.bf16.msra.mxu0 0
        %7127 = vmatprep.subr.bf16.mxu0 0
        %7128 = vmatpush1.bf16.msra.mxu0 0
        %7129 = vmatprep.subr.bf16.mxu0 0
        %7130 = vmatpush1.bf16.msra.mxu0 0
        %7131 = vmatprep.subr.bf16.mxu0 0
        %7132 = vmatpush1.bf16.msra.mxu0 0
        %7133 = vmatprep.subr.bf16.mxu0 0
        %7134 = vmatpush1.bf16.msra.mxu0 0
        %7135 = vmatprep.subr.bf16.mxu0 0
        %7136 = vmatpush1.bf16.msra.mxu0 0
        %7137 = vmatprep.subr.bf16.mxu0 0
        %7138 = vmatpush1.bf16.msra.mxu0 0
        %7139 = vmatprep.mubr.bf16.mxu0 0
        %7140 = vmatmul.mubr.bf16.gmra.mrb[0].mxu0 %v6022
        %v7141 = vpop.f32.mrb[0].mxu0
        %v7142 = vadd.f32 %v7093, %v7141
        %v7143 = vpop.f32.mrb[0].mxu0
        %v7144 = vpop.f32.mrb[0].mxu0
        %v7145 = vpop.f32.mrb[0].mxu0
        %7146 = vdwg.mxu0
        %v7147 = vpack.c.bf16 %v7012, %v7012
        %v7148 = vpack.c.bf16 %v7019, %v7019
        %v7149 = vpack.c.bf16 %v7026, %v7026
        %v7150 = vpack.c.bf16 %v7033, %v7033
        %v7151 = vpack.c.bf16 %v7040, %v7040
        %v7152 = vpack.c.bf16 %v7047, %v7047
        %v7153 = vpack.c.bf16 %v7054, %v7054
        %v7154 = vpack.c.bf16 %v7061, %v7061
        %v7155 = vld [vmem:[%s7] sm:$0xf]
        %v7156 = vld [vmem:[%s7 + $0x4] sm:$0xf]
        %v7157 = vld [vmem:[%s7 + $0x8] sm:$0xf]
        %v7158 = vld [vmem:[%s7 + $0xc] sm:$0xf]
        %v7159 = vpack.c.bf16 %v7142, %v7142
        %v7160 = vld [vmem:[%s8] sm:$0xf]
        %v7161 = vld [vmem:[%s8 + $0x4] sm:$0xf]
        %v7162 = vld [vmem:[%s8 + $0x8] sm:$0xf]
        %v7163 = vld [vmem:[%s8 + $0xc] sm:$0xf]
        %v7168 = vunpack.c.l.b16 %v7160
        %v7169 = vunpack.c.l.b16 %v7161
        %v7170 = vunpack.c.l.b16 %v7162
        %v7171 = vunpack.c.l.b16 %v7163
        %v7172 = vpack.c.b16 %v7169, %v7168
        %v7173 = vpack.c.b16 %v7171, %v7170
        %v7177 = vsel %vm618, %v7159, 0
        %7179 = vmatprep.subr.bf16.mxu0 0
        %7180 = vmatpush1.bf16.msra.mxu0 %v7172
        %7181 = vmatprep.subr.bf16.mxu0 0
        %7182 = vmatpush1.bf16.msra.mxu0 %v7173
        %7183 = vmatprep.subr.bf16.mxu0 0
        %7184 = vmatpush1.bf16.msra.mxu0 0
        %7185 = vmatprep.subr.bf16.mxu0 0
        %7186 = vmatpush1.bf16.msra.mxu0 0
        %7187 = vmatprep.subr.bf16.mxu0 0
        %7188 = vmatpush1.bf16.msra.mxu0 0
        %7189 = vmatprep.subr.bf16.mxu0 0
        %7190 = vmatpush1.bf16.msra.mxu0 0
        %7191 = vmatprep.subr.bf16.mxu0 0
        %7192 = vmatpush1.bf16.msra.mxu0 0
        %7193 = vmatprep.subr.bf16.mxu0 0
        %7194 = vmatpush1.bf16.msra.mxu0 0
        %7195 = vmatprep.subr.bf16.mxu0 0
        %7196 = vmatpush1.bf16.msra.mxu0 0
        %7197 = vmatprep.subr.bf16.mxu0 0
        %7198 = vmatpush1.bf16.msra.mxu0 0
        %7199 = vmatprep.subr.bf16.mxu0 0
        %7200 = vmatpush1.bf16.msra.mxu0 0
        %7201 = vmatprep.subr.bf16.mxu0 0
        %7202 = vmatpush1.bf16.msra.mxu0 0
        %7203 = vmatprep.subr.bf16.mxu0 0
        %7204 = vmatpush1.bf16.msra.mxu0 0
        %7205 = vmatprep.subr.bf16.mxu0 0
        %7206 = vmatpush1.bf16.msra.mxu0 0
        %7207 = vmatprep.subr.bf16.mxu0 0
        %7208 = vmatpush1.bf16.msra.mxu0 0
        %7209 = vmatprep.subr.bf16.mxu0 0
        %7210 = vmatpush1.bf16.msra.mxu0 0
        %7211 = vmatprep.mubr.bf16.mxu0 0
        %7212 = vmatmul.mubr.bf16.gmra.mrb[0].mxu0 %v7177
        %v7213 = vpop.f32.mrb[0].mxu0
        %v7214 = vadd.f32 0.0, %v7213
        %v7215 = vpop.f32.mrb[0].mxu0
        %v7216 = vpop.f32.mrb[0].mxu0
        %v7217 = vpop.f32.mrb[0].mxu0
        %7218 = vdwg.mxu0
        %v7227 = vunpack.c.l.b16 %v7147
        %v7228 = vunpack.c.l.b16 %v7148
        %v7229 = vunpack.c.l.b16 %v7149
        %v7230 = vunpack.c.l.b16 %v7150
        %v7231 = vunpack.c.l.b16 %v7151
        %v7232 = vunpack.c.l.b16 %v7152
        %v7233 = vunpack.c.l.b16 %v7153
        %v7234 = vunpack.c.l.b16 %v7154
        %v7235 = vsel %vm1564, %v7228, %v7227
        %v7236 = vsel %vm1567, %v7229, %v7235
        %v7237 = vsel %vm1570, %v7230, %v7236
        %v7238 = vsel %vm1573, %v7231, %v7237
        %v7239 = vsel %vm1576, %v7232, %v7238
        %v7240 = vsel %vm1579, %v7233, %v7239
        %v7241 = vsel %vm1582, %v7234, %v7240
        %v7242 = vpack.c.b16 %v7241, %v7241
        %v7247 = vunpack.c.l.b16 %v7155
        %v7248 = vunpack.c.l.b16 %v7156
        %v7249 = vunpack.c.l.b16 %v7157
        %v7250 = vunpack.c.l.b16 %v7158
        %v7251 = vpack.c.b16 %v7248, %v7247
        %v7252 = vpack.c.b16 %v7250, %v7249
        %v7256 = vsel %vm618, %v7242, 0
        %7258 = vmatprep.subr.bf16.mxu0 0
        %7259 = vmatpush1.bf16.msra.mxu0 %v7251
        %7260 = vmatprep.subr.bf16.mxu0 0
        %7261 = vmatpush1.bf16.msra.mxu0 %v7252
        %7262 = vmatprep.subr.bf16.mxu0 0
        %7263 = vmatpush1.bf16.msra.mxu0 0
        %7264 = vmatprep.subr.bf16.mxu0 0
        %7265 = vmatpush1.bf16.msra.mxu0 0
        %7266 = vmatprep.subr.bf16.mxu0 0
        %7267 = vmatpush1.bf16.msra.mxu0 0
        %7268 = vmatprep.subr.bf16.mxu0 0
        %7269 = vmatpush1.bf16.msra.mxu0 0
        %7270 = vmatprep.subr.bf16.mxu0 0
        %7271 = vmatpush1.bf16.msra.mxu0 0
        %7272 = vmatprep.subr.bf16.mxu0 0
        %7273 = vmatpush1.bf16.msra.mxu0 0
        %7274 = vmatprep.subr.bf16.mxu0 0
        %7275 = vmatpush1.bf16.msra.mxu0 0
        %7276 = vmatprep.subr.bf16.mxu0 0
        %7277 = vmatpush1.bf16.msra.mxu0 0
        %7278 = vmatprep.subr.bf16.mxu0 0
        %7279 = vmatpush1.bf16.msra.mxu0 0
        %7280 = vmatprep.subr.bf16.mxu0 0
        %7281 = vmatpush1.bf16.msra.mxu0 0
        %7282 = vmatprep.subr.bf16.mxu0 0
        %7283 = vmatpush1.bf16.msra.mxu0 0
        %7284 = vmatprep.subr.bf16.mxu0 0
        %7285 = vmatpush1.bf16.msra.mxu0 0
        %7286 = vmatprep.subr.bf16.mxu0 0
        %7287 = vmatpush1.bf16.msra.mxu0 0
        %7288 = vmatprep.subr.bf16.mxu0 0
        %7289 = vmatpush1.bf16.msra.mxu0 0
        %7290 = vmatprep.mubr.bf16.mxu0 0
        %7291 = vmatmul.mubr.bf16.gmra.mrb[0].mxu0 %v7256
        %v7292 = vpop.f32.mrb[0].mxu0
        %v7293 = vadd.f32 %v7214, %v7292
        %v7294 = vpop.f32.mrb[0].mxu0
        %v7295 = vpop.f32.mrb[0].mxu0
        %v7296 = vpop.f32.mrb[0].mxu0
        %7297 = vdwg.mxu0
        %v7298 = vld [vmem:[%s9] sm:$0x1]
        %v7300 = vlaneseq
        %v7301 = vshrl.u32 %v7300, 7
        %v7302 = vsub.s32 0, %v7301
        %v7303 = vrot.slane %v7298, %v7302
        %v7305 = vadd.f32 %v7293, %v7303
        %v7306 = vmul.f32 %v7305, %v6192
        %v7308 = vcombine.high %v7306, %v7306
        %v7310 = vunpack.c.l.s4 1966171168
        %v7311 = vunpack.c.0.s8 %v7310
        %v7312 = vlaneseq
        %v7313 = vshrl.u32 %v7312, 7
        %v7314 = vsub.s32 %v7311, %v7313
        %v7315 = vrot.slane %v7306, %v7314
        %v7317 = vunpack.c.l.s4 1966171168
        %v7318 = vunpack.c.0.s8 %v7317
        %v7319 = vlaneseq
        %v7320 = vshrl.u32 %v7319, 7
        %v7321 = vsub.s32 %v7318, %v7320
        %v7322 = vrot.slane %v7308, %v7321
        %v7323 = vcombine.high %v7315, %v7315
        %v7324 = vcombine.high %v7322, %v7322
        %v7326 = vunpack.c.l.s4 1966171168
        %v7327 = vunpack.c.0.s8 %v7326
        %v7328 = vlaneseq
        %v7329 = vshrl.u32 %v7328, 7
        %v7330 = vsub.s32 %v7327, %v7329
        %v7331 = vrot.slane %v7315, %v7330
        %v7333 = vunpack.c.l.s4 1966171168
        %v7334 = vunpack.c.0.s8 %v7333
        %v7335 = vlaneseq
        %v7336 = vshrl.u32 %v7335, 7
        %v7337 = vsub.s32 %v7334, %v7336
        %v7338 = vrot.slane %v7322, %v7337
        %v7340 = vunpack.c.l.s4 1966171168
        %v7341 = vunpack.c.0.s8 %v7340
        %v7342 = vlaneseq
        %v7343 = vshrl.u32 %v7342, 7
        %v7344 = vsub.s32 %v7341, %v7343
        %v7345 = vrot.slane %v7323, %v7344
        %v7347 = vunpack.c.l.s4 1966171168
        %v7348 = vunpack.c.0.s8 %v7347
        %v7349 = vlaneseq
        %v7350 = vshrl.u32 %v7349, 7
        %v7351 = vsub.s32 %v7348, %v7350
        %v7352 = vrot.slane %v7324, %v7351
        %v7353 = vcombine.high %v7331, %v7331
        %v7354 = vcombine.high %v7338, %v7338
        %v7355 = vcombine.high %v7345, %v7345
        %v7356 = vcombine.high %v7352, %v7352
        %v7357 = vlaneseq
        %v7358 = vshrl.u32 %v7357, 7
        %v7359 = vsub.s32 0, %v7358
        %v7360 = vrot.slane %v7331, %v7359
        %v7361 = vlaneseq
        %v7362 = vshrl.u32 %v7361, 7
        %v7363 = vsub.s32 0, %v7362
        %v7364 = vrot.slane %v7345, %v7363
        %v7365 = vlaneseq
        %v7366 = vshrl.u32 %v7365, 7
        %v7367 = vsub.s32 0, %v7366
        %v7368 = vrot.slane %v7353, %v7367
        %v7369 = vlaneseq
        %v7370 = vshrl.u32 %v7369, 7
        %v7371 = vsub.s32 0, %v7370
        %v7372 = vrot.slane %v7355, %v7371
        %v7373 = vlaneseq
        %v7374 = vshrl.u32 %v7373, 7
        %v7375 = vsub.s32 0, %v7374
        %v7376 = vrot.slane %v7338, %v7375
        %v7377 = vlaneseq
        %v7378 = vshrl.u32 %v7377, 7
        %v7379 = vsub.s32 0, %v7378
        %v7380 = vrot.slane %v7352, %v7379
        %v7381 = vlaneseq
        %v7382 = vshrl.u32 %v7381, 7
        %v7383 = vsub.s32 0, %v7382
        %v7384 = vrot.slane %v7354, %v7383
        %v7385 = vlaneseq
        %v7386 = vshrl.u32 %v7385, 7
        %v7387 = vsub.s32 0, %v7386
        %v7388 = vrot.slane %v7356, %v7387
        %v7397 = vmul.f32 %v5987, %v7360
        %v7398 = vmul.f32 %v5988, %v7364
        %v7399 = vmul.f32 %v5989, %v7368
        %v7400 = vmul.f32 %v5990, %v7372
        %v7401 = vmul.f32 %v5991, %v7376
        %v7402 = vmul.f32 %v5992, %v7380
        %v7403 = vmul.f32 %v5993, %v7384
        %v7404 = vmul.f32 %v5994, %v7388
        %v7405 = vsel %vm618, %v7397, 0.0
        %7406 = vadd.xlane.f32.xlu0 %v7405
        %v7407 = vpop.xlane.xlu0 %7406
        %v7408 = vsel %vm618, %v7398, 0.0
        %7409 = vadd.xlane.f32.xlu0 %v7408
        %v7410 = vpop.xlane.xlu0 %7409
        %v7411 = vsel %vm618, %v7399, 0.0
        %7412 = vadd.xlane.f32.xlu0 %v7411
        %v7413 = vpop.xlane.xlu0 %7412
        %v7414 = vsel %vm618, %v7400, 0.0
        %7415 = vadd.xlane.f32.xlu0 %v7414
        %v7416 = vpop.xlane.xlu0 %7415
        %v7417 = vsel %vm618, %v7401, 0.0
        %7418 = vadd.xlane.f32.xlu0 %v7417
        %v7419 = vpop.xlane.xlu0 %7418
        %v7420 = vsel %vm618, %v7402, 0.0
        %7421 = vadd.xlane.f32.xlu0 %v7420
        %v7422 = vpop.xlane.xlu0 %7421
        %v7423 = vsel %vm618, %v7403, 0.0
        %7424 = vadd.xlane.f32.xlu0 %v7423
        %v7425 = vpop.xlane.xlu0 %7424
        %v7426 = vsel %vm618, %v7404, 0.0
        %7427 = vadd.xlane.f32.xlu0 %v7426
        %v7428 = vpop.xlane.xlu0 %7427
        %v7429 = vadd.f32 %v7407, %v6317
        %v7430 = vadd.f32 %v7410, %v6317
        %v7431 = vadd.f32 %v7413, %v6317
        %v7432 = vadd.f32 %v7416, %v6317
        %v7433 = vadd.f32 %v7419, %v6317
        %v7434 = vadd.f32 %v7422, %v6317
        %v7435 = vadd.f32 %v7425, %v6317
        %v7436 = vadd.f32 %v7428, %v6317
        %v7445 = vlaneseq
        %v7446 = vshrl.u32 %v7445, 7
        %v7447 = vsub.s32 %v6335, %v7446
        %v7448 = vrot.slane %v7429, %v7447
        %v7449 = vlaneseq
        %v7450 = vshrl.u32 %v7449, 7
        %v7451 = vsub.s32 %v6335, %v7450
        %v7452 = vrot.slane %v7430, %v7451
        %v7453 = vlaneseq
        %v7454 = vshrl.u32 %v7453, 7
        %v7455 = vsub.s32 %v6335, %v7454
        %v7456 = vrot.slane %v7431, %v7455
        %v7457 = vlaneseq
        %v7458 = vshrl.u32 %v7457, 7
        %v7459 = vsub.s32 %v6335, %v7458
        %v7460 = vrot.slane %v7432, %v7459
        %v7461 = vlaneseq
        %v7462 = vshrl.u32 %v7461, 7
        %v7463 = vsub.s32 %v6335, %v7462
        %v7464 = vrot.slane %v7433, %v7463
        %v7465 = vlaneseq
        %v7466 = vshrl.u32 %v7465, 7
        %v7467 = vsub.s32 %v6335, %v7466
        %v7468 = vrot.slane %v7434, %v7467
        %v7469 = vlaneseq
        %v7470 = vshrl.u32 %v7469, 7
        %v7471 = vsub.s32 %v6335, %v7470
        %v7472 = vrot.slane %v7435, %v7471
        %v7473 = vlaneseq
        %v7474 = vshrl.u32 %v7473, 7
        %v7475 = vsub.s32 %v6335, %v7474
        %v7476 = vrot.slane %v7436, %v7475
        %v7477 = vsel %vm1564, %v7452, %v7448
        %v7478 = vsel %vm1567, %v7456, %v7477
        %v7479 = vsel %vm1570, %v7460, %v7478
        %v7480 = vsel %vm1573, %v7464, %v7479
        %v7481 = vsel %vm1576, %v7468, %v7480
        %v7482 = vsel %vm1579, %v7472, %v7481
        %v7483 = vsel %vm1582, %v7476, %v7482
        %v7485 = vsel %vm1018, %v7483, -1e+20
        %v7486 = vsel %vm6377, %v7485, -inf
        %7487 = vmax.xlane.f32.xlu0 %v7486
        %v7488 = vpop.xlane.xlu0 %7487
        %v7489 = vsub.f32 %v7485, %v7488
        %v7490 = vmul.f32 %v7489, 1.442695
        %v7491 = vpow.pop %v7490
        %v7492 = vsel %vm6377, %v7491, 0.0
        %7493 = vadd.xlane.f32.xlu0 %v7492
        %v7494 = vpop.xlane.xlu0 %7493
        %v7495 = vrcp.pop %v7494
        %v7496 = vmul.f32 %v7491, %v7495
        %v7497 = vlaneseq
        %v7498 = vshrl.u32 %v7497, 7
        %v7499 = vsub.s32 0, %v7498
        %v7500 = vrot.slane %v7496, %v7499
        %7502 = vbcast.lane.b32.xlu0 %v7500, 256
        %v7503 = vpop.permute.xlu0 %7502
        %v7504 = vlaneseq
        %v7505 = vshrl.u32 %v7504, 7
        %v7506 = vsub.s32 1, %v7505
        %v7507 = vrot.slane %v7496, %v7506
        %7509 = vbcast.lane.b32.xlu0 %v7507, 256
        %v7510 = vpop.permute.xlu0 %7509
        %v7511 = vlaneseq
        %v7512 = vshrl.u32 %v7511, 7
        %v7513 = vsub.s32 2, %v7512
        %v7514 = vrot.slane %v7496, %v7513
        %7516 = vbcast.lane.b32.xlu0 %v7514, 256
        %v7517 = vpop.permute.xlu0 %7516
        %v7518 = vlaneseq
        %v7519 = vshrl.u32 %v7518, 7
        %v7520 = vsub.s32 3, %v7519
        %v7521 = vrot.slane %v7496, %v7520
        %7523 = vbcast.lane.b32.xlu0 %v7521, 256
        %v7524 = vpop.permute.xlu0 %7523
        %v7525 = vlaneseq
        %v7526 = vshrl.u32 %v7525, 7
        %v7527 = vsub.s32 4, %v7526
        %v7528 = vrot.slane %v7496, %v7527
        %7530 = vbcast.lane.b32.xlu0 %v7528, 256
        %v7531 = vpop.permute.xlu0 %7530
        %v7532 = vlaneseq
        %v7533 = vshrl.u32 %v7532, 7
        %v7534 = vsub.s32 5, %v7533
        %v7535 = vrot.slane %v7496, %v7534
        %7537 = vbcast.lane.b32.xlu0 %v7535, 256
        %v7538 = vpop.permute.xlu0 %7537
        %v7539 = vlaneseq
        %v7540 = vshrl.u32 %v7539, 7
        %v7541 = vsub.s32 6, %v7540
        %v7542 = vrot.slane %v7496, %v7541
        %7544 = vbcast.lane.b32.xlu0 %v7542, 256
        %v7545 = vpop.permute.xlu0 %7544
        %v7546 = vlaneseq
        %v7547 = vshrl.u32 %v7546, 7
        %v7548 = vsub.s32 7, %v7547
        %v7549 = vrot.slane %v7496, %v7548
        %7551 = vbcast.lane.b32.xlu0 %v7549, 256
        %v7552 = vpop.permute.xlu0 %7551
        %v7553 = vmul.f32 %v7503, %v5987
        %v7554 = vmul.f32 %v7510, %v5988
        %v7555 = vmul.f32 %v7517, %v5989
        %v7556 = vmul.f32 %v7524, %v5990
        %v7557 = vmul.f32 %v7531, %v5991
        %v7558 = vmul.f32 %v7538, %v5992
        %v7559 = vmul.f32 %v7545, %v5993
        %v7560 = vmul.f32 %v7552, %v5994
        %v7561 = vsel %vm618, %v7553, 0.0
        %v7562 = vrot.slane %v7561, 4
        %v7563 = vadd.f32 %v7561, %v7562
        %v7564 = vrot.slane %v7563, 2
        %v7565 = vadd.f32 %v7563, %v7564
        %v7566 = vrot.slane %v7565, 1
        %v7567 = vadd.f32 %v7565, %v7566
        %v7568 = vsel %vm618, %v7554, 0.0
        %v7569 = vrot.slane %v7568, 4
        %v7570 = vadd.f32 %v7568, %v7569
        %v7571 = vrot.slane %v7570, 2
        %v7572 = vadd.f32 %v7570, %v7571
        %v7573 = vrot.slane %v7572, 1
        %v7574 = vadd.f32 %v7572, %v7573
        %v7575 = vsel %vm618, %v7555, 0.0
        %v7576 = vrot.slane %v7575, 4
        %v7577 = vadd.f32 %v7575, %v7576
        %v7578 = vrot.slane %v7577, 2
        %v7579 = vadd.f32 %v7577, %v7578
        %v7580 = vrot.slane %v7579, 1
        %v7581 = vadd.f32 %v7579, %v7580
        %v7582 = vsel %vm618, %v7556, 0.0
        %v7583 = vrot.slane %v7582, 4
        %v7584 = vadd.f32 %v7582, %v7583
        %v7585 = vrot.slane %v7584, 2
        %v7586 = vadd.f32 %v7584, %v7585
        %v7587 = vrot.slane %v7586, 1
        %v7588 = vadd.f32 %v7586, %v7587
        %v7589 = vsel %vm618, %v7557, 0.0
        %v7590 = vrot.slane %v7589, 4
        %v7591 = vadd.f32 %v7589, %v7590
        %v7592 = vrot.slane %v7591, 2
        %v7593 = vadd.f32 %v7591, %v7592
        %v7594 = vrot.slane %v7593, 1
        %v7595 = vadd.f32 %v7593, %v7594
        %v7596 = vsel %vm618, %v7558, 0.0
        %v7597 = vrot.slane %v7596, 4
        %v7598 = vadd.f32 %v7596, %v7597
        %v7599 = vrot.slane %v7598, 2
        %v7600 = vadd.f32 %v7598, %v7599
        %v7601 = vrot.slane %v7600, 1
        %v7602 = vadd.f32 %v7600, %v7601
        %v7603 = vsel %vm618, %v7559, 0.0
        %v7604 = vrot.slane %v7603, 4
        %v7605 = vadd.f32 %v7603, %v7604
        %v7606 = vrot.slane %v7605, 2
        %v7607 = vadd.f32 %v7605, %v7606
        %v7608 = vrot.slane %v7607, 1
        %v7609 = vadd.f32 %v7607, %v7608
        %v7610 = vsel %vm618, %v7560, 0.0
        %v7611 = vrot.slane %v7610, 4
        %v7612 = vadd.f32 %v7610, %v7611
        %v7613 = vrot.slane %v7612, 2
        %v7614 = vadd.f32 %v7612, %v7613
        %v7615 = vrot.slane %v7614, 1
        %v7616 = vadd.f32 %v7614, %v7615
        %v7625 = vsel %vm1564, %v7574, %v7567
        %v7626 = vsel %vm1567, %v7581, %v7625
        %v7627 = vsel %vm1570, %v7588, %v7626
        %v7628 = vsel %vm1573, %v7595, %v7627
        %v7629 = vsel %vm1576, %v7602, %v7628
        %v7630 = vsel %vm1579, %v7609, %v7629
        %v7631 = vsel %vm1582, %v7616, %v7630
        %s7633 = scalar_lea.vmem %s547, 16 [#allocation16]
        %7634 = vst.msk [vmem:[%s7633] sm:$0xff] %vm618, %v7631
        %s7635 = scalar_lea.vmem %s560, 16 [#allocation19]
        %7636 = vst.msk [vmem:[%s7635] sm:$0xff] %vm6377, %v7496
        %s7637 = sand.u32 %s308, 1
        %s7638 = scalar_lea.sflag [#allocation10], %s7637
        %s7639 = sand.u32 %s308, 1
        %s7640 = smul.addr %s7639, 24
        %s7641 = scalar_lea.vmem [#allocation16], %s7640
        %s7642 = sand.u32 %s334, 1
        %s7643 = scalar_lea.sflag [#allocation18], %s7642
        %s7644 = sand.u32 %s334, 1
        %s7645 = smul.addr %s7644, 8
        %s7646 = scalar_lea.vmem [#allocation17], %s7645
        %s7647 = sand.u32 %s360, 1
        %s7648 = sand.u32 %s360, 1
        %s7649 = smul.addr %s7648, 24
        %s7650 = scalar_lea.vmem [#allocation19], %s7649
        // Predicated region
        $region85: #{tpu_custom_call.1} parent=67 // pred_check
          %p7651 = pneg %p318
        $region86: #{tpu_custom_call.1} parent=67 // pred_check_branch
          %7653 = sbr.rel (%p7651) target = $region88
        $region87: #{tpu_custom_call.1} parent=67 // pred_region
          %s7655 = ssub.s32 384, 384
          %7656 = vsyncadd %s7638, %s7655
          %s7657 = smul.addr %s38, 128
          %s7658 = scalar_lea.hbm %s12, %s7657
          %s7659 = sshll.u32 %s7641, 4
          %s7660 = int_to_ptr.vmem [resolvable:$true] %s7659
          %7665 = dma.vmem_to_hbm [thread:$0]  %s7660, 384, %s7658, %s7638, 128, 256, 8
        $region88: #{tpu_custom_call.1} parent=67 // pred_fallthru
          _
        // Predicated region
        $region89: #{tpu_custom_call.1} parent=67 // pred_check
          %p7666 = pneg %p344
        $region90: #{tpu_custom_call.1} parent=67 // pred_check_branch
          %7668 = sbr.rel (%p7666) target = $region92
        $region91: #{tpu_custom_call.1} parent=67 // pred_region
          %s7670 = ssub.s32 128, 128
          %7671 = vsyncadd %s7643, %s7670
          %s7672 = smul.addr %s38, 128
          %s7673 = scalar_lea.hbm %s13, %s7672
          %s7675 = sshll.u32 %s7646, 4
          %s7676 = int_to_ptr.vmem [resolvable:$true] %s7675
          %7678 = dma.vmem_to_hbm [thread:$0]  %s7676, 128, %s7673, %s7643
        $region92: #{tpu_custom_call.1} parent=67 // pred_fallthru
          _
        // Predicated region
        $region93: #{tpu_custom_call.1} parent=67 // pred_check
          %p7679 = pneg %p370
        $region94: #{tpu_custom_call.1} parent=67 // pred_check_branch
          %7681 = sbr.rel (%p7679) target = $region96
        $region95: #{tpu_custom_call.1} parent=67 // pred_region
          %s7682 = smul.addr %s38, 8
          %s7683 = scalar_lea.vmem %s14, %s7682
          // Predicated region
          $region97: #{tpu_custom_call.1} parent=95 // pred_check
            _
          $region98: #{tpu_custom_call.1} parent=95 // pred_check_branch
            %7685 = sbr.rel (0) target = $region100
          $region99: #{tpu_custom_call.1} parent=95 // pred_region
            // Predicated region
            $region101: #{tpu_custom_call.1} parent=99 // pred_check
              _
            $region102: #{tpu_custom_call.1} parent=99 // pred_check_branch
              %7687 = sbr.rel (0) target = $region104
            $region103: #{tpu_custom_call.1} parent=99 // pred_region
              // Predicated region
              $region116: #{tpu_custom_call.1} parent=103 // pred_check
                _
              $region117: #{tpu_custom_call.1} parent=103 // pred_check_branch
                %7706 = sbr.rel (0) target = $region119
              $region118: #{tpu_custom_call.1} parent=103 // pred_region
                loop: start=0, step=1, limit=1
                $region120: #{tpu_custom_call.1} parent=118 // loop_pre_header
                  _
                $region121: #{tpu_custom_call.1} parent=118 // loop_header
                  %s7708 = sphi 0, %s7712
                  %p7709 = scmp.ge.s32.totalorder %s7708, 1
                  %s7713 = sphi %s7650, %s7650
                  %s7714 = sphi %s7683, %s7683
                $region122: #{tpu_custom_call.1} parent=118 // loop_header_branch
                  %7711 = sbr.rel (%p7709) target = $region126
                $region123: #{tpu_custom_call.1} parent=118 // loop_body
                  %v7715 = vld [vmem:[%s7713] sm:$0xff]
                  %7716 = vst [vmem:[%s7714] sm:$0xff] %v7715
                  %v7717 = vld [vmem:[%s7713 + $0x8] sm:$0xff]
                  %7718 = vst [vmem:[%s7714 + $0x10] sm:$0xff] %v7717
                  %v7719 = vld [vmem:[%s7713 + $0x10] sm:$0xff]
                  %7720 = vst [vmem:[%s7714 + $0x20] sm:$0xff] %v7719
                $region124: #{tpu_custom_call.1} parent=118 // loop_footer
                  %s7712 = sadd.s32 1, %s7708
                $region125: #{tpu_custom_call.1} parent=118 // loop_footer_branch
                  %7707 = sbr.rel target = $region121
                $region126: #{tpu_custom_call.1} parent=118 // loop_exit
                  _
              $region119: #{tpu_custom_call.1} parent=103 // pred_fallthru
                _
              // Predicated region
              $region127: #{tpu_custom_call.1} parent=103 // pred_check
                _
              $region128: #{tpu_custom_call.1} parent=103 // pred_check_branch
                %7722 = sbr.rel target = $region130
              $region129: #{tpu_custom_call.1} parent=103 // pred_region
                _
              $region130: #{tpu_custom_call.1} parent=103 // pred_fallthru
                _
            $region104: #{tpu_custom_call.1} parent=99 // pred_fallthru
              _
            // Predicated region
            $region105: #{tpu_custom_call.1} parent=99 // pred_check
              _
            $region106: #{tpu_custom_call.1} parent=99 // pred_check_branch
              %7689 = sbr.rel target = $region108
            $region107: #{tpu_custom_call.1} parent=99 // pred_region
              loop: start=0, step=1, limit=1
              $region109: #{tpu_custom_call.1} parent=107 // loop_pre_header
                _
              $region110: #{tpu_custom_call.1} parent=107 // loop_header
                %s7692 = sphi 0, %s7696
                %p7693 = scmp.ge.s32.totalorder %s7692, 1
                %s7697 = sphi %s7650, %s7650
                %s7698 = sphi %s7683, %s7683
              $region111: #{tpu_custom_call.1} parent=107 // loop_header_branch
                %7695 = sbr.rel (%p7693) target = $region115
              $region112: #{tpu_custom_call.1} parent=107 // loop_body
                %v7699 = vld [vmem:[%s7697] sm:$0xff]
                %7700 = vst [vmem:[%s7698] sm:$0xff] %v7699
                %v7701 = vld [vmem:[%s7697 + $0x8] sm:$0xff]
                %7702 = vst [vmem:[%s7698 + $0x10] sm:$0xff] %v7701
                %v7703 = vld [vmem:[%s7697 + $0x10] sm:$0xff]
                %7704 = vst [vmem:[%s7698 + $0x20] sm:$0xff] %v7703
              $region113: #{tpu_custom_call.1} parent=107 // loop_footer
                %s7696 = sadd.s32 1, %s7692
              $region114: #{tpu_custom_call.1} parent=107 // loop_footer_branch
                %7691 = sbr.rel target = $region110
              $region115: #{tpu_custom_call.1} parent=107 // loop_exit
                _
            $region108: #{tpu_custom_call.1} parent=99 // pred_fallthru
              _
          $region100: #{tpu_custom_call.1} parent=95 // pred_fallthru
            _
          %7723 = vnop
        $region96: #{tpu_custom_call.1} parent=67 // pred_fallthru
          _
      $region68: #{tpu_custom_call.1} parent=5 // pred_fallthru
        _
      %p7724 = scmp.le.s32.totalorder 2, %s33
      // Predicated region
      $region131: #{tpu_custom_call.1} parent=5 // pred_check
        %p7725 = pneg %p7724
      $region132: #{tpu_custom_call.1} parent=5 // pred_check_branch
        %7727 = sbr.rel (%p7725) target = $region134
      $region133: #{tpu_custom_call.1} parent=5 // pred_region
        %s7728 = ssub.s32 %s33, 2
        // Predicated region
        $region135: #{tpu_custom_call.1} parent=133 // pred_check
          %p7729 = pneg %p324
        $region136: #{tpu_custom_call.1} parent=133 // pred_check_branch
          %7731 = sbr.rel (%p7729) target = $region138
        $region137: #{tpu_custom_call.1} parent=133 // pred_region
          %s7732 = sand.u32 %s309, 1
          %s7733 = scalar_lea.sflag [#allocation10], %s7732
          %s7734 = sand.u32 %s309, 1
          %s7735 = smul.addr %s7734, 24
          %s7736 = scalar_lea.vmem [#allocation16], %s7735
          %7737 = dma.done %s7733, 384
        $region138: #{tpu_custom_call.1} parent=133 // pred_fallthru
          _
        // Predicated region
        $region139: #{tpu_custom_call.1} parent=133 // pred_check
          %p7738 = pneg %p350
        $region140: #{tpu_custom_call.1} parent=133 // pred_check_branch
          %7740 = sbr.rel (%p7738) target = $region142
        $region141: #{tpu_custom_call.1} parent=133 // pred_region
          %s7741 = sand.u32 %s335, 1
          %s7742 = scalar_lea.sflag [#allocation18], %s7741
          %s7743 = sand.u32 %s335, 1
          %s7744 = smul.addr %s7743, 8
          %s7745 = scalar_lea.vmem [#allocation17], %s7744
          %7746 = dma.done %s7742, 128
        $region142: #{tpu_custom_call.1} parent=133 // pred_fallthru
          _
        // Predicated region
        $region143: #{tpu_custom_call.1} parent=133 // pred_check
          %p7747 = pneg %p376
        $region144: #{tpu_custom_call.1} parent=133 // pred_check_branch
          %7749 = sbr.rel (%p7747) target = $region146
        $region145: #{tpu_custom_call.1} parent=133 // pred_region
          %s7750 = sand.u32 %s361, 1
          %s7751 = sand.u32 %s361, 1
          %s7752 = smul.addr %s7751, 24
          %s7753 = scalar_lea.vmem [#allocation19], %s7752
        $region146: #{tpu_custom_call.1} parent=133 // pred_fallthru
          _
      $region134: #{tpu_custom_call.1} parent=5 // pred_fallthru
        _
    $region6: #{tpu_custom_call.1} parent=1 // loop_footer
      %s37 = sadd.s32 1, %s33
    $region7: #{tpu_custom_call.1} parent=1 // loop_footer_branch
      %32 = sbr.rel target = $region3
    $region8: #{tpu_custom_call.1} parent=1 // loop_exit
      _
    %7754 = vsyncpa [#allocation9], 1
    %s7755 = scalar_lea.sflag [#allocation9], 1
    %7756 = vsyncpa %s7755, 1
    %7757 = vsyncpa [#allocation12], 1
    %7758 = vsyncpa [#allocation15], 1
    %7759 = vsyncpa [#allocation10], 1
    %s7760 = scalar_lea.sflag [#allocation10], 1
    %7761 = vsyncpa %s7760, 1
    %7762 = vsyncpa [#allocation18], 1
    %s7763 = scalar_lea.sflag [#allocation18], 1
    %7764 = vsyncpa %s7763, 1

</llo_original>
